<compile_context>
chip_gen: v6e
topology: v6e:2x2x1
jax: 0.10.0
libtpu: 0.0.40
codegen_flags: <defaults>
</compile_context>

<pallas_src>
import functools

import jax
import jax.numpy as jnp
from jax.experimental import pallas as pl
from jax.experimental.pallas import tpu as pltpu

LANE = 128                       # TPU lane width: keep channels lane-dense.
COMPUTE_DTYPE = jnp.bfloat16     # MXU-native input dtype; accumulation is f32.
_VMEM_LIMIT = 48 * 1024 * 1024   # explicit scoped-VMEM budget (< v7x 64 MiB).


def _round_up(x, m):
    return (x + m - 1) // m * m


# --------------------------- fused CSP block kernel ------------------------- #

def _csp_fused_kernel(apply_conv, *refs):
    """One grid step = one image.  All intermediates stay resident in VMEM."""
    if apply_conv:
        (x_ref, wc_ref, bc_ref, w1_ref, b1_ref, w2_ref, b2_ref,
         wa_ref, wb_ref, bm_ref, o_ref, pad_ref) = refs
    else:
        (x_ref, w1_ref, b1_ref, w2_ref, b2_ref,
         wa_ref, wb_ref, bm_ref, o_ref, pad_ref) = refs
        wc_ref = bc_ref = None

    _, H, W, C = x_ref.shape
    N = o_ref.shape[-1]
    HW = H * W

    x = x_ref[0].reshape(HW, C)

    # self.conv (1x1). On the downsample path x is already the conv output.
    if apply_conv:
        x1_f32 = jnp.dot(x, wc_ref[...],
                         preferred_element_type=jnp.float32) + bc_ref[...]
    else:
        x1_f32 = x.astype(jnp.float32)
    x1 = x1_f32.astype(x_ref.dtype)

    # 1-pixel halo buffer: zero it (halo stays zero, interior is overwritten).
    pad_ref[...] = jnp.zeros_like(pad_ref)

    def conv3x3(w_ref, b_ref):
        acc = jnp.zeros((HW, C), jnp.float32)
        for ky in range(3):
            for kx in range(3):
                win = pad_ref[ky:ky + H, kx:kx + W, :].reshape(HW, C)
                acc = acc + jnp.dot(win, w_ref[ky * 3 + kx],
                                    preferred_element_type=jnp.float32)
        return acc + b_ref[...]

    # bottleneck conv 1 (3x3, stride 1, pad 1)
    pad_ref[1:1 + H, 1:1 + W, :] = x1.reshape(H, W, C)
    h = conv3x3(w1_ref, b1_ref).astype(x_ref.dtype)

    # bottleneck conv 2 (3x3, stride 1, pad 1) + identity residual
    pad_ref[1:1 + H, 1:1 + W, :] = h.reshape(H, W, C)
    xb = (conv3x3(w2_ref, b2_ref) + x1_f32).astype(x_ref.dtype)

    # torch.cat([x1, xb], dim=C) + merge 1x1 conv, fused via split weight:
    # out = x1 @ Wa + xb @ Wb + bm  (the 2C concat never exists in memory).
    out = (jnp.dot(x1, wa_ref[...], preferred_element_type=jnp.float32)
           + jnp.dot(xb, wb_ref[...], preferred_element_type=jnp.float32)
           + bm_ref[...])
    o_ref[0] = out.reshape(H, W, N).astype(o_ref.dtype)


def csp_block_fused(x, prep, apply_conv):
    """Everything except the optional stride-2 conv, in a single pallas_call."""
    B, H, W, C = x.shape
    N = prep["merge_b"].shape[1]

    full2 = lambda b: (0, 0)
    full3 = lambda b: (0, 0, 0)

    in_specs = [pl.BlockSpec((1, H, W, C), lambda b: (b, 0, 0, 0))]
    args = [x]
    if apply_conv:
        in_specs += [pl.BlockSpec((C, C), full2), pl.BlockSpec((1, C), full2)]
        args += [prep["conv_w"], prep["conv_b"]]
    in_specs += [
        pl.BlockSpec((9, C, C), full3), pl.BlockSpec((1, C), full2),
        pl.BlockSpec((9, C, C), full3), pl.BlockSpec((1, C), full2),
        pl.BlockSpec((C, N), full2), pl.BlockSpec((C, N), full2),
        pl.BlockSpec((1, N), full2),
    ]
    args += [prep["bneck_w1"], prep["bneck_b1"],
             prep["bneck_w2"], prep["bneck_b2"],
             prep["merge_wa"], prep["merge_wb"], prep["merge_b"]]

    return pl.pallas_call(
        functools.partial(_csp_fused_kernel, apply_conv),
        out_shape=jax.ShapeDtypeStruct((B, H, W, N), jnp.float32),
        grid=(B,),
        in_specs=in_specs,
        out_specs=pl.BlockSpec((1, H, W, N), lambda b: (b, 0, 0, 0)),
        scratch_shapes=[pltpu.VMEM((H + 2, W + 2, C), x.dtype)],
        compiler_params=pltpu.CompilerParams(
            dimension_semantics=("parallel",),
            vmem_limit_bytes=_VMEM_LIMIT),
    )(*args)


# ----------------- tiled matmul (downsample im2col path only) --------------- #

def _mm_bias_kernel(x_ref, w_ref, b_ref, o_ref, acc_ref):
    """out[i,j] = sum_k x[i,k] @ w[k,j] + b[j]   (K tiled on grid axis 2)."""
    @pl.when(pl.program_id(2) == 0)
    def _():
        acc_ref[...] = jnp.zeros_like(acc_ref)

    acc_ref[...] += jnp.dot(x_ref[...], w_ref[...],
                            preferred_element_type=jnp.float32)

    @pl.when(pl.program_id(2) == pl.num_programs(2) - 1)
    def _():
        o_ref[...] = (acc_ref[...] + b_ref[...]).astype(o_ref.dtype)


def _pick_tm(M):
    if M >= 1024:
        return 512
    return max(8, _round_up(pl.cdiv(M, 2), 8))


def _pick_tk(K):
    for t in (512, 384, 256, 128):
        if K % t == 0:
            return t
    return K


def _pick_tn(N):
    if N % 256 == 0:
        return 256
    return 128 if N % 128 == 0 else N


def matmul_bias(x, w, bias, out_dtype):
    """out = x @ w + bias.  K, N are lane-padded multiples of 128."""
    M, K = x.shape
    N = w.shape[1]

    tm, tk, tn = _pick_tm(M), _pick_tk(K), _pick_tn(N)
    m_pad = _round_up(M, tm)
    if m_pad != M:
        x = jnp.pad(x, ((0, m_pad - M), (0, 0)))
    grid = (m_pad // tm, N // tn, K // tk)

    out = pl.pallas_call(
        _mm_bias_kernel,
        out_shape=jax.ShapeDtypeStruct((m_pad, N), out_dtype),
        grid=grid,
        in_specs=[pl.BlockSpec((tm, tk), lambda i, j, k: (i, k)),
                  pl.BlockSpec((tk, tn), lambda i, j, k: (k, j)),
                  pl.BlockSpec((1, tn), lambda i, j, k: (0, j))],
        out_specs=pl.BlockSpec((tm, tn), lambda i, j, k: (i, j)),
        scratch_shapes=[pltpu.VMEM((tm, tn), jnp.float32)],
        compiler_params=pltpu.CompilerParams(
            dimension_semantics=("parallel", "parallel", "arbitrary"),
            vmem_limit_bytes=_VMEM_LIMIT),
    )(x, w, bias)
    return out[:M] if m_pad != M else out


def conv3x3_s2_im2col(x, w_taps, b, out_dtype):
    """Downsample 3x3 stride-2 conv via (small) XLA im2col + Pallas matmul.

    Only used on the downsample path (not exercised by the demo).
    TODO(synk): fuse the stride-2 halo gather into the Pallas kernel as well.
    """
    B, H, W, C = x.shape
    N = w_taps.shape[-1]
    Ho = (H + 2 - 3) // 2 + 1
    Wo = (W + 2 - 3) // 2 + 1
    xp = jnp.pad(x, ((0, 0), (1, 1), (1, 1), (0, 0)))
    cols = [xp[:, ky:ky + 2 * Ho:2, kx:kx + 2 * Wo:2, :]
            for ky in range(3) for kx in range(3)]
    patches = jnp.concatenate(cols, axis=-1).reshape(B * Ho * Wo, 9 * C)
    out = matmul_bias(patches, w_taps.reshape(9 * C, N), b, out_dtype)
    return out.reshape(B, Ho, Wo, N)


# ------------------------------ parameters ---------------------------------- #

def init_params(key, in_channels, out_channels, downsample=False):
    """Deterministic PyTorch-like (uniform +-1/sqrt(fan_in)) conv init,
    in PyTorch (Cout, Cin, kh, kw) layout."""
    ks = jax.random.split(key, 8)

    def conv_init(kw_key, kb_key, cout, cin, k):
        fan_in = cin * k * k
        bound = 1.0 / jnp.sqrt(fan_in)
        w = jax.random.uniform(kw_key, (cout, cin, k, k), jnp.float32, -bound, bound)
        b = jax.random.uniform(kb_key, (cout,), jnp.float32, -bound, bound)
        return w, b

    k_conv = 3 if downsample else 1
    conv_w, conv_b = conv_init(ks[0], ks[1], in_channels, in_channels, k_conv)
    b1_w, b1_b = conv_init(ks[2], ks[3], in_channels, in_channels, 3)
    b2_w, b2_b = conv_init(ks[4], ks[5], in_channels, in_channels, 3)
    merge_w, merge_b = conv_init(ks[6], ks[7], out_channels, in_channels * 2, 1)
    return dict(conv_w=conv_w, conv_b=conv_b,
                bneck_w1=b1_w, bneck_b1=b1_b,
                bneck_w2=b2_w, bneck_b2=b2_b,
                merge_w=merge_w, merge_b=merge_b)


def _prep_conv_w(w, cin_pad, cout_pad):
    """(Cout, Cin, kh, kw) -> (kh*kw, cin_pad, cout_pad) bf16, zero padded."""
    cout, cin, kh, kw = w.shape
    wt = jnp.transpose(w, (2, 3, 1, 0)).reshape(kh * kw, cin, cout)
    wt = jnp.pad(wt, ((0, 0), (0, cin_pad - cin), (0, cout_pad - cout)))
    return wt.astype(COMPUTE_DTYPE)


def _prep_bias(b, cout_pad):
    return jnp.pad(b, (0, cout_pad - b.shape[0])).reshape(1, cout_pad).astype(jnp.float32)


def prepare_params(params, in_channels, out_channels, downsample=False):
    """One-time relayout of PyTorch-layout weights into lane-dense, K-major
    kernel-ready matrices (hoisted out of the per-forward path)."""
    cp = _round_up(in_channels, LANE)
    np_ = _round_up(out_channels, LANE)

    conv_w = _prep_conv_w(params["conv_w"], cp, cp)
    if not downsample:
        conv_w = conv_w[0]                        # 1x1: single (cp, cp) matrix
    merge_w = params["merge_w"]                   # (out, 2*in, 1, 1)
    merge_wa = _prep_conv_w(merge_w[:, :in_channels], cp, np_)[0]
    merge_wb = _prep_conv_w(merge_w[:, in_channels:], cp, np_)[0]
    return dict(
        conv_w=conv_w,
        conv_b=_prep_bias(params["conv_b"], cp),
        bneck_w1=_prep_conv_w(params["bneck_w1"], cp, cp),
        bneck_b1=_prep_bias(params["bneck_b1"], cp),
        bneck_w2=_prep_conv_w(params["bneck_w2"], cp, cp),
        bneck_b2=_prep_bias(params["bneck_b2"], cp),
        merge_wa=merge_wa,
        merge_wb=merge_wb,
        merge_b=_prep_bias(params["merge_b"], np_),
    )


# ------------------------------- forward ------------------------------------ #

@functools.partial(jax.jit, static_argnames=("out_channels", "downsample"))
def rtmdet_csp_block(x_nchw, prep, out_channels, downsample=False):
    """RTMDetCSPBlock forward: NCHW in, NCHW out (channels-last internally)."""
    B, cin, H, W = x_nchw.shape
    cp = prep["conv_b"].shape[1]                  # lane-padded channel count

    # layout: NCHW -> NHWC, zero-pad channels to a multiple of 128, cast bf16
    x = jnp.transpose(x_nchw, (0, 2, 3, 1))
    x = jnp.pad(x, ((0, 0), (0, 0), (0, 0), (0, cp - cin))).astype(COMPUTE_DTYPE)

    if downsample:
        # stride-2 3x3 conv, then fused bottleneck + concat + merge.
        x1 = conv3x3_s2_im2col(x, prep["conv_w"], prep["conv_b"], COMPUTE_DTYPE)
        out = csp_block_fused(x1, prep, apply_conv=False)
    else:
        # fully fused: 1x1 conv + bottleneck + concat + merge in one kernel.
        out = csp_block_fused(x, prep, apply_conv=True)

    out = out[..., :out_channels]
    return jnp.transpose(out, (0, 3, 1, 2))


# --------------------------------- driver ------------------------------------ #

if __name__ == "__main__":
    key = jax.random.PRNGKey(0)
    k_x, k_p = jax.random.split(key)

    B, C_in, H, W = 2, 4, 16, 16
    C_out = 8
    downsample = False

    x = jax.random.normal(k_x, (B, C_in, H, W), jnp.float32)
    params = init_params(k_p, C_in, C_out, downsample=downsample)
    prep = prepare_params(params, C_in, C_out, downsample=downsample)

    out = rtmdet_csp_block(x, prep, out_channels=C_out, downsample=downsample)
    out = jax.block_until_ready(out)

    assert out.shape == (B, C_out, H, W), out.shape
    assert out.dtype == jnp.float32
    assert bool(jnp.isfinite(out).all())
    print("KERNEL_OK")
</pallas_src>

<mosaic_0001>
module attributes {stable_mosaic.version = 11 : i64} {
  func.func @_csp_fused_kernel(%arg0: i32, %arg1: memref<1x16x16x128xbf16, #tpu.memory_space<vmem>>, %arg2: memref<128x128xbf16, #tpu.memory_space<vmem>>, %arg3: memref<1x128xf32, #tpu.memory_space<vmem>>, %arg4: memref<9x128x128xbf16, #tpu.memory_space<vmem>>, %arg5: memref<1x128xf32, #tpu.memory_space<vmem>>, %arg6: memref<9x128x128xbf16, #tpu.memory_space<vmem>>, %arg7: memref<1x128xf32, #tpu.memory_space<vmem>>, %arg8: memref<128x128xbf16, #tpu.memory_space<vmem>>, %arg9: memref<128x128xbf16, #tpu.memory_space<vmem>>, %arg10: memref<1x128xf32, #tpu.memory_space<vmem>>, %arg11: memref<1x16x16x128xf32, #tpu.memory_space<vmem>>, %arg12: memref<18x18x128xbf16, #tpu.memory_space<vmem>>) attributes {dimension_semantics = [#tpu.dimension_semantics<parallel>], iteration_bounds = array<i64: 2>, scalar_prefetch = 0 : i64, scratch_operands = 1 : i64, tpu.core_type = #tpu.core_type<tc>, window_params = [{transform_indices = @transform_0, window_bounds = array<i64: 1, 16, 16, 128>}, {pipeline_mode = #tpu.pipeline_mode<synchronous>, transform_indices = @transform_1, window_bounds = array<i64: 128, 128>}, {pipeline_mode = #tpu.pipeline_mode<synchronous>, transform_indices = @transform_2, window_bounds = array<i64: 1, 128>}, {pipeline_mode = #tpu.pipeline_mode<synchronous>, transform_indices = @transform_3, window_bounds = array<i64: 9, 128, 128>}, {pipeline_mode = #tpu.pipeline_mode<synchronous>, transform_indices = @transform_4, window_bounds = array<i64: 1, 128>}, {pipeline_mode = #tpu.pipeline_mode<synchronous>, transform_indices = @transform_5, window_bounds = array<i64: 9, 128, 128>}, {pipeline_mode = #tpu.pipeline_mode<synchronous>, transform_indices = @transform_6, window_bounds = array<i64: 1, 128>}, {pipeline_mode = #tpu.pipeline_mode<synchronous>, transform_indices = @transform_7, window_bounds = array<i64: 128, 128>}, {pipeline_mode = #tpu.pipeline_mode<synchronous>, transform_indices = @transform_8, window_bounds = array<i64: 128, 128>}, {pipeline_mode = #tpu.pipeline_mode<synchronous>, transform_indices = @transform_9, window_bounds = array<i64: 1, 128>}, {transform_indices = @transform_10, window_bounds = array<i64: 1, 16, 16, 128>}]} {
    %c0 = arith.constant 0 : index
    %c0_0 = arith.constant 0 : index
    %c0_1 = arith.constant 0 : index
    %c0_2 = arith.constant 0 : index
    %0 = vector.load %arg1[%c0, %c0_0, %c0_1, %c0_2] : memref<1x16x16x128xbf16, #tpu.memory_space<vmem>>, vector<1x16x16x128xbf16>
    %1 = vector.shape_cast %0 : vector<1x16x16x128xbf16> to vector<16x16x128xbf16>
    %2 = vector.shape_cast %1 : vector<16x16x128xbf16> to vector<256x128xbf16>
    %c0_3 = arith.constant 0 : index
    %c0_4 = arith.constant 0 : index
    %3 = vector.load %arg2[%c0_3, %c0_4] : memref<128x128xbf16, #tpu.memory_space<vmem>>, vector<128x128xbf16>
    %cst = arith.constant dense<0.000000e+00> : vector<256x128xf32>
    %4 = tpu.matmul %2, %3, %cst {dimension_numbers = #tpu.dot_dimension_numbers<[1], [0], [0], [1], [0, 0, 1, 1], [], []>} : vector<256x128xbf16>, vector<128x128xbf16>, vector<256x128xf32> -> vector<256x128xf32>
    %c0_5 = arith.constant 0 : index
    %c0_6 = arith.constant 0 : index
    %5 = vector.load %arg3[%c0_5, %c0_6] : memref<1x128xf32, #tpu.memory_space<vmem>>, vector<1x128xf32>
    %6 = vector.broadcast %5 : vector<1x128xf32> to vector<256x128xf32>
    %7 = arith.addf %4, %6 : vector<256x128xf32>
    %8 = arith.truncf %7 : vector<256x128xf32> to vector<256x128xbf16>
    %cst_7 = arith.constant 0.000000e+00 : bf16
    %9 = vector.broadcast %cst_7 : bf16 to vector<18x18x128xbf16>
    %c0_8 = arith.constant 0 : index
    %c0_9 = arith.constant 0 : index
    %c0_10 = arith.constant 0 : index
    %10 = vector.load %arg12[%c0_8, %c0_9, %c0_10] : memref<18x18x128xbf16, #tpu.memory_space<vmem>>, vector<18x18x128xbf16>
    tpu.vector_store %arg12[%c0_8, %c0_9, %c0_10], %9 {strides = array<i32>} : memref<18x18x128xbf16, #tpu.memory_space<vmem>>, vector<18x18x128xbf16>,
    %11 = vector.shape_cast %8 : vector<256x128xbf16> to vector<16x16x128xbf16>
    %c1 = arith.constant 1 : index
    %c1_11 = arith.constant 1 : index
    %c0_12 = arith.constant 0 : index
    %12 = vector.load %arg12[%c1, %c1_11, %c0_12] : memref<18x18x128xbf16, #tpu.memory_space<vmem>>, vector<16x16x128xbf16>
    tpu.vector_store %arg12[%c1, %c1_11, %c0_12], %11 {strides = array<i32>} : memref<18x18x128xbf16, #tpu.memory_space<vmem>>, vector<16x16x128xbf16>,
    %cst_13 = arith.constant 0.000000e+00 : f32
    %13 = vector.broadcast %cst_13 : f32 to vector<256x128xf32>
    %c0_14 = arith.constant 0 : index
    %c0_15 = arith.constant 0 : index
    %c0_16 = arith.constant 0 : index
    %14 = vector.load %arg12[%c0_14, %c0_15, %c0_16] : memref<18x18x128xbf16, #tpu.memory_space<vmem>>, vector<16x16x128xbf16>
    %15 = vector.shape_cast %14 : vector<16x16x128xbf16> to vector<256x128xbf16>
    %c0_17 = arith.constant 0 : index
    %c0_18 = arith.constant 0 : index
    %c0_19 = arith.constant 0 : index
    %16 = vector.load %arg4[%c0_17, %c0_18, %c0_19] : memref<9x128x128xbf16, #tpu.memory_space<vmem>>, vector<1x128x128xbf16>
    %17 = vector.shape_cast %16 : vector<1x128x128xbf16> to vector<128x128xbf16>
    %cst_20 = arith.constant dense<0.000000e+00> : vector<256x128xf32>
    %18 = tpu.matmul %15, %17, %cst_20 {dimension_numbers = #tpu.dot_dimension_numbers<[1], [0], [0], [1], [0, 0, 1, 1], [], []>} : vector<256x128xbf16>, vector<128x128xbf16>, vector<256x128xf32> -> vector<256x128xf32>
    %19 = arith.addf %13, %18 : vector<256x128xf32>
    %c0_21 = arith.constant 0 : index
    %c1_22 = arith.constant 1 : index
    %c0_23 = arith.constant 0 : index
    %20 = vector.load %arg12[%c0_21, %c1_22, %c0_23] : memref<18x18x128xbf16, #tpu.memory_space<vmem>>, vector<16x16x128xbf16>
    %21 = vector.shape_cast %20 : vector<16x16x128xbf16> to vector<256x128xbf16>
    %c1_24 = arith.constant 1 : index
    %c0_25 = arith.constant 0 : index
    %c0_26 = arith.constant 0 : index
    %22 = vector.load %arg4[%c1_24, %c0_25, %c0_26] : memref<9x128x128xbf16, #tpu.memory_space<vmem>>, vector<1x128x128xbf16>
    %23 = vector.shape_cast %22 : vector<1x128x128xbf16> to vector<128x128xbf16>
    %cst_27 = arith.constant dense<0.000000e+00> : vector<256x128xf32>
    %24 = tpu.matmul %21, %23, %cst_27 {dimension_numbers = #tpu.dot_dimension_numbers<[1], [0], [0], [1], [0, 0, 1, 1], [], []>} : vector<256x128xbf16>, vector<128x128xbf16>, vector<256x128xf32> -> vector<256x128xf32>
    %25 = arith.addf %19, %24 : vector<256x128xf32>
    %c0_28 = arith.constant 0 : index
    %c2 = arith.constant 2 : index
    %c0_29 = arith.constant 0 : index
    %26 = vector.load %arg12[%c0_28, %c2, %c0_29] : memref<18x18x128xbf16, #tpu.memory_space<vmem>>, vector<16x16x128xbf16>
    %27 = vector.shape_cast %26 : vector<16x16x128xbf16> to vector<256x128xbf16>
    %c2_30 = arith.constant 2 : index
    %c0_31 = arith.constant 0 : index
    %c0_32 = arith.constant 0 : index
    %28 = vector.load %arg4[%c2_30, %c0_31, %c0_32] : memref<9x128x128xbf16, #tpu.memory_space<vmem>>, vector<1x128x128xbf16>
    %29 = vector.shape_cast %28 : vector<1x128x128xbf16> to vector<128x128xbf16>
    %cst_33 = arith.constant dense<0.000000e+00> : vector<256x128xf32>
    %30 = tpu.matmul %27, %29, %cst_33 {dimension_numbers = #tpu.dot_dimension_numbers<[1], [0], [0], [1], [0, 0, 1, 1], [], []>} : vector<256x128xbf16>, vector<128x128xbf16>, vector<256x128xf32> -> vector<256x128xf32>
    %31 = arith.addf %25, %30 : vector<256x128xf32>
    %c1_34 = arith.constant 1 : index
    %c0_35 = arith.constant 0 : index
    %c0_36 = arith.constant 0 : index
    %32 = vector.load %arg12[%c1_34, %c0_35, %c0_36] : memref<18x18x128xbf16, #tpu.memory_space<vmem>>, vector<16x16x128xbf16>
    %33 = vector.shape_cast %32 : vector<16x16x128xbf16> to vector<256x128xbf16>
    %c3 = arith.constant 3 : index
    %c0_37 = arith.constant 0 : index
    %c0_38 = arith.constant 0 : index
    %34 = vector.load %arg4[%c3, %c0_37, %c0_38] : memref<9x128x128xbf16, #tpu.memory_space<vmem>>, vector<1x128x128xbf16>
    %35 = vector.shape_cast %34 : vector<1x128x128xbf16> to vector<128x128xbf16>
    %cst_39 = arith.constant dense<0.000000e+00> : vector<256x128xf32>
    %36 = tpu.matmul %33, %35, %cst_39 {dimension_numbers = #tpu.dot_dimension_numbers<[1], [0], [0], [1], [0, 0, 1, 1], [], []>} : vector<256x128xbf16>, vector<128x128xbf16>, vector<256x128xf32> -> vector<256x128xf32>
    %37 = arith.addf %31, %36 : vector<256x128xf32>
    %c1_40 = arith.constant 1 : index
    %c1_41 = arith.constant 1 : index
    %c0_42 = arith.constant 0 : index
    %38 = vector.load %arg12[%c1_40, %c1_41, %c0_42] : memref<18x18x128xbf16, #tpu.memory_space<vmem>>, vector<16x16x128xbf16>
    %39 = vector.shape_cast %38 : vector<16x16x128xbf16> to vector<256x128xbf16>
    %c4 = arith.constant 4 : index
    %c0_43 = arith.constant 0 : index
    %c0_44 = arith.constant 0 : index
    %40 = vector.load %arg4[%c4, %c0_43, %c0_44] : memref<9x128x128xbf16, #tpu.memory_space<vmem>>, vector<1x128x128xbf16>
    %41 = vector.shape_cast %40 : vector<1x128x128xbf16> to vector<128x128xbf16>
    %cst_45 = arith.constant dense<0.000000e+00> : vector<256x128xf32>
    %42 = tpu.matmul %39, %41, %cst_45 {dimension_numbers = #tpu.dot_dimension_numbers<[1], [0], [0], [1], [0, 0, 1, 1], [], []>} : vector<256x128xbf16>, vector<128x128xbf16>, vector<256x128xf32> -> vector<256x128xf32>
    %43 = arith.addf %37, %42 : vector<256x128xf32>
    %c1_46 = arith.constant 1 : index
    %c2_47 = arith.constant 2 : index
    %c0_48 = arith.constant 0 : index
    %44 = vector.load %arg12[%c1_46, %c2_47, %c0_48] : memref<18x18x128xbf16, #tpu.memory_space<vmem>>, vector<16x16x128xbf16>
    %45 = vector.shape_cast %44 : vector<16x16x128xbf16> to vector<256x128xbf16>
    %c5 = arith.constant 5 : index
    %c0_49 = arith.constant 0 : index
    %c0_50 = arith.constant 0 : index
    %46 = vector.load %arg4[%c5, %c0_49, %c0_50] : memref<9x128x128xbf16, #tpu.memory_space<vmem>>, vector<1x128x128xbf16>
    %47 = vector.shape_cast %46 : vector<1x128x128xbf16> to vector<128x128xbf16>
    %cst_51 = arith.constant dense<0.000000e+00> : vector<256x128xf32>
    %48 = tpu.matmul %45, %47, %cst_51 {dimension_numbers = #tpu.dot_dimension_numbers<[1], [0], [0], [1], [0, 0, 1, 1], [], []>} : vector<256x128xbf16>, vector<128x128xbf16>, vector<256x128xf32> -> vector<256x128xf32>
    %49 = arith.addf %43, %48 : vector<256x128xf32>
    %c2_52 = arith.constant 2 : index
    %c0_53 = arith.constant 0 : index
    %c0_54 = arith.constant 0 : index
    %50 = vector.load %arg12[%c2_52, %c0_53, %c0_54] : memref<18x18x128xbf16, #tpu.memory_space<vmem>>, vector<16x16x128xbf16>
    %51 = vector.shape_cast %50 : vector<16x16x128xbf16> to vector<256x128xbf16>
    %c6 = arith.constant 6 : index
    %c0_55 = arith.constant 0 : index
    %c0_56 = arith.constant 0 : index
    %52 = vector.load %arg4[%c6, %c0_55, %c0_56] : memref<9x128x128xbf16, #tpu.memory_space<vmem>>, vector<1x128x128xbf16>
    %53 = vector.shape_cast %52 : vector<1x128x128xbf16> to vector<128x128xbf16>
    %cst_57 = arith.constant dense<0.000000e+00> : vector<256x128xf32>
    %54 = tpu.matmul %51, %53, %cst_57 {dimension_numbers = #tpu.dot_dimension_numbers<[1], [0], [0], [1], [0, 0, 1, 1], [], []>} : vector<256x128xbf16>, vector<128x128xbf16>, vector<256x128xf32> -> vector<256x128xf32>
    %55 = arith.addf %49, %54 : vector<256x128xf32>
    %c2_58 = arith.constant 2 : index
    %c1_59 = arith.constant 1 : index
    %c0_60 = arith.constant 0 : index
    %56 = vector.load %arg12[%c2_58, %c1_59, %c0_60] : memref<18x18x128xbf16, #tpu.memory_space<vmem>>, vector<16x16x128xbf16>
    %57 = vector.shape_cast %56 : vector<16x16x128xbf16> to vector<256x128xbf16>
    %c7 = arith.constant 7 : index
    %c0_61 = arith.constant 0 : index
    %c0_62 = arith.constant 0 : index
    %58 = vector.load %arg4[%c7, %c0_61, %c0_62] : memref<9x128x128xbf16, #tpu.memory_space<vmem>>, vector<1x128x128xbf16>
    %59 = vector.shape_cast %58 : vector<1x128x128xbf16> to vector<128x128xbf16>
    %cst_63 = arith.constant dense<0.000000e+00> : vector<256x128xf32>
    %60 = tpu.matmul %57, %59, %cst_63 {dimension_numbers = #tpu.dot_dimension_numbers<[1], [0], [0], [1], [0, 0, 1, 1], [], []>} : vector<256x128xbf16>, vector<128x128xbf16>, vector<256x128xf32> -> vector<256x128xf32>
    %61 = arith.addf %55, %60 : vector<256x128xf32>
    %c2_64 = arith.constant 2 : index
    %c2_65 = arith.constant 2 : index
    %c0_66 = arith.constant 0 : index
    %62 = vector.load %arg12[%c2_64, %c2_65, %c0_66] : memref<18x18x128xbf16, #tpu.memory_space<vmem>>, vector<16x16x128xbf16>
    %63 = vector.shape_cast %62 : vector<16x16x128xbf16> to vector<256x128xbf16>
    %c8 = arith.constant 8 : index
    %c0_67 = arith.constant 0 : index
    %c0_68 = arith.constant 0 : index
    %64 = vector.load %arg4[%c8, %c0_67, %c0_68] : memref<9x128x128xbf16, #tpu.memory_space<vmem>>, vector<1x128x128xbf16>
    %65 = vector.shape_cast %64 : vector<1x128x128xbf16> to vector<128x128xbf16>
    %cst_69 = arith.constant dense<0.000000e+00> : vector<256x128xf32>
    %66 = tpu.matmul %63, %65, %cst_69 {dimension_numbers = #tpu.dot_dimension_numbers<[1], [0], [0], [1], [0, 0, 1, 1], [], []>} : vector<256x128xbf16>, vector<128x128xbf16>, vector<256x128xf32> -> vector<256x128xf32>
    %67 = arith.addf %61, %66 : vector<256x128xf32>
    %c0_70 = arith.constant 0 : index
    %c0_71 = arith.constant 0 : index
    %68 = vector.load %arg5[%c0_70, %c0_71] : memref<1x128xf32, #tpu.memory_space<vmem>>, vector<1x128xf32>
    %69 = vector.broadcast %68 : vector<1x128xf32> to vector<256x128xf32>
    %70 = arith.addf %67, %69 : vector<256x128xf32>
    %71 = arith.truncf %70 : vector<256x128xf32> to vector<256x128xbf16>
    %72 = vector.shape_cast %71 : vector<256x128xbf16> to vector<16x16x128xbf16>
    %c1_72 = arith.constant 1 : index
    %c1_73 = arith.constant 1 : index
    %c0_74 = arith.constant 0 : index
    %73 = vector.load %arg12[%c1_72, %c1_73, %c0_74] : memref<18x18x128xbf16, #tpu.memory_space<vmem>>, vector<16x16x128xbf16>
    tpu.vector_store %arg12[%c1_72, %c1_73, %c0_74], %72 {strides = array<i32>} : memref<18x18x128xbf16, #tpu.memory_space<vmem>>, vector<16x16x128xbf16>,
    %cst_75 = arith.constant 0.000000e+00 : f32
    %74 = vector.broadcast %cst_75 : f32 to vector<256x128xf32>
    %c0_76 = arith.constant 0 : index
    %c0_77 = arith.constant 0 : index
    %c0_78 = arith.constant 0 : index
    %75 = vector.load %arg12[%c0_76, %c0_77, %c0_78] : memref<18x18x128xbf16, #tpu.memory_space<vmem>>, vector<16x16x128xbf16>
    %76 = vector.shape_cast %75 : vector<16x16x128xbf16> to vector<256x128xbf16>
    %c0_79 = arith.constant 0 : index
    %c0_80 = arith.constant 0 : index
    %c0_81 = arith.constant 0 : index
    %77 = vector.load %arg6[%c0_79, %c0_80, %c0_81] : memref<9x128x128xbf16, #tpu.memory_space<vmem>>, vector<1x128x128xbf16>
    %78 = vector.shape_cast %77 : vector<1x128x128xbf16> to vector<128x128xbf16>
    %cst_82 = arith.constant dense<0.000000e+00> : vector<256x128xf32>
    %79 = tpu.matmul %76, %78, %cst_82 {dimension_numbers = #tpu.dot_dimension_numbers<[1], [0], [0], [1], [0, 0, 1, 1], [], []>} : vector<256x128xbf16>, vector<128x128xbf16>, vector<256x128xf32> -> vector<256x128xf32>
    %80 = arith.addf %74, %79 : vector<256x128xf32>
    %c0_83 = arith.constant 0 : index
    %c1_84 = arith.constant 1 : index
    %c0_85 = arith.constant 0 : index
    %81 = vector.load %arg12[%c0_83, %c1_84, %c0_85] : memref<18x18x128xbf16, #tpu.memory_space<vmem>>, vector<16x16x128xbf16>
    %82 = vector.shape_cast %81 : vector<16x16x128xbf16> to vector<256x128xbf16>
    %c1_86 = arith.constant 1 : index
    %c0_87 = arith.constant 0 : index
    %c0_88 = arith.constant 0 : index
    %83 = vector.load %arg6[%c1_86, %c0_87, %c0_88] : memref<9x128x128xbf16, #tpu.memory_space<vmem>>, vector<1x128x128xbf16>
    %84 = vector.shape_cast %83 : vector<1x128x128xbf16> to vector<128x128xbf16>
    %cst_89 = arith.constant dense<0.000000e+00> : vector<256x128xf32>
    %85 = tpu.matmul %82, %84, %cst_89 {dimension_numbers = #tpu.dot_dimension_numbers<[1], [0], [0], [1], [0, 0, 1, 1], [], []>} : vector<256x128xbf16>, vector<128x128xbf16>, vector<256x128xf32> -> vector<256x128xf32>
    %86 = arith.addf %80, %85 : vector<256x128xf32>
    %c0_90 = arith.constant 0 : index
    %c2_91 = arith.constant 2 : index
    %c0_92 = arith.constant 0 : index
    %87 = vector.load %arg12[%c0_90, %c2_91, %c0_92] : memref<18x18x128xbf16, #tpu.memory_space<vmem>>, vector<16x16x128xbf16>
    %88 = vector.shape_cast %87 : vector<16x16x128xbf16> to vector<256x128xbf16>
    %c2_93 = arith.constant 2 : index
    %c0_94 = arith.constant 0 : index
    %c0_95 = arith.constant 0 : index
    %89 = vector.load %arg6[%c2_93, %c0_94, %c0_95] : memref<9x128x128xbf16, #tpu.memory_space<vmem>>, vector<1x128x128xbf16>
    %90 = vector.shape_cast %89 : vector<1x128x128xbf16> to vector<128x128xbf16>
    %cst_96 = arith.constant dense<0.000000e+00> : vector<256x128xf32>
    %91 = tpu.matmul %88, %90, %cst_96 {dimension_numbers = #tpu.dot_dimension_numbers<[1], [0], [0], [1], [0, 0, 1, 1], [], []>} : vector<256x128xbf16>, vector<128x128xbf16>, vector<256x128xf32> -> vector<256x128xf32>
    %92 = arith.addf %86, %91 : vector<256x128xf32>
    %c1_97 = arith.constant 1 : index
    %c0_98 = arith.constant 0 : index
    %c0_99 = arith.constant 0 : index
    %93 = vector.load %arg12[%c1_97, %c0_98, %c0_99] : memref<18x18x128xbf16, #tpu.memory_space<vmem>>, vector<16x16x128xbf16>
    %94 = vector.shape_cast %93 : vector<16x16x128xbf16> to vector<256x128xbf16>
    %c3_100 = arith.constant 3 : index
    %c0_101 = arith.constant 0 : index
    %c0_102 = arith.constant 0 : index
    %95 = vector.load %arg6[%c3_100, %c0_101, %c0_102] : memref<9x128x128xbf16, #tpu.memory_space<vmem>>, vector<1x128x128xbf16>
    %96 = vector.shape_cast %95 : vector<1x128x128xbf16> to vector<128x128xbf16>
    %cst_103 = arith.constant dense<0.000000e+00> : vector<256x128xf32>
    %97 = tpu.matmul %94, %96, %cst_103 {dimension_numbers = #tpu.dot_dimension_numbers<[1], [0], [0], [1], [0, 0, 1, 1], [], []>} : vector<256x128xbf16>, vector<128x128xbf16>, vector<256x128xf32> -> vector<256x128xf32>
    %98 = arith.addf %92, %97 : vector<256x128xf32>
    %c1_104 = arith.constant 1 : index
    %c1_105 = arith.constant 1 : index
    %c0_106 = arith.constant 0 : index
    %99 = vector.load %arg12[%c1_104, %c1_105, %c0_106] : memref<18x18x128xbf16, #tpu.memory_space<vmem>>, vector<16x16x128xbf16>
    %100 = vector.shape_cast %99 : vector<16x16x128xbf16> to vector<256x128xbf16>
    %c4_107 = arith.constant 4 : index
    %c0_108 = arith.constant 0 : index
    %c0_109 = arith.constant 0 : index
    %101 = vector.load %arg6[%c4_107, %c0_108, %c0_109] : memref<9x128x128xbf16, #tpu.memory_space<vmem>>, vector<1x128x128xbf16>
    %102 = vector.shape_cast %101 : vector<1x128x128xbf16> to vector<128x128xbf16>
    %cst_110 = arith.constant dense<0.000000e+00> : vector<256x128xf32>
    %103 = tpu.matmul %100, %102, %cst_110 {dimension_numbers = #tpu.dot_dimension_numbers<[1], [0], [0], [1], [0, 0, 1, 1], [], []>} : vector<256x128xbf16>, vector<128x128xbf16>, vector<256x128xf32> -> vector<256x128xf32>
    %104 = arith.addf %98, %103 : vector<256x128xf32>
    %c1_111 = arith.constant 1 : index
    %c2_112 = arith.constant 2 : index
    %c0_113 = arith.constant 0 : index
    %105 = vector.load %arg12[%c1_111, %c2_112, %c0_113] : memref<18x18x128xbf16, #tpu.memory_space<vmem>>, vector<16x16x128xbf16>
    %106 = vector.shape_cast %105 : vector<16x16x128xbf16> to vector<256x128xbf16>
    %c5_114 = arith.constant 5 : index
    %c0_115 = arith.constant 0 : index
    %c0_116 = arith.constant 0 : index
    %107 = vector.load %arg6[%c5_114, %c0_115, %c0_116] : memref<9x128x128xbf16, #tpu.memory_space<vmem>>, vector<1x128x128xbf16>
    %108 = vector.shape_cast %107 : vector<1x128x128xbf16> to vector<128x128xbf16>
    %cst_117 = arith.constant dense<0.000000e+00> : vector<256x128xf32>
    %109 = tpu.matmul %106, %108, %cst_117 {dimension_numbers = #tpu.dot_dimension_numbers<[1], [0], [0], [1], [0, 0, 1, 1], [], []>} : vector<256x128xbf16>, vector<128x128xbf16>, vector<256x128xf32> -> vector<256x128xf32>
    %110 = arith.addf %104, %109 : vector<256x128xf32>
    %c2_118 = arith.constant 2 : index
    %c0_119 = arith.constant 0 : index
    %c0_120 = arith.constant 0 : index
    %111 = vector.load %arg12[%c2_118, %c0_119, %c0_120] : memref<18x18x128xbf16, #tpu.memory_space<vmem>>, vector<16x16x128xbf16>
    %112 = vector.shape_cast %111 : vector<16x16x128xbf16> to vector<256x128xbf16>
    %c6_121 = arith.constant 6 : index
    %c0_122 = arith.constant 0 : index
    %c0_123 = arith.constant 0 : index
    %113 = vector.load %arg6[%c6_121, %c0_122, %c0_123] : memref<9x128x128xbf16, #tpu.memory_space<vmem>>, vector<1x128x128xbf16>
    %114 = vector.shape_cast %113 : vector<1x128x128xbf16> to vector<128x128xbf16>
    %cst_124 = arith.constant dense<0.000000e+00> : vector<256x128xf32>
    %115 = tpu.matmul %112, %114, %cst_124 {dimension_numbers = #tpu.dot_dimension_numbers<[1], [0], [0], [1], [0, 0, 1, 1], [], []>} : vector<256x128xbf16>, vector<128x128xbf16>, vector<256x128xf32> -> vector<256x128xf32>
    %116 = arith.addf %110, %115 : vector<256x128xf32>
    %c2_125 = arith.constant 2 : index
    %c1_126 = arith.constant 1 : index
    %c0_127 = arith.constant 0 : index
    %117 = vector.load %arg12[%c2_125, %c1_126, %c0_127] : memref<18x18x128xbf16, #tpu.memory_space<vmem>>, vector<16x16x128xbf16>
    %118 = vector.shape_cast %117 : vector<16x16x128xbf16> to vector<256x128xbf16>
    %c7_128 = arith.constant 7 : index
    %c0_129 = arith.constant 0 : index
    %c0_130 = arith.constant 0 : index
    %119 = vector.load %arg6[%c7_128, %c0_129, %c0_130] : memref<9x128x128xbf16, #tpu.memory_space<vmem>>, vector<1x128x128xbf16>
    %120 = vector.shape_cast %119 : vector<1x128x128xbf16> to vector<128x128xbf16>
    %cst_131 = arith.constant dense<0.000000e+00> : vector<256x128xf32>
    %121 = tpu.matmul %118, %120, %cst_131 {dimension_numbers = #tpu.dot_dimension_numbers<[1], [0], [0], [1], [0, 0, 1, 1], [], []>} : vector<256x128xbf16>, vector<128x128xbf16>, vector<256x128xf32> -> vector<256x128xf32>
    %122 = arith.addf %116, %121 : vector<256x128xf32>
    %c2_132 = arith.constant 2 : index
    %c2_133 = arith.constant 2 : index
    %c0_134 = arith.constant 0 : index
    %123 = vector.load %arg12[%c2_132, %c2_133, %c0_134] : memref<18x18x128xbf16, #tpu.memory_space<vmem>>, vector<16x16x128xbf16>
    %124 = vector.shape_cast %123 : vector<16x16x128xbf16> to vector<256x128xbf16>
    %c8_135 = arith.constant 8 : index
    %c0_136 = arith.constant 0 : index
    %c0_137 = arith.constant 0 : index
    %125 = vector.load %arg6[%c8_135, %c0_136, %c0_137] : memref<9x128x128xbf16, #tpu.memory_space<vmem>>, vector<1x128x128xbf16>
    %126 = vector.shape_cast %125 : vector<1x128x128xbf16> to vector<128x128xbf16>
    %cst_138 = arith.constant dense<0.000000e+00> : vector<256x128xf32>
    %127 = tpu.matmul %124, %126, %cst_138 {dimension_numbers = #tpu.dot_dimension_numbers<[1], [0], [0], [1], [0, 0, 1, 1], [], []>} : vector<256x128xbf16>, vector<128x128xbf16>, vector<256x128xf32> -> vector<256x128xf32>
    %128 = arith.addf %122, %127 : vector<256x128xf32>
    %c0_139 = arith.constant 0 : index
    %c0_140 = arith.constant 0 : index
    %129 = vector.load %arg7[%c0_139, %c0_140] : memref<1x128xf32, #tpu.memory_space<vmem>>, vector<1x128xf32>
    %130 = vector.broadcast %129 : vector<1x128xf32> to vector<256x128xf32>
    %131 = arith.addf %128, %130 : vector<256x128xf32>
    %132 = arith.addf %131, %7 : vector<256x128xf32>
    %133 = arith.truncf %132 : vector<256x128xf32> to vector<256x128xbf16>
    %c0_141 = arith.constant 0 : index
    %c0_142 = arith.constant 0 : index
    %134 = vector.load %arg8[%c0_141, %c0_142] : memref<128x128xbf16, #tpu.memory_space<vmem>>, vector<128x128xbf16>
    %cst_143 = arith.constant dense<0.000000e+00> : vector<256x128xf32>
    %135 = tpu.matmul %8, %134, %cst_143 {dimension_numbers = #tpu.dot_dimension_numbers<[1], [0], [0], [1], [0, 0, 1, 1], [], []>} : vector<256x128xbf16>, vector<128x128xbf16>, vector<256x128xf32> -> vector<256x128xf32>
    %c0_144 = arith.constant 0 : index
    %c0_145 = arith.constant 0 : index
    %136 = vector.load %arg9[%c0_144, %c0_145] : memref<128x128xbf16, #tpu.memory_space<vmem>>, vector<128x128xbf16>
    %cst_146 = arith.constant dense<0.000000e+00> : vector<256x128xf32>
    %137 = tpu.matmul %133, %136, %cst_146 {dimension_numbers = #tpu.dot_dimension_numbers<[1], [0], [0], [1], [0, 0, 1, 1], [], []>} : vector<256x128xbf16>, vector<128x128xbf16>, vector<256x128xf32> -> vector<256x128xf32>
    %138 = arith.addf %135, %137 : vector<256x128xf32>
    %c0_147 = arith.constant 0 : index
    %c0_148 = arith.constant 0 : index
    %139 = vector.load %arg10[%c0_147, %c0_148] : memref<1x128xf32, #tpu.memory_space<vmem>>, vector<1x128xf32>
    %140 = vector.broadcast %139 : vector<1x128xf32> to vector<256x128xf32>
    %141 = arith.addf %138, %140 : vector<256x128xf32>
    %142 = vector.shape_cast %141 : vector<256x128xf32> to vector<16x16x128xf32>
    %c0_149 = arith.constant 0 : index
    %c0_150 = arith.constant 0 : index
    %c0_151 = arith.constant 0 : index
    %c0_152 = arith.constant 0 : index
    %143 = vector.load %arg11[%c0_149, %c0_150, %c0_151, %c0_152] : memref<1x16x16x128xf32, #tpu.memory_space<vmem>>, vector<1x16x16x128xf32>
    %144 = vector.shape_cast %143 : vector<1x16x16x128xf32> to vector<16x16x128xf32>
    %145 = vector.shape_cast %142 : vector<16x16x128xf32> to vector<1x16x16x128xf32>
    tpu.vector_store %arg11[%c0_149, %c0_150, %c0_151, %c0_152], %145 {strides = array<i32>} : memref<1x16x16x128xf32, #tpu.memory_space<vmem>>, vector<1x16x16x128xf32>,
    return
  }
  func.func @transform_0(%arg0: i32) -> (i32, i32, i32, i32) {
    %c0_i32 = arith.constant 0 : i32
    %c0_i32_0 = arith.constant 0 : i32
    %c0_i32_1 = arith.constant 0 : i32
    %c0_i32_2 = arith.constant 0 : i32
    return %arg0, %c0_i32, %c0_i32_0, %c0_i32_1 : i32, i32, i32, i32
  }
  func.func @transform_1(%arg0: i32) -> (i32, i32) {
    %c0_i32 = arith.constant 0 : i32
    %c0_i32_0 = arith.constant 0 : i32
    %c0_i32_1 = arith.constant 0 : i32
    return %c0_i32, %c0_i32_0 : i32, i32
  }
  func.func @transform_2(%arg0: i32) -> (i32, i32) {
    %c0_i32 = arith.constant 0 : i32
    %c0_i32_0 = arith.constant 0 : i32
    %c0_i32_1 = arith.constant 0 : i32
    return %c0_i32, %c0_i32_0 : i32, i32
  }
  func.func @transform_3(%arg0: i32) -> (i32, i32, i32) {
    %c0_i32 = arith.constant 0 : i32
    %c0_i32_0 = arith.constant 0 : i32
    %c0_i32_1 = arith.constant 0 : i32
    %c0_i32_2 = arith.constant 0 : i32
    return %c0_i32, %c0_i32_0, %c0_i32_1 : i32, i32, i32
  }
  func.func @transform_4(%arg0: i32) -> (i32, i32) {
    %c0_i32 = arith.constant 0 : i32
    %c0_i32_0 = arith.constant 0 : i32
    %c0_i32_1 = arith.constant 0 : i32
    return %c0_i32, %c0_i32_0 : i32, i32
  }
  func.func @transform_5(%arg0: i32) -> (i32, i32, i32) {
    %c0_i32 = arith.constant 0 : i32
    %c0_i32_0 = arith.constant 0 : i32
    %c0_i32_1 = arith.constant 0 : i32
    %c0_i32_2 = arith.constant 0 : i32
    return %c0_i32, %c0_i32_0, %c0_i32_1 : i32, i32, i32
  }
  func.func @transform_6(%arg0: i32) -> (i32, i32) {
    %c0_i32 = arith.constant 0 : i32
    %c0_i32_0 = arith.constant 0 : i32
    %c0_i32_1 = arith.constant 0 : i32
    return %c0_i32, %c0_i32_0 : i32, i32
  }
  func.func @transform_7(%arg0: i32) -> (i32, i32) {
    %c0_i32 = arith.constant 0 : i32
    %c0_i32_0 = arith.constant 0 : i32
    %c0_i32_1 = arith.constant 0 : i32
    return %c0_i32, %c0_i32_0 : i32, i32
  }
  func.func @transform_8(%arg0: i32) -> (i32, i32) {
    %c0_i32 = arith.constant 0 : i32
    %c0_i32_0 = arith.constant 0 : i32
    %c0_i32_1 = arith.constant 0 : i32
    return %c0_i32, %c0_i32_0 : i32, i32
  }
  func.func @transform_9(%arg0: i32) -> (i32, i32) {
    %c0_i32 = arith.constant 0 : i32
    %c0_i32_0 = arith.constant 0 : i32
    %c0_i32_1 = arith.constant 0 : i32
    return %c0_i32, %c0_i32_0 : i32, i32
  }
  func.func @transform_10(%arg0: i32) -> (i32, i32, i32, i32) {
    %c0_i32 = arith.constant 0 : i32
    %c0_i32_0 = arith.constant 0 : i32
    %c0_i32_1 = arith.constant 0 : i32
    %c0_i32_2 = arith.constant 0 : i32
    return %arg0, %c0_i32, %c0_i32_0, %c0_i32_1 : i32, i32, i32, i32
  }
}

</mosaic_0001>

<llo_original>
// kernel: rtmdet_csp_block.1
$region0: #{rtmdet_csp_block.1}
  #allocation0 [shape = 'u32[]', space=smem, size = 0x4, offset = 0x4, fixed_abs, tag = 'smem constant byte address 0x4 - core index']
  #allocation1 [shape = 'u32[144,128]{1,0:T(1,128)}', space=vmem, size = 0x12000, scoped, tag = 'internal scratch']
  #allocation2 [shape = 'bf16[18,18,128]{2,1,0:T(8,128)(2,1)}', space=vmem, size = 0x1b000, scoped, tag = 'scratch operand']
  %s0 = inlined_call_operand.vmem [shape: bf16[2,16,16,128], index: 0, kind: input, shape index: {}]
  %s1 = inlined_call_operand.vmem [shape: bf16[128,128], index: 1, kind: input, shape index: {}]
  %s2 = inlined_call_operand.vmem [shape: f32[1,128], index: 2, kind: input, shape index: {}]
  %s3 = inlined_call_operand.vmem [shape: bf16[9,128,128], index: 3, kind: input, shape index: {}]
  %s4 = inlined_call_operand.vmem [shape: f32[1,128], index: 4, kind: input, shape index: {}]
  %s5 = inlined_call_operand.hbm [shape: bf16[9,128,128], index: 5, kind: input, shape index: {}]
  %s6 = inlined_call_operand.vmem [shape: f32[1,128], index: 6, kind: input, shape index: {}]
  %s7 = inlined_call_operand.vmem [shape: bf16[128,128], index: 7, kind: input, shape index: {}]
  %s8 = inlined_call_operand.vmem [shape: bf16[128,128], index: 8, kind: input, shape index: {}]
  %s9 = inlined_call_operand.vmem [shape: f32[1,128], index: 9, kind: input, shape index: {}]
  %s10 = inlined_call_operand.vmem [shape: f32[2,16,16,128], index: 10, kind: output, shape index: {}]
  %s11 = sld [smem:[#allocation0]]
  $region77: #{rtmdet_csp_block.1} parent=0
    _
  %s13 = ssub.s32 1, %s11
  %s14 = scalar_select 0, %s13, %s11
  $region1: #{rtmdet_csp_block.1} parent=0
    #allocation3 [shape = 'u8[294912]{0}', space=vmem, size = 0x48000, scoped, tag = 'input window, operand 5, single buffered']
    #allocation4 [shape = 's32[2]{0}', space=sflag, size = 0x8, scoped, tag = 'scoped memory for rtmdet_csp_block.1']
    %15 = vsyncpa [#allocation4], 0
    loop: start=0, step=1, limit=4
    $region2: #{rtmdet_csp_block.1} parent=1 // loop_pre_header
      _
    $region3: #{rtmdet_csp_block.1} parent=1 // loop_header
      %s17 = sphi 0, %s21
      %p18 = scmp.ge.s32.totalorder %s17, 4
      %s27 = sphi 0, %s29
      %s30 = sphi 0, %s27
      %s31 = sphi 0, %s30
      %s47 = sphi 0, %s31
      %s51 = sphi 0, %s51
      %s53 = sphi 0, %s51
      %s54 = sphi 0, %s53
      %s68 = sphi 0, %s54
      %s72 = sphi 0, %s72
      %s74 = sphi 0, %s72
      %s75 = sphi 0, %s74
      %s89 = sphi 0, %s75
      %s93 = sphi 0, %s93
      %s95 = sphi 0, %s93
      %s96 = sphi 0, %s95
      %s110 = sphi 0, %s96
      %s114 = sphi 0, %s114
      %s116 = sphi 0, %s114
      %s117 = sphi 0, %s116
      %s131 = sphi 0, %s117
      %s135 = sphi 0, %s135
      %s137 = sphi 0, %s135
      %s138 = sphi 0, %s137
      %s152 = sphi 0, %s138
      %s156 = sphi 0, %s156
      %s158 = sphi 0, %s156
      %s159 = sphi 0, %s158
      %s173 = sphi 0, %s159
      %s177 = sphi 0, %s177
      %s179 = sphi 0, %s177
      %s180 = sphi 0, %s179
      %s194 = sphi 0, %s180
      %s198 = sphi 0, %s198
      %s200 = sphi 0, %s198
      %s201 = sphi 0, %s200
      %s215 = sphi 0, %s201
      %s219 = sphi 0, %s219
      %s221 = sphi 0, %s219
      %s222 = sphi 0, %s221
      %s236 = sphi 0, %s222
      %s242 = sphi 0, %s244
      %s245 = sphi 0, %s242
      %s246 = sphi 0, %s245
      %s262 = sphi 0, %s246
    $region4: #{rtmdet_csp_block.1} parent=1 // loop_header_branch
      %20 = sbr.rel (%p18) target = $region8
    $region5: #{rtmdet_csp_block.1} parent=1 // loop_body
      %s22 = ssub.s32 %s17, 1
      %s23 = ssub.s32 %s17, 2
      %s24 = sadd.s32 %s17, 1
      %s25 = ssub.s32 %s17, %s24
      %p26 = scmp.eq.s32.totalorder %s25, 0
      %s28 = sadd.s32 %s27, 1
      %s29 = scalar_select %p26, %s27, %s28
      %p32 = pneg %p26
      %p33 = scmp.eq.s32.totalorder %s17, 1
      %p34 = por %p32, %p33
      %p35 = scmp.ne.s32.totalorder %s27, %s30
      %p36 = scmp.eq.s32.totalorder %s17, 0
      %p37 = por %p35, %p36
      %p38 = scmp.ne.s32.totalorder %s27, %s30
      %p39 = scmp.eq.s32.totalorder %s22, 1
      %p40 = por %p38, %p39
      %p41 = scmp.ne.s32.totalorder %s30, %s31
      %p42 = scmp.eq.s32.totalorder %s22, 0
      %p43 = por %p41, %p42
      %p44 = scmp.ne.s32.totalorder %s30, %s31
      %p45 = scmp.eq.s32.totalorder %s23, 1
      %p46 = por %p44, %p45
      %p48 = scmp.ne.s32.totalorder %s31, %s47
      %p49 = scmp.eq.s32.totalorder %s23, 0
      %p50 = por %p48, %p49
      %s52 = sadd.s32 %s51, 1
      %p55 = scmp.eq.s32.totalorder %s17, 1
      %p56 = scmp.ne.s32.totalorder %s51, %s53
      %p57 = scmp.eq.s32.totalorder %s17, 0
      %p58 = por %p56, %p57
      %p59 = scmp.ne.s32.totalorder %s51, %s53
      %p60 = scmp.eq.s32.totalorder %s22, 1
      %p61 = por %p59, %p60
      %p62 = scmp.ne.s32.totalorder %s53, %s54
      %p63 = scmp.eq.s32.totalorder %s22, 0
      %p64 = por %p62, %p63
      %p65 = scmp.ne.s32.totalorder %s53, %s54
      %p66 = scmp.eq.s32.totalorder %s23, 1
      %p67 = por %p65, %p66
      %p69 = scmp.ne.s32.totalorder %s54, %s68
      %p70 = scmp.eq.s32.totalorder %s23, 0
      %p71 = por %p69, %p70
      %s73 = sadd.s32 %s72, 1
      %p76 = scmp.eq.s32.totalorder %s17, 1
      %p77 = scmp.ne.s32.totalorder %s72, %s74
      %p78 = scmp.eq.s32.totalorder %s17, 0
      %p79 = por %p77, %p78
      %p80 = scmp.ne.s32.totalorder %s72, %s74
      %p81 = scmp.eq.s32.totalorder %s22, 1
      %p82 = por %p80, %p81
      %p83 = scmp.ne.s32.totalorder %s74, %s75
      %p84 = scmp.eq.s32.totalorder %s22, 0
      %p85 = por %p83, %p84
      %p86 = scmp.ne.s32.totalorder %s74, %s75
      %p87 = scmp.eq.s32.totalorder %s23, 1
      %p88 = por %p86, %p87
      %p90 = scmp.ne.s32.totalorder %s75, %s89
      %p91 = scmp.eq.s32.totalorder %s23, 0
      %p92 = por %p90, %p91
      %s94 = sadd.s32 %s93, 1
      %p97 = scmp.eq.s32.totalorder %s17, 1
      %p98 = scmp.ne.s32.totalorder %s93, %s95
      %p99 = scmp.eq.s32.totalorder %s17, 0
      %p100 = por %p98, %p99
      %p101 = scmp.ne.s32.totalorder %s93, %s95
      %p102 = scmp.eq.s32.totalorder %s22, 1
      %p103 = por %p101, %p102
      %p104 = scmp.ne.s32.totalorder %s95, %s96
      %p105 = scmp.eq.s32.totalorder %s22, 0
      %p106 = por %p104, %p105
      %p107 = scmp.ne.s32.totalorder %s95, %s96
      %p108 = scmp.eq.s32.totalorder %s23, 1
      %p109 = por %p107, %p108
      %p111 = scmp.ne.s32.totalorder %s96, %s110
      %p112 = scmp.eq.s32.totalorder %s23, 0
      %p113 = por %p111, %p112
      %s115 = sadd.s32 %s114, 1
      %p118 = scmp.eq.s32.totalorder %s17, 1
      %p119 = scmp.ne.s32.totalorder %s114, %s116
      %p120 = scmp.eq.s32.totalorder %s17, 0
      %p121 = por %p119, %p120
      %p122 = scmp.ne.s32.totalorder %s114, %s116
      %p123 = scmp.eq.s32.totalorder %s22, 1
      %p124 = por %p122, %p123
      %p125 = scmp.ne.s32.totalorder %s116, %s117
      %p126 = scmp.eq.s32.totalorder %s22, 0
      %p127 = por %p125, %p126
      %p128 = scmp.ne.s32.totalorder %s116, %s117
      %p129 = scmp.eq.s32.totalorder %s23, 1
      %p130 = por %p128, %p129
      %p132 = scmp.ne.s32.totalorder %s117, %s131
      %p133 = scmp.eq.s32.totalorder %s23, 0
      %p134 = por %p132, %p133
      %s136 = sadd.s32 %s135, 1
      %p139 = scmp.eq.s32.totalorder %s17, 1
      %p140 = scmp.ne.s32.totalorder %s135, %s137
      %p141 = scmp.eq.s32.totalorder %s17, 0
      %p142 = por %p140, %p141
      %p143 = scmp.ne.s32.totalorder %s135, %s137
      %p144 = scmp.eq.s32.totalorder %s22, 1
      %p145 = por %p143, %p144
      %p146 = scmp.ne.s32.totalorder %s137, %s138
      %p147 = scmp.eq.s32.totalorder %s22, 0
      %p148 = por %p146, %p147
      %p149 = scmp.ne.s32.totalorder %s137, %s138
      %p150 = scmp.eq.s32.totalorder %s23, 1
      %p151 = por %p149, %p150
      %p153 = scmp.ne.s32.totalorder %s138, %s152
      %p154 = scmp.eq.s32.totalorder %s23, 0
      %p155 = por %p153, %p154
      %s157 = sadd.s32 %s156, 1
      %p160 = scmp.eq.s32.totalorder %s17, 1
      %p161 = scmp.ne.s32.totalorder %s156, %s158
      %p162 = scmp.eq.s32.totalorder %s17, 0
      %p163 = por %p161, %p162
      %p164 = scmp.ne.s32.totalorder %s156, %s158
      %p165 = scmp.eq.s32.totalorder %s22, 1
      %p166 = por %p164, %p165
      %p167 = scmp.ne.s32.totalorder %s158, %s159
      %p168 = scmp.eq.s32.totalorder %s22, 0
      %p169 = por %p167, %p168
      %p170 = scmp.ne.s32.totalorder %s158, %s159
      %p171 = scmp.eq.s32.totalorder %s23, 1
      %p172 = por %p170, %p171
      %p174 = scmp.ne.s32.totalorder %s159, %s173
      %p175 = scmp.eq.s32.totalorder %s23, 0
      %p176 = por %p174, %p175
      %s178 = sadd.s32 %s177, 1
      %p181 = scmp.eq.s32.totalorder %s17, 1
      %p182 = scmp.ne.s32.totalorder %s177, %s179
      %p183 = scmp.eq.s32.totalorder %s17, 0
      %p184 = por %p182, %p183
      %p185 = scmp.ne.s32.totalorder %s177, %s179
      %p186 = scmp.eq.s32.totalorder %s22, 1
      %p187 = por %p185, %p186
      %p188 = scmp.ne.s32.totalorder %s179, %s180
      %p189 = scmp.eq.s32.totalorder %s22, 0
      %p190 = por %p188, %p189
      %p191 = scmp.ne.s32.totalorder %s179, %s180
      %p192 = scmp.eq.s32.totalorder %s23, 1
      %p193 = por %p191, %p192
      %p195 = scmp.ne.s32.totalorder %s180, %s194
      %p196 = scmp.eq.s32.totalorder %s23, 0
      %p197 = por %p195, %p196
      %s199 = sadd.s32 %s198, 1
      %p202 = scmp.eq.s32.totalorder %s17, 1
      %p203 = scmp.ne.s32.totalorder %s198, %s200
      %p204 = scmp.eq.s32.totalorder %s17, 0
      %p205 = por %p203, %p204
      %p206 = scmp.ne.s32.totalorder %s198, %s200
      %p207 = scmp.eq.s32.totalorder %s22, 1
      %p208 = por %p206, %p207
      %p209 = scmp.ne.s32.totalorder %s200, %s201
      %p210 = scmp.eq.s32.totalorder %s22, 0
      %p211 = por %p209, %p210
      %p212 = scmp.ne.s32.totalorder %s200, %s201
      %p213 = scmp.eq.s32.totalorder %s23, 1
      %p214 = por %p212, %p213
      %p216 = scmp.ne.s32.totalorder %s201, %s215
      %p217 = scmp.eq.s32.totalorder %s23, 0
      %p218 = por %p216, %p217
      %s220 = sadd.s32 %s219, 1
      %p223 = scmp.eq.s32.totalorder %s17, 1
      %p224 = scmp.ne.s32.totalorder %s219, %s221
      %p225 = scmp.eq.s32.totalorder %s17, 0
      %p226 = por %p224, %p225
      %p227 = scmp.ne.s32.totalorder %s219, %s221
      %p228 = scmp.eq.s32.totalorder %s22, 1
      %p229 = por %p227, %p228
      %p230 = scmp.ne.s32.totalorder %s221, %s222
      %p231 = scmp.eq.s32.totalorder %s22, 0
      %p232 = por %p230, %p231
      %p233 = scmp.ne.s32.totalorder %s221, %s222
      %p234 = scmp.eq.s32.totalorder %s23, 1
      %p235 = por %p233, %p234
      %p237 = scmp.ne.s32.totalorder %s222, %s236
      %p238 = scmp.eq.s32.totalorder %s23, 0
      %p239 = por %p237, %p238
      %s240 = ssub.s32 %s17, %s24
      %p241 = scmp.eq.s32.totalorder %s240, 0
      %s243 = sadd.s32 %s242, 1
      %s244 = scalar_select %p241, %s242, %s243
      %p247 = pneg %p241
      %p248 = scmp.eq.s32.totalorder %s17, 1
      %p249 = por %p247, %p248
      %p250 = scmp.ne.s32.totalorder %s242, %s245
      %p251 = scmp.eq.s32.totalorder %s17, 0
      %p252 = por %p250, %p251
      %p253 = scmp.ne.s32.totalorder %s242, %s245
      %p254 = scmp.eq.s32.totalorder %s22, 1
      %p255 = por %p253, %p254
      %p256 = scmp.ne.s32.totalorder %s245, %s246
      %p257 = scmp.eq.s32.totalorder %s22, 0
      %p258 = por %p256, %p257
      %p259 = scmp.ne.s32.totalorder %s245, %s246
      %p260 = scmp.eq.s32.totalorder %s23, 1
      %p261 = por %p259, %p260
      %p263 = scmp.ne.s32.totalorder %s246, %s262
      %p264 = scmp.eq.s32.totalorder %s23, 0
      %p265 = por %p263, %p264
      %p266 = scmp.le.s32.totalorder 1, %s17
      %p267 = scmp.lt.s32.totalorder %s17, 3
      %p268 = pnand %p266, %p267
      %p269 = pneg %p268
      // Predicated region
      $region9: #{rtmdet_csp_block.1} parent=5 // pred_check
        _
      $region10: #{rtmdet_csp_block.1} parent=5 // pred_check_branch
        %271 = sbr.rel (%p268) target = $region12
      $region11: #{rtmdet_csp_block.1} parent=5 // pred_region
        %s272 = ssub.s32 %s17, 1
        // Predicated region
        $region13: #{rtmdet_csp_block.1} parent=11 // pred_check
          %p273 = pneg %p64
        $region14: #{rtmdet_csp_block.1} parent=11 // pred_check_branch
          %275 = sbr.rel (%p273) target = $region16
        $region15: #{rtmdet_csp_block.1} parent=11 // pred_region
          _
        $region16: #{rtmdet_csp_block.1} parent=11 // pred_fallthru
          _
        // Predicated region
        $region17: #{rtmdet_csp_block.1} parent=11 // pred_check
          %p276 = pneg %p85
        $region18: #{rtmdet_csp_block.1} parent=11 // pred_check_branch
          %278 = sbr.rel (%p276) target = $region20
        $region19: #{rtmdet_csp_block.1} parent=11 // pred_region
          _
        $region20: #{rtmdet_csp_block.1} parent=11 // pred_fallthru
          _
        // Predicated region
        $region21: #{rtmdet_csp_block.1} parent=11 // pred_check
          %p279 = pneg %p106
        $region22: #{rtmdet_csp_block.1} parent=11 // pred_check_branch
          %281 = sbr.rel (%p279) target = $region24
        $region23: #{rtmdet_csp_block.1} parent=11 // pred_region
          _
        $region24: #{rtmdet_csp_block.1} parent=11 // pred_fallthru
          _
        // Predicated region
        $region25: #{rtmdet_csp_block.1} parent=11 // pred_check
          %p282 = pneg %p127
        $region26: #{rtmdet_csp_block.1} parent=11 // pred_check_branch
          %284 = sbr.rel (%p282) target = $region28
        $region27: #{rtmdet_csp_block.1} parent=11 // pred_region
          _
        $region28: #{rtmdet_csp_block.1} parent=11 // pred_fallthru
          _
        // Predicated region
        $region29: #{rtmdet_csp_block.1} parent=11 // pred_check
          %p285 = pneg %p148
        $region30: #{rtmdet_csp_block.1} parent=11 // pred_check_branch
          %287 = sbr.rel (%p285) target = $region32
        $region31: #{rtmdet_csp_block.1} parent=11 // pred_region
          %s289 = ssub.s32 9216, 9216
          %290 = vsyncadd [#allocation4], %s289
          %s291 = sshll.u32 [#allocation3], 4
          %s292 = int_to_ptr.vmem [resolvable:$true] %s291
          %297 = dma.hbm_to_vmem [thread:$0]  %s5, 9216, %s292, [#allocation4], 64, 64, 4
        $region32: #{rtmdet_csp_block.1} parent=11 // pred_fallthru
          _
        // Predicated region
        $region33: #{rtmdet_csp_block.1} parent=11 // pred_check
          %p298 = pneg %p169
        $region34: #{rtmdet_csp_block.1} parent=11 // pred_check_branch
          %300 = sbr.rel (%p298) target = $region36
        $region35: #{rtmdet_csp_block.1} parent=11 // pred_region
          _
        $region36: #{rtmdet_csp_block.1} parent=11 // pred_fallthru
          _
        // Predicated region
        $region37: #{rtmdet_csp_block.1} parent=11 // pred_check
          %p301 = pneg %p190
        $region38: #{rtmdet_csp_block.1} parent=11 // pred_check_branch
          %303 = sbr.rel (%p301) target = $region40
        $region39: #{rtmdet_csp_block.1} parent=11 // pred_region
          _
        $region40: #{rtmdet_csp_block.1} parent=11 // pred_fallthru
          _
        // Predicated region
        $region41: #{rtmdet_csp_block.1} parent=11 // pred_check
          %p304 = pneg %p211
        $region42: #{rtmdet_csp_block.1} parent=11 // pred_check_branch
          %306 = sbr.rel (%p304) target = $region44
        $region43: #{rtmdet_csp_block.1} parent=11 // pred_region
          _
        $region44: #{rtmdet_csp_block.1} parent=11 // pred_fallthru
          _
        // Predicated region
        $region45: #{rtmdet_csp_block.1} parent=11 // pred_check
          %p307 = pneg %p232
        $region46: #{rtmdet_csp_block.1} parent=11 // pred_check_branch
          %309 = sbr.rel (%p307) target = $region48
        $region47: #{rtmdet_csp_block.1} parent=11 // pred_region
          _
        $region48: #{rtmdet_csp_block.1} parent=11 // pred_fallthru
          _
      $region12: #{rtmdet_csp_block.1} parent=5 // pred_fallthru
        _
      %p310 = scmp.lt.s32.totalorder %s17, 2
      // Predicated region
      $region49: #{rtmdet_csp_block.1} parent=5 // pred_check
        %p311 = pneg %p310
      $region50: #{rtmdet_csp_block.1} parent=5 // pred_check_branch
        %313 = sbr.rel (%p311) target = $region52
      $region51: #{rtmdet_csp_block.1} parent=5 // pred_region
        // Predicated region
        $region53: #{rtmdet_csp_block.1} parent=51 // pred_check
          %p314 = pneg %p37
        $region54: #{rtmdet_csp_block.1} parent=51 // pred_check_branch
          %316 = sbr.rel (%p314) target = $region56
        $region55: #{rtmdet_csp_block.1} parent=51 // pred_region
          %p317 = scmp.lt.s32.totalorder %s17, 1
          %s318 = scalar_select %p317, %s17, 1
          %s319 = smul.addr %s318, 32
          %s320 = smul.addr %s319, 4
          %s321 = scalar_lea.vmem %s0, %s320
        $region56: #{rtmdet_csp_block.1} parent=51 // pred_fallthru
          _
      $region52: #{rtmdet_csp_block.1} parent=5 // pred_fallthru
        _
      %p322 = scmp.le.s32.totalorder 1, %s17
      %p323 = scmp.lt.s32.totalorder %s17, 3
      %p324 = pnand %p322, %p323
      %p325 = pneg %p324
      // Predicated region
      $region57: #{rtmdet_csp_block.1} parent=5 // pred_check
        _
      $region58: #{rtmdet_csp_block.1} parent=5 // pred_check_branch
        %327 = sbr.rel (%p324) target = $region60
      $region59: #{rtmdet_csp_block.1} parent=5 // pred_region
        %s328 = ssub.s32 %s17, 1
        // Predicated region
        $region61: #{rtmdet_csp_block.1} parent=59 // pred_check
          %p329 = pneg %p148
        $region62: #{rtmdet_csp_block.1} parent=59 // pred_check_branch
          %331 = sbr.rel (%p329) target = $region64
        $region63: #{rtmdet_csp_block.1} parent=59 // pred_region
          %332 = dma.done [#allocation4], 9216
        $region64: #{rtmdet_csp_block.1} parent=59 // pred_fallthru
          _
        %p333 = scmp.lt.s32.totalorder %s22, 1
        %s334 = scalar_select %p333, %s22, 1
        %s335 = smul.addr %s334, 32
        %s336 = smul.addr %s335, 4
        %s337 = scalar_lea.vmem %s0, %s336
        %p338 = pneg %p43
        %p339 = pneg %p40
        %p340 = pneg %p64
        %p341 = pneg %p61
        %p342 = pneg %p85
        %p343 = pneg %p82
        %p344 = pneg %p106
        %p345 = pneg %p103
        %p346 = pneg %p127
        %p347 = pneg %p124
        %p348 = pneg %p148
        %p349 = pneg %p145
        %p350 = pneg %p169
        %p351 = pneg %p166
        %p352 = pneg %p190
        %p353 = pneg %p187
        %p354 = pneg %p211
        %p355 = pneg %p208
        %p356 = pneg %p232
        %p357 = pneg %p229
        %p358 = pneg %p258
        %p359 = pneg %p255
        %p360 = scmp.lt.s32.totalorder %s22, 1
        %s361 = scalar_select %p360, %s22, 1
        %s362 = smul.addr %s361, 32
        %s363 = smul.addr %s362, 8
        %s364 = scalar_lea.vmem %s10, %s363
        %p365 = scmp.lt.s32.totalorder %s22, 1
        %s366 = scalar_select %p365, %s22, 1
        %s367 = smul.addr %s366, 32
        %s368 = smul.addr %s367, 4
        %s369 = scalar_lea.vmem %s0, %s368
        %p370 = scmp.lt.s32.totalorder %s22, 1
        %s371 = scalar_select %p370, %s22, 1
        %s372 = smul.addr %s371, 32
        %s373 = smul.addr %s372, 8
        %s374 = scalar_lea.vmem %s10, %s373
        %v376 = vld [vmem:[%s369] sm:$0xf]
        %v377 = vld [vmem:[%s369 + $0x4] sm:$0xf]
        %v378 = vld [vmem:[%s369 + $0x8] sm:$0xf]
        %v379 = vld [vmem:[%s369 + $0xc] sm:$0xf]
        %v380 = vld [vmem:[%s369 + $0x10] sm:$0xf]
        %v381 = vld [vmem:[%s369 + $0x14] sm:$0xf]
        %v382 = vld [vmem:[%s369 + $0x18] sm:$0xf]
        %v383 = vld [vmem:[%s369 + $0x1c] sm:$0xf]
        %v384 = vld [vmem:[%s369 + $0x20] sm:$0xf]
        %v385 = vld [vmem:[%s369 + $0x24] sm:$0xf]
        %v386 = vld [vmem:[%s369 + $0x28] sm:$0xf]
        %v387 = vld [vmem:[%s369 + $0x2c] sm:$0xf]
        %v388 = vld [vmem:[%s369 + $0x30] sm:$0xf]
        %v389 = vld [vmem:[%s369 + $0x34] sm:$0xf]
        %v390 = vld [vmem:[%s369 + $0x38] sm:$0xf]
        %v391 = vld [vmem:[%s369 + $0x3c] sm:$0xf]
        %v392 = vld [vmem:[%s369 + $0x40] sm:$0xf]
        %v393 = vld [vmem:[%s369 + $0x44] sm:$0xf]
        %v394 = vld [vmem:[%s369 + $0x48] sm:$0xf]
        %v395 = vld [vmem:[%s369 + $0x4c] sm:$0xf]
        %v396 = vld [vmem:[%s369 + $0x50] sm:$0xf]
        %v397 = vld [vmem:[%s369 + $0x54] sm:$0xf]
        %v398 = vld [vmem:[%s369 + $0x58] sm:$0xf]
        %v399 = vld [vmem:[%s369 + $0x5c] sm:$0xf]
        %v400 = vld [vmem:[%s369 + $0x60] sm:$0xf]
        %v401 = vld [vmem:[%s369 + $0x64] sm:$0xf]
        %v402 = vld [vmem:[%s369 + $0x68] sm:$0xf]
        %v403 = vld [vmem:[%s369 + $0x6c] sm:$0xf]
        %v404 = vld [vmem:[%s369 + $0x70] sm:$0xf]
        %v405 = vld [vmem:[%s369 + $0x74] sm:$0xf]
        %v406 = vld [vmem:[%s369 + $0x78] sm:$0xf]
        %v407 = vld [vmem:[%s369 + $0x7c] sm:$0xf]
        %v408 = vld [vmem:[%s1] sm:$0xf]
        %v409 = vld [vmem:[%s1 + $0x4] sm:$0xf]
        %v410 = vld [vmem:[%s1 + $0x8] sm:$0xf]
        %v411 = vld [vmem:[%s1 + $0xc] sm:$0xf]
        %v412 = vld [vmem:[%s1 + $0x10] sm:$0xf]
        %v413 = vld [vmem:[%s1 + $0x14] sm:$0xf]
        %v414 = vld [vmem:[%s1 + $0x18] sm:$0xf]
        %v415 = vld [vmem:[%s1 + $0x1c] sm:$0xf]
        %v416 = vld [vmem:[%s1 + $0x20] sm:$0xf]
        %v417 = vld [vmem:[%s1 + $0x24] sm:$0xf]
        %v418 = vld [vmem:[%s1 + $0x28] sm:$0xf]
        %v419 = vld [vmem:[%s1 + $0x2c] sm:$0xf]
        %v420 = vld [vmem:[%s1 + $0x30] sm:$0xf]
        %v421 = vld [vmem:[%s1 + $0x34] sm:$0xf]
        %v422 = vld [vmem:[%s1 + $0x38] sm:$0xf]
        %v423 = vld [vmem:[%s1 + $0x3c] sm:$0xf]
        %v424 = vld [vmem:[%s2] sm:$0x1]
        %v426 = vlaneseq
        %v427 = vshrl.u32 %v426, 7
        %v428 = vsub.s32 0, %v427
        %v429 = vrot.slane %v424, %v428
        %v463 = vunpack.c.l.b16 %v376
        %v464 = vunpack.c.l.b16 %v377
        %v465 = vunpack.c.l.b16 %v378
        %v466 = vunpack.c.l.b16 %v379
        %v467 = vunpack.c.l.b16 %v380
        %v468 = vunpack.c.l.b16 %v381
        %v469 = vunpack.c.l.b16 %v382
        %v470 = vunpack.c.l.b16 %v383
        %v471 = vunpack.c.l.b16 %v384
        %v472 = vunpack.c.l.b16 %v385
        %v473 = vunpack.c.l.b16 %v386
        %v474 = vunpack.c.l.b16 %v387
        %v475 = vunpack.c.l.b16 %v388
        %v476 = vunpack.c.l.b16 %v389
        %v477 = vunpack.c.l.b16 %v390
        %v478 = vunpack.c.l.b16 %v391
        %v479 = vunpack.c.l.b16 %v392
        %v480 = vunpack.c.l.b16 %v393
        %v481 = vunpack.c.l.b16 %v394
        %v482 = vunpack.c.l.b16 %v395
        %v483 = vunpack.c.l.b16 %v396
        %v484 = vunpack.c.l.b16 %v397
        %v485 = vunpack.c.l.b16 %v398
        %v486 = vunpack.c.l.b16 %v399
        %v487 = vunpack.c.l.b16 %v400
        %v488 = vunpack.c.l.b16 %v401
        %v489 = vunpack.c.l.b16 %v402
        %v490 = vunpack.c.l.b16 %v403
        %v491 = vunpack.c.l.b16 %v404
        %v492 = vunpack.c.l.b16 %v405
        %v493 = vunpack.c.l.b16 %v406
        %v494 = vunpack.c.l.b16 %v407
        %v495 = vpack.c.b16 %v464, %v463
        %v496 = vpack.c.b16 %v466, %v465
        %v497 = vpack.c.b16 %v468, %v467
        %v498 = vpack.c.b16 %v470, %v469
        %v499 = vpack.c.b16 %v472, %v471
        %v500 = vpack.c.b16 %v474, %v473
        %v501 = vpack.c.b16 %v476, %v475
        %v502 = vpack.c.b16 %v478, %v477
        %v503 = vpack.c.b16 %v480, %v479
        %v504 = vpack.c.b16 %v482, %v481
        %v505 = vpack.c.b16 %v484, %v483
        %v506 = vpack.c.b16 %v486, %v485
        %v507 = vpack.c.b16 %v488, %v487
        %v508 = vpack.c.b16 %v490, %v489
        %v509 = vpack.c.b16 %v492, %v491
        %v510 = vpack.c.b16 %v494, %v493
        %v543 = vunpack.c.l.b16 %v408
        %v544 = vunpack.c.l.b16 %v409
        %v545 = vunpack.c.l.b16 %v410
        %v546 = vunpack.c.l.b16 %v411
        %v547 = vunpack.c.l.b16 %v412
        %v548 = vunpack.c.l.b16 %v413
        %v549 = vunpack.c.l.b16 %v414
        %v550 = vunpack.c.l.b16 %v415
        %v551 = vunpack.c.l.b16 %v416
        %v552 = vunpack.c.l.b16 %v417
        %v553 = vunpack.c.l.b16 %v418
        %v554 = vunpack.c.l.b16 %v419
        %v555 = vunpack.c.l.b16 %v420
        %v556 = vunpack.c.l.b16 %v421
        %v557 = vunpack.c.l.b16 %v422
        %v558 = vunpack.c.l.b16 %v423
        %v559 = vpack.c.b16 %v544, %v543
        %v560 = vpack.c.b16 %v546, %v545
        %v561 = vpack.c.b16 %v548, %v547
        %v562 = vpack.c.b16 %v550, %v549
        %v563 = vpack.c.b16 %v552, %v551
        %v564 = vpack.c.b16 %v554, %v553
        %v565 = vpack.c.b16 %v556, %v555
        %v566 = vpack.c.b16 %v558, %v557
        %575 = vmatprep.subr.bf16.mxu0 0
        %576 = vmatpush1.bf16.msra.mxu0 %v566
        %577 = vmatprep.subr.bf16.mxu0 0
        %578 = vmatpush1.bf16.msra.mxu0 %v565
        %579 = vmatprep.subr.bf16.mxu0 0
        %580 = vmatpush1.bf16.msra.mxu0 %v564
        %581 = vmatprep.subr.bf16.mxu0 0
        %582 = vmatpush1.bf16.msra.mxu0 %v563
        %583 = vmatprep.subr.bf16.mxu0 0
        %584 = vmatpush1.bf16.msra.mxu0 %v562
        %585 = vmatprep.subr.bf16.mxu0 0
        %586 = vmatpush1.bf16.msra.mxu0 %v561
        %587 = vmatprep.subr.bf16.mxu0 0
        %588 = vmatpush1.bf16.msra.mxu0 %v560
        %589 = vmatprep.subr.bf16.mxu0 0
        %590 = vmatpush1.bf16.msra.mxu0 %v559
        %591 = vmatprep.subr.bf16.mxu0 0
        %592 = vmatpush2.bf16.msra.mxu0 0
        %593 = vmatprep.subr.bf16.mxu0 0
        %594 = vmatpush2.bf16.msra.mxu0 0
        %595 = vmatprep.subr.bf16.mxu0 0
        %596 = vmatpush2.bf16.msra.mxu0 0
        %597 = vmatprep.subr.bf16.mxu0 0
        %598 = vmatpush2.bf16.msra.mxu0 0
        %599 = vmatprep.subr.bf16.mxu0 0
        %600 = vmatpush2.bf16.msra.mxu0 0
        %601 = vmatprep.subr.bf16.mxu0 0
        %602 = vmatpush2.bf16.msra.mxu0 0
        %603 = vmatprep.subr.bf16.mxu0 0
        %604 = vmatpush2.bf16.msra.mxu0 0
        %605 = vmatprep.subr.bf16.mxu0 0
        %606 = vmatpush2.bf16.msra.mxu0 0
        %607 = vmatprep.mubr.bf16.mxu0 0
        %608 = vmatmul.mubr.bf16.gmra.mxu0 %v495
        %v609 = vpop.f32.mrf.mxu0
        %v610 = vadd.f32 %v429, %v609
        %v611 = vpop.f32.mrf.mxu0
        %v612 = vpop.f32.mrf.mxu0
        %v613 = vadd.f32 %v429, %v612
        %v614 = vpop.f32.mrf.mxu0
        %615 = vmatprep.mubr.bf16.mxu0 0
        %616 = vmatmul.mubr.bf16.gmra.mxu0 %v496
        %v617 = vpop.f32.mrf.mxu0
        %v618 = vadd.f32 %v429, %v617
        %v619 = vpop.f32.mrf.mxu0
        %v620 = vpop.f32.mrf.mxu0
        %v621 = vadd.f32 %v429, %v620
        %v622 = vpop.f32.mrf.mxu0
        %623 = vmatprep.mubr.bf16.mxu0 0
        %624 = vmatmul.mubr.bf16.gmra.mxu0 %v497
        %v625 = vpop.f32.mrf.mxu0
        %v626 = vadd.f32 %v429, %v625
        %v627 = vpop.f32.mrf.mxu0
        %v628 = vpop.f32.mrf.mxu0
        %v629 = vadd.f32 %v429, %v628
        %v630 = vpop.f32.mrf.mxu0
        %631 = vmatprep.mubr.bf16.mxu0 0
        %632 = vmatmul.mubr.bf16.gmra.mxu0 %v498
        %v633 = vpop.f32.mrf.mxu0
        %v634 = vadd.f32 %v429, %v633
        %v635 = vpop.f32.mrf.mxu0
        %v636 = vpop.f32.mrf.mxu0
        %v637 = vadd.f32 %v429, %v636
        %v638 = vpop.f32.mrf.mxu0
        %639 = vmatprep.mubr.bf16.mxu0 0
        %640 = vmatmul.mubr.bf16.gmra.mxu0 %v499
        %v641 = vpop.f32.mrf.mxu0
        %v642 = vadd.f32 %v429, %v641
        %v643 = vpop.f32.mrf.mxu0
        %v644 = vpop.f32.mrf.mxu0
        %v645 = vadd.f32 %v429, %v644
        %v646 = vpop.f32.mrf.mxu0
        %647 = vmatprep.mubr.bf16.mxu0 0
        %648 = vmatmul.mubr.bf16.gmra.mxu0 %v500
        %v649 = vpop.f32.mrf.mxu0
        %v650 = vadd.f32 %v429, %v649
        %v651 = vpop.f32.mrf.mxu0
        %v652 = vpop.f32.mrf.mxu0
        %v653 = vadd.f32 %v429, %v652
        %v654 = vpop.f32.mrf.mxu0
        %655 = vmatprep.mubr.bf16.mxu0 0
        %656 = vmatmul.mubr.bf16.gmra.mxu0 %v501
        %v657 = vpop.f32.mrf.mxu0
        %v658 = vadd.f32 %v429, %v657
        %v659 = vpop.f32.mrf.mxu0
        %v660 = vpop.f32.mrf.mxu0
        %v661 = vadd.f32 %v429, %v660
        %v662 = vpop.f32.mrf.mxu0
        %663 = vmatprep.mubr.bf16.mxu0 0
        %664 = vmatmul.mubr.bf16.gmra.mxu0 %v502
        %v665 = vpop.f32.mrf.mxu0
        %v666 = vadd.f32 %v429, %v665
        %v667 = vpop.f32.mrf.mxu0
        %v668 = vpop.f32.mrf.mxu0
        %v669 = vadd.f32 %v429, %v668
        %v670 = vpop.f32.mrf.mxu0
        %671 = vmatprep.mubr.bf16.mxu0 0
        %672 = vmatmul.mubr.bf16.gmra.mxu0 %v503
        %v673 = vpop.f32.mrf.mxu0
        %v674 = vadd.f32 %v429, %v673
        %v675 = vpop.f32.mrf.mxu0
        %v676 = vpop.f32.mrf.mxu0
        %v677 = vadd.f32 %v429, %v676
        %v678 = vpop.f32.mrf.mxu0
        %679 = vmatprep.mubr.bf16.mxu0 0
        %680 = vmatmul.mubr.bf16.gmra.mxu0 %v504
        %v681 = vpop.f32.mrf.mxu0
        %v682 = vadd.f32 %v429, %v681
        %v683 = vpop.f32.mrf.mxu0
        %v684 = vpop.f32.mrf.mxu0
        %v685 = vadd.f32 %v429, %v684
        %v686 = vpop.f32.mrf.mxu0
        %687 = vmatprep.mubr.bf16.mxu0 0
        %688 = vmatmul.mubr.bf16.gmra.mxu0 %v505
        %v689 = vpop.f32.mrf.mxu0
        %v690 = vadd.f32 %v429, %v689
        %v691 = vpop.f32.mrf.mxu0
        %v692 = vpop.f32.mrf.mxu0
        %v693 = vadd.f32 %v429, %v692
        %v694 = vpop.f32.mrf.mxu0
        %695 = vmatprep.mubr.bf16.mxu0 0
        %696 = vmatmul.mubr.bf16.gmra.mxu0 %v506
        %v697 = vpop.f32.mrf.mxu0
        %v698 = vadd.f32 %v429, %v697
        %v699 = vpop.f32.mrf.mxu0
        %v700 = vpop.f32.mrf.mxu0
        %v701 = vadd.f32 %v429, %v700
        %v702 = vpop.f32.mrf.mxu0
        %703 = vmatprep.mubr.bf16.mxu0 0
        %704 = vmatmul.mubr.bf16.gmra.mxu0 %v507
        %v705 = vpop.f32.mrf.mxu0
        %v706 = vadd.f32 %v429, %v705
        %v707 = vpop.f32.mrf.mxu0
        %v708 = vpop.f32.mrf.mxu0
        %v709 = vadd.f32 %v429, %v708
        %v710 = vpop.f32.mrf.mxu0
        %711 = vmatprep.mubr.bf16.mxu0 0
        %712 = vmatmul.mubr.bf16.gmra.mxu0 %v508
        %v713 = vpop.f32.mrf.mxu0
        %v714 = vadd.f32 %v429, %v713
        %v715 = vpop.f32.mrf.mxu0
        %v716 = vpop.f32.mrf.mxu0
        %v717 = vadd.f32 %v429, %v716
        %v718 = vpop.f32.mrf.mxu0
        %719 = vmatprep.mubr.bf16.mxu0 0
        %720 = vmatmul.mubr.bf16.gmra.mxu0 %v509
        %v721 = vpop.f32.mrf.mxu0
        %v722 = vadd.f32 %v429, %v721
        %v723 = vpop.f32.mrf.mxu0
        %v724 = vpop.f32.mrf.mxu0
        %v725 = vadd.f32 %v429, %v724
        %v726 = vpop.f32.mrf.mxu0
        %727 = vmatprep.mubr.bf16.mxu0 0
        %728 = vmatmul.mubr.bf16.gmra.mxu0 %v510
        %v729 = vpop.f32.mrf.mxu0
        %v730 = vadd.f32 %v429, %v729
        %v731 = vpop.f32.mrf.mxu0
        %v732 = vpop.f32.mrf.mxu0
        %v733 = vadd.f32 %v429, %v732
        %v734 = vpop.f32.mrf.mxu0
        %735 = vdwg.mxu0
        %v736 = vpack.c.bf16 %v613, %v610
        %v737 = vpack.c.bf16 %v621, %v618
        %v738 = vpack.c.bf16 %v629, %v626
        %v739 = vpack.c.bf16 %v637, %v634
        %v740 = vpack.c.bf16 %v645, %v642
        %v741 = vpack.c.bf16 %v653, %v650
        %v742 = vpack.c.bf16 %v661, %v658
        %v743 = vpack.c.bf16 %v669, %v666
        %v744 = vpack.c.bf16 %v677, %v674
        %v745 = vpack.c.bf16 %v685, %v682
        %v746 = vpack.c.bf16 %v693, %v690
        %v747 = vpack.c.bf16 %v701, %v698
        %v748 = vpack.c.bf16 %v709, %v706
        %v749 = vpack.c.bf16 %v717, %v714
        %v750 = vpack.c.bf16 %v725, %v722
        %v751 = vpack.c.bf16 %v733, %v730
        %752 = vst [vmem:[#allocation2] sm:$0xf] 0
        %753 = vst [vmem:[#allocation2 + $0x4] sm:$0xf] 0
        %754 = vst [vmem:[#allocation2 + $0x8] sm:$0x1] 0
        %755 = vst [vmem:[#allocation2 + $0xc] sm:$0xf] 0
        %756 = vst [vmem:[#allocation2 + $0x10] sm:$0xf] 0
        %757 = vst [vmem:[#allocation2 + $0x14] sm:$0x1] 0
        %758 = vst [vmem:[#allocation2 + $0x18] sm:$0xf] 0
        %759 = vst [vmem:[#allocation2 + $0x1c] sm:$0xf] 0
        %760 = vst [vmem:[#allocation2 + $0x20] sm:$0x1] 0
        %761 = vst [vmem:[#allocation2 + $0x24] sm:$0xf] 0
        %762 = vst [vmem:[#allocation2 + $0x28] sm:$0xf] 0
        %763 = vst [vmem:[#allocation2 + $0x2c] sm:$0x1] 0
        %764 = vst [vmem:[#allocation2 + $0x30] sm:$0xf] 0
        %765 = vst [vmem:[#allocation2 + $0x34] sm:$0xf] 0
        %766 = vst [vmem:[#allocation2 + $0x38] sm:$0x1] 0
        %767 = vst [vmem:[#allocation2 + $0x3c] sm:$0xf] 0
        %768 = vst [vmem:[#allocation2 + $0x40] sm:$0xf] 0
        %769 = vst [vmem:[#allocation2 + $0x44] sm:$0x1] 0
        %770 = vst [vmem:[#allocation2 + $0x48] sm:$0xf] 0
        %771 = vst [vmem:[#allocation2 + $0x4c] sm:$0xf] 0
        %772 = vst [vmem:[#allocation2 + $0x50] sm:$0x1] 0
        %773 = vst [vmem:[#allocation2 + $0x54] sm:$0xf] 0
        %774 = vst [vmem:[#allocation2 + $0x58] sm:$0xf] 0
        %775 = vst [vmem:[#allocation2 + $0x5c] sm:$0x1] 0
        %776 = vst [vmem:[#allocation2 + $0x60] sm:$0xf] 0
        %777 = vst [vmem:[#allocation2 + $0x64] sm:$0xf] 0
        %778 = vst [vmem:[#allocation2 + $0x68] sm:$0x1] 0
        %779 = vst [vmem:[#allocation2 + $0x6c] sm:$0xf] 0
        %780 = vst [vmem:[#allocation2 + $0x70] sm:$0xf] 0
        %781 = vst [vmem:[#allocation2 + $0x74] sm:$0x1] 0
        %782 = vst [vmem:[#allocation2 + $0x78] sm:$0xf] 0
        %783 = vst [vmem:[#allocation2 + $0x7c] sm:$0xf] 0
        %784 = vst [vmem:[#allocation2 + $0x80] sm:$0x1] 0
        %785 = vst [vmem:[#allocation2 + $0x84] sm:$0xf] 0
        %786 = vst [vmem:[#allocation2 + $0x88] sm:$0xf] 0
        %787 = vst [vmem:[#allocation2 + $0x8c] sm:$0x1] 0
        %788 = vst [vmem:[#allocation2 + $0x90] sm:$0xf] 0
        %789 = vst [vmem:[#allocation2 + $0x94] sm:$0xf] 0
        %790 = vst [vmem:[#allocation2 + $0x98] sm:$0x1] 0
        %791 = vst [vmem:[#allocation2 + $0x9c] sm:$0xf] 0
        %792 = vst [vmem:[#allocation2 + $0xa0] sm:$0xf] 0
        %793 = vst [vmem:[#allocation2 + $0xa4] sm:$0x1] 0
        %794 = vst [vmem:[#allocation2 + $0xa8] sm:$0xf] 0
        %795 = vst [vmem:[#allocation2 + $0xac] sm:$0xf] 0
        %796 = vst [vmem:[#allocation2 + $0xb0] sm:$0x1] 0
        %797 = vst [vmem:[#allocation2 + $0xb4] sm:$0xf] 0
        %798 = vst [vmem:[#allocation2 + $0xb8] sm:$0xf] 0
        %799 = vst [vmem:[#allocation2 + $0xbc] sm:$0x1] 0
        %800 = vst [vmem:[#allocation2 + $0xc0] sm:$0xf] 0
        %801 = vst [vmem:[#allocation2 + $0xc4] sm:$0xf] 0
        %802 = vst [vmem:[#allocation2 + $0xc8] sm:$0x1] 0
        %803 = vst [vmem:[#allocation2 + $0xcc] sm:$0xf] 0
        %804 = vst [vmem:[#allocation2 + $0xd0] sm:$0xf] 0
        %805 = vst [vmem:[#allocation2 + $0xd4] sm:$0x1] 0
        %v822 = vunpack.c.l.b16 %v736
        %v823 = vunpack.c.h.b16 %v736
        %v824 = vunpack.c.l.b16 %v737
        %v825 = vunpack.c.h.b16 %v737
        %v826 = vunpack.c.l.b16 %v738
        %v827 = vunpack.c.h.b16 %v738
        %v828 = vunpack.c.l.b16 %v739
        %v829 = vunpack.c.h.b16 %v739
        %v830 = vunpack.c.l.b16 %v740
        %v831 = vunpack.c.h.b16 %v740
        %v832 = vunpack.c.l.b16 %v741
        %v833 = vunpack.c.h.b16 %v741
        %v834 = vunpack.c.l.b16 %v742
        %v835 = vunpack.c.h.b16 %v742
        %v836 = vunpack.c.l.b16 %v743
        %v837 = vunpack.c.h.b16 %v743
        %v838 = vunpack.c.l.b16 %v744
        %v839 = vunpack.c.h.b16 %v744
        %v840 = vunpack.c.l.b16 %v745
        %v841 = vunpack.c.h.b16 %v745
        %v842 = vunpack.c.l.b16 %v746
        %v843 = vunpack.c.h.b16 %v746
        %v844 = vunpack.c.l.b16 %v747
        %v845 = vunpack.c.h.b16 %v747
        %v846 = vunpack.c.l.b16 %v748
        %v847 = vunpack.c.h.b16 %v748
        %v848 = vunpack.c.l.b16 %v749
        %v849 = vunpack.c.h.b16 %v749
        %v850 = vunpack.c.l.b16 %v750
        %v851 = vunpack.c.h.b16 %v750
        %v852 = vunpack.c.l.b16 %v751
        %v853 = vunpack.c.h.b16 %v751
        %v854 = vpack.c.b16 %v822, %v822
        %v855 = vpack.c.b16 %v823, %v823
        %v856 = vpack.c.b16 %v824, %v824
        %v857 = vpack.c.b16 %v825, %v825
        %v858 = vpack.c.b16 %v826, %v826
        %v859 = vpack.c.b16 %v827, %v827
        %v860 = vpack.c.b16 %v828, %v828
        %v861 = vpack.c.b16 %v829, %v829
        %v862 = vpack.c.b16 %v830, %v830
        %v863 = vpack.c.b16 %v831, %v831
        %v864 = vpack.c.b16 %v832, %v832
        %v865 = vpack.c.b16 %v833, %v833
        %v866 = vpack.c.b16 %v834, %v834
        %v867 = vpack.c.b16 %v835, %v835
        %v868 = vpack.c.b16 %v836, %v836
        %v869 = vpack.c.b16 %v837, %v837
        %v870 = vpack.c.b16 %v838, %v838
        %v871 = vpack.c.b16 %v839, %v839
        %v872 = vpack.c.b16 %v840, %v840
        %v873 = vpack.c.b16 %v841, %v841
        %v874 = vpack.c.b16 %v842, %v842
        %v875 = vpack.c.b16 %v843, %v843
        %v876 = vpack.c.b16 %v844, %v844
        %v877 = vpack.c.b16 %v845, %v845
        %v878 = vpack.c.b16 %v846, %v846
        %v879 = vpack.c.b16 %v847, %v847
        %v880 = vpack.c.b16 %v848, %v848
        %v881 = vpack.c.b16 %v849, %v849
        %v882 = vpack.c.b16 %v850, %v850
        %v883 = vpack.c.b16 %v851, %v851
        %v884 = vpack.c.b16 %v852, %v852
        %v885 = vpack.c.b16 %v853, %v853
        %vm886 = vsmask.f32 256
        %vm887 = vsmask.f32 4368
        %vm888 = vmor %vm886, %vm887
        %v890 = vshrl.u32 %v854, 16
        %v892 = vrot.slane %v890, 7
        %v893 = vshll.u32 %v854, 16
        %v895 = vor.u32 %v892, %v893
        %v896 = vrot.slane %v892, 4
        %v898 = vshrl.u32 %v855, 16
        %v900 = vrot.slane %v898, 7
        %v901 = vshll.u32 %v855, 16
        %v903 = vor.u32 %v900, %v901
        %v904 = vsel %vm888, %v896, %v903
        %v905 = vrot.slane %v900, 4
        %v907 = vshrl.u32 %v856, 16
        %v909 = vrot.slane %v907, 7
        %v910 = vshll.u32 %v856, 16
        %v912 = vor.u32 %v909, %v910
        %v913 = vrot.slane %v909, 4
        %v915 = vshrl.u32 %v857, 16
        %v917 = vrot.slane %v915, 7
        %v918 = vshll.u32 %v857, 16
        %v920 = vor.u32 %v917, %v918
        %v921 = vsel %vm888, %v913, %v920
        %v922 = vrot.slane %v917, 4
        %v924 = vshrl.u32 %v858, 16
        %v926 = vrot.slane %v924, 7
        %v927 = vshll.u32 %v858, 16
        %v929 = vor.u32 %v926, %v927
        %v930 = vrot.slane %v926, 4
        %v932 = vshrl.u32 %v859, 16
        %v934 = vrot.slane %v932, 7
        %v935 = vshll.u32 %v859, 16
        %v937 = vor.u32 %v934, %v935
        %v938 = vsel %vm888, %v930, %v937
        %v939 = vrot.slane %v934, 4
        %v941 = vshrl.u32 %v860, 16
        %v943 = vrot.slane %v941, 7
        %v944 = vshll.u32 %v860, 16
        %v946 = vor.u32 %v943, %v944
        %v947 = vrot.slane %v943, 4
        %v949 = vshrl.u32 %v861, 16
        %v951 = vrot.slane %v949, 7
        %v952 = vshll.u32 %v861, 16
        %v954 = vor.u32 %v951, %v952
        %v955 = vsel %vm888, %v947, %v954
        %v956 = vrot.slane %v951, 4
        %v958 = vshrl.u32 %v862, 16
        %v960 = vrot.slane %v958, 7
        %v961 = vshll.u32 %v862, 16
        %v963 = vor.u32 %v960, %v961
        %v964 = vrot.slane %v960, 4
        %v966 = vshrl.u32 %v863, 16
        %v968 = vrot.slane %v966, 7
        %v969 = vshll.u32 %v863, 16
        %v971 = vor.u32 %v968, %v969
        %v972 = vsel %vm888, %v964, %v971
        %v973 = vrot.slane %v968, 4
        %v975 = vshrl.u32 %v864, 16
        %v977 = vrot.slane %v975, 7
        %v978 = vshll.u32 %v864, 16
        %v980 = vor.u32 %v977, %v978
        %v981 = vrot.slane %v977, 4
        %v983 = vshrl.u32 %v865, 16
        %v985 = vrot.slane %v983, 7
        %v986 = vshll.u32 %v865, 16
        %v988 = vor.u32 %v985, %v986
        %v989 = vsel %vm888, %v981, %v988
        %v990 = vrot.slane %v985, 4
        %v992 = vshrl.u32 %v866, 16
        %v994 = vrot.slane %v992, 7
        %v995 = vshll.u32 %v866, 16
        %v997 = vor.u32 %v994, %v995
        %v998 = vrot.slane %v994, 4
        %v1000 = vshrl.u32 %v867, 16
        %v1002 = vrot.slane %v1000, 7
        %v1003 = vshll.u32 %v867, 16
        %v1005 = vor.u32 %v1002, %v1003
        %v1006 = vsel %vm888, %v998, %v1005
        %v1007 = vrot.slane %v1002, 4
        %v1009 = vshrl.u32 %v868, 16
        %v1011 = vrot.slane %v1009, 7
        %v1012 = vshll.u32 %v868, 16
        %v1014 = vor.u32 %v1011, %v1012
        %v1015 = vrot.slane %v1011, 4
        %v1017 = vshrl.u32 %v869, 16
        %v1019 = vrot.slane %v1017, 7
        %v1020 = vshll.u32 %v869, 16
        %v1022 = vor.u32 %v1019, %v1020
        %v1023 = vsel %vm888, %v1015, %v1022
        %v1024 = vrot.slane %v1019, 4
        %v1026 = vshrl.u32 %v870, 16
        %v1028 = vrot.slane %v1026, 7
        %v1029 = vshll.u32 %v870, 16
        %v1031 = vor.u32 %v1028, %v1029
        %v1032 = vrot.slane %v1028, 4
        %v1034 = vshrl.u32 %v871, 16
        %v1036 = vrot.slane %v1034, 7
        %v1037 = vshll.u32 %v871, 16
        %v1039 = vor.u32 %v1036, %v1037
        %v1040 = vsel %vm888, %v1032, %v1039
        %v1041 = vrot.slane %v1036, 4
        %v1043 = vshrl.u32 %v872, 16
        %v1045 = vrot.slane %v1043, 7
        %v1046 = vshll.u32 %v872, 16
        %v1048 = vor.u32 %v1045, %v1046
        %v1049 = vrot.slane %v1045, 4
        %v1051 = vshrl.u32 %v873, 16
        %v1053 = vrot.slane %v1051, 7
        %v1054 = vshll.u32 %v873, 16
        %v1056 = vor.u32 %v1053, %v1054
        %v1057 = vsel %vm888, %v1049, %v1056
        %v1058 = vrot.slane %v1053, 4
        %v1060 = vshrl.u32 %v874, 16
        %v1062 = vrot.slane %v1060, 7
        %v1063 = vshll.u32 %v874, 16
        %v1065 = vor.u32 %v1062, %v1063
        %v1066 = vrot.slane %v1062, 4
        %v1068 = vshrl.u32 %v875, 16
        %v1070 = vrot.slane %v1068, 7
        %v1071 = vshll.u32 %v875, 16
        %v1073 = vor.u32 %v1070, %v1071
        %v1074 = vsel %vm888, %v1066, %v1073
        %v1075 = vrot.slane %v1070, 4
        %v1077 = vshrl.u32 %v876, 16
        %v1079 = vrot.slane %v1077, 7
        %v1080 = vshll.u32 %v876, 16
        %v1082 = vor.u32 %v1079, %v1080
        %v1083 = vrot.slane %v1079, 4
        %v1085 = vshrl.u32 %v877, 16
        %v1087 = vrot.slane %v1085, 7
        %v1088 = vshll.u32 %v877, 16
        %v1090 = vor.u32 %v1087, %v1088
        %v1091 = vsel %vm888, %v1083, %v1090
        %v1092 = vrot.slane %v1087, 4
        %v1094 = vshrl.u32 %v878, 16
        %v1096 = vrot.slane %v1094, 7
        %v1097 = vshll.u32 %v878, 16
        %v1099 = vor.u32 %v1096, %v1097
        %v1100 = vrot.slane %v1096, 4
        %v1102 = vshrl.u32 %v879, 16
        %v1104 = vrot.slane %v1102, 7
        %v1105 = vshll.u32 %v879, 16
        %v1107 = vor.u32 %v1104, %v1105
        %v1108 = vsel %vm888, %v1100, %v1107
        %v1109 = vrot.slane %v1104, 4
        %v1111 = vshrl.u32 %v880, 16
        %v1113 = vrot.slane %v1111, 7
        %v1114 = vshll.u32 %v880, 16
        %v1116 = vor.u32 %v1113, %v1114
        %v1117 = vrot.slane %v1113, 4
        %v1119 = vshrl.u32 %v881, 16
        %v1121 = vrot.slane %v1119, 7
        %v1122 = vshll.u32 %v881, 16
        %v1124 = vor.u32 %v1121, %v1122
        %v1125 = vsel %vm888, %v1117, %v1124
        %v1126 = vrot.slane %v1121, 4
        %v1128 = vshrl.u32 %v882, 16
        %v1130 = vrot.slane %v1128, 7
        %v1131 = vshll.u32 %v882, 16
        %v1133 = vor.u32 %v1130, %v1131
        %v1134 = vrot.slane %v1130, 4
        %v1136 = vshrl.u32 %v883, 16
        %v1138 = vrot.slane %v1136, 7
        %v1139 = vshll.u32 %v883, 16
        %v1141 = vor.u32 %v1138, %v1139
        %v1142 = vsel %vm888, %v1134, %v1141
        %v1143 = vrot.slane %v1138, 4
        %v1145 = vshrl.u32 %v884, 16
        %v1147 = vrot.slane %v1145, 7
        %v1148 = vshll.u32 %v884, 16
        %v1150 = vor.u32 %v1147, %v1148
        %v1151 = vrot.slane %v1147, 4
        %v1153 = vshrl.u32 %v885, 16
        %v1155 = vrot.slane %v1153, 7
        %v1156 = vshll.u32 %v885, 16
        %v1158 = vor.u32 %v1155, %v1156
        %v1159 = vsel %vm888, %v1151, %v1158
        %v1160 = vrot.slane %v1155, 4
        %s1209 = scalar_lea.vmem [#allocation2], 12
        %vm1210 = vcmask 1043456
        %vm1211 = vsmask.f32 7938
        %vm1212 = vmand %vm1210, %vm1211
        %v1213 = vld [vmem:[%s1209] sm:$0xf]
        %v1214 = vsel %vm1212, %v895, %v1213
        %1215 = vst [vmem:[%s1209] sm:$0xf] %v1214
        %1216 = vst [vmem:[%s1209 + $0x4] sm:$0xf] %v904
        %vm1217 = vcmask 1040384
        %vm1218 = vmand %vm1217, %vm886
        %v1219 = vld [vmem:[%s1209 + $0x8] sm:$0x1]
        %v1220 = vsel %vm1218, %v905, %v1219
        %1221 = vst [vmem:[%s1209 + $0x8] sm:$0x1] %v1220
        %v1222 = vld [vmem:[%s1209 + $0xc] sm:$0xf]
        %v1223 = vsel %vm1212, %v912, %v1222
        %1224 = vst [vmem:[%s1209 + $0xc] sm:$0xf] %v1223
        %1225 = vst [vmem:[%s1209 + $0x10] sm:$0xf] %v921
        %v1226 = vld [vmem:[%s1209 + $0x14] sm:$0x1]
        %v1227 = vsel %vm1218, %v922, %v1226
        %1228 = vst [vmem:[%s1209 + $0x14] sm:$0x1] %v1227
        %v1229 = vld [vmem:[%s1209 + $0x18] sm:$0xf]
        %v1230 = vsel %vm1212, %v929, %v1229
        %1231 = vst [vmem:[%s1209 + $0x18] sm:$0xf] %v1230
        %1232 = vst [vmem:[%s1209 + $0x1c] sm:$0xf] %v938
        %v1233 = vld [vmem:[%s1209 + $0x20] sm:$0x1]
        %v1234 = vsel %vm1218, %v939, %v1233
        %1235 = vst [vmem:[%s1209 + $0x20] sm:$0x1] %v1234
        %v1236 = vld [vmem:[%s1209 + $0x24] sm:$0xf]
        %v1237 = vsel %vm1212, %v946, %v1236
        %1238 = vst [vmem:[%s1209 + $0x24] sm:$0xf] %v1237
        %1239 = vst [vmem:[%s1209 + $0x28] sm:$0xf] %v955
        %v1240 = vld [vmem:[%s1209 + $0x2c] sm:$0x1]
        %v1241 = vsel %vm1218, %v956, %v1240
        %1242 = vst [vmem:[%s1209 + $0x2c] sm:$0x1] %v1241
        %v1243 = vld [vmem:[%s1209 + $0x30] sm:$0xf]
        %v1244 = vsel %vm1212, %v963, %v1243
        %1245 = vst [vmem:[%s1209 + $0x30] sm:$0xf] %v1244
        %1246 = vst [vmem:[%s1209 + $0x34] sm:$0xf] %v972
        %v1247 = vld [vmem:[%s1209 + $0x38] sm:$0x1]
        %v1248 = vsel %vm1218, %v973, %v1247
        %1249 = vst [vmem:[%s1209 + $0x38] sm:$0x1] %v1248
        %v1250 = vld [vmem:[%s1209 + $0x3c] sm:$0xf]
        %v1251 = vsel %vm1212, %v980, %v1250
        %1252 = vst [vmem:[%s1209 + $0x3c] sm:$0xf] %v1251
        %1253 = vst [vmem:[%s1209 + $0x40] sm:$0xf] %v989
        %v1254 = vld [vmem:[%s1209 + $0x44] sm:$0x1]
        %v1255 = vsel %vm1218, %v990, %v1254
        %1256 = vst [vmem:[%s1209 + $0x44] sm:$0x1] %v1255
        %v1257 = vld [vmem:[%s1209 + $0x48] sm:$0xf]
        %v1258 = vsel %vm1212, %v997, %v1257
        %1259 = vst [vmem:[%s1209 + $0x48] sm:$0xf] %v1258
        %1260 = vst [vmem:[%s1209 + $0x4c] sm:$0xf] %v1006
        %v1261 = vld [vmem:[%s1209 + $0x50] sm:$0x1]
        %v1262 = vsel %vm1218, %v1007, %v1261
        %1263 = vst [vmem:[%s1209 + $0x50] sm:$0x1] %v1262
        %v1264 = vld [vmem:[%s1209 + $0x54] sm:$0xf]
        %v1265 = vsel %vm1212, %v1014, %v1264
        %1266 = vst [vmem:[%s1209 + $0x54] sm:$0xf] %v1265
        %1267 = vst [vmem:[%s1209 + $0x58] sm:$0xf] %v1023
        %v1268 = vld [vmem:[%s1209 + $0x5c] sm:$0x1]
        %v1269 = vsel %vm1218, %v1024, %v1268
        %1270 = vst [vmem:[%s1209 + $0x5c] sm:$0x1] %v1269
        %v1271 = vld [vmem:[%s1209 + $0x60] sm:$0xf]
        %v1272 = vsel %vm1212, %v1031, %v1271
        %1273 = vst [vmem:[%s1209 + $0x60] sm:$0xf] %v1272
        %1274 = vst [vmem:[%s1209 + $0x64] sm:$0xf] %v1040
        %v1275 = vld [vmem:[%s1209 + $0x68] sm:$0x1]
        %v1276 = vsel %vm1218, %v1041, %v1275
        %1277 = vst [vmem:[%s1209 + $0x68] sm:$0x1] %v1276
        %v1278 = vld [vmem:[%s1209 + $0x6c] sm:$0xf]
        %v1279 = vsel %vm1212, %v1048, %v1278
        %1280 = vst [vmem:[%s1209 + $0x6c] sm:$0xf] %v1279
        %1281 = vst [vmem:[%s1209 + $0x70] sm:$0xf] %v1057
        %v1282 = vld [vmem:[%s1209 + $0x74] sm:$0x1]
        %v1283 = vsel %vm1218, %v1058, %v1282
        %1284 = vst [vmem:[%s1209 + $0x74] sm:$0x1] %v1283
        %v1285 = vld [vmem:[%s1209 + $0x78] sm:$0xf]
        %v1286 = vsel %vm1212, %v1065, %v1285
        %1287 = vst [vmem:[%s1209 + $0x78] sm:$0xf] %v1286
        %1288 = vst [vmem:[%s1209 + $0x7c] sm:$0xf] %v1074
        %v1289 = vld [vmem:[%s1209 + $0x80] sm:$0x1]
        %v1290 = vsel %vm1218, %v1075, %v1289
        %1291 = vst [vmem:[%s1209 + $0x80] sm:$0x1] %v1290
        %v1292 = vld [vmem:[%s1209 + $0x84] sm:$0xf]
        %v1293 = vsel %vm1212, %v1082, %v1292
        %1294 = vst [vmem:[%s1209 + $0x84] sm:$0xf] %v1293
        %1295 = vst [vmem:[%s1209 + $0x88] sm:$0xf] %v1091
        %v1296 = vld [vmem:[%s1209 + $0x8c] sm:$0x1]
        %v1297 = vsel %vm1218, %v1092, %v1296
        %1298 = vst [vmem:[%s1209 + $0x8c] sm:$0x1] %v1297
        %v1299 = vld [vmem:[%s1209 + $0x90] sm:$0xf]
        %v1300 = vsel %vm1212, %v1099, %v1299
        %1301 = vst [vmem:[%s1209 + $0x90] sm:$0xf] %v1300
        %1302 = vst [vmem:[%s1209 + $0x94] sm:$0xf] %v1108
        %v1303 = vld [vmem:[%s1209 + $0x98] sm:$0x1]
        %v1304 = vsel %vm1218, %v1109, %v1303
        %1305 = vst [vmem:[%s1209 + $0x98] sm:$0x1] %v1304
        %v1306 = vld [vmem:[%s1209 + $0x9c] sm:$0xf]
        %v1307 = vsel %vm1212, %v1116, %v1306
        %1308 = vst [vmem:[%s1209 + $0x9c] sm:$0xf] %v1307
        %1309 = vst [vmem:[%s1209 + $0xa0] sm:$0xf] %v1125
        %v1310 = vld [vmem:[%s1209 + $0xa4] sm:$0x1]
        %v1311 = vsel %vm1218, %v1126, %v1310
        %1312 = vst [vmem:[%s1209 + $0xa4] sm:$0x1] %v1311
        %v1313 = vld [vmem:[%s1209 + $0xa8] sm:$0xf]
        %v1314 = vsel %vm1212, %v1133, %v1313
        %1315 = vst [vmem:[%s1209 + $0xa8] sm:$0xf] %v1314
        %1316 = vst [vmem:[%s1209 + $0xac] sm:$0xf] %v1142
        %v1317 = vld [vmem:[%s1209 + $0xb0] sm:$0x1]
        %v1318 = vsel %vm1218, %v1143, %v1317
        %1319 = vst [vmem:[%s1209 + $0xb0] sm:$0x1] %v1318
        %v1320 = vld [vmem:[%s1209 + $0xb4] sm:$0xf]
        %v1321 = vsel %vm1212, %v1150, %v1320
        %1322 = vst [vmem:[%s1209 + $0xb4] sm:$0xf] %v1321
        %1323 = vst [vmem:[%s1209 + $0xb8] sm:$0xf] %v1159
        %v1324 = vld [vmem:[%s1209 + $0xbc] sm:$0x1]
        %v1325 = vsel %vm1218, %v1160, %v1324
        %1326 = vst [vmem:[%s1209 + $0xbc] sm:$0x1] %v1325
        %v1327 = vld [vmem:[#allocation2] sm:$0xf]
        %v1328 = vld [vmem:[#allocation2 + $0x4] sm:$0xf]
        %v1329 = vld [vmem:[#allocation2 + $0xc] sm:$0xf]
        %v1330 = vld [vmem:[#allocation2 + $0x10] sm:$0xf]
        %v1331 = vld [vmem:[#allocation2 + $0x18] sm:$0xf]
        %v1332 = vld [vmem:[#allocation2 + $0x1c] sm:$0xf]
        %v1333 = vld [vmem:[#allocation2 + $0x24] sm:$0xf]
        %v1334 = vld [vmem:[#allocation2 + $0x28] sm:$0xf]
        %v1335 = vld [vmem:[#allocation2 + $0x30] sm:$0xf]
        %v1336 = vld [vmem:[#allocation2 + $0x34] sm:$0xf]
        %v1337 = vld [vmem:[#allocation2 + $0x3c] sm:$0xf]
        %v1338 = vld [vmem:[#allocation2 + $0x40] sm:$0xf]
        %v1339 = vld [vmem:[#allocation2 + $0x48] sm:$0xf]
        %v1340 = vld [vmem:[#allocation2 + $0x4c] sm:$0xf]
        %v1341 = vld [vmem:[#allocation2 + $0x54] sm:$0xf]
        %v1342 = vld [vmem:[#allocation2 + $0x58] sm:$0xf]
        %v1343 = vld [vmem:[#allocation2 + $0x60] sm:$0xf]
        %v1344 = vld [vmem:[#allocation2 + $0x64] sm:$0xf]
        %v1345 = vld [vmem:[#allocation2 + $0x6c] sm:$0xf]
        %v1346 = vld [vmem:[#allocation2 + $0x70] sm:$0xf]
        %v1347 = vld [vmem:[#allocation2 + $0x78] sm:$0xf]
        %v1348 = vld [vmem:[#allocation2 + $0x7c] sm:$0xf]
        %v1349 = vld [vmem:[#allocation2 + $0x84] sm:$0xf]
        %v1350 = vld [vmem:[#allocation2 + $0x88] sm:$0xf]
        %v1351 = vld [vmem:[#allocation2 + $0x90] sm:$0xf]
        %v1352 = vld [vmem:[#allocation2 + $0x94] sm:$0xf]
        %v1353 = vld [vmem:[#allocation2 + $0x9c] sm:$0xf]
        %v1354 = vld [vmem:[#allocation2 + $0xa0] sm:$0xf]
        %v1355 = vld [vmem:[#allocation2 + $0xa8] sm:$0xf]
        %v1356 = vld [vmem:[#allocation2 + $0xac] sm:$0xf]
        %v1357 = vld [vmem:[#allocation2 + $0xb4] sm:$0xf]
        %v1358 = vld [vmem:[#allocation2 + $0xb8] sm:$0xf]
        %v1359 = vld [vmem:[%s3] sm:$0xf]
        %v1360 = vld [vmem:[%s3 + $0x4] sm:$0xf]
        %v1361 = vld [vmem:[%s3 + $0x8] sm:$0xf]
        %v1362 = vld [vmem:[%s3 + $0xc] sm:$0xf]
        %v1363 = vld [vmem:[%s3 + $0x10] sm:$0xf]
        %v1364 = vld [vmem:[%s3 + $0x14] sm:$0xf]
        %v1365 = vld [vmem:[%s3 + $0x18] sm:$0xf]
        %v1366 = vld [vmem:[%s3 + $0x1c] sm:$0xf]
        %v1367 = vld [vmem:[%s3 + $0x20] sm:$0xf]
        %v1368 = vld [vmem:[%s3 + $0x24] sm:$0xf]
        %v1369 = vld [vmem:[%s3 + $0x28] sm:$0xf]
        %v1370 = vld [vmem:[%s3 + $0x2c] sm:$0xf]
        %v1371 = vld [vmem:[%s3 + $0x30] sm:$0xf]
        %v1372 = vld [vmem:[%s3 + $0x34] sm:$0xf]
        %v1373 = vld [vmem:[%s3 + $0x38] sm:$0xf]
        %v1374 = vld [vmem:[%s3 + $0x3c] sm:$0xf]
        %v1375 = vld [vmem:[#allocation2 + $0x8] sm:$0x1]
        %v1376 = vld [vmem:[#allocation2 + $0x14] sm:$0x1]
        %v1377 = vld [vmem:[#allocation2 + $0x20] sm:$0x1]
        %v1378 = vld [vmem:[#allocation2 + $0x2c] sm:$0x1]
        %v1379 = vld [vmem:[#allocation2 + $0x38] sm:$0x1]
        %v1380 = vld [vmem:[#allocation2 + $0x44] sm:$0x1]
        %v1381 = vld [vmem:[#allocation2 + $0x50] sm:$0x1]
        %v1382 = vld [vmem:[#allocation2 + $0x5c] sm:$0x1]
        %v1383 = vld [vmem:[#allocation2 + $0x68] sm:$0x1]
        %v1384 = vld [vmem:[#allocation2 + $0x74] sm:$0x1]
        %v1385 = vld [vmem:[#allocation2 + $0x80] sm:$0x1]
        %v1386 = vld [vmem:[#allocation2 + $0x8c] sm:$0x1]
        %v1387 = vld [vmem:[#allocation2 + $0x98] sm:$0x1]
        %v1388 = vld [vmem:[#allocation2 + $0xa4] sm:$0x1]
        %v1389 = vld [vmem:[#allocation2 + $0xb0] sm:$0x1]
        %v1390 = vld [vmem:[#allocation2 + $0xbc] sm:$0x1]
        %vm1391 = vsmask.f32 3328
        %vm1392 = vsmask.f32 7440
        %vm1393 = vmor %vm1391, %vm1392
        %v1395 = vshrl.u32 %v1327, 16
        %v1397 = vrot.slane %v1395, 4
        %v1398 = vshll.u32 %v1327, 16
        %v1400 = vrot.slane %v1398, 5
        %v1401 = vor.u32 %v1397, %v1400
        %v1402 = vrot.slane %v1401, 4
        %v1404 = vshll.u32 %v1328, 16
        %v1406 = vrot.slane %v1404, 5
        %v1407 = vsel %vm1393, %v1402, %v1406
        %v1408 = vshrl.u32 %v1328, 16
        %v1410 = vrot.slane %v1408, 4
        %v1411 = vor.u32 %v1410, %v1406
        %v1412 = vrot.slane %v1411, 4
        %v1414 = vshll.u32 %v1375, 16
        %v1416 = vrot.slane %v1414, 5
        %v1417 = vsel %vm1393, %v1412, %v1416
        %v1419 = vshrl.u32 %v1329, 16
        %v1421 = vrot.slane %v1419, 4
        %v1422 = vshll.u32 %v1329, 16
        %v1424 = vrot.slane %v1422, 5
        %v1425 = vor.u32 %v1421, %v1424
        %v1426 = vrot.slane %v1425, 4
        %v1428 = vshll.u32 %v1330, 16
        %v1430 = vrot.slane %v1428, 5
        %v1431 = vsel %vm1393, %v1426, %v1430
        %v1432 = vshrl.u32 %v1330, 16
        %v1434 = vrot.slane %v1432, 4
        %v1435 = vor.u32 %v1434, %v1430
        %v1436 = vrot.slane %v1435, 4
        %v1438 = vshll.u32 %v1376, 16
        %v1440 = vrot.slane %v1438, 5
        %v1441 = vsel %vm1393, %v1436, %v1440
        %v1443 = vshrl.u32 %v1331, 16
        %v1445 = vrot.slane %v1443, 4
        %v1446 = vshll.u32 %v1331, 16
        %v1448 = vrot.slane %v1446, 5
        %v1449 = vor.u32 %v1445, %v1448
        %v1450 = vrot.slane %v1449, 4
        %v1452 = vshll.u32 %v1332, 16
        %v1454 = vrot.slane %v1452, 5
        %v1455 = vsel %vm1393, %v1450, %v1454
        %v1456 = vshrl.u32 %v1332, 16
        %v1458 = vrot.slane %v1456, 4
        %v1459 = vor.u32 %v1458, %v1454
        %v1460 = vrot.slane %v1459, 4
        %v1462 = vshll.u32 %v1377, 16
        %v1464 = vrot.slane %v1462, 5
        %v1465 = vsel %vm1393, %v1460, %v1464
        %v1467 = vshrl.u32 %v1333, 16
        %v1469 = vrot.slane %v1467, 4
        %v1470 = vshll.u32 %v1333, 16
        %v1472 = vrot.slane %v1470, 5
        %v1473 = vor.u32 %v1469, %v1472
        %v1474 = vrot.slane %v1473, 4
        %v1476 = vshll.u32 %v1334, 16
        %v1478 = vrot.slane %v1476, 5
        %v1479 = vsel %vm1393, %v1474, %v1478
        %v1480 = vshrl.u32 %v1334, 16
        %v1482 = vrot.slane %v1480, 4
        %v1483 = vor.u32 %v1482, %v1478
        %v1484 = vrot.slane %v1483, 4
        %v1486 = vshll.u32 %v1378, 16
        %v1488 = vrot.slane %v1486, 5
        %v1489 = vsel %vm1393, %v1484, %v1488
        %v1491 = vshrl.u32 %v1335, 16
        %v1493 = vrot.slane %v1491, 4
        %v1494 = vshll.u32 %v1335, 16
        %v1496 = vrot.slane %v1494, 5
        %v1497 = vor.u32 %v1493, %v1496
        %v1498 = vrot.slane %v1497, 4
        %v1500 = vshll.u32 %v1336, 16
        %v1502 = vrot.slane %v1500, 5
        %v1503 = vsel %vm1393, %v1498, %v1502
        %v1504 = vshrl.u32 %v1336, 16
        %v1506 = vrot.slane %v1504, 4
        %v1507 = vor.u32 %v1506, %v1502
        %v1508 = vrot.slane %v1507, 4
        %v1510 = vshll.u32 %v1379, 16
        %v1512 = vrot.slane %v1510, 5
        %v1513 = vsel %vm1393, %v1508, %v1512
        %v1515 = vshrl.u32 %v1337, 16
        %v1517 = vrot.slane %v1515, 4
        %v1518 = vshll.u32 %v1337, 16
        %v1520 = vrot.slane %v1518, 5
        %v1521 = vor.u32 %v1517, %v1520
        %v1522 = vrot.slane %v1521, 4
        %v1524 = vshll.u32 %v1338, 16
        %v1526 = vrot.slane %v1524, 5
        %v1527 = vsel %vm1393, %v1522, %v1526
        %v1528 = vshrl.u32 %v1338, 16
        %v1530 = vrot.slane %v1528, 4
        %v1531 = vor.u32 %v1530, %v1526
        %v1532 = vrot.slane %v1531, 4
        %v1534 = vshll.u32 %v1380, 16
        %v1536 = vrot.slane %v1534, 5
        %v1537 = vsel %vm1393, %v1532, %v1536
        %v1539 = vshrl.u32 %v1339, 16
        %v1541 = vrot.slane %v1539, 4
        %v1542 = vshll.u32 %v1339, 16
        %v1544 = vrot.slane %v1542, 5
        %v1545 = vor.u32 %v1541, %v1544
        %v1546 = vrot.slane %v1545, 4
        %v1548 = vshll.u32 %v1340, 16
        %v1550 = vrot.slane %v1548, 5
        %v1551 = vsel %vm1393, %v1546, %v1550
        %v1552 = vshrl.u32 %v1340, 16
        %v1554 = vrot.slane %v1552, 4
        %v1555 = vor.u32 %v1554, %v1550
        %v1556 = vrot.slane %v1555, 4
        %v1558 = vshll.u32 %v1381, 16
        %v1560 = vrot.slane %v1558, 5
        %v1561 = vsel %vm1393, %v1556, %v1560
        %v1563 = vshrl.u32 %v1341, 16
        %v1565 = vrot.slane %v1563, 4
        %v1566 = vshll.u32 %v1341, 16
        %v1568 = vrot.slane %v1566, 5
        %v1569 = vor.u32 %v1565, %v1568
        %v1570 = vrot.slane %v1569, 4
        %v1572 = vshll.u32 %v1342, 16
        %v1574 = vrot.slane %v1572, 5
        %v1575 = vsel %vm1393, %v1570, %v1574
        %v1576 = vshrl.u32 %v1342, 16
        %v1578 = vrot.slane %v1576, 4
        %v1579 = vor.u32 %v1578, %v1574
        %v1580 = vrot.slane %v1579, 4
        %v1582 = vshll.u32 %v1382, 16
        %v1584 = vrot.slane %v1582, 5
        %v1585 = vsel %vm1393, %v1580, %v1584
        %v1587 = vshrl.u32 %v1343, 16
        %v1589 = vrot.slane %v1587, 4
        %v1590 = vshll.u32 %v1343, 16
        %v1592 = vrot.slane %v1590, 5
        %v1593 = vor.u32 %v1589, %v1592
        %v1594 = vrot.slane %v1593, 4
        %v1596 = vshll.u32 %v1344, 16
        %v1598 = vrot.slane %v1596, 5
        %v1599 = vsel %vm1393, %v1594, %v1598
        %v1600 = vshrl.u32 %v1344, 16
        %v1602 = vrot.slane %v1600, 4
        %v1603 = vor.u32 %v1602, %v1598
        %v1604 = vrot.slane %v1603, 4
        %v1606 = vshll.u32 %v1383, 16
        %v1608 = vrot.slane %v1606, 5
        %v1609 = vsel %vm1393, %v1604, %v1608
        %v1611 = vshrl.u32 %v1345, 16
        %v1613 = vrot.slane %v1611, 4
        %v1614 = vshll.u32 %v1345, 16
        %v1616 = vrot.slane %v1614, 5
        %v1617 = vor.u32 %v1613, %v1616
        %v1618 = vrot.slane %v1617, 4
        %v1620 = vshll.u32 %v1346, 16
        %v1622 = vrot.slane %v1620, 5
        %v1623 = vsel %vm1393, %v1618, %v1622
        %v1624 = vshrl.u32 %v1346, 16
        %v1626 = vrot.slane %v1624, 4
        %v1627 = vor.u32 %v1626, %v1622
        %v1628 = vrot.slane %v1627, 4
        %v1630 = vshll.u32 %v1384, 16
        %v1632 = vrot.slane %v1630, 5
        %v1633 = vsel %vm1393, %v1628, %v1632
        %v1635 = vshrl.u32 %v1347, 16
        %v1637 = vrot.slane %v1635, 4
        %v1638 = vshll.u32 %v1347, 16
        %v1640 = vrot.slane %v1638, 5
        %v1641 = vor.u32 %v1637, %v1640
        %v1642 = vrot.slane %v1641, 4
        %v1644 = vshll.u32 %v1348, 16
        %v1646 = vrot.slane %v1644, 5
        %v1647 = vsel %vm1393, %v1642, %v1646
        %v1648 = vshrl.u32 %v1348, 16
        %v1650 = vrot.slane %v1648, 4
        %v1651 = vor.u32 %v1650, %v1646
        %v1652 = vrot.slane %v1651, 4
        %v1654 = vshll.u32 %v1385, 16
        %v1656 = vrot.slane %v1654, 5
        %v1657 = vsel %vm1393, %v1652, %v1656
        %v1659 = vshrl.u32 %v1349, 16
        %v1661 = vrot.slane %v1659, 4
        %v1662 = vshll.u32 %v1349, 16
        %v1664 = vrot.slane %v1662, 5
        %v1665 = vor.u32 %v1661, %v1664
        %v1666 = vrot.slane %v1665, 4
        %v1668 = vshll.u32 %v1350, 16
        %v1670 = vrot.slane %v1668, 5
        %v1671 = vsel %vm1393, %v1666, %v1670
        %v1672 = vshrl.u32 %v1350, 16
        %v1674 = vrot.slane %v1672, 4
        %v1675 = vor.u32 %v1674, %v1670
        %v1676 = vrot.slane %v1675, 4
        %v1678 = vshll.u32 %v1386, 16
        %v1680 = vrot.slane %v1678, 5
        %v1681 = vsel %vm1393, %v1676, %v1680
        %v1683 = vshrl.u32 %v1351, 16
        %v1685 = vrot.slane %v1683, 4
        %v1686 = vshll.u32 %v1351, 16
        %v1688 = vrot.slane %v1686, 5
        %v1689 = vor.u32 %v1685, %v1688
        %v1690 = vrot.slane %v1689, 4
        %v1692 = vshll.u32 %v1352, 16
        %v1694 = vrot.slane %v1692, 5
        %v1695 = vsel %vm1393, %v1690, %v1694
        %v1696 = vshrl.u32 %v1352, 16
        %v1698 = vrot.slane %v1696, 4
        %v1699 = vor.u32 %v1698, %v1694
        %v1700 = vrot.slane %v1699, 4
        %v1702 = vshll.u32 %v1387, 16
        %v1704 = vrot.slane %v1702, 5
        %v1705 = vsel %vm1393, %v1700, %v1704
        %v1707 = vshrl.u32 %v1353, 16
        %v1709 = vrot.slane %v1707, 4
        %v1710 = vshll.u32 %v1353, 16
        %v1712 = vrot.slane %v1710, 5
        %v1713 = vor.u32 %v1709, %v1712
        %v1714 = vrot.slane %v1713, 4
        %v1716 = vshll.u32 %v1354, 16
        %v1718 = vrot.slane %v1716, 5
        %v1719 = vsel %vm1393, %v1714, %v1718
        %v1720 = vshrl.u32 %v1354, 16
        %v1722 = vrot.slane %v1720, 4
        %v1723 = vor.u32 %v1722, %v1718
        %v1724 = vrot.slane %v1723, 4
        %v1726 = vshll.u32 %v1388, 16
        %v1728 = vrot.slane %v1726, 5
        %v1729 = vsel %vm1393, %v1724, %v1728
        %v1731 = vshrl.u32 %v1355, 16
        %v1733 = vrot.slane %v1731, 4
        %v1734 = vshll.u32 %v1355, 16
        %v1736 = vrot.slane %v1734, 5
        %v1737 = vor.u32 %v1733, %v1736
        %v1738 = vrot.slane %v1737, 4
        %v1740 = vshll.u32 %v1356, 16
        %v1742 = vrot.slane %v1740, 5
        %v1743 = vsel %vm1393, %v1738, %v1742
        %v1744 = vshrl.u32 %v1356, 16
        %v1746 = vrot.slane %v1744, 4
        %v1747 = vor.u32 %v1746, %v1742
        %v1748 = vrot.slane %v1747, 4
        %v1750 = vshll.u32 %v1389, 16
        %v1752 = vrot.slane %v1750, 5
        %v1753 = vsel %vm1393, %v1748, %v1752
        %v1755 = vshrl.u32 %v1357, 16
        %v1757 = vrot.slane %v1755, 4
        %v1758 = vshll.u32 %v1357, 16
        %v1760 = vrot.slane %v1758, 5
        %v1761 = vor.u32 %v1757, %v1760
        %v1762 = vrot.slane %v1761, 4
        %v1764 = vshll.u32 %v1358, 16
        %v1766 = vrot.slane %v1764, 5
        %v1767 = vsel %vm1393, %v1762, %v1766
        %v1768 = vshrl.u32 %v1358, 16
        %v1770 = vrot.slane %v1768, 4
        %v1771 = vor.u32 %v1770, %v1766
        %v1772 = vrot.slane %v1771, 4
        %v1774 = vshll.u32 %v1390, 16
        %v1776 = vrot.slane %v1774, 5
        %v1777 = vsel %vm1393, %v1772, %v1776
        %s1778 = scalar_lea.vmem %s3, 64
        %v1779 = vld [vmem:[%s1778] sm:$0xf]
        %v1780 = vld [vmem:[%s1778 + $0x4] sm:$0xf]
        %v1781 = vld [vmem:[%s1778 + $0x8] sm:$0xf]
        %v1782 = vld [vmem:[%s1778 + $0xc] sm:$0xf]
        %v1783 = vld [vmem:[%s1778 + $0x10] sm:$0xf]
        %v1784 = vld [vmem:[%s1778 + $0x14] sm:$0xf]
        %v1785 = vld [vmem:[%s1778 + $0x18] sm:$0xf]
        %v1786 = vld [vmem:[%s1778 + $0x1c] sm:$0xf]
        %v1787 = vld [vmem:[%s1778 + $0x20] sm:$0xf]
        %v1788 = vld [vmem:[%s1778 + $0x24] sm:$0xf]
        %v1789 = vld [vmem:[%s1778 + $0x28] sm:$0xf]
        %v1790 = vld [vmem:[%s1778 + $0x2c] sm:$0xf]
        %v1791 = vld [vmem:[%s1778 + $0x30] sm:$0xf]
        %v1792 = vld [vmem:[%s1778 + $0x34] sm:$0xf]
        %v1793 = vld [vmem:[%s1778 + $0x38] sm:$0xf]
        %v1794 = vld [vmem:[%s1778 + $0x3c] sm:$0xf]
        %v1795 = vunpack.c.l.b16 %v1407
        %v1796 = vunpack.c.l.b16 %v1417
        %v1797 = vunpack.c.l.b16 %v1431
        %v1798 = vunpack.c.l.b16 %v1441
        %v1799 = vunpack.c.l.b16 %v1455
        %v1800 = vunpack.c.l.b16 %v1465
        %v1801 = vunpack.c.l.b16 %v1479
        %v1802 = vunpack.c.l.b16 %v1489
        %v1803 = vunpack.c.l.b16 %v1503
        %v1804 = vunpack.c.l.b16 %v1513
        %v1805 = vunpack.c.l.b16 %v1527
        %v1806 = vunpack.c.l.b16 %v1537
        %v1807 = vunpack.c.l.b16 %v1551
        %v1808 = vunpack.c.l.b16 %v1561
        %v1809 = vunpack.c.l.b16 %v1575
        %v1810 = vunpack.c.l.b16 %v1585
        %v1811 = vunpack.c.l.b16 %v1599
        %v1812 = vunpack.c.l.b16 %v1609
        %v1813 = vunpack.c.l.b16 %v1623
        %v1814 = vunpack.c.l.b16 %v1633
        %v1815 = vunpack.c.l.b16 %v1647
        %v1816 = vunpack.c.l.b16 %v1657
        %v1817 = vunpack.c.l.b16 %v1671
        %v1818 = vunpack.c.l.b16 %v1681
        %v1819 = vunpack.c.l.b16 %v1695
        %v1820 = vunpack.c.l.b16 %v1705
        %v1821 = vunpack.c.l.b16 %v1719
        %v1822 = vunpack.c.l.b16 %v1729
        %v1823 = vunpack.c.l.b16 %v1743
        %v1824 = vunpack.c.l.b16 %v1753
        %v1825 = vunpack.c.l.b16 %v1767
        %v1826 = vunpack.c.l.b16 %v1777
        %v1827 = vpack.c.b16 %v1796, %v1795
        %v1828 = vpack.c.b16 %v1798, %v1797
        %v1829 = vpack.c.b16 %v1800, %v1799
        %v1830 = vpack.c.b16 %v1802, %v1801
        %v1831 = vpack.c.b16 %v1804, %v1803
        %v1832 = vpack.c.b16 %v1806, %v1805
        %v1833 = vpack.c.b16 %v1808, %v1807
        %v1834 = vpack.c.b16 %v1810, %v1809
        %v1835 = vpack.c.b16 %v1812, %v1811
        %v1836 = vpack.c.b16 %v1814, %v1813
        %v1837 = vpack.c.b16 %v1816, %v1815
        %v1838 = vpack.c.b16 %v1818, %v1817
        %v1839 = vpack.c.b16 %v1820, %v1819
        %v1840 = vpack.c.b16 %v1822, %v1821
        %v1841 = vpack.c.b16 %v1824, %v1823
        %v1842 = vpack.c.b16 %v1826, %v1825
        %v1875 = vunpack.c.l.b16 %v1779
        %v1876 = vunpack.c.l.b16 %v1780
        %v1877 = vunpack.c.l.b16 %v1781
        %v1878 = vunpack.c.l.b16 %v1782
        %v1879 = vunpack.c.l.b16 %v1783
        %v1880 = vunpack.c.l.b16 %v1784
        %v1881 = vunpack.c.l.b16 %v1785
        %v1882 = vunpack.c.l.b16 %v1786
        %v1883 = vunpack.c.l.b16 %v1787
        %v1884 = vunpack.c.l.b16 %v1788
        %v1885 = vunpack.c.l.b16 %v1789
        %v1886 = vunpack.c.l.b16 %v1790
        %v1887 = vunpack.c.l.b16 %v1791
        %v1888 = vunpack.c.l.b16 %v1792
        %v1889 = vunpack.c.l.b16 %v1793
        %v1890 = vunpack.c.l.b16 %v1794
        %v1891 = vpack.c.b16 %v1876, %v1875
        %v1892 = vpack.c.b16 %v1878, %v1877
        %v1893 = vpack.c.b16 %v1880, %v1879
        %v1894 = vpack.c.b16 %v1882, %v1881
        %v1895 = vpack.c.b16 %v1884, %v1883
        %v1896 = vpack.c.b16 %v1886, %v1885
        %v1897 = vpack.c.b16 %v1888, %v1887
        %v1898 = vpack.c.b16 %v1890, %v1889
        %1907 = vmatprep.subr.bf16.mxu0 0
        %1908 = vmatpush1.bf16.msra.mxu0 %v1898
        %1909 = vmatprep.subr.bf16.mxu0 0
        %1910 = vmatpush1.bf16.msra.mxu0 %v1897
        %1911 = vmatprep.subr.bf16.mxu0 0
        %1912 = vmatpush1.bf16.msra.mxu0 %v1896
        %1913 = vmatprep.subr.bf16.mxu0 0
        %1914 = vmatpush1.bf16.msra.mxu0 %v1895
        %1915 = vmatprep.subr.bf16.mxu0 0
        %1916 = vmatpush1.bf16.msra.mxu0 %v1894
        %1917 = vmatprep.subr.bf16.mxu0 0
        %1918 = vmatpush1.bf16.msra.mxu0 %v1893
        %1919 = vmatprep.subr.bf16.mxu0 0
        %1920 = vmatpush1.bf16.msra.mxu0 %v1892
        %1921 = vmatprep.subr.bf16.mxu0 0
        %1922 = vmatpush1.bf16.msra.mxu0 %v1891
        %1923 = vmatprep.subr.bf16.mxu0 0
        %1924 = vmatpush2.bf16.msra.mxu0 0
        %1925 = vmatprep.subr.bf16.mxu0 0
        %1926 = vmatpush2.bf16.msra.mxu0 0
        %1927 = vmatprep.subr.bf16.mxu0 0
        %1928 = vmatpush2.bf16.msra.mxu0 0
        %1929 = vmatprep.subr.bf16.mxu0 0
        %1930 = vmatpush2.bf16.msra.mxu0 0
        %1931 = vmatprep.subr.bf16.mxu0 0
        %1932 = vmatpush2.bf16.msra.mxu0 0
        %1933 = vmatprep.subr.bf16.mxu0 0
        %1934 = vmatpush2.bf16.msra.mxu0 0
        %1935 = vmatprep.subr.bf16.mxu0 0
        %1936 = vmatpush2.bf16.msra.mxu0 0
        %1937 = vmatprep.subr.bf16.mxu0 0
        %1938 = vmatpush2.bf16.msra.mxu0 0
        %1939 = vmatprep.mubr.bf16.mxu0 0
        %1940 = vmatmul.mubr.bf16.gmra.mxu0 %v1827
        %v1941 = vpop.f32.mrf.mxu0
        %v1942 = vadd.f32 0.0, %v1941
        %v1943 = vpop.f32.mrf.mxu0
        %v1944 = vpop.f32.mrf.mxu0
        %v1945 = vadd.f32 0.0, %v1944
        %v1946 = vpop.f32.mrf.mxu0
        %1947 = vmatprep.mubr.bf16.mxu0 0
        %1948 = vmatmul.mubr.bf16.gmra.mxu0 %v1828
        %v1949 = vpop.f32.mrf.mxu0
        %v1950 = vadd.f32 0.0, %v1949
        %v1951 = vpop.f32.mrf.mxu0
        %v1952 = vpop.f32.mrf.mxu0
        %v1953 = vadd.f32 0.0, %v1952
        %v1954 = vpop.f32.mrf.mxu0
        %1955 = vmatprep.mubr.bf16.mxu0 0
        %1956 = vmatmul.mubr.bf16.gmra.mxu0 %v1829
        %v1957 = vpop.f32.mrf.mxu0
        %v1958 = vadd.f32 0.0, %v1957
        %v1959 = vpop.f32.mrf.mxu0
        %v1960 = vpop.f32.mrf.mxu0
        %v1961 = vadd.f32 0.0, %v1960
        %v1962 = vpop.f32.mrf.mxu0
        %1963 = vmatprep.mubr.bf16.mxu0 0
        %1964 = vmatmul.mubr.bf16.gmra.mxu0 %v1830
        %v1965 = vpop.f32.mrf.mxu0
        %v1966 = vadd.f32 0.0, %v1965
        %v1967 = vpop.f32.mrf.mxu0
        %v1968 = vpop.f32.mrf.mxu0
        %v1969 = vadd.f32 0.0, %v1968
        %v1970 = vpop.f32.mrf.mxu0
        %1971 = vmatprep.mubr.bf16.mxu0 0
        %1972 = vmatmul.mubr.bf16.gmra.mxu0 %v1831
        %v1973 = vpop.f32.mrf.mxu0
        %v1974 = vadd.f32 0.0, %v1973
        %v1975 = vpop.f32.mrf.mxu0
        %v1976 = vpop.f32.mrf.mxu0
        %v1977 = vadd.f32 0.0, %v1976
        %v1978 = vpop.f32.mrf.mxu0
        %1979 = vmatprep.mubr.bf16.mxu0 0
        %1980 = vmatmul.mubr.bf16.gmra.mxu0 %v1832
        %v1981 = vpop.f32.mrf.mxu0
        %v1982 = vadd.f32 0.0, %v1981
        %v1983 = vpop.f32.mrf.mxu0
        %v1984 = vpop.f32.mrf.mxu0
        %v1985 = vadd.f32 0.0, %v1984
        %v1986 = vpop.f32.mrf.mxu0
        %1987 = vmatprep.mubr.bf16.mxu0 0
        %1988 = vmatmul.mubr.bf16.gmra.mxu0 %v1833
        %v1989 = vpop.f32.mrf.mxu0
        %v1990 = vadd.f32 0.0, %v1989
        %v1991 = vpop.f32.mrf.mxu0
        %v1992 = vpop.f32.mrf.mxu0
        %v1993 = vadd.f32 0.0, %v1992
        %v1994 = vpop.f32.mrf.mxu0
        %1995 = vmatprep.mubr.bf16.mxu0 0
        %1996 = vmatmul.mubr.bf16.gmra.mxu0 %v1834
        %v1997 = vpop.f32.mrf.mxu0
        %v1998 = vadd.f32 0.0, %v1997
        %v1999 = vpop.f32.mrf.mxu0
        %v2000 = vpop.f32.mrf.mxu0
        %v2001 = vadd.f32 0.0, %v2000
        %v2002 = vpop.f32.mrf.mxu0
        %2003 = vmatprep.mubr.bf16.mxu0 0
        %2004 = vmatmul.mubr.bf16.gmra.mxu0 %v1835
        %v2005 = vpop.f32.mrf.mxu0
        %v2006 = vadd.f32 0.0, %v2005
        %v2007 = vpop.f32.mrf.mxu0
        %v2008 = vpop.f32.mrf.mxu0
        %v2009 = vadd.f32 0.0, %v2008
        %v2010 = vpop.f32.mrf.mxu0
        %2011 = vmatprep.mubr.bf16.mxu0 0
        %2012 = vmatmul.mubr.bf16.gmra.mxu0 %v1836
        %v2013 = vpop.f32.mrf.mxu0
        %v2014 = vadd.f32 0.0, %v2013
        %v2015 = vpop.f32.mrf.mxu0
        %v2016 = vpop.f32.mrf.mxu0
        %v2017 = vadd.f32 0.0, %v2016
        %v2018 = vpop.f32.mrf.mxu0
        %2019 = vmatprep.mubr.bf16.mxu0 0
        %2020 = vmatmul.mubr.bf16.gmra.mxu0 %v1837
        %v2021 = vpop.f32.mrf.mxu0
        %v2022 = vadd.f32 0.0, %v2021
        %v2023 = vpop.f32.mrf.mxu0
        %v2024 = vpop.f32.mrf.mxu0
        %v2025 = vadd.f32 0.0, %v2024
        %v2026 = vpop.f32.mrf.mxu0
        %2027 = vmatprep.mubr.bf16.mxu0 0
        %2028 = vmatmul.mubr.bf16.gmra.mxu0 %v1838
        %v2029 = vpop.f32.mrf.mxu0
        %v2030 = vadd.f32 0.0, %v2029
        %v2031 = vpop.f32.mrf.mxu0
        %v2032 = vpop.f32.mrf.mxu0
        %v2033 = vadd.f32 0.0, %v2032
        %v2034 = vpop.f32.mrf.mxu0
        %2035 = vmatprep.mubr.bf16.mxu0 0
        %2036 = vmatmul.mubr.bf16.gmra.mxu0 %v1839
        %v2037 = vpop.f32.mrf.mxu0
        %v2038 = vadd.f32 0.0, %v2037
        %v2039 = vpop.f32.mrf.mxu0
        %v2040 = vpop.f32.mrf.mxu0
        %v2041 = vadd.f32 0.0, %v2040
        %v2042 = vpop.f32.mrf.mxu0
        %2043 = vmatprep.mubr.bf16.mxu0 0
        %2044 = vmatmul.mubr.bf16.gmra.mxu0 %v1840
        %v2045 = vpop.f32.mrf.mxu0
        %v2046 = vadd.f32 0.0, %v2045
        %v2047 = vpop.f32.mrf.mxu0
        %v2048 = vpop.f32.mrf.mxu0
        %v2049 = vadd.f32 0.0, %v2048
        %v2050 = vpop.f32.mrf.mxu0
        %2051 = vmatprep.mubr.bf16.mxu0 0
        %2052 = vmatmul.mubr.bf16.gmra.mxu0 %v1841
        %v2053 = vpop.f32.mrf.mxu0
        %v2054 = vadd.f32 0.0, %v2053
        %v2055 = vpop.f32.mrf.mxu0
        %v2056 = vpop.f32.mrf.mxu0
        %v2057 = vadd.f32 0.0, %v2056
        %v2058 = vpop.f32.mrf.mxu0
        %2059 = vmatprep.mubr.bf16.mxu0 0
        %2060 = vmatmul.mubr.bf16.gmra.mxu0 %v1842
        %v2061 = vpop.f32.mrf.mxu0
        %v2062 = vadd.f32 0.0, %v2061
        %v2063 = vpop.f32.mrf.mxu0
        %v2064 = vpop.f32.mrf.mxu0
        %v2065 = vadd.f32 0.0, %v2064
        %v2066 = vpop.f32.mrf.mxu0
        %2067 = vdwg.mxu0
        %v2100 = vunpack.c.l.b16 %v1327
        %v2101 = vunpack.c.l.b16 %v1328
        %v2102 = vunpack.c.l.b16 %v1329
        %v2103 = vunpack.c.l.b16 %v1330
        %v2104 = vunpack.c.l.b16 %v1331
        %v2105 = vunpack.c.l.b16 %v1332
        %v2106 = vunpack.c.l.b16 %v1333
        %v2107 = vunpack.c.l.b16 %v1334
        %v2108 = vunpack.c.l.b16 %v1335
        %v2109 = vunpack.c.l.b16 %v1336
        %v2110 = vunpack.c.l.b16 %v1337
        %v2111 = vunpack.c.l.b16 %v1338
        %v2112 = vunpack.c.l.b16 %v1339
        %v2113 = vunpack.c.l.b16 %v1340
        %v2114 = vunpack.c.l.b16 %v1341
        %v2115 = vunpack.c.l.b16 %v1342
        %v2116 = vunpack.c.l.b16 %v1343
        %v2117 = vunpack.c.l.b16 %v1344
        %v2118 = vunpack.c.l.b16 %v1345
        %v2119 = vunpack.c.l.b16 %v1346
        %v2120 = vunpack.c.l.b16 %v1347
        %v2121 = vunpack.c.l.b16 %v1348
        %v2122 = vunpack.c.l.b16 %v1349
        %v2123 = vunpack.c.l.b16 %v1350
        %v2124 = vunpack.c.l.b16 %v1351
        %v2125 = vunpack.c.l.b16 %v1352
        %v2126 = vunpack.c.l.b16 %v1353
        %v2127 = vunpack.c.l.b16 %v1354
        %v2128 = vunpack.c.l.b16 %v1355
        %v2129 = vunpack.c.l.b16 %v1356
        %v2130 = vunpack.c.l.b16 %v1357
        %v2131 = vunpack.c.l.b16 %v1358
        %v2132 = vpack.c.b16 %v2101, %v2100
        %v2133 = vpack.c.b16 %v2103, %v2102
        %v2134 = vpack.c.b16 %v2105, %v2104
        %v2135 = vpack.c.b16 %v2107, %v2106
        %v2136 = vpack.c.b16 %v2109, %v2108
        %v2137 = vpack.c.b16 %v2111, %v2110
        %v2138 = vpack.c.b16 %v2113, %v2112
        %v2139 = vpack.c.b16 %v2115, %v2114
        %v2140 = vpack.c.b16 %v2117, %v2116
        %v2141 = vpack.c.b16 %v2119, %v2118
        %v2142 = vpack.c.b16 %v2121, %v2120
        %v2143 = vpack.c.b16 %v2123, %v2122
        %v2144 = vpack.c.b16 %v2125, %v2124
        %v2145 = vpack.c.b16 %v2127, %v2126
        %v2146 = vpack.c.b16 %v2129, %v2128
        %v2147 = vpack.c.b16 %v2131, %v2130
        %v2180 = vunpack.c.l.b16 %v1359
        %v2181 = vunpack.c.l.b16 %v1360
        %v2182 = vunpack.c.l.b16 %v1361
        %v2183 = vunpack.c.l.b16 %v1362
        %v2184 = vunpack.c.l.b16 %v1363
        %v2185 = vunpack.c.l.b16 %v1364
        %v2186 = vunpack.c.l.b16 %v1365
        %v2187 = vunpack.c.l.b16 %v1366
        %v2188 = vunpack.c.l.b16 %v1367
        %v2189 = vunpack.c.l.b16 %v1368
        %v2190 = vunpack.c.l.b16 %v1369
        %v2191 = vunpack.c.l.b16 %v1370
        %v2192 = vunpack.c.l.b16 %v1371
        %v2193 = vunpack.c.l.b16 %v1372
        %v2194 = vunpack.c.l.b16 %v1373
        %v2195 = vunpack.c.l.b16 %v1374
        %v2196 = vpack.c.b16 %v2181, %v2180
        %v2197 = vpack.c.b16 %v2183, %v2182
        %v2198 = vpack.c.b16 %v2185, %v2184
        %v2199 = vpack.c.b16 %v2187, %v2186
        %v2200 = vpack.c.b16 %v2189, %v2188
        %v2201 = vpack.c.b16 %v2191, %v2190
        %v2202 = vpack.c.b16 %v2193, %v2192
        %v2203 = vpack.c.b16 %v2195, %v2194
        %2212 = vmatprep.subr.bf16.mxu0 0
        %2213 = vmatpush1.bf16.msra.mxu0 %v2203
        %2214 = vmatprep.subr.bf16.mxu0 0
        %2215 = vmatpush1.bf16.msra.mxu0 %v2202
        %2216 = vmatprep.subr.bf16.mxu0 0
        %2217 = vmatpush1.bf16.msra.mxu0 %v2201
        %2218 = vmatprep.subr.bf16.mxu0 0
        %2219 = vmatpush1.bf16.msra.mxu0 %v2200
        %2220 = vmatprep.subr.bf16.mxu0 0
        %2221 = vmatpush1.bf16.msra.mxu0 %v2199
        %2222 = vmatprep.subr.bf16.mxu0 0
        %2223 = vmatpush1.bf16.msra.mxu0 %v2198
        %2224 = vmatprep.subr.bf16.mxu0 0
        %2225 = vmatpush1.bf16.msra.mxu0 %v2197
        %2226 = vmatprep.subr.bf16.mxu0 0
        %2227 = vmatpush1.bf16.msra.mxu0 %v2196
        %2228 = vmatprep.subr.bf16.mxu0 0
        %2229 = vmatpush2.bf16.msra.mxu0 0
        %2230 = vmatprep.subr.bf16.mxu0 0
        %2231 = vmatpush2.bf16.msra.mxu0 0
        %2232 = vmatprep.subr.bf16.mxu0 0
        %2233 = vmatpush2.bf16.msra.mxu0 0
        %2234 = vmatprep.subr.bf16.mxu0 0
        %2235 = vmatpush2.bf16.msra.mxu0 0
        %2236 = vmatprep.subr.bf16.mxu0 0
        %2237 = vmatpush2.bf16.msra.mxu0 0
        %2238 = vmatprep.subr.bf16.mxu0 0
        %2239 = vmatpush2.bf16.msra.mxu0 0
        %2240 = vmatprep.subr.bf16.mxu0 0
        %2241 = vmatpush2.bf16.msra.mxu0 0
        %2242 = vmatprep.subr.bf16.mxu0 0
        %2243 = vmatpush2.bf16.msra.mxu0 0
        %2244 = vmatprep.mubr.bf16.mxu0 0
        %2245 = vmatmul.mubr.bf16.gmra.mxu0 %v2132
        %v2246 = vpop.f32.mrf.mxu0
        %v2247 = vadd.f32 %v1942, %v2246
        %v2248 = vpop.f32.mrf.mxu0
        %v2249 = vpop.f32.mrf.mxu0
        %v2250 = vadd.f32 %v1945, %v2249
        %v2251 = vpop.f32.mrf.mxu0
        %2252 = vmatprep.mubr.bf16.mxu0 0
        %2253 = vmatmul.mubr.bf16.gmra.mxu0 %v2133
        %v2254 = vpop.f32.mrf.mxu0
        %v2255 = vadd.f32 %v1950, %v2254
        %v2256 = vpop.f32.mrf.mxu0
        %v2257 = vpop.f32.mrf.mxu0
        %v2258 = vadd.f32 %v1953, %v2257
        %v2259 = vpop.f32.mrf.mxu0
        %2260 = vmatprep.mubr.bf16.mxu0 0
        %2261 = vmatmul.mubr.bf16.gmra.mxu0 %v2134
        %v2262 = vpop.f32.mrf.mxu0
        %v2263 = vadd.f32 %v1958, %v2262
        %v2264 = vpop.f32.mrf.mxu0
        %v2265 = vpop.f32.mrf.mxu0
        %v2266 = vadd.f32 %v1961, %v2265
        %v2267 = vpop.f32.mrf.mxu0
        %2268 = vmatprep.mubr.bf16.mxu0 0
        %2269 = vmatmul.mubr.bf16.gmra.mxu0 %v2135
        %v2270 = vpop.f32.mrf.mxu0
        %v2271 = vadd.f32 %v1966, %v2270
        %v2272 = vpop.f32.mrf.mxu0
        %v2273 = vpop.f32.mrf.mxu0
        %v2274 = vadd.f32 %v1969, %v2273
        %v2275 = vpop.f32.mrf.mxu0
        %2276 = vmatprep.mubr.bf16.mxu0 0
        %2277 = vmatmul.mubr.bf16.gmra.mxu0 %v2136
        %v2278 = vpop.f32.mrf.mxu0
        %v2279 = vadd.f32 %v1974, %v2278
        %v2280 = vpop.f32.mrf.mxu0
        %v2281 = vpop.f32.mrf.mxu0
        %v2282 = vadd.f32 %v1977, %v2281
        %v2283 = vpop.f32.mrf.mxu0
        %2284 = vmatprep.mubr.bf16.mxu0 0
        %2285 = vmatmul.mubr.bf16.gmra.mxu0 %v2137
        %v2286 = vpop.f32.mrf.mxu0
        %v2287 = vadd.f32 %v1982, %v2286
        %v2288 = vpop.f32.mrf.mxu0
        %v2289 = vpop.f32.mrf.mxu0
        %v2290 = vadd.f32 %v1985, %v2289
        %v2291 = vpop.f32.mrf.mxu0
        %2292 = vmatprep.mubr.bf16.mxu0 0
        %2293 = vmatmul.mubr.bf16.gmra.mxu0 %v2138
        %v2294 = vpop.f32.mrf.mxu0
        %v2295 = vadd.f32 %v1990, %v2294
        %v2296 = vpop.f32.mrf.mxu0
        %v2297 = vpop.f32.mrf.mxu0
        %v2298 = vadd.f32 %v1993, %v2297
        %v2299 = vpop.f32.mrf.mxu0
        %2300 = vmatprep.mubr.bf16.mxu0 0
        %2301 = vmatmul.mubr.bf16.gmra.mxu0 %v2139
        %v2302 = vpop.f32.mrf.mxu0
        %v2303 = vadd.f32 %v1998, %v2302
        %v2304 = vpop.f32.mrf.mxu0
        %v2305 = vpop.f32.mrf.mxu0
        %v2306 = vadd.f32 %v2001, %v2305
        %v2307 = vpop.f32.mrf.mxu0
        %2308 = vmatprep.mubr.bf16.mxu0 0
        %2309 = vmatmul.mubr.bf16.gmra.mxu0 %v2140
        %v2310 = vpop.f32.mrf.mxu0
        %v2311 = vadd.f32 %v2006, %v2310
        %v2312 = vpop.f32.mrf.mxu0
        %v2313 = vpop.f32.mrf.mxu0
        %v2314 = vadd.f32 %v2009, %v2313
        %v2315 = vpop.f32.mrf.mxu0
        %2316 = vmatprep.mubr.bf16.mxu0 0
        %2317 = vmatmul.mubr.bf16.gmra.mxu0 %v2141
        %v2318 = vpop.f32.mrf.mxu0
        %v2319 = vadd.f32 %v2014, %v2318
        %v2320 = vpop.f32.mrf.mxu0
        %v2321 = vpop.f32.mrf.mxu0
        %v2322 = vadd.f32 %v2017, %v2321
        %v2323 = vpop.f32.mrf.mxu0
        %2324 = vmatprep.mubr.bf16.mxu0 0
        %2325 = vmatmul.mubr.bf16.gmra.mxu0 %v2142
        %v2326 = vpop.f32.mrf.mxu0
        %v2327 = vadd.f32 %v2022, %v2326
        %v2328 = vpop.f32.mrf.mxu0
        %v2329 = vpop.f32.mrf.mxu0
        %v2330 = vadd.f32 %v2025, %v2329
        %v2331 = vpop.f32.mrf.mxu0
        %2332 = vmatprep.mubr.bf16.mxu0 0
        %2333 = vmatmul.mubr.bf16.gmra.mxu0 %v2143
        %v2334 = vpop.f32.mrf.mxu0
        %v2335 = vadd.f32 %v2030, %v2334
        %v2336 = vpop.f32.mrf.mxu0
        %v2337 = vpop.f32.mrf.mxu0
        %v2338 = vadd.f32 %v2033, %v2337
        %v2339 = vpop.f32.mrf.mxu0
        %2340 = vmatprep.mubr.bf16.mxu0 0
        %2341 = vmatmul.mubr.bf16.gmra.mxu0 %v2144
        %v2342 = vpop.f32.mrf.mxu0
        %v2343 = vadd.f32 %v2038, %v2342
        %v2344 = vpop.f32.mrf.mxu0
        %v2345 = vpop.f32.mrf.mxu0
        %v2346 = vadd.f32 %v2041, %v2345
        %v2347 = vpop.f32.mrf.mxu0
        %2348 = vmatprep.mubr.bf16.mxu0 0
        %2349 = vmatmul.mubr.bf16.gmra.mxu0 %v2145
        %v2350 = vpop.f32.mrf.mxu0
        %v2351 = vadd.f32 %v2046, %v2350
        %v2352 = vpop.f32.mrf.mxu0
        %v2353 = vpop.f32.mrf.mxu0
        %v2354 = vadd.f32 %v2049, %v2353
        %v2355 = vpop.f32.mrf.mxu0
        %2356 = vmatprep.mubr.bf16.mxu0 0
        %2357 = vmatmul.mubr.bf16.gmra.mxu0 %v2146
        %v2358 = vpop.f32.mrf.mxu0
        %v2359 = vadd.f32 %v2054, %v2358
        %v2360 = vpop.f32.mrf.mxu0
        %v2361 = vpop.f32.mrf.mxu0
        %v2362 = vadd.f32 %v2057, %v2361
        %v2363 = vpop.f32.mrf.mxu0
        %2364 = vmatprep.mubr.bf16.mxu0 0
        %2365 = vmatmul.mubr.bf16.gmra.mxu0 %v2147
        %v2366 = vpop.f32.mrf.mxu0
        %v2367 = vadd.f32 %v2062, %v2366
        %v2368 = vpop.f32.mrf.mxu0
        %v2369 = vpop.f32.mrf.mxu0
        %v2370 = vadd.f32 %v2065, %v2369
        %v2371 = vpop.f32.mrf.mxu0
        %2372 = vdwg.mxu0
        %v2373 = vld [vmem:[#allocation2] sm:$0xe]
        %v2374 = vld [vmem:[#allocation2 + $0xc] sm:$0xe]
        %v2375 = vld [vmem:[#allocation2 + $0x18] sm:$0xe]
        %v2376 = vld [vmem:[#allocation2 + $0x24] sm:$0xe]
        %v2377 = vld [vmem:[#allocation2 + $0x30] sm:$0xe]
        %v2378 = vld [vmem:[#allocation2 + $0x3c] sm:$0xe]
        %v2379 = vld [vmem:[#allocation2 + $0x48] sm:$0xe]
        %v2380 = vld [vmem:[#allocation2 + $0x54] sm:$0xe]
        %v2381 = vld [vmem:[#allocation2 + $0x60] sm:$0xe]
        %v2382 = vld [vmem:[#allocation2 + $0x6c] sm:$0xe]
        %v2383 = vld [vmem:[#allocation2 + $0x78] sm:$0xe]
        %v2384 = vld [vmem:[#allocation2 + $0x84] sm:$0xe]
        %v2385 = vld [vmem:[#allocation2 + $0x90] sm:$0xe]
        %v2386 = vld [vmem:[#allocation2 + $0x9c] sm:$0xe]
        %v2387 = vld [vmem:[#allocation2 + $0xa8] sm:$0xe]
        %v2388 = vld [vmem:[#allocation2 + $0xb4] sm:$0xe]
        %vm2421 = vcmask 1042432
        %vm2422 = vcmask 1046532
        %vm2423 = vmor %vm2421, %vm2422
        %v2424 = vrot.slane %v2373, 5
        %v2425 = vrot.slane %v2424, 4
        %v2426 = vrot.slane %v1328, 5
        %v2427 = vsel %vm2423, %v2425, %v2426
        %v2428 = vrot.slane %v2426, 4
        %v2429 = vrot.slane %v1375, 5
        %v2430 = vsel %vm2423, %v2428, %v2429
        %v2431 = vrot.slane %v2374, 5
        %v2432 = vrot.slane %v2431, 4
        %v2433 = vrot.slane %v1330, 5
        %v2434 = vsel %vm2423, %v2432, %v2433
        %v2435 = vrot.slane %v2433, 4
        %v2436 = vrot.slane %v1376, 5
        %v2437 = vsel %vm2423, %v2435, %v2436
        %v2438 = vrot.slane %v2375, 5
        %v2439 = vrot.slane %v2438, 4
        %v2440 = vrot.slane %v1332, 5
        %v2441 = vsel %vm2423, %v2439, %v2440
        %v2442 = vrot.slane %v2440, 4
        %v2443 = vrot.slane %v1377, 5
        %v2444 = vsel %vm2423, %v2442, %v2443
        %v2445 = vrot.slane %v2376, 5
        %v2446 = vrot.slane %v2445, 4
        %v2447 = vrot.slane %v1334, 5
        %v2448 = vsel %vm2423, %v2446, %v2447
        %v2449 = vrot.slane %v2447, 4
        %v2450 = vrot.slane %v1378, 5
        %v2451 = vsel %vm2423, %v2449, %v2450
        %v2452 = vrot.slane %v2377, 5
        %v2453 = vrot.slane %v2452, 4
        %v2454 = vrot.slane %v1336, 5
        %v2455 = vsel %vm2423, %v2453, %v2454
        %v2456 = vrot.slane %v2454, 4
        %v2457 = vrot.slane %v1379, 5
        %v2458 = vsel %vm2423, %v2456, %v2457
        %v2459 = vrot.slane %v2378, 5
        %v2460 = vrot.slane %v2459, 4
        %v2461 = vrot.slane %v1338, 5
        %v2462 = vsel %vm2423, %v2460, %v2461
        %v2463 = vrot.slane %v2461, 4
        %v2464 = vrot.slane %v1380, 5
        %v2465 = vsel %vm2423, %v2463, %v2464
        %v2466 = vrot.slane %v2379, 5
        %v2467 = vrot.slane %v2466, 4
        %v2468 = vrot.slane %v1340, 5
        %v2469 = vsel %vm2423, %v2467, %v2468
        %v2470 = vrot.slane %v2468, 4
        %v2471 = vrot.slane %v1381, 5
        %v2472 = vsel %vm2423, %v2470, %v2471
        %v2473 = vrot.slane %v2380, 5
        %v2474 = vrot.slane %v2473, 4
        %v2475 = vrot.slane %v1342, 5
        %v2476 = vsel %vm2423, %v2474, %v2475
        %v2477 = vrot.slane %v2475, 4
        %v2478 = vrot.slane %v1382, 5
        %v2479 = vsel %vm2423, %v2477, %v2478
        %v2480 = vrot.slane %v2381, 5
        %v2481 = vrot.slane %v2480, 4
        %v2482 = vrot.slane %v1344, 5
        %v2483 = vsel %vm2423, %v2481, %v2482
        %v2484 = vrot.slane %v2482, 4
        %v2485 = vrot.slane %v1383, 5
        %v2486 = vsel %vm2423, %v2484, %v2485
        %v2487 = vrot.slane %v2382, 5
        %v2488 = vrot.slane %v2487, 4
        %v2489 = vrot.slane %v1346, 5
        %v2490 = vsel %vm2423, %v2488, %v2489
        %v2491 = vrot.slane %v2489, 4
        %v2492 = vrot.slane %v1384, 5
        %v2493 = vsel %vm2423, %v2491, %v2492
        %v2494 = vrot.slane %v2383, 5
        %v2495 = vrot.slane %v2494, 4
        %v2496 = vrot.slane %v1348, 5
        %v2497 = vsel %vm2423, %v2495, %v2496
        %v2498 = vrot.slane %v2496, 4
        %v2499 = vrot.slane %v1385, 5
        %v2500 = vsel %vm2423, %v2498, %v2499
        %v2501 = vrot.slane %v2384, 5
        %v2502 = vrot.slane %v2501, 4
        %v2503 = vrot.slane %v1350, 5
        %v2504 = vsel %vm2423, %v2502, %v2503
        %v2505 = vrot.slane %v2503, 4
        %v2506 = vrot.slane %v1386, 5
        %v2507 = vsel %vm2423, %v2505, %v2506
        %v2508 = vrot.slane %v2385, 5
        %v2509 = vrot.slane %v2508, 4
        %v2510 = vrot.slane %v1352, 5
        %v2511 = vsel %vm2423, %v2509, %v2510
        %v2512 = vrot.slane %v2510, 4
        %v2513 = vrot.slane %v1387, 5
        %v2514 = vsel %vm2423, %v2512, %v2513
        %v2515 = vrot.slane %v2386, 5
        %v2516 = vrot.slane %v2515, 4
        %v2517 = vrot.slane %v1354, 5
        %v2518 = vsel %vm2423, %v2516, %v2517
        %v2519 = vrot.slane %v2517, 4
        %v2520 = vrot.slane %v1388, 5
        %v2521 = vsel %vm2423, %v2519, %v2520
        %v2522 = vrot.slane %v2387, 5
        %v2523 = vrot.slane %v2522, 4
        %v2524 = vrot.slane %v1356, 5
        %v2525 = vsel %vm2423, %v2523, %v2524
        %v2526 = vrot.slane %v2524, 4
        %v2527 = vrot.slane %v1389, 5
        %v2528 = vsel %vm2423, %v2526, %v2527
        %v2529 = vrot.slane %v2388, 5
        %v2530 = vrot.slane %v2529, 4
        %v2531 = vrot.slane %v1358, 5
        %v2532 = vsel %vm2423, %v2530, %v2531
        %v2533 = vrot.slane %v2531, 4
        %v2534 = vrot.slane %v1390, 5
        %v2535 = vsel %vm2423, %v2533, %v2534
        %s2536 = scalar_lea.vmem %s3, 128
        %v2537 = vld [vmem:[%s2536] sm:$0xf]
        %v2538 = vld [vmem:[%s2536 + $0x4] sm:$0xf]
        %v2539 = vld [vmem:[%s2536 + $0x8] sm:$0xf]
        %v2540 = vld [vmem:[%s2536 + $0xc] sm:$0xf]
        %v2541 = vld [vmem:[%s2536 + $0x10] sm:$0xf]
        %v2542 = vld [vmem:[%s2536 + $0x14] sm:$0xf]
        %v2543 = vld [vmem:[%s2536 + $0x18] sm:$0xf]
        %v2544 = vld [vmem:[%s2536 + $0x1c] sm:$0xf]
        %v2545 = vld [vmem:[%s2536 + $0x20] sm:$0xf]
        %v2546 = vld [vmem:[%s2536 + $0x24] sm:$0xf]
        %v2547 = vld [vmem:[%s2536 + $0x28] sm:$0xf]
        %v2548 = vld [vmem:[%s2536 + $0x2c] sm:$0xf]
        %v2549 = vld [vmem:[%s2536 + $0x30] sm:$0xf]
        %v2550 = vld [vmem:[%s2536 + $0x34] sm:$0xf]
        %v2551 = vld [vmem:[%s2536 + $0x38] sm:$0xf]
        %v2552 = vld [vmem:[%s2536 + $0x3c] sm:$0xf]
        %v2553 = vunpack.c.l.b16 %v2427
        %v2554 = vunpack.c.l.b16 %v2430
        %v2555 = vunpack.c.l.b16 %v2434
        %v2556 = vunpack.c.l.b16 %v2437
        %v2557 = vunpack.c.l.b16 %v2441
        %v2558 = vunpack.c.l.b16 %v2444
        %v2559 = vunpack.c.l.b16 %v2448
        %v2560 = vunpack.c.l.b16 %v2451
        %v2561 = vunpack.c.l.b16 %v2455
        %v2562 = vunpack.c.l.b16 %v2458
        %v2563 = vunpack.c.l.b16 %v2462
        %v2564 = vunpack.c.l.b16 %v2465
        %v2565 = vunpack.c.l.b16 %v2469
        %v2566 = vunpack.c.l.b16 %v2472
        %v2567 = vunpack.c.l.b16 %v2476
        %v2568 = vunpack.c.l.b16 %v2479
        %v2569 = vunpack.c.l.b16 %v2483
        %v2570 = vunpack.c.l.b16 %v2486
        %v2571 = vunpack.c.l.b16 %v2490
        %v2572 = vunpack.c.l.b16 %v2493
        %v2573 = vunpack.c.l.b16 %v2497
        %v2574 = vunpack.c.l.b16 %v2500
        %v2575 = vunpack.c.l.b16 %v2504
        %v2576 = vunpack.c.l.b16 %v2507
        %v2577 = vunpack.c.l.b16 %v2511
        %v2578 = vunpack.c.l.b16 %v2514
        %v2579 = vunpack.c.l.b16 %v2518
        %v2580 = vunpack.c.l.b16 %v2521
        %v2581 = vunpack.c.l.b16 %v2525
        %v2582 = vunpack.c.l.b16 %v2528
        %v2583 = vunpack.c.l.b16 %v2532
        %v2584 = vunpack.c.l.b16 %v2535
        %v2585 = vpack.c.b16 %v2554, %v2553
        %v2586 = vpack.c.b16 %v2556, %v2555
        %v2587 = vpack.c.b16 %v2558, %v2557
        %v2588 = vpack.c.b16 %v2560, %v2559
        %v2589 = vpack.c.b16 %v2562, %v2561
        %v2590 = vpack.c.b16 %v2564, %v2563
        %v2591 = vpack.c.b16 %v2566, %v2565
        %v2592 = vpack.c.b16 %v2568, %v2567
        %v2593 = vpack.c.b16 %v2570, %v2569
        %v2594 = vpack.c.b16 %v2572, %v2571
        %v2595 = vpack.c.b16 %v2574, %v2573
        %v2596 = vpack.c.b16 %v2576, %v2575
        %v2597 = vpack.c.b16 %v2578, %v2577
        %v2598 = vpack.c.b16 %v2580, %v2579
        %v2599 = vpack.c.b16 %v2582, %v2581
        %v2600 = vpack.c.b16 %v2584, %v2583
        %v2633 = vunpack.c.l.b16 %v2537
        %v2634 = vunpack.c.l.b16 %v2538
        %v2635 = vunpack.c.l.b16 %v2539
        %v2636 = vunpack.c.l.b16 %v2540
        %v2637 = vunpack.c.l.b16 %v2541
        %v2638 = vunpack.c.l.b16 %v2542
        %v2639 = vunpack.c.l.b16 %v2543
        %v2640 = vunpack.c.l.b16 %v2544
        %v2641 = vunpack.c.l.b16 %v2545
        %v2642 = vunpack.c.l.b16 %v2546
        %v2643 = vunpack.c.l.b16 %v2547
        %v2644 = vunpack.c.l.b16 %v2548
        %v2645 = vunpack.c.l.b16 %v2549
        %v2646 = vunpack.c.l.b16 %v2550
        %v2647 = vunpack.c.l.b16 %v2551
        %v2648 = vunpack.c.l.b16 %v2552
        %v2649 = vpack.c.b16 %v2634, %v2633
        %v2650 = vpack.c.b16 %v2636, %v2635
        %v2651 = vpack.c.b16 %v2638, %v2637
        %v2652 = vpack.c.b16 %v2640, %v2639
        %v2653 = vpack.c.b16 %v2642, %v2641
        %v2654 = vpack.c.b16 %v2644, %v2643
        %v2655 = vpack.c.b16 %v2646, %v2645
        %v2656 = vpack.c.b16 %v2648, %v2647
        %2665 = vmatprep.subr.bf16.mxu0 0
        %2666 = vmatpush1.bf16.msra.mxu0 %v2656
        %2667 = vmatprep.subr.bf16.mxu0 0
        %2668 = vmatpush1.bf16.msra.mxu0 %v2655
        %2669 = vmatprep.subr.bf16.mxu0 0
        %2670 = vmatpush1.bf16.msra.mxu0 %v2654
        %2671 = vmatprep.subr.bf16.mxu0 0
        %2672 = vmatpush1.bf16.msra.mxu0 %v2653
        %2673 = vmatprep.subr.bf16.mxu0 0
        %2674 = vmatpush1.bf16.msra.mxu0 %v2652
        %2675 = vmatprep.subr.bf16.mxu0 0
        %2676 = vmatpush1.bf16.msra.mxu0 %v2651
        %2677 = vmatprep.subr.bf16.mxu0 0
        %2678 = vmatpush1.bf16.msra.mxu0 %v2650
        %2679 = vmatprep.subr.bf16.mxu0 0
        %2680 = vmatpush1.bf16.msra.mxu0 %v2649
        %2681 = vmatprep.subr.bf16.mxu0 0
        %2682 = vmatpush2.bf16.msra.mxu0 0
        %2683 = vmatprep.subr.bf16.mxu0 0
        %2684 = vmatpush2.bf16.msra.mxu0 0
        %2685 = vmatprep.subr.bf16.mxu0 0
        %2686 = vmatpush2.bf16.msra.mxu0 0
        %2687 = vmatprep.subr.bf16.mxu0 0
        %2688 = vmatpush2.bf16.msra.mxu0 0
        %2689 = vmatprep.subr.bf16.mxu0 0
        %2690 = vmatpush2.bf16.msra.mxu0 0
        %2691 = vmatprep.subr.bf16.mxu0 0
        %2692 = vmatpush2.bf16.msra.mxu0 0
        %2693 = vmatprep.subr.bf16.mxu0 0
        %2694 = vmatpush2.bf16.msra.mxu0 0
        %2695 = vmatprep.subr.bf16.mxu0 0
        %2696 = vmatpush2.bf16.msra.mxu0 0
        %2697 = vmatprep.mubr.bf16.mxu0 0
        %2698 = vmatmul.mubr.bf16.gmra.mxu0 %v2585
        %v2699 = vpop.f32.mrf.mxu0
        %v2700 = vadd.f32 0.0, %v2699
        %v2701 = vpop.f32.mrf.mxu0
        %v2702 = vpop.f32.mrf.mxu0
        %v2703 = vadd.f32 0.0, %v2702
        %v2704 = vpop.f32.mrf.mxu0
        %2705 = vmatprep.mubr.bf16.mxu0 0
        %2706 = vmatmul.mubr.bf16.gmra.mxu0 %v2586
        %v2707 = vpop.f32.mrf.mxu0
        %v2708 = vadd.f32 0.0, %v2707
        %v2709 = vpop.f32.mrf.mxu0
        %v2710 = vpop.f32.mrf.mxu0
        %v2711 = vadd.f32 0.0, %v2710
        %v2712 = vpop.f32.mrf.mxu0
        %2713 = vmatprep.mubr.bf16.mxu0 0
        %2714 = vmatmul.mubr.bf16.gmra.mxu0 %v2587
        %v2715 = vpop.f32.mrf.mxu0
        %v2716 = vadd.f32 0.0, %v2715
        %v2717 = vpop.f32.mrf.mxu0
        %v2718 = vpop.f32.mrf.mxu0
        %v2719 = vadd.f32 0.0, %v2718
        %v2720 = vpop.f32.mrf.mxu0
        %2721 = vmatprep.mubr.bf16.mxu0 0
        %2722 = vmatmul.mubr.bf16.gmra.mxu0 %v2588
        %v2723 = vpop.f32.mrf.mxu0
        %v2724 = vadd.f32 0.0, %v2723
        %v2725 = vpop.f32.mrf.mxu0
        %v2726 = vpop.f32.mrf.mxu0
        %v2727 = vadd.f32 0.0, %v2726
        %v2728 = vpop.f32.mrf.mxu0
        %2729 = vmatprep.mubr.bf16.mxu0 0
        %2730 = vmatmul.mubr.bf16.gmra.mxu0 %v2589
        %v2731 = vpop.f32.mrf.mxu0
        %v2732 = vadd.f32 0.0, %v2731
        %v2733 = vpop.f32.mrf.mxu0
        %v2734 = vpop.f32.mrf.mxu0
        %v2735 = vadd.f32 0.0, %v2734
        %v2736 = vpop.f32.mrf.mxu0
        %2737 = vmatprep.mubr.bf16.mxu0 0
        %2738 = vmatmul.mubr.bf16.gmra.mxu0 %v2590
        %v2739 = vpop.f32.mrf.mxu0
        %v2740 = vadd.f32 0.0, %v2739
        %v2741 = vpop.f32.mrf.mxu0
        %v2742 = vpop.f32.mrf.mxu0
        %v2743 = vadd.f32 0.0, %v2742
        %v2744 = vpop.f32.mrf.mxu0
        %2745 = vmatprep.mubr.bf16.mxu0 0
        %2746 = vmatmul.mubr.bf16.gmra.mxu0 %v2591
        %v2747 = vpop.f32.mrf.mxu0
        %v2748 = vadd.f32 0.0, %v2747
        %v2749 = vpop.f32.mrf.mxu0
        %v2750 = vpop.f32.mrf.mxu0
        %v2751 = vadd.f32 0.0, %v2750
        %v2752 = vpop.f32.mrf.mxu0
        %2753 = vmatprep.mubr.bf16.mxu0 0
        %2754 = vmatmul.mubr.bf16.gmra.mxu0 %v2592
        %v2755 = vpop.f32.mrf.mxu0
        %v2756 = vadd.f32 0.0, %v2755
        %v2757 = vpop.f32.mrf.mxu0
        %v2758 = vpop.f32.mrf.mxu0
        %v2759 = vadd.f32 0.0, %v2758
        %v2760 = vpop.f32.mrf.mxu0
        %2761 = vmatprep.mubr.bf16.mxu0 0
        %2762 = vmatmul.mubr.bf16.gmra.mxu0 %v2593
        %v2763 = vpop.f32.mrf.mxu0
        %v2764 = vadd.f32 0.0, %v2763
        %v2765 = vpop.f32.mrf.mxu0
        %v2766 = vpop.f32.mrf.mxu0
        %v2767 = vadd.f32 0.0, %v2766
        %v2768 = vpop.f32.mrf.mxu0
        %2769 = vmatprep.mubr.bf16.mxu0 0
        %2770 = vmatmul.mubr.bf16.gmra.mxu0 %v2594
        %v2771 = vpop.f32.mrf.mxu0
        %v2772 = vadd.f32 0.0, %v2771
        %v2773 = vpop.f32.mrf.mxu0
        %v2774 = vpop.f32.mrf.mxu0
        %v2775 = vadd.f32 0.0, %v2774
        %v2776 = vpop.f32.mrf.mxu0
        %2777 = vmatprep.mubr.bf16.mxu0 0
        %2778 = vmatmul.mubr.bf16.gmra.mxu0 %v2595
        %v2779 = vpop.f32.mrf.mxu0
        %v2780 = vadd.f32 0.0, %v2779
        %v2781 = vpop.f32.mrf.mxu0
        %v2782 = vpop.f32.mrf.mxu0
        %v2783 = vadd.f32 0.0, %v2782
        %v2784 = vpop.f32.mrf.mxu0
        %2785 = vmatprep.mubr.bf16.mxu0 0
        %2786 = vmatmul.mubr.bf16.gmra.mxu0 %v2596
        %v2787 = vpop.f32.mrf.mxu0
        %v2788 = vadd.f32 0.0, %v2787
        %v2789 = vpop.f32.mrf.mxu0
        %v2790 = vpop.f32.mrf.mxu0
        %v2791 = vadd.f32 0.0, %v2790
        %v2792 = vpop.f32.mrf.mxu0
        %2793 = vmatprep.mubr.bf16.mxu0 0
        %2794 = vmatmul.mubr.bf16.gmra.mxu0 %v2597
        %v2795 = vpop.f32.mrf.mxu0
        %v2796 = vadd.f32 0.0, %v2795
        %v2797 = vpop.f32.mrf.mxu0
        %v2798 = vpop.f32.mrf.mxu0
        %v2799 = vadd.f32 0.0, %v2798
        %v2800 = vpop.f32.mrf.mxu0
        %2801 = vmatprep.mubr.bf16.mxu0 0
        %2802 = vmatmul.mubr.bf16.gmra.mxu0 %v2598
        %v2803 = vpop.f32.mrf.mxu0
        %v2804 = vadd.f32 0.0, %v2803
        %v2805 = vpop.f32.mrf.mxu0
        %v2806 = vpop.f32.mrf.mxu0
        %v2807 = vadd.f32 0.0, %v2806
        %v2808 = vpop.f32.mrf.mxu0
        %2809 = vmatprep.mubr.bf16.mxu0 0
        %2810 = vmatmul.mubr.bf16.gmra.mxu0 %v2599
        %v2811 = vpop.f32.mrf.mxu0
        %v2812 = vadd.f32 0.0, %v2811
        %v2813 = vpop.f32.mrf.mxu0
        %v2814 = vpop.f32.mrf.mxu0
        %v2815 = vadd.f32 0.0, %v2814
        %v2816 = vpop.f32.mrf.mxu0
        %2817 = vmatprep.mubr.bf16.mxu0 0
        %2818 = vmatmul.mubr.bf16.gmra.mxu0 %v2600
        %v2819 = vpop.f32.mrf.mxu0
        %v2820 = vadd.f32 0.0, %v2819
        %v2821 = vpop.f32.mrf.mxu0
        %v2822 = vpop.f32.mrf.mxu0
        %v2823 = vadd.f32 0.0, %v2822
        %v2824 = vpop.f32.mrf.mxu0
        %2825 = vdwg.mxu0
        %v2826 = vadd.f32 %v2247, %v2700
        %v2827 = vadd.f32 %v2250, %v2703
        %v2828 = vadd.f32 %v2255, %v2708
        %v2829 = vadd.f32 %v2258, %v2711
        %v2830 = vadd.f32 %v2263, %v2716
        %v2831 = vadd.f32 %v2266, %v2719
        %v2832 = vadd.f32 %v2271, %v2724
        %v2833 = vadd.f32 %v2274, %v2727
        %v2834 = vadd.f32 %v2279, %v2732
        %v2835 = vadd.f32 %v2282, %v2735
        %v2836 = vadd.f32 %v2287, %v2740
        %v2837 = vadd.f32 %v2290, %v2743
        %v2838 = vadd.f32 %v2295, %v2748
        %v2839 = vadd.f32 %v2298, %v2751
        %v2840 = vadd.f32 %v2303, %v2756
        %v2841 = vadd.f32 %v2306, %v2759
        %v2842 = vadd.f32 %v2311, %v2764
        %v2843 = vadd.f32 %v2314, %v2767
        %v2844 = vadd.f32 %v2319, %v2772
        %v2845 = vadd.f32 %v2322, %v2775
        %v2846 = vadd.f32 %v2327, %v2780
        %v2847 = vadd.f32 %v2330, %v2783
        %v2848 = vadd.f32 %v2335, %v2788
        %v2849 = vadd.f32 %v2338, %v2791
        %v2850 = vadd.f32 %v2343, %v2796
        %v2851 = vadd.f32 %v2346, %v2799
        %v2852 = vadd.f32 %v2351, %v2804
        %v2853 = vadd.f32 %v2354, %v2807
        %v2854 = vadd.f32 %v2359, %v2812
        %v2855 = vadd.f32 %v2362, %v2815
        %v2856 = vadd.f32 %v2367, %v2820
        %v2857 = vadd.f32 %v2370, %v2823
        %v2858 = vld [vmem:[%s1209] sm:$0xf]
        %v2859 = vld [vmem:[%s1209 + $0x4] sm:$0xf]
        %v2860 = vld [vmem:[%s1209 + $0xc] sm:$0xf]
        %v2861 = vld [vmem:[%s1209 + $0x10] sm:$0xf]
        %v2862 = vld [vmem:[%s1209 + $0x18] sm:$0xf]
        %v2863 = vld [vmem:[%s1209 + $0x1c] sm:$0xf]
        %v2864 = vld [vmem:[%s1209 + $0x24] sm:$0xf]
        %v2865 = vld [vmem:[%s1209 + $0x28] sm:$0xf]
        %v2866 = vld [vmem:[%s1209 + $0x30] sm:$0xf]
        %v2867 = vld [vmem:[%s1209 + $0x34] sm:$0xf]
        %v2868 = vld [vmem:[%s1209 + $0x3c] sm:$0xf]
        %v2869 = vld [vmem:[%s1209 + $0x40] sm:$0xf]
        %v2870 = vld [vmem:[%s1209 + $0x48] sm:$0xf]
        %v2871 = vld [vmem:[%s1209 + $0x4c] sm:$0xf]
        %v2872 = vld [vmem:[%s1209 + $0x54] sm:$0xf]
        %v2873 = vld [vmem:[%s1209 + $0x58] sm:$0xf]
        %v2874 = vld [vmem:[%s1209 + $0x60] sm:$0xf]
        %v2875 = vld [vmem:[%s1209 + $0x64] sm:$0xf]
        %v2876 = vld [vmem:[%s1209 + $0x6c] sm:$0xf]
        %v2877 = vld [vmem:[%s1209 + $0x70] sm:$0xf]
        %v2878 = vld [vmem:[%s1209 + $0x78] sm:$0xf]
        %v2879 = vld [vmem:[%s1209 + $0x7c] sm:$0xf]
        %v2880 = vld [vmem:[%s1209 + $0x84] sm:$0xf]
        %v2881 = vld [vmem:[%s1209 + $0x88] sm:$0xf]
        %v2882 = vld [vmem:[%s1209 + $0x90] sm:$0xf]
        %v2883 = vld [vmem:[%s1209 + $0x94] sm:$0xf]
        %v2884 = vld [vmem:[%s1209 + $0x9c] sm:$0xf]
        %v2885 = vld [vmem:[%s1209 + $0xa0] sm:$0xf]
        %v2886 = vld [vmem:[%s1209 + $0xa8] sm:$0xf]
        %v2887 = vld [vmem:[%s1209 + $0xac] sm:$0xf]
        %v2888 = vld [vmem:[%s1209 + $0xb4] sm:$0xf]
        %v2889 = vld [vmem:[%s1209 + $0xb8] sm:$0xf]
        %s2890 = scalar_lea.vmem %s3, 192
        %v2891 = vld [vmem:[%s2890] sm:$0xf]
        %v2892 = vld [vmem:[%s2890 + $0x4] sm:$0xf]
        %v2893 = vld [vmem:[%s2890 + $0x8] sm:$0xf]
        %v2894 = vld [vmem:[%s2890 + $0xc] sm:$0xf]
        %v2895 = vld [vmem:[%s2890 + $0x10] sm:$0xf]
        %v2896 = vld [vmem:[%s2890 + $0x14] sm:$0xf]
        %v2897 = vld [vmem:[%s2890 + $0x18] sm:$0xf]
        %v2898 = vld [vmem:[%s2890 + $0x1c] sm:$0xf]
        %v2899 = vld [vmem:[%s2890 + $0x20] sm:$0xf]
        %v2900 = vld [vmem:[%s2890 + $0x24] sm:$0xf]
        %v2901 = vld [vmem:[%s2890 + $0x28] sm:$0xf]
        %v2902 = vld [vmem:[%s2890 + $0x2c] sm:$0xf]
        %v2903 = vld [vmem:[%s2890 + $0x30] sm:$0xf]
        %v2904 = vld [vmem:[%s2890 + $0x34] sm:$0xf]
        %v2905 = vld [vmem:[%s2890 + $0x38] sm:$0xf]
        %v2906 = vld [vmem:[%s2890 + $0x3c] sm:$0xf]
        %v2939 = vunpack.c.l.b16 %v2858
        %v2940 = vunpack.c.l.b16 %v2859
        %v2941 = vunpack.c.l.b16 %v2860
        %v2942 = vunpack.c.l.b16 %v2861
        %v2943 = vunpack.c.l.b16 %v2862
        %v2944 = vunpack.c.l.b16 %v2863
        %v2945 = vunpack.c.l.b16 %v2864
        %v2946 = vunpack.c.l.b16 %v2865
        %v2947 = vunpack.c.l.b16 %v2866
        %v2948 = vunpack.c.l.b16 %v2867
        %v2949 = vunpack.c.l.b16 %v2868
        %v2950 = vunpack.c.l.b16 %v2869
        %v2951 = vunpack.c.l.b16 %v2870
        %v2952 = vunpack.c.l.b16 %v2871
        %v2953 = vunpack.c.l.b16 %v2872
        %v2954 = vunpack.c.l.b16 %v2873
        %v2955 = vunpack.c.l.b16 %v2874
        %v2956 = vunpack.c.l.b16 %v2875
        %v2957 = vunpack.c.l.b16 %v2876
        %v2958 = vunpack.c.l.b16 %v2877
        %v2959 = vunpack.c.l.b16 %v2878
        %v2960 = vunpack.c.l.b16 %v2879
        %v2961 = vunpack.c.l.b16 %v2880
        %v2962 = vunpack.c.l.b16 %v2881
        %v2963 = vunpack.c.l.b16 %v2882
        %v2964 = vunpack.c.l.b16 %v2883
        %v2965 = vunpack.c.l.b16 %v2884
        %v2966 = vunpack.c.l.b16 %v2885
        %v2967 = vunpack.c.l.b16 %v2886
        %v2968 = vunpack.c.l.b16 %v2887
        %v2969 = vunpack.c.l.b16 %v2888
        %v2970 = vunpack.c.l.b16 %v2889
        %v2971 = vpack.c.b16 %v2940, %v2939
        %v2972 = vpack.c.b16 %v2942, %v2941
        %v2973 = vpack.c.b16 %v2944, %v2943
        %v2974 = vpack.c.b16 %v2946, %v2945
        %v2975 = vpack.c.b16 %v2948, %v2947
        %v2976 = vpack.c.b16 %v2950, %v2949
        %v2977 = vpack.c.b16 %v2952, %v2951
        %v2978 = vpack.c.b16 %v2954, %v2953
        %v2979 = vpack.c.b16 %v2956, %v2955
        %v2980 = vpack.c.b16 %v2958, %v2957
        %v2981 = vpack.c.b16 %v2960, %v2959
        %v2982 = vpack.c.b16 %v2962, %v2961
        %v2983 = vpack.c.b16 %v2964, %v2963
        %v2984 = vpack.c.b16 %v2966, %v2965
        %v2985 = vpack.c.b16 %v2968, %v2967
        %v2986 = vpack.c.b16 %v2970, %v2969
        %v3019 = vunpack.c.l.b16 %v2891
        %v3020 = vunpack.c.l.b16 %v2892
        %v3021 = vunpack.c.l.b16 %v2893
        %v3022 = vunpack.c.l.b16 %v2894
        %v3023 = vunpack.c.l.b16 %v2895
        %v3024 = vunpack.c.l.b16 %v2896
        %v3025 = vunpack.c.l.b16 %v2897
        %v3026 = vunpack.c.l.b16 %v2898
        %v3027 = vunpack.c.l.b16 %v2899
        %v3028 = vunpack.c.l.b16 %v2900
        %v3029 = vunpack.c.l.b16 %v2901
        %v3030 = vunpack.c.l.b16 %v2902
        %v3031 = vunpack.c.l.b16 %v2903
        %v3032 = vunpack.c.l.b16 %v2904
        %v3033 = vunpack.c.l.b16 %v2905
        %v3034 = vunpack.c.l.b16 %v2906
        %v3035 = vpack.c.b16 %v3020, %v3019
        %v3036 = vpack.c.b16 %v3022, %v3021
        %v3037 = vpack.c.b16 %v3024, %v3023
        %v3038 = vpack.c.b16 %v3026, %v3025
        %v3039 = vpack.c.b16 %v3028, %v3027
        %v3040 = vpack.c.b16 %v3030, %v3029
        %v3041 = vpack.c.b16 %v3032, %v3031
        %v3042 = vpack.c.b16 %v3034, %v3033
        %3051 = vmatprep.subr.bf16.mxu0 0
        %3052 = vmatpush1.bf16.msra.mxu0 %v3042
        %3053 = vmatprep.subr.bf16.mxu0 0
        %3054 = vmatpush1.bf16.msra.mxu0 %v3041
        %3055 = vmatprep.subr.bf16.mxu0 0
        %3056 = vmatpush1.bf16.msra.mxu0 %v3040
        %3057 = vmatprep.subr.bf16.mxu0 0
        %3058 = vmatpush1.bf16.msra.mxu0 %v3039
        %3059 = vmatprep.subr.bf16.mxu0 0
        %3060 = vmatpush1.bf16.msra.mxu0 %v3038
        %3061 = vmatprep.subr.bf16.mxu0 0
        %3062 = vmatpush1.bf16.msra.mxu0 %v3037
        %3063 = vmatprep.subr.bf16.mxu0 0
        %3064 = vmatpush1.bf16.msra.mxu0 %v3036
        %3065 = vmatprep.subr.bf16.mxu0 0
        %3066 = vmatpush1.bf16.msra.mxu0 %v3035
        %3067 = vmatprep.subr.bf16.mxu0 0
        %3068 = vmatpush2.bf16.msra.mxu0 0
        %3069 = vmatprep.subr.bf16.mxu0 0
        %3070 = vmatpush2.bf16.msra.mxu0 0
        %3071 = vmatprep.subr.bf16.mxu0 0
        %3072 = vmatpush2.bf16.msra.mxu0 0
        %3073 = vmatprep.subr.bf16.mxu0 0
        %3074 = vmatpush2.bf16.msra.mxu0 0
        %3075 = vmatprep.subr.bf16.mxu0 0
        %3076 = vmatpush2.bf16.msra.mxu0 0
        %3077 = vmatprep.subr.bf16.mxu0 0
        %3078 = vmatpush2.bf16.msra.mxu0 0
        %3079 = vmatprep.subr.bf16.mxu0 0
        %3080 = vmatpush2.bf16.msra.mxu0 0
        %3081 = vmatprep.subr.bf16.mxu0 0
        %3082 = vmatpush2.bf16.msra.mxu0 0
        %3083 = vmatprep.mubr.bf16.mxu0 0
        %3084 = vmatmul.mubr.bf16.gmra.mxu0 %v2971
        %v3085 = vpop.f32.mrf.mxu0
        %v3086 = vadd.f32 0.0, %v3085
        %v3087 = vpop.f32.mrf.mxu0
        %v3088 = vpop.f32.mrf.mxu0
        %v3089 = vadd.f32 0.0, %v3088
        %v3090 = vpop.f32.mrf.mxu0
        %3091 = vmatprep.mubr.bf16.mxu0 0
        %3092 = vmatmul.mubr.bf16.gmra.mxu0 %v2972
        %v3093 = vpop.f32.mrf.mxu0
        %v3094 = vadd.f32 0.0, %v3093
        %v3095 = vpop.f32.mrf.mxu0
        %v3096 = vpop.f32.mrf.mxu0
        %v3097 = vadd.f32 0.0, %v3096
        %v3098 = vpop.f32.mrf.mxu0
        %3099 = vmatprep.mubr.bf16.mxu0 0
        %3100 = vmatmul.mubr.bf16.gmra.mxu0 %v2973
        %v3101 = vpop.f32.mrf.mxu0
        %v3102 = vadd.f32 0.0, %v3101
        %v3103 = vpop.f32.mrf.mxu0
        %v3104 = vpop.f32.mrf.mxu0
        %v3105 = vadd.f32 0.0, %v3104
        %v3106 = vpop.f32.mrf.mxu0
        %3107 = vmatprep.mubr.bf16.mxu0 0
        %3108 = vmatmul.mubr.bf16.gmra.mxu0 %v2974
        %v3109 = vpop.f32.mrf.mxu0
        %v3110 = vadd.f32 0.0, %v3109
        %v3111 = vpop.f32.mrf.mxu0
        %v3112 = vpop.f32.mrf.mxu0
        %v3113 = vadd.f32 0.0, %v3112
        %v3114 = vpop.f32.mrf.mxu0
        %3115 = vmatprep.mubr.bf16.mxu0 0
        %3116 = vmatmul.mubr.bf16.gmra.mxu0 %v2975
        %v3117 = vpop.f32.mrf.mxu0
        %v3118 = vadd.f32 0.0, %v3117
        %v3119 = vpop.f32.mrf.mxu0
        %v3120 = vpop.f32.mrf.mxu0
        %v3121 = vadd.f32 0.0, %v3120
        %v3122 = vpop.f32.mrf.mxu0
        %3123 = vmatprep.mubr.bf16.mxu0 0
        %3124 = vmatmul.mubr.bf16.gmra.mxu0 %v2976
        %v3125 = vpop.f32.mrf.mxu0
        %v3126 = vadd.f32 0.0, %v3125
        %v3127 = vpop.f32.mrf.mxu0
        %v3128 = vpop.f32.mrf.mxu0
        %v3129 = vadd.f32 0.0, %v3128
        %v3130 = vpop.f32.mrf.mxu0
        %3131 = vmatprep.mubr.bf16.mxu0 0
        %3132 = vmatmul.mubr.bf16.gmra.mxu0 %v2977
        %v3133 = vpop.f32.mrf.mxu0
        %v3134 = vadd.f32 0.0, %v3133
        %v3135 = vpop.f32.mrf.mxu0
        %v3136 = vpop.f32.mrf.mxu0
        %v3137 = vadd.f32 0.0, %v3136
        %v3138 = vpop.f32.mrf.mxu0
        %3139 = vmatprep.mubr.bf16.mxu0 0
        %3140 = vmatmul.mubr.bf16.gmra.mxu0 %v2978
        %v3141 = vpop.f32.mrf.mxu0
        %v3142 = vadd.f32 0.0, %v3141
        %v3143 = vpop.f32.mrf.mxu0
        %v3144 = vpop.f32.mrf.mxu0
        %v3145 = vadd.f32 0.0, %v3144
        %v3146 = vpop.f32.mrf.mxu0
        %3147 = vmatprep.mubr.bf16.mxu0 0
        %3148 = vmatmul.mubr.bf16.gmra.mxu0 %v2979
        %v3149 = vpop.f32.mrf.mxu0
        %v3150 = vadd.f32 0.0, %v3149
        %v3151 = vpop.f32.mrf.mxu0
        %v3152 = vpop.f32.mrf.mxu0
        %v3153 = vadd.f32 0.0, %v3152
        %v3154 = vpop.f32.mrf.mxu0
        %3155 = vmatprep.mubr.bf16.mxu0 0
        %3156 = vmatmul.mubr.bf16.gmra.mxu0 %v2980
        %v3157 = vpop.f32.mrf.mxu0
        %v3158 = vadd.f32 0.0, %v3157
        %v3159 = vpop.f32.mrf.mxu0
        %v3160 = vpop.f32.mrf.mxu0
        %v3161 = vadd.f32 0.0, %v3160
        %v3162 = vpop.f32.mrf.mxu0
        %3163 = vmatprep.mubr.bf16.mxu0 0
        %3164 = vmatmul.mubr.bf16.gmra.mxu0 %v2981
        %v3165 = vpop.f32.mrf.mxu0
        %v3166 = vadd.f32 0.0, %v3165
        %v3167 = vpop.f32.mrf.mxu0
        %v3168 = vpop.f32.mrf.mxu0
        %v3169 = vadd.f32 0.0, %v3168
        %v3170 = vpop.f32.mrf.mxu0
        %3171 = vmatprep.mubr.bf16.mxu0 0
        %3172 = vmatmul.mubr.bf16.gmra.mxu0 %v2982
        %v3173 = vpop.f32.mrf.mxu0
        %v3174 = vadd.f32 0.0, %v3173
        %v3175 = vpop.f32.mrf.mxu0
        %v3176 = vpop.f32.mrf.mxu0
        %v3177 = vadd.f32 0.0, %v3176
        %v3178 = vpop.f32.mrf.mxu0
        %3179 = vmatprep.mubr.bf16.mxu0 0
        %3180 = vmatmul.mubr.bf16.gmra.mxu0 %v2983
        %v3181 = vpop.f32.mrf.mxu0
        %v3182 = vadd.f32 0.0, %v3181
        %v3183 = vpop.f32.mrf.mxu0
        %v3184 = vpop.f32.mrf.mxu0
        %v3185 = vadd.f32 0.0, %v3184
        %v3186 = vpop.f32.mrf.mxu0
        %3187 = vmatprep.mubr.bf16.mxu0 0
        %3188 = vmatmul.mubr.bf16.gmra.mxu0 %v2984
        %v3189 = vpop.f32.mrf.mxu0
        %v3190 = vadd.f32 0.0, %v3189
        %v3191 = vpop.f32.mrf.mxu0
        %v3192 = vpop.f32.mrf.mxu0
        %v3193 = vadd.f32 0.0, %v3192
        %v3194 = vpop.f32.mrf.mxu0
        %3195 = vmatprep.mubr.bf16.mxu0 0
        %3196 = vmatmul.mubr.bf16.gmra.mxu0 %v2985
        %v3197 = vpop.f32.mrf.mxu0
        %v3198 = vadd.f32 0.0, %v3197
        %v3199 = vpop.f32.mrf.mxu0
        %v3200 = vpop.f32.mrf.mxu0
        %v3201 = vadd.f32 0.0, %v3200
        %v3202 = vpop.f32.mrf.mxu0
        %3203 = vmatprep.mubr.bf16.mxu0 0
        %3204 = vmatmul.mubr.bf16.gmra.mxu0 %v2986
        %v3205 = vpop.f32.mrf.mxu0
        %v3206 = vadd.f32 0.0, %v3205
        %v3207 = vpop.f32.mrf.mxu0
        %v3208 = vpop.f32.mrf.mxu0
        %v3209 = vadd.f32 0.0, %v3208
        %v3210 = vpop.f32.mrf.mxu0
        %3211 = vdwg.mxu0
        %v3212 = vadd.f32 %v2826, %v3086
        %v3213 = vadd.f32 %v2827, %v3089
        %v3214 = vadd.f32 %v2828, %v3094
        %v3215 = vadd.f32 %v2829, %v3097
        %v3216 = vadd.f32 %v2830, %v3102
        %v3217 = vadd.f32 %v2831, %v3105
        %v3218 = vadd.f32 %v2832, %v3110
        %v3219 = vadd.f32 %v2833, %v3113
        %v3220 = vadd.f32 %v2834, %v3118
        %v3221 = vadd.f32 %v2835, %v3121
        %v3222 = vadd.f32 %v2836, %v3126
        %v3223 = vadd.f32 %v2837, %v3129
        %v3224 = vadd.f32 %v2838, %v3134
        %v3225 = vadd.f32 %v2839, %v3137
        %v3226 = vadd.f32 %v2840, %v3142
        %v3227 = vadd.f32 %v2841, %v3145
        %v3228 = vadd.f32 %v2842, %v3150
        %v3229 = vadd.f32 %v2843, %v3153
        %v3230 = vadd.f32 %v2844, %v3158
        %v3231 = vadd.f32 %v2845, %v3161
        %v3232 = vadd.f32 %v2846, %v3166
        %v3233 = vadd.f32 %v2847, %v3169
        %v3234 = vadd.f32 %v2848, %v3174
        %v3235 = vadd.f32 %v2849, %v3177
        %v3236 = vadd.f32 %v2850, %v3182
        %v3237 = vadd.f32 %v2851, %v3185
        %v3238 = vadd.f32 %v2852, %v3190
        %v3239 = vadd.f32 %v2853, %v3193
        %v3240 = vadd.f32 %v2854, %v3198
        %v3241 = vadd.f32 %v2855, %v3201
        %v3242 = vadd.f32 %v2856, %v3206
        %v3243 = vadd.f32 %v2857, %v3209
        %v3244 = vld [vmem:[%s1209] sm:$0xf]
        %v3245 = vld [vmem:[%s1209 + $0x4] sm:$0xf]
        %v3246 = vld [vmem:[%s1209 + $0x8] sm:$0x1]
        %v3247 = vld [vmem:[%s1209 + $0xc] sm:$0xf]
        %v3248 = vld [vmem:[%s1209 + $0x10] sm:$0xf]
        %v3249 = vld [vmem:[%s1209 + $0x14] sm:$0x1]
        %v3250 = vld [vmem:[%s1209 + $0x18] sm:$0xf]
        %v3251 = vld [vmem:[%s1209 + $0x1c] sm:$0xf]
        %v3252 = vld [vmem:[%s1209 + $0x20] sm:$0x1]
        %v3253 = vld [vmem:[%s1209 + $0x24] sm:$0xf]
        %v3254 = vld [vmem:[%s1209 + $0x28] sm:$0xf]
        %v3255 = vld [vmem:[%s1209 + $0x2c] sm:$0x1]
        %v3256 = vld [vmem:[%s1209 + $0x30] sm:$0xf]
        %v3257 = vld [vmem:[%s1209 + $0x34] sm:$0xf]
        %v3258 = vld [vmem:[%s1209 + $0x38] sm:$0x1]
        %v3259 = vld [vmem:[%s1209 + $0x3c] sm:$0xf]
        %v3260 = vld [vmem:[%s1209 + $0x40] sm:$0xf]
        %v3261 = vld [vmem:[%s1209 + $0x44] sm:$0x1]
        %v3262 = vld [vmem:[%s1209 + $0x48] sm:$0xf]
        %v3263 = vld [vmem:[%s1209 + $0x4c] sm:$0xf]
        %v3264 = vld [vmem:[%s1209 + $0x50] sm:$0x1]
        %v3265 = vld [vmem:[%s1209 + $0x54] sm:$0xf]
        %v3266 = vld [vmem:[%s1209 + $0x58] sm:$0xf]
        %v3267 = vld [vmem:[%s1209 + $0x5c] sm:$0x1]
        %v3268 = vld [vmem:[%s1209 + $0x60] sm:$0xf]
        %v3269 = vld [vmem:[%s1209 + $0x64] sm:$0xf]
        %v3270 = vld [vmem:[%s1209 + $0x68] sm:$0x1]
        %v3271 = vld [vmem:[%s1209 + $0x6c] sm:$0xf]
        %v3272 = vld [vmem:[%s1209 + $0x70] sm:$0xf]
        %v3273 = vld [vmem:[%s1209 + $0x74] sm:$0x1]
        %v3274 = vld [vmem:[%s1209 + $0x78] sm:$0xf]
        %v3275 = vld [vmem:[%s1209 + $0x7c] sm:$0xf]
        %v3276 = vld [vmem:[%s1209 + $0x80] sm:$0x1]
        %v3277 = vld [vmem:[%s1209 + $0x84] sm:$0xf]
        %v3278 = vld [vmem:[%s1209 + $0x88] sm:$0xf]
        %v3279 = vld [vmem:[%s1209 + $0x8c] sm:$0x1]
        %v3280 = vld [vmem:[%s1209 + $0x90] sm:$0xf]
        %v3281 = vld [vmem:[%s1209 + $0x94] sm:$0xf]
        %v3282 = vld [vmem:[%s1209 + $0x98] sm:$0x1]
        %v3283 = vld [vmem:[%s1209 + $0x9c] sm:$0xf]
        %v3284 = vld [vmem:[%s1209 + $0xa0] sm:$0xf]
        %v3285 = vld [vmem:[%s1209 + $0xa4] sm:$0x1]
        %v3286 = vld [vmem:[%s1209 + $0xa8] sm:$0xf]
        %v3287 = vld [vmem:[%s1209 + $0xac] sm:$0xf]
        %v3288 = vld [vmem:[%s1209 + $0xb0] sm:$0x1]
        %v3289 = vld [vmem:[%s1209 + $0xb4] sm:$0xf]
        %v3290 = vld [vmem:[%s1209 + $0xb8] sm:$0xf]
        %v3291 = vld [vmem:[%s1209 + $0xbc] sm:$0x1]
        %v3293 = vshrl.u32 %v3244, 16
        %v3295 = vrot.slane %v3293, 4
        %v3296 = vshll.u32 %v3244, 16
        %v3298 = vrot.slane %v3296, 5
        %v3299 = vor.u32 %v3295, %v3298
        %v3300 = vrot.slane %v3299, 4
        %v3302 = vshll.u32 %v3245, 16
        %v3304 = vrot.slane %v3302, 5
        %v3305 = vsel %vm1393, %v3300, %v3304
        %v3306 = vshrl.u32 %v3245, 16
        %v3308 = vrot.slane %v3306, 4
        %v3309 = vor.u32 %v3308, %v3304
        %v3310 = vrot.slane %v3309, 4
        %v3312 = vshll.u32 %v3246, 16
        %v3314 = vrot.slane %v3312, 5
        %v3315 = vsel %vm1393, %v3310, %v3314
        %v3317 = vshrl.u32 %v3247, 16
        %v3319 = vrot.slane %v3317, 4
        %v3320 = vshll.u32 %v3247, 16
        %v3322 = vrot.slane %v3320, 5
        %v3323 = vor.u32 %v3319, %v3322
        %v3324 = vrot.slane %v3323, 4
        %v3326 = vshll.u32 %v3248, 16
        %v3328 = vrot.slane %v3326, 5
        %v3329 = vsel %vm1393, %v3324, %v3328
        %v3330 = vshrl.u32 %v3248, 16
        %v3332 = vrot.slane %v3330, 4
        %v3333 = vor.u32 %v3332, %v3328
        %v3334 = vrot.slane %v3333, 4
        %v3336 = vshll.u32 %v3249, 16
        %v3338 = vrot.slane %v3336, 5
        %v3339 = vsel %vm1393, %v3334, %v3338
        %v3341 = vshrl.u32 %v3250, 16
        %v3343 = vrot.slane %v3341, 4
        %v3344 = vshll.u32 %v3250, 16
        %v3346 = vrot.slane %v3344, 5
        %v3347 = vor.u32 %v3343, %v3346
        %v3348 = vrot.slane %v3347, 4
        %v3350 = vshll.u32 %v3251, 16
        %v3352 = vrot.slane %v3350, 5
        %v3353 = vsel %vm1393, %v3348, %v3352
        %v3354 = vshrl.u32 %v3251, 16
        %v3356 = vrot.slane %v3354, 4
        %v3357 = vor.u32 %v3356, %v3352
        %v3358 = vrot.slane %v3357, 4
        %v3360 = vshll.u32 %v3252, 16
        %v3362 = vrot.slane %v3360, 5
        %v3363 = vsel %vm1393, %v3358, %v3362
        %v3365 = vshrl.u32 %v3253, 16
        %v3367 = vrot.slane %v3365, 4
        %v3368 = vshll.u32 %v3253, 16
        %v3370 = vrot.slane %v3368, 5
        %v3371 = vor.u32 %v3367, %v3370
        %v3372 = vrot.slane %v3371, 4
        %v3374 = vshll.u32 %v3254, 16
        %v3376 = vrot.slane %v3374, 5
        %v3377 = vsel %vm1393, %v3372, %v3376
        %v3378 = vshrl.u32 %v3254, 16
        %v3380 = vrot.slane %v3378, 4
        %v3381 = vor.u32 %v3380, %v3376
        %v3382 = vrot.slane %v3381, 4
        %v3384 = vshll.u32 %v3255, 16
        %v3386 = vrot.slane %v3384, 5
        %v3387 = vsel %vm1393, %v3382, %v3386
        %v3389 = vshrl.u32 %v3256, 16
        %v3391 = vrot.slane %v3389, 4
        %v3392 = vshll.u32 %v3256, 16
        %v3394 = vrot.slane %v3392, 5
        %v3395 = vor.u32 %v3391, %v3394
        %v3396 = vrot.slane %v3395, 4
        %v3398 = vshll.u32 %v3257, 16
        %v3400 = vrot.slane %v3398, 5
        %v3401 = vsel %vm1393, %v3396, %v3400
        %v3402 = vshrl.u32 %v3257, 16
        %v3404 = vrot.slane %v3402, 4
        %v3405 = vor.u32 %v3404, %v3400
        %v3406 = vrot.slane %v3405, 4
        %v3408 = vshll.u32 %v3258, 16
        %v3410 = vrot.slane %v3408, 5
        %v3411 = vsel %vm1393, %v3406, %v3410
        %v3413 = vshrl.u32 %v3259, 16
        %v3415 = vrot.slane %v3413, 4
        %v3416 = vshll.u32 %v3259, 16
        %v3418 = vrot.slane %v3416, 5
        %v3419 = vor.u32 %v3415, %v3418
        %v3420 = vrot.slane %v3419, 4
        %v3422 = vshll.u32 %v3260, 16
        %v3424 = vrot.slane %v3422, 5
        %v3425 = vsel %vm1393, %v3420, %v3424
        %v3426 = vshrl.u32 %v3260, 16
        %v3428 = vrot.slane %v3426, 4
        %v3429 = vor.u32 %v3428, %v3424
        %v3430 = vrot.slane %v3429, 4
        %v3432 = vshll.u32 %v3261, 16
        %v3434 = vrot.slane %v3432, 5
        %v3435 = vsel %vm1393, %v3430, %v3434
        %v3437 = vshrl.u32 %v3262, 16
        %v3439 = vrot.slane %v3437, 4
        %v3440 = vshll.u32 %v3262, 16
        %v3442 = vrot.slane %v3440, 5
        %v3443 = vor.u32 %v3439, %v3442
        %v3444 = vrot.slane %v3443, 4
        %v3446 = vshll.u32 %v3263, 16
        %v3448 = vrot.slane %v3446, 5
        %v3449 = vsel %vm1393, %v3444, %v3448
        %v3450 = vshrl.u32 %v3263, 16
        %v3452 = vrot.slane %v3450, 4
        %v3453 = vor.u32 %v3452, %v3448
        %v3454 = vrot.slane %v3453, 4
        %v3456 = vshll.u32 %v3264, 16
        %v3458 = vrot.slane %v3456, 5
        %v3459 = vsel %vm1393, %v3454, %v3458
        %v3461 = vshrl.u32 %v3265, 16
        %v3463 = vrot.slane %v3461, 4
        %v3464 = vshll.u32 %v3265, 16
        %v3466 = vrot.slane %v3464, 5
        %v3467 = vor.u32 %v3463, %v3466
        %v3468 = vrot.slane %v3467, 4
        %v3470 = vshll.u32 %v3266, 16
        %v3472 = vrot.slane %v3470, 5
        %v3473 = vsel %vm1393, %v3468, %v3472
        %v3474 = vshrl.u32 %v3266, 16
        %v3476 = vrot.slane %v3474, 4
        %v3477 = vor.u32 %v3476, %v3472
        %v3478 = vrot.slane %v3477, 4
        %v3480 = vshll.u32 %v3267, 16
        %v3482 = vrot.slane %v3480, 5
        %v3483 = vsel %vm1393, %v3478, %v3482
        %v3485 = vshrl.u32 %v3268, 16
        %v3487 = vrot.slane %v3485, 4
        %v3488 = vshll.u32 %v3268, 16
        %v3490 = vrot.slane %v3488, 5
        %v3491 = vor.u32 %v3487, %v3490
        %v3492 = vrot.slane %v3491, 4
        %v3494 = vshll.u32 %v3269, 16
        %v3496 = vrot.slane %v3494, 5
        %v3497 = vsel %vm1393, %v3492, %v3496
        %v3498 = vshrl.u32 %v3269, 16
        %v3500 = vrot.slane %v3498, 4
        %v3501 = vor.u32 %v3500, %v3496
        %v3502 = vrot.slane %v3501, 4
        %v3504 = vshll.u32 %v3270, 16
        %v3506 = vrot.slane %v3504, 5
        %v3507 = vsel %vm1393, %v3502, %v3506
        %v3509 = vshrl.u32 %v3271, 16
        %v3511 = vrot.slane %v3509, 4
        %v3512 = vshll.u32 %v3271, 16
        %v3514 = vrot.slane %v3512, 5
        %v3515 = vor.u32 %v3511, %v3514
        %v3516 = vrot.slane %v3515, 4
        %v3518 = vshll.u32 %v3272, 16
        %v3520 = vrot.slane %v3518, 5
        %v3521 = vsel %vm1393, %v3516, %v3520
        %v3522 = vshrl.u32 %v3272, 16
        %v3524 = vrot.slane %v3522, 4
        %v3525 = vor.u32 %v3524, %v3520
        %v3526 = vrot.slane %v3525, 4
        %v3528 = vshll.u32 %v3273, 16
        %v3530 = vrot.slane %v3528, 5
        %v3531 = vsel %vm1393, %v3526, %v3530
        %v3533 = vshrl.u32 %v3274, 16
        %v3535 = vrot.slane %v3533, 4
        %v3536 = vshll.u32 %v3274, 16
        %v3538 = vrot.slane %v3536, 5
        %v3539 = vor.u32 %v3535, %v3538
        %v3540 = vrot.slane %v3539, 4
        %v3542 = vshll.u32 %v3275, 16
        %v3544 = vrot.slane %v3542, 5
        %v3545 = vsel %vm1393, %v3540, %v3544
        %v3546 = vshrl.u32 %v3275, 16
        %v3548 = vrot.slane %v3546, 4
        %v3549 = vor.u32 %v3548, %v3544
        %v3550 = vrot.slane %v3549, 4
        %v3552 = vshll.u32 %v3276, 16
        %v3554 = vrot.slane %v3552, 5
        %v3555 = vsel %vm1393, %v3550, %v3554
        %v3557 = vshrl.u32 %v3277, 16
        %v3559 = vrot.slane %v3557, 4
        %v3560 = vshll.u32 %v3277, 16
        %v3562 = vrot.slane %v3560, 5
        %v3563 = vor.u32 %v3559, %v3562
        %v3564 = vrot.slane %v3563, 4
        %v3566 = vshll.u32 %v3278, 16
        %v3568 = vrot.slane %v3566, 5
        %v3569 = vsel %vm1393, %v3564, %v3568
        %v3570 = vshrl.u32 %v3278, 16
        %v3572 = vrot.slane %v3570, 4
        %v3573 = vor.u32 %v3572, %v3568
        %v3574 = vrot.slane %v3573, 4
        %v3576 = vshll.u32 %v3279, 16
        %v3578 = vrot.slane %v3576, 5
        %v3579 = vsel %vm1393, %v3574, %v3578
        %v3581 = vshrl.u32 %v3280, 16
        %v3583 = vrot.slane %v3581, 4
        %v3584 = vshll.u32 %v3280, 16
        %v3586 = vrot.slane %v3584, 5
        %v3587 = vor.u32 %v3583, %v3586
        %v3588 = vrot.slane %v3587, 4
        %v3590 = vshll.u32 %v3281, 16
        %v3592 = vrot.slane %v3590, 5
        %v3593 = vsel %vm1393, %v3588, %v3592
        %v3594 = vshrl.u32 %v3281, 16
        %v3596 = vrot.slane %v3594, 4
        %v3597 = vor.u32 %v3596, %v3592
        %v3598 = vrot.slane %v3597, 4
        %v3600 = vshll.u32 %v3282, 16
        %v3602 = vrot.slane %v3600, 5
        %v3603 = vsel %vm1393, %v3598, %v3602
        %v3605 = vshrl.u32 %v3283, 16
        %v3607 = vrot.slane %v3605, 4
        %v3608 = vshll.u32 %v3283, 16
        %v3610 = vrot.slane %v3608, 5
        %v3611 = vor.u32 %v3607, %v3610
        %v3612 = vrot.slane %v3611, 4
        %v3614 = vshll.u32 %v3284, 16
        %v3616 = vrot.slane %v3614, 5
        %v3617 = vsel %vm1393, %v3612, %v3616
        %v3618 = vshrl.u32 %v3284, 16
        %v3620 = vrot.slane %v3618, 4
        %v3621 = vor.u32 %v3620, %v3616
        %v3622 = vrot.slane %v3621, 4
        %v3624 = vshll.u32 %v3285, 16
        %v3626 = vrot.slane %v3624, 5
        %v3627 = vsel %vm1393, %v3622, %v3626
        %v3629 = vshrl.u32 %v3286, 16
        %v3631 = vrot.slane %v3629, 4
        %v3632 = vshll.u32 %v3286, 16
        %v3634 = vrot.slane %v3632, 5
        %v3635 = vor.u32 %v3631, %v3634
        %v3636 = vrot.slane %v3635, 4
        %v3638 = vshll.u32 %v3287, 16
        %v3640 = vrot.slane %v3638, 5
        %v3641 = vsel %vm1393, %v3636, %v3640
        %v3642 = vshrl.u32 %v3287, 16
        %v3644 = vrot.slane %v3642, 4
        %v3645 = vor.u32 %v3644, %v3640
        %v3646 = vrot.slane %v3645, 4
        %v3648 = vshll.u32 %v3288, 16
        %v3650 = vrot.slane %v3648, 5
        %v3651 = vsel %vm1393, %v3646, %v3650
        %v3653 = vshrl.u32 %v3289, 16
        %v3655 = vrot.slane %v3653, 4
        %v3656 = vshll.u32 %v3289, 16
        %v3658 = vrot.slane %v3656, 5
        %v3659 = vor.u32 %v3655, %v3658
        %v3660 = vrot.slane %v3659, 4
        %v3662 = vshll.u32 %v3290, 16
        %v3664 = vrot.slane %v3662, 5
        %v3665 = vsel %vm1393, %v3660, %v3664
        %v3666 = vshrl.u32 %v3290, 16
        %v3668 = vrot.slane %v3666, 4
        %v3669 = vor.u32 %v3668, %v3664
        %v3670 = vrot.slane %v3669, 4
        %v3672 = vshll.u32 %v3291, 16
        %v3674 = vrot.slane %v3672, 5
        %v3675 = vsel %vm1393, %v3670, %v3674
        %s3676 = scalar_lea.vmem %s3, 256
        %v3677 = vld [vmem:[%s3676] sm:$0xf]
        %v3678 = vld [vmem:[%s3676 + $0x4] sm:$0xf]
        %v3679 = vld [vmem:[%s3676 + $0x8] sm:$0xf]
        %v3680 = vld [vmem:[%s3676 + $0xc] sm:$0xf]
        %v3681 = vld [vmem:[%s3676 + $0x10] sm:$0xf]
        %v3682 = vld [vmem:[%s3676 + $0x14] sm:$0xf]
        %v3683 = vld [vmem:[%s3676 + $0x18] sm:$0xf]
        %v3684 = vld [vmem:[%s3676 + $0x1c] sm:$0xf]
        %v3685 = vld [vmem:[%s3676 + $0x20] sm:$0xf]
        %v3686 = vld [vmem:[%s3676 + $0x24] sm:$0xf]
        %v3687 = vld [vmem:[%s3676 + $0x28] sm:$0xf]
        %v3688 = vld [vmem:[%s3676 + $0x2c] sm:$0xf]
        %v3689 = vld [vmem:[%s3676 + $0x30] sm:$0xf]
        %v3690 = vld [vmem:[%s3676 + $0x34] sm:$0xf]
        %v3691 = vld [vmem:[%s3676 + $0x38] sm:$0xf]
        %v3692 = vld [vmem:[%s3676 + $0x3c] sm:$0xf]
        %v3693 = vunpack.c.l.b16 %v3305
        %v3694 = vunpack.c.l.b16 %v3315
        %v3695 = vunpack.c.l.b16 %v3329
        %v3696 = vunpack.c.l.b16 %v3339
        %v3697 = vunpack.c.l.b16 %v3353
        %v3698 = vunpack.c.l.b16 %v3363
        %v3699 = vunpack.c.l.b16 %v3377
        %v3700 = vunpack.c.l.b16 %v3387
        %v3701 = vunpack.c.l.b16 %v3401
        %v3702 = vunpack.c.l.b16 %v3411
        %v3703 = vunpack.c.l.b16 %v3425
        %v3704 = vunpack.c.l.b16 %v3435
        %v3705 = vunpack.c.l.b16 %v3449
        %v3706 = vunpack.c.l.b16 %v3459
        %v3707 = vunpack.c.l.b16 %v3473
        %v3708 = vunpack.c.l.b16 %v3483
        %v3709 = vunpack.c.l.b16 %v3497
        %v3710 = vunpack.c.l.b16 %v3507
        %v3711 = vunpack.c.l.b16 %v3521
        %v3712 = vunpack.c.l.b16 %v3531
        %v3713 = vunpack.c.l.b16 %v3545
        %v3714 = vunpack.c.l.b16 %v3555
        %v3715 = vunpack.c.l.b16 %v3569
        %v3716 = vunpack.c.l.b16 %v3579
        %v3717 = vunpack.c.l.b16 %v3593
        %v3718 = vunpack.c.l.b16 %v3603
        %v3719 = vunpack.c.l.b16 %v3617
        %v3720 = vunpack.c.l.b16 %v3627
        %v3721 = vunpack.c.l.b16 %v3641
        %v3722 = vunpack.c.l.b16 %v3651
        %v3723 = vunpack.c.l.b16 %v3665
        %v3724 = vunpack.c.l.b16 %v3675
        %v3725 = vpack.c.b16 %v3694, %v3693
        %v3726 = vpack.c.b16 %v3696, %v3695
        %v3727 = vpack.c.b16 %v3698, %v3697
        %v3728 = vpack.c.b16 %v3700, %v3699
        %v3729 = vpack.c.b16 %v3702, %v3701
        %v3730 = vpack.c.b16 %v3704, %v3703
        %v3731 = vpack.c.b16 %v3706, %v3705
        %v3732 = vpack.c.b16 %v3708, %v3707
        %v3733 = vpack.c.b16 %v3710, %v3709
        %v3734 = vpack.c.b16 %v3712, %v3711
        %v3735 = vpack.c.b16 %v3714, %v3713
        %v3736 = vpack.c.b16 %v3716, %v3715
        %v3737 = vpack.c.b16 %v3718, %v3717
        %v3738 = vpack.c.b16 %v3720, %v3719
        %v3739 = vpack.c.b16 %v3722, %v3721
        %v3740 = vpack.c.b16 %v3724, %v3723
        %v3773 = vunpack.c.l.b16 %v3677
        %v3774 = vunpack.c.l.b16 %v3678
        %v3775 = vunpack.c.l.b16 %v3679
        %v3776 = vunpack.c.l.b16 %v3680
        %v3777 = vunpack.c.l.b16 %v3681
        %v3778 = vunpack.c.l.b16 %v3682
        %v3779 = vunpack.c.l.b16 %v3683
        %v3780 = vunpack.c.l.b16 %v3684
        %v3781 = vunpack.c.l.b16 %v3685
        %v3782 = vunpack.c.l.b16 %v3686
        %v3783 = vunpack.c.l.b16 %v3687
        %v3784 = vunpack.c.l.b16 %v3688
        %v3785 = vunpack.c.l.b16 %v3689
        %v3786 = vunpack.c.l.b16 %v3690
        %v3787 = vunpack.c.l.b16 %v3691
        %v3788 = vunpack.c.l.b16 %v3692
        %v3789 = vpack.c.b16 %v3774, %v3773
        %v3790 = vpack.c.b16 %v3776, %v3775
        %v3791 = vpack.c.b16 %v3778, %v3777
        %v3792 = vpack.c.b16 %v3780, %v3779
        %v3793 = vpack.c.b16 %v3782, %v3781
        %v3794 = vpack.c.b16 %v3784, %v3783
        %v3795 = vpack.c.b16 %v3786, %v3785
        %v3796 = vpack.c.b16 %v3788, %v3787
        %3805 = vmatprep.subr.bf16.mxu0 0
        %3806 = vmatpush1.bf16.msra.mxu0 %v3796
        %3807 = vmatprep.subr.bf16.mxu0 0
        %3808 = vmatpush1.bf16.msra.mxu0 %v3795
        %3809 = vmatprep.subr.bf16.mxu0 0
        %3810 = vmatpush1.bf16.msra.mxu0 %v3794
        %3811 = vmatprep.subr.bf16.mxu0 0
        %3812 = vmatpush1.bf16.msra.mxu0 %v3793
        %3813 = vmatprep.subr.bf16.mxu0 0
        %3814 = vmatpush1.bf16.msra.mxu0 %v3792
        %3815 = vmatprep.subr.bf16.mxu0 0
        %3816 = vmatpush1.bf16.msra.mxu0 %v3791
        %3817 = vmatprep.subr.bf16.mxu0 0
        %3818 = vmatpush1.bf16.msra.mxu0 %v3790
        %3819 = vmatprep.subr.bf16.mxu0 0
        %3820 = vmatpush1.bf16.msra.mxu0 %v3789
        %3821 = vmatprep.subr.bf16.mxu0 0
        %3822 = vmatpush2.bf16.msra.mxu0 0
        %3823 = vmatprep.subr.bf16.mxu0 0
        %3824 = vmatpush2.bf16.msra.mxu0 0
        %3825 = vmatprep.subr.bf16.mxu0 0
        %3826 = vmatpush2.bf16.msra.mxu0 0
        %3827 = vmatprep.subr.bf16.mxu0 0
        %3828 = vmatpush2.bf16.msra.mxu0 0
        %3829 = vmatprep.subr.bf16.mxu0 0
        %3830 = vmatpush2.bf16.msra.mxu0 0
        %3831 = vmatprep.subr.bf16.mxu0 0
        %3832 = vmatpush2.bf16.msra.mxu0 0
        %3833 = vmatprep.subr.bf16.mxu0 0
        %3834 = vmatpush2.bf16.msra.mxu0 0
        %3835 = vmatprep.subr.bf16.mxu0 0
        %3836 = vmatpush2.bf16.msra.mxu0 0
        %3837 = vmatprep.mubr.bf16.mxu0 0
        %3838 = vmatmul.mubr.bf16.gmra.mxu0 %v3725
        %v3839 = vpop.f32.mrf.mxu0
        %v3840 = vadd.f32 0.0, %v3839
        %v3841 = vpop.f32.mrf.mxu0
        %v3842 = vpop.f32.mrf.mxu0
        %v3843 = vadd.f32 0.0, %v3842
        %v3844 = vpop.f32.mrf.mxu0
        %3845 = vmatprep.mubr.bf16.mxu0 0
        %3846 = vmatmul.mubr.bf16.gmra.mxu0 %v3726
        %v3847 = vpop.f32.mrf.mxu0
        %v3848 = vadd.f32 0.0, %v3847
        %v3849 = vpop.f32.mrf.mxu0
        %v3850 = vpop.f32.mrf.mxu0
        %v3851 = vadd.f32 0.0, %v3850
        %v3852 = vpop.f32.mrf.mxu0
        %3853 = vmatprep.mubr.bf16.mxu0 0
        %3854 = vmatmul.mubr.bf16.gmra.mxu0 %v3727
        %v3855 = vpop.f32.mrf.mxu0
        %v3856 = vadd.f32 0.0, %v3855
        %v3857 = vpop.f32.mrf.mxu0
        %v3858 = vpop.f32.mrf.mxu0
        %v3859 = vadd.f32 0.0, %v3858
        %v3860 = vpop.f32.mrf.mxu0
        %3861 = vmatprep.mubr.bf16.mxu0 0
        %3862 = vmatmul.mubr.bf16.gmra.mxu0 %v3728
        %v3863 = vpop.f32.mrf.mxu0
        %v3864 = vadd.f32 0.0, %v3863
        %v3865 = vpop.f32.mrf.mxu0
        %v3866 = vpop.f32.mrf.mxu0
        %v3867 = vadd.f32 0.0, %v3866
        %v3868 = vpop.f32.mrf.mxu0
        %3869 = vmatprep.mubr.bf16.mxu0 0
        %3870 = vmatmul.mubr.bf16.gmra.mxu0 %v3729
        %v3871 = vpop.f32.mrf.mxu0
        %v3872 = vadd.f32 0.0, %v3871
        %v3873 = vpop.f32.mrf.mxu0
        %v3874 = vpop.f32.mrf.mxu0
        %v3875 = vadd.f32 0.0, %v3874
        %v3876 = vpop.f32.mrf.mxu0
        %3877 = vmatprep.mubr.bf16.mxu0 0
        %3878 = vmatmul.mubr.bf16.gmra.mxu0 %v3730
        %v3879 = vpop.f32.mrf.mxu0
        %v3880 = vadd.f32 0.0, %v3879
        %v3881 = vpop.f32.mrf.mxu0
        %v3882 = vpop.f32.mrf.mxu0
        %v3883 = vadd.f32 0.0, %v3882
        %v3884 = vpop.f32.mrf.mxu0
        %3885 = vmatprep.mubr.bf16.mxu0 0
        %3886 = vmatmul.mubr.bf16.gmra.mxu0 %v3731
        %v3887 = vpop.f32.mrf.mxu0
        %v3888 = vadd.f32 0.0, %v3887
        %v3889 = vpop.f32.mrf.mxu0
        %v3890 = vpop.f32.mrf.mxu0
        %v3891 = vadd.f32 0.0, %v3890
        %v3892 = vpop.f32.mrf.mxu0
        %3893 = vmatprep.mubr.bf16.mxu0 0
        %3894 = vmatmul.mubr.bf16.gmra.mxu0 %v3732
        %v3895 = vpop.f32.mrf.mxu0
        %v3896 = vadd.f32 0.0, %v3895
        %v3897 = vpop.f32.mrf.mxu0
        %v3898 = vpop.f32.mrf.mxu0
        %v3899 = vadd.f32 0.0, %v3898
        %v3900 = vpop.f32.mrf.mxu0
        %3901 = vmatprep.mubr.bf16.mxu0 0
        %3902 = vmatmul.mubr.bf16.gmra.mxu0 %v3733
        %v3903 = vpop.f32.mrf.mxu0
        %v3904 = vadd.f32 0.0, %v3903
        %v3905 = vpop.f32.mrf.mxu0
        %v3906 = vpop.f32.mrf.mxu0
        %v3907 = vadd.f32 0.0, %v3906
        %v3908 = vpop.f32.mrf.mxu0
        %3909 = vmatprep.mubr.bf16.mxu0 0
        %3910 = vmatmul.mubr.bf16.gmra.mxu0 %v3734
        %v3911 = vpop.f32.mrf.mxu0
        %v3912 = vadd.f32 0.0, %v3911
        %v3913 = vpop.f32.mrf.mxu0
        %v3914 = vpop.f32.mrf.mxu0
        %v3915 = vadd.f32 0.0, %v3914
        %v3916 = vpop.f32.mrf.mxu0
        %3917 = vmatprep.mubr.bf16.mxu0 0
        %3918 = vmatmul.mubr.bf16.gmra.mxu0 %v3735
        %v3919 = vpop.f32.mrf.mxu0
        %v3920 = vadd.f32 0.0, %v3919
        %v3921 = vpop.f32.mrf.mxu0
        %v3922 = vpop.f32.mrf.mxu0
        %v3923 = vadd.f32 0.0, %v3922
        %v3924 = vpop.f32.mrf.mxu0
        %3925 = vmatprep.mubr.bf16.mxu0 0
        %3926 = vmatmul.mubr.bf16.gmra.mxu0 %v3736
        %v3927 = vpop.f32.mrf.mxu0
        %v3928 = vadd.f32 0.0, %v3927
        %v3929 = vpop.f32.mrf.mxu0
        %v3930 = vpop.f32.mrf.mxu0
        %v3931 = vadd.f32 0.0, %v3930
        %v3932 = vpop.f32.mrf.mxu0
        %3933 = vmatprep.mubr.bf16.mxu0 0
        %3934 = vmatmul.mubr.bf16.gmra.mxu0 %v3737
        %v3935 = vpop.f32.mrf.mxu0
        %v3936 = vadd.f32 0.0, %v3935
        %v3937 = vpop.f32.mrf.mxu0
        %v3938 = vpop.f32.mrf.mxu0
        %v3939 = vadd.f32 0.0, %v3938
        %v3940 = vpop.f32.mrf.mxu0
        %3941 = vmatprep.mubr.bf16.mxu0 0
        %3942 = vmatmul.mubr.bf16.gmra.mxu0 %v3738
        %v3943 = vpop.f32.mrf.mxu0
        %v3944 = vadd.f32 0.0, %v3943
        %v3945 = vpop.f32.mrf.mxu0
        %v3946 = vpop.f32.mrf.mxu0
        %v3947 = vadd.f32 0.0, %v3946
        %v3948 = vpop.f32.mrf.mxu0
        %3949 = vmatprep.mubr.bf16.mxu0 0
        %3950 = vmatmul.mubr.bf16.gmra.mxu0 %v3739
        %v3951 = vpop.f32.mrf.mxu0
        %v3952 = vadd.f32 0.0, %v3951
        %v3953 = vpop.f32.mrf.mxu0
        %v3954 = vpop.f32.mrf.mxu0
        %v3955 = vadd.f32 0.0, %v3954
        %v3956 = vpop.f32.mrf.mxu0
        %3957 = vmatprep.mubr.bf16.mxu0 0
        %3958 = vmatmul.mubr.bf16.gmra.mxu0 %v3740
        %v3959 = vpop.f32.mrf.mxu0
        %v3960 = vadd.f32 0.0, %v3959
        %v3961 = vpop.f32.mrf.mxu0
        %v3962 = vpop.f32.mrf.mxu0
        %v3963 = vadd.f32 0.0, %v3962
        %v3964 = vpop.f32.mrf.mxu0
        %3965 = vdwg.mxu0
        %v3966 = vadd.f32 %v3212, %v3840
        %v3967 = vadd.f32 %v3213, %v3843
        %v3968 = vadd.f32 %v3214, %v3848
        %v3969 = vadd.f32 %v3215, %v3851
        %v3970 = vadd.f32 %v3216, %v3856
        %v3971 = vadd.f32 %v3217, %v3859
        %v3972 = vadd.f32 %v3218, %v3864
        %v3973 = vadd.f32 %v3219, %v3867
        %v3974 = vadd.f32 %v3220, %v3872
        %v3975 = vadd.f32 %v3221, %v3875
        %v3976 = vadd.f32 %v3222, %v3880
        %v3977 = vadd.f32 %v3223, %v3883
        %v3978 = vadd.f32 %v3224, %v3888
        %v3979 = vadd.f32 %v3225, %v3891
        %v3980 = vadd.f32 %v3226, %v3896
        %v3981 = vadd.f32 %v3227, %v3899
        %v3982 = vadd.f32 %v3228, %v3904
        %v3983 = vadd.f32 %v3229, %v3907
        %v3984 = vadd.f32 %v3230, %v3912
        %v3985 = vadd.f32 %v3231, %v3915
        %v3986 = vadd.f32 %v3232, %v3920
        %v3987 = vadd.f32 %v3233, %v3923
        %v3988 = vadd.f32 %v3234, %v3928
        %v3989 = vadd.f32 %v3235, %v3931
        %v3990 = vadd.f32 %v3236, %v3936
        %v3991 = vadd.f32 %v3237, %v3939
        %v3992 = vadd.f32 %v3238, %v3944
        %v3993 = vadd.f32 %v3239, %v3947
        %v3994 = vadd.f32 %v3240, %v3952
        %v3995 = vadd.f32 %v3241, %v3955
        %v3996 = vadd.f32 %v3242, %v3960
        %v3997 = vadd.f32 %v3243, %v3963
        %v3998 = vld [vmem:[%s1209] sm:$0xe]
        %v3999 = vld [vmem:[%s1209 + $0xc] sm:$0xe]
        %v4000 = vld [vmem:[%s1209 + $0x18] sm:$0xe]
        %v4001 = vld [vmem:[%s1209 + $0x24] sm:$0xe]
        %v4002 = vld [vmem:[%s1209 + $0x30] sm:$0xe]
        %v4003 = vld [vmem:[%s1209 + $0x3c] sm:$0xe]
        %v4004 = vld [vmem:[%s1209 + $0x48] sm:$0xe]
        %v4005 = vld [vmem:[%s1209 + $0x54] sm:$0xe]
        %v4006 = vld [vmem:[%s1209 + $0x60] sm:$0xe]
        %v4007 = vld [vmem:[%s1209 + $0x6c] sm:$0xe]
        %v4008 = vld [vmem:[%s1209 + $0x78] sm:$0xe]
        %v4009 = vld [vmem:[%s1209 + $0x84] sm:$0xe]
        %v4010 = vld [vmem:[%s1209 + $0x90] sm:$0xe]
        %v4011 = vld [vmem:[%s1209 + $0x9c] sm:$0xe]
        %v4012 = vld [vmem:[%s1209 + $0xa8] sm:$0xe]
        %v4013 = vld [vmem:[%s1209 + $0xb4] sm:$0xe]
        %v4062 = vrot.slane %v3998, 5
        %v4063 = vrot.slane %v4062, 4
        %v4064 = vrot.slane %v3245, 5
        %v4065 = vsel %vm2423, %v4063, %v4064
        %v4066 = vrot.slane %v4064, 4
        %v4067 = vrot.slane %v3246, 5
        %v4068 = vsel %vm2423, %v4066, %v4067
        %v4069 = vrot.slane %v3999, 5
        %v4070 = vrot.slane %v4069, 4
        %v4071 = vrot.slane %v3248, 5
        %v4072 = vsel %vm2423, %v4070, %v4071
        %v4073 = vrot.slane %v4071, 4
        %v4074 = vrot.slane %v3249, 5
        %v4075 = vsel %vm2423, %v4073, %v4074
        %v4076 = vrot.slane %v4000, 5
        %v4077 = vrot.slane %v4076, 4
        %v4078 = vrot.slane %v3251, 5
        %v4079 = vsel %vm2423, %v4077, %v4078
        %v4080 = vrot.slane %v4078, 4
        %v4081 = vrot.slane %v3252, 5
        %v4082 = vsel %vm2423, %v4080, %v4081
        %v4083 = vrot.slane %v4001, 5
        %v4084 = vrot.slane %v4083, 4
        %v4085 = vrot.slane %v3254, 5
        %v4086 = vsel %vm2423, %v4084, %v4085
        %v4087 = vrot.slane %v4085, 4
        %v4088 = vrot.slane %v3255, 5
        %v4089 = vsel %vm2423, %v4087, %v4088
        %v4090 = vrot.slane %v4002, 5
        %v4091 = vrot.slane %v4090, 4
        %v4092 = vrot.slane %v3257, 5
        %v4093 = vsel %vm2423, %v4091, %v4092
        %v4094 = vrot.slane %v4092, 4
        %v4095 = vrot.slane %v3258, 5
        %v4096 = vsel %vm2423, %v4094, %v4095
        %v4097 = vrot.slane %v4003, 5
        %v4098 = vrot.slane %v4097, 4
        %v4099 = vrot.slane %v3260, 5
        %v4100 = vsel %vm2423, %v4098, %v4099
        %v4101 = vrot.slane %v4099, 4
        %v4102 = vrot.slane %v3261, 5
        %v4103 = vsel %vm2423, %v4101, %v4102
        %v4104 = vrot.slane %v4004, 5
        %v4105 = vrot.slane %v4104, 4
        %v4106 = vrot.slane %v3263, 5
        %v4107 = vsel %vm2423, %v4105, %v4106
        %v4108 = vrot.slane %v4106, 4
        %v4109 = vrot.slane %v3264, 5
        %v4110 = vsel %vm2423, %v4108, %v4109
        %v4111 = vrot.slane %v4005, 5
        %v4112 = vrot.slane %v4111, 4
        %v4113 = vrot.slane %v3266, 5
        %v4114 = vsel %vm2423, %v4112, %v4113
        %v4115 = vrot.slane %v4113, 4
        %v4116 = vrot.slane %v3267, 5
        %v4117 = vsel %vm2423, %v4115, %v4116
        %v4118 = vrot.slane %v4006, 5
        %v4119 = vrot.slane %v4118, 4
        %v4120 = vrot.slane %v3269, 5
        %v4121 = vsel %vm2423, %v4119, %v4120
        %v4122 = vrot.slane %v4120, 4
        %v4123 = vrot.slane %v3270, 5
        %v4124 = vsel %vm2423, %v4122, %v4123
        %v4125 = vrot.slane %v4007, 5
        %v4126 = vrot.slane %v4125, 4
        %v4127 = vrot.slane %v3272, 5
        %v4128 = vsel %vm2423, %v4126, %v4127
        %v4129 = vrot.slane %v4127, 4
        %v4130 = vrot.slane %v3273, 5
        %v4131 = vsel %vm2423, %v4129, %v4130
        %v4132 = vrot.slane %v4008, 5
        %v4133 = vrot.slane %v4132, 4
        %v4134 = vrot.slane %v3275, 5
        %v4135 = vsel %vm2423, %v4133, %v4134
        %v4136 = vrot.slane %v4134, 4
        %v4137 = vrot.slane %v3276, 5
        %v4138 = vsel %vm2423, %v4136, %v4137
        %v4139 = vrot.slane %v4009, 5
        %v4140 = vrot.slane %v4139, 4
        %v4141 = vrot.slane %v3278, 5
        %v4142 = vsel %vm2423, %v4140, %v4141
        %v4143 = vrot.slane %v4141, 4
        %v4144 = vrot.slane %v3279, 5
        %v4145 = vsel %vm2423, %v4143, %v4144
        %v4146 = vrot.slane %v4010, 5
        %v4147 = vrot.slane %v4146, 4
        %v4148 = vrot.slane %v3281, 5
        %v4149 = vsel %vm2423, %v4147, %v4148
        %v4150 = vrot.slane %v4148, 4
        %v4151 = vrot.slane %v3282, 5
        %v4152 = vsel %vm2423, %v4150, %v4151
        %v4153 = vrot.slane %v4011, 5
        %v4154 = vrot.slane %v4153, 4
        %v4155 = vrot.slane %v3284, 5
        %v4156 = vsel %vm2423, %v4154, %v4155
        %v4157 = vrot.slane %v4155, 4
        %v4158 = vrot.slane %v3285, 5
        %v4159 = vsel %vm2423, %v4157, %v4158
        %v4160 = vrot.slane %v4012, 5
        %v4161 = vrot.slane %v4160, 4
        %v4162 = vrot.slane %v3287, 5
        %v4163 = vsel %vm2423, %v4161, %v4162
        %v4164 = vrot.slane %v4162, 4
        %v4165 = vrot.slane %v3288, 5
        %v4166 = vsel %vm2423, %v4164, %v4165
        %v4167 = vrot.slane %v4013, 5
        %v4168 = vrot.slane %v4167, 4
        %v4169 = vrot.slane %v3290, 5
        %v4170 = vsel %vm2423, %v4168, %v4169
        %v4171 = vrot.slane %v4169, 4
        %v4172 = vrot.slane %v3291, 5
        %v4173 = vsel %vm2423, %v4171, %v4172
        %s4174 = scalar_lea.vmem %s3, 320
        %v4175 = vld [vmem:[%s4174] sm:$0xf]
        %v4176 = vld [vmem:[%s4174 + $0x4] sm:$0xf]
        %v4177 = vld [vmem:[%s4174 + $0x8] sm:$0xf]
        %v4178 = vld [vmem:[%s4174 + $0xc] sm:$0xf]
        %v4179 = vld [vmem:[%s4174 + $0x10] sm:$0xf]
        %v4180 = vld [vmem:[%s4174 + $0x14] sm:$0xf]
        %v4181 = vld [vmem:[%s4174 + $0x18] sm:$0xf]
        %v4182 = vld [vmem:[%s4174 + $0x1c] sm:$0xf]
        %v4183 = vld [vmem:[%s4174 + $0x20] sm:$0xf]
        %v4184 = vld [vmem:[%s4174 + $0x24] sm:$0xf]
        %v4185 = vld [vmem:[%s4174 + $0x28] sm:$0xf]
        %v4186 = vld [vmem:[%s4174 + $0x2c] sm:$0xf]
        %v4187 = vld [vmem:[%s4174 + $0x30] sm:$0xf]
        %v4188 = vld [vmem:[%s4174 + $0x34] sm:$0xf]
        %v4189 = vld [vmem:[%s4174 + $0x38] sm:$0xf]
        %v4190 = vld [vmem:[%s4174 + $0x3c] sm:$0xf]
        %v4191 = vunpack.c.l.b16 %v4065
        %v4192 = vunpack.c.l.b16 %v4068
        %v4193 = vunpack.c.l.b16 %v4072
        %v4194 = vunpack.c.l.b16 %v4075
        %v4195 = vunpack.c.l.b16 %v4079
        %v4196 = vunpack.c.l.b16 %v4082
        %v4197 = vunpack.c.l.b16 %v4086
        %v4198 = vunpack.c.l.b16 %v4089
        %v4199 = vunpack.c.l.b16 %v4093
        %v4200 = vunpack.c.l.b16 %v4096
        %v4201 = vunpack.c.l.b16 %v4100
        %v4202 = vunpack.c.l.b16 %v4103
        %v4203 = vunpack.c.l.b16 %v4107
        %v4204 = vunpack.c.l.b16 %v4110
        %v4205 = vunpack.c.l.b16 %v4114
        %v4206 = vunpack.c.l.b16 %v4117
        %v4207 = vunpack.c.l.b16 %v4121
        %v4208 = vunpack.c.l.b16 %v4124
        %v4209 = vunpack.c.l.b16 %v4128
        %v4210 = vunpack.c.l.b16 %v4131
        %v4211 = vunpack.c.l.b16 %v4135
        %v4212 = vunpack.c.l.b16 %v4138
        %v4213 = vunpack.c.l.b16 %v4142
        %v4214 = vunpack.c.l.b16 %v4145
        %v4215 = vunpack.c.l.b16 %v4149
        %v4216 = vunpack.c.l.b16 %v4152
        %v4217 = vunpack.c.l.b16 %v4156
        %v4218 = vunpack.c.l.b16 %v4159
        %v4219 = vunpack.c.l.b16 %v4163
        %v4220 = vunpack.c.l.b16 %v4166
        %v4221 = vunpack.c.l.b16 %v4170
        %v4222 = vunpack.c.l.b16 %v4173
        %v4223 = vpack.c.b16 %v4192, %v4191
        %v4224 = vpack.c.b16 %v4194, %v4193
        %v4225 = vpack.c.b16 %v4196, %v4195
        %v4226 = vpack.c.b16 %v4198, %v4197
        %v4227 = vpack.c.b16 %v4200, %v4199
        %v4228 = vpack.c.b16 %v4202, %v4201
        %v4229 = vpack.c.b16 %v4204, %v4203
        %v4230 = vpack.c.b16 %v4206, %v4205
        %v4231 = vpack.c.b16 %v4208, %v4207
        %v4232 = vpack.c.b16 %v4210, %v4209
        %v4233 = vpack.c.b16 %v4212, %v4211
        %v4234 = vpack.c.b16 %v4214, %v4213
        %v4235 = vpack.c.b16 %v4216, %v4215
        %v4236 = vpack.c.b16 %v4218, %v4217
        %v4237 = vpack.c.b16 %v4220, %v4219
        %v4238 = vpack.c.b16 %v4222, %v4221
        %v4271 = vunpack.c.l.b16 %v4175
        %v4272 = vunpack.c.l.b16 %v4176
        %v4273 = vunpack.c.l.b16 %v4177
        %v4274 = vunpack.c.l.b16 %v4178
        %v4275 = vunpack.c.l.b16 %v4179
        %v4276 = vunpack.c.l.b16 %v4180
        %v4277 = vunpack.c.l.b16 %v4181
        %v4278 = vunpack.c.l.b16 %v4182
        %v4279 = vunpack.c.l.b16 %v4183
        %v4280 = vunpack.c.l.b16 %v4184
        %v4281 = vunpack.c.l.b16 %v4185
        %v4282 = vunpack.c.l.b16 %v4186
        %v4283 = vunpack.c.l.b16 %v4187
        %v4284 = vunpack.c.l.b16 %v4188
        %v4285 = vunpack.c.l.b16 %v4189
        %v4286 = vunpack.c.l.b16 %v4190
        %v4287 = vpack.c.b16 %v4272, %v4271
        %v4288 = vpack.c.b16 %v4274, %v4273
        %v4289 = vpack.c.b16 %v4276, %v4275
        %v4290 = vpack.c.b16 %v4278, %v4277
        %v4291 = vpack.c.b16 %v4280, %v4279
        %v4292 = vpack.c.b16 %v4282, %v4281
        %v4293 = vpack.c.b16 %v4284, %v4283
        %v4294 = vpack.c.b16 %v4286, %v4285
        %4303 = vmatprep.subr.bf16.mxu0 0
        %4304 = vmatpush1.bf16.msra.mxu0 %v4294
        %4305 = vmatprep.subr.bf16.mxu0 0
        %4306 = vmatpush1.bf16.msra.mxu0 %v4293
        %4307 = vmatprep.subr.bf16.mxu0 0
        %4308 = vmatpush1.bf16.msra.mxu0 %v4292
        %4309 = vmatprep.subr.bf16.mxu0 0
        %4310 = vmatpush1.bf16.msra.mxu0 %v4291
        %4311 = vmatprep.subr.bf16.mxu0 0
        %4312 = vmatpush1.bf16.msra.mxu0 %v4290
        %4313 = vmatprep.subr.bf16.mxu0 0
        %4314 = vmatpush1.bf16.msra.mxu0 %v4289
        %4315 = vmatprep.subr.bf16.mxu0 0
        %4316 = vmatpush1.bf16.msra.mxu0 %v4288
        %4317 = vmatprep.subr.bf16.mxu0 0
        %4318 = vmatpush1.bf16.msra.mxu0 %v4287
        %4319 = vmatprep.subr.bf16.mxu0 0
        %4320 = vmatpush2.bf16.msra.mxu0 0
        %4321 = vmatprep.subr.bf16.mxu0 0
        %4322 = vmatpush2.bf16.msra.mxu0 0
        %4323 = vmatprep.subr.bf16.mxu0 0
        %4324 = vmatpush2.bf16.msra.mxu0 0
        %4325 = vmatprep.subr.bf16.mxu0 0
        %4326 = vmatpush2.bf16.msra.mxu0 0
        %4327 = vmatprep.subr.bf16.mxu0 0
        %4328 = vmatpush2.bf16.msra.mxu0 0
        %4329 = vmatprep.subr.bf16.mxu0 0
        %4330 = vmatpush2.bf16.msra.mxu0 0
        %4331 = vmatprep.subr.bf16.mxu0 0
        %4332 = vmatpush2.bf16.msra.mxu0 0
        %4333 = vmatprep.subr.bf16.mxu0 0
        %4334 = vmatpush2.bf16.msra.mxu0 0
        %4335 = vmatprep.mubr.bf16.mxu0 0
        %4336 = vmatmul.mubr.bf16.gmra.mxu0 %v4223
        %v4337 = vpop.f32.mrf.mxu0
        %v4338 = vadd.f32 0.0, %v4337
        %v4339 = vpop.f32.mrf.mxu0
        %v4340 = vpop.f32.mrf.mxu0
        %v4341 = vadd.f32 0.0, %v4340
        %v4342 = vpop.f32.mrf.mxu0
        %4343 = vmatprep.mubr.bf16.mxu0 0
        %4344 = vmatmul.mubr.bf16.gmra.mxu0 %v4224
        %v4345 = vpop.f32.mrf.mxu0
        %v4346 = vadd.f32 0.0, %v4345
        %v4347 = vpop.f32.mrf.mxu0
        %v4348 = vpop.f32.mrf.mxu0
        %v4349 = vadd.f32 0.0, %v4348
        %v4350 = vpop.f32.mrf.mxu0
        %4351 = vmatprep.mubr.bf16.mxu0 0
        %4352 = vmatmul.mubr.bf16.gmra.mxu0 %v4225
        %v4353 = vpop.f32.mrf.mxu0
        %v4354 = vadd.f32 0.0, %v4353
        %v4355 = vpop.f32.mrf.mxu0
        %v4356 = vpop.f32.mrf.mxu0
        %v4357 = vadd.f32 0.0, %v4356
        %v4358 = vpop.f32.mrf.mxu0
        %4359 = vmatprep.mubr.bf16.mxu0 0
        %4360 = vmatmul.mubr.bf16.gmra.mxu0 %v4226
        %v4361 = vpop.f32.mrf.mxu0
        %v4362 = vadd.f32 0.0, %v4361
        %v4363 = vpop.f32.mrf.mxu0
        %v4364 = vpop.f32.mrf.mxu0
        %v4365 = vadd.f32 0.0, %v4364
        %v4366 = vpop.f32.mrf.mxu0
        %4367 = vmatprep.mubr.bf16.mxu0 0
        %4368 = vmatmul.mubr.bf16.gmra.mxu0 %v4227
        %v4369 = vpop.f32.mrf.mxu0
        %v4370 = vadd.f32 0.0, %v4369
        %v4371 = vpop.f32.mrf.mxu0
        %v4372 = vpop.f32.mrf.mxu0
        %v4373 = vadd.f32 0.0, %v4372
        %v4374 = vpop.f32.mrf.mxu0
        %4375 = vmatprep.mubr.bf16.mxu0 0
        %4376 = vmatmul.mubr.bf16.gmra.mxu0 %v4228
        %v4377 = vpop.f32.mrf.mxu0
        %v4378 = vadd.f32 0.0, %v4377
        %v4379 = vpop.f32.mrf.mxu0
        %v4380 = vpop.f32.mrf.mxu0
        %v4381 = vadd.f32 0.0, %v4380
        %v4382 = vpop.f32.mrf.mxu0
        %4383 = vmatprep.mubr.bf16.mxu0 0
        %4384 = vmatmul.mubr.bf16.gmra.mxu0 %v4229
        %v4385 = vpop.f32.mrf.mxu0
        %v4386 = vadd.f32 0.0, %v4385
        %v4387 = vpop.f32.mrf.mxu0
        %v4388 = vpop.f32.mrf.mxu0
        %v4389 = vadd.f32 0.0, %v4388
        %v4390 = vpop.f32.mrf.mxu0
        %4391 = vmatprep.mubr.bf16.mxu0 0
        %4392 = vmatmul.mubr.bf16.gmra.mxu0 %v4230
        %v4393 = vpop.f32.mrf.mxu0
        %v4394 = vadd.f32 0.0, %v4393
        %v4395 = vpop.f32.mrf.mxu0
        %v4396 = vpop.f32.mrf.mxu0
        %v4397 = vadd.f32 0.0, %v4396
        %v4398 = vpop.f32.mrf.mxu0
        %4399 = vmatprep.mubr.bf16.mxu0 0
        %4400 = vmatmul.mubr.bf16.gmra.mxu0 %v4231
        %v4401 = vpop.f32.mrf.mxu0
        %v4402 = vadd.f32 0.0, %v4401
        %v4403 = vpop.f32.mrf.mxu0
        %v4404 = vpop.f32.mrf.mxu0
        %v4405 = vadd.f32 0.0, %v4404
        %v4406 = vpop.f32.mrf.mxu0
        %4407 = vmatprep.mubr.bf16.mxu0 0
        %4408 = vmatmul.mubr.bf16.gmra.mxu0 %v4232
        %v4409 = vpop.f32.mrf.mxu0
        %v4410 = vadd.f32 0.0, %v4409
        %v4411 = vpop.f32.mrf.mxu0
        %v4412 = vpop.f32.mrf.mxu0
        %v4413 = vadd.f32 0.0, %v4412
        %v4414 = vpop.f32.mrf.mxu0
        %4415 = vmatprep.mubr.bf16.mxu0 0
        %4416 = vmatmul.mubr.bf16.gmra.mxu0 %v4233
        %v4417 = vpop.f32.mrf.mxu0
        %v4418 = vadd.f32 0.0, %v4417
        %v4419 = vpop.f32.mrf.mxu0
        %v4420 = vpop.f32.mrf.mxu0
        %v4421 = vadd.f32 0.0, %v4420
        %v4422 = vpop.f32.mrf.mxu0
        %4423 = vmatprep.mubr.bf16.mxu0 0
        %4424 = vmatmul.mubr.bf16.gmra.mxu0 %v4234
        %v4425 = vpop.f32.mrf.mxu0
        %v4426 = vadd.f32 0.0, %v4425
        %v4427 = vpop.f32.mrf.mxu0
        %v4428 = vpop.f32.mrf.mxu0
        %v4429 = vadd.f32 0.0, %v4428
        %v4430 = vpop.f32.mrf.mxu0
        %4431 = vmatprep.mubr.bf16.mxu0 0
        %4432 = vmatmul.mubr.bf16.gmra.mxu0 %v4235
        %v4433 = vpop.f32.mrf.mxu0
        %v4434 = vadd.f32 0.0, %v4433
        %v4435 = vpop.f32.mrf.mxu0
        %v4436 = vpop.f32.mrf.mxu0
        %v4437 = vadd.f32 0.0, %v4436
        %v4438 = vpop.f32.mrf.mxu0
        %4439 = vmatprep.mubr.bf16.mxu0 0
        %4440 = vmatmul.mubr.bf16.gmra.mxu0 %v4236
        %v4441 = vpop.f32.mrf.mxu0
        %v4442 = vadd.f32 0.0, %v4441
        %v4443 = vpop.f32.mrf.mxu0
        %v4444 = vpop.f32.mrf.mxu0
        %v4445 = vadd.f32 0.0, %v4444
        %v4446 = vpop.f32.mrf.mxu0
        %4447 = vmatprep.mubr.bf16.mxu0 0
        %4448 = vmatmul.mubr.bf16.gmra.mxu0 %v4237
        %v4449 = vpop.f32.mrf.mxu0
        %v4450 = vadd.f32 0.0, %v4449
        %v4451 = vpop.f32.mrf.mxu0
        %v4452 = vpop.f32.mrf.mxu0
        %v4453 = vadd.f32 0.0, %v4452
        %v4454 = vpop.f32.mrf.mxu0
        %4455 = vmatprep.mubr.bf16.mxu0 0
        %4456 = vmatmul.mubr.bf16.gmra.mxu0 %v4238
        %v4457 = vpop.f32.mrf.mxu0
        %v4458 = vadd.f32 0.0, %v4457
        %v4459 = vpop.f32.mrf.mxu0
        %v4460 = vpop.f32.mrf.mxu0
        %v4461 = vadd.f32 0.0, %v4460
        %v4462 = vpop.f32.mrf.mxu0
        %4463 = vdwg.mxu0
        %v4464 = vadd.f32 %v3966, %v4338
        %v4465 = vadd.f32 %v3967, %v4341
        %v4466 = vadd.f32 %v3968, %v4346
        %v4467 = vadd.f32 %v3969, %v4349
        %v4468 = vadd.f32 %v3970, %v4354
        %v4469 = vadd.f32 %v3971, %v4357
        %v4470 = vadd.f32 %v3972, %v4362
        %v4471 = vadd.f32 %v3973, %v4365
        %v4472 = vadd.f32 %v3974, %v4370
        %v4473 = vadd.f32 %v3975, %v4373
        %v4474 = vadd.f32 %v3976, %v4378
        %v4475 = vadd.f32 %v3977, %v4381
        %v4476 = vadd.f32 %v3978, %v4386
        %v4477 = vadd.f32 %v3979, %v4389
        %v4478 = vadd.f32 %v3980, %v4394
        %v4479 = vadd.f32 %v3981, %v4397
        %v4480 = vadd.f32 %v3982, %v4402
        %v4481 = vadd.f32 %v3983, %v4405
        %v4482 = vadd.f32 %v3984, %v4410
        %v4483 = vadd.f32 %v3985, %v4413
        %v4484 = vadd.f32 %v3986, %v4418
        %v4485 = vadd.f32 %v3987, %v4421
        %v4486 = vadd.f32 %v3988, %v4426
        %v4487 = vadd.f32 %v3989, %v4429
        %v4488 = vadd.f32 %v3990, %v4434
        %v4489 = vadd.f32 %v3991, %v4437
        %v4490 = vadd.f32 %v3992, %v4442
        %v4491 = vadd.f32 %v3993, %v4445
        %v4492 = vadd.f32 %v3994, %v4450
        %v4493 = vadd.f32 %v3995, %v4453
        %v4494 = vadd.f32 %v3996, %v4458
        %v4495 = vadd.f32 %v3997, %v4461
        %s4496 = scalar_lea.vmem [#allocation2], 24
        %v4497 = vld [vmem:[%s4496] sm:$0xf]
        %v4498 = vld [vmem:[%s4496 + $0x4] sm:$0xf]
        %v4499 = vld [vmem:[%s4496 + $0xc] sm:$0xf]
        %v4500 = vld [vmem:[%s4496 + $0x10] sm:$0xf]
        %v4501 = vld [vmem:[%s4496 + $0x18] sm:$0xf]
        %v4502 = vld [vmem:[%s4496 + $0x1c] sm:$0xf]
        %v4503 = vld [vmem:[%s4496 + $0x24] sm:$0xf]
        %v4504 = vld [vmem:[%s4496 + $0x28] sm:$0xf]
        %v4505 = vld [vmem:[%s4496 + $0x30] sm:$0xf]
        %v4506 = vld [vmem:[%s4496 + $0x34] sm:$0xf]
        %v4507 = vld [vmem:[%s4496 + $0x3c] sm:$0xf]
        %v4508 = vld [vmem:[%s4496 + $0x40] sm:$0xf]
        %v4509 = vld [vmem:[%s4496 + $0x48] sm:$0xf]
        %v4510 = vld [vmem:[%s4496 + $0x4c] sm:$0xf]
        %v4511 = vld [vmem:[%s4496 + $0x54] sm:$0xf]
        %v4512 = vld [vmem:[%s4496 + $0x58] sm:$0xf]
        %v4513 = vld [vmem:[%s4496 + $0x60] sm:$0xf]
        %v4514 = vld [vmem:[%s4496 + $0x64] sm:$0xf]
        %v4515 = vld [vmem:[%s4496 + $0x6c] sm:$0xf]
        %v4516 = vld [vmem:[%s4496 + $0x70] sm:$0xf]
        %v4517 = vld [vmem:[%s4496 + $0x78] sm:$0xf]
        %v4518 = vld [vmem:[%s4496 + $0x7c] sm:$0xf]
        %v4519 = vld [vmem:[%s4496 + $0x84] sm:$0xf]
        %v4520 = vld [vmem:[%s4496 + $0x88] sm:$0xf]
        %v4521 = vld [vmem:[%s4496 + $0x90] sm:$0xf]
        %v4522 = vld [vmem:[%s4496 + $0x94] sm:$0xf]
        %v4523 = vld [vmem:[%s4496 + $0x9c] sm:$0xf]
        %v4524 = vld [vmem:[%s4496 + $0xa0] sm:$0xf]
        %v4525 = vld [vmem:[%s4496 + $0xa8] sm:$0xf]
        %v4526 = vld [vmem:[%s4496 + $0xac] sm:$0xf]
        %v4527 = vld [vmem:[%s4496 + $0xb4] sm:$0xf]
        %v4528 = vld [vmem:[%s4496 + $0xb8] sm:$0xf]
        %s4529 = scalar_lea.vmem %s3, 384
        %v4530 = vld [vmem:[%s4529] sm:$0xf]
        %v4531 = vld [vmem:[%s4529 + $0x4] sm:$0xf]
        %v4532 = vld [vmem:[%s4529 + $0x8] sm:$0xf]
        %v4533 = vld [vmem:[%s4529 + $0xc] sm:$0xf]
        %v4534 = vld [vmem:[%s4529 + $0x10] sm:$0xf]
        %v4535 = vld [vmem:[%s4529 + $0x14] sm:$0xf]
        %v4536 = vld [vmem:[%s4529 + $0x18] sm:$0xf]
        %v4537 = vld [vmem:[%s4529 + $0x1c] sm:$0xf]
        %v4538 = vld [vmem:[%s4529 + $0x20] sm:$0xf]
        %v4539 = vld [vmem:[%s4529 + $0x24] sm:$0xf]
        %v4540 = vld [vmem:[%s4529 + $0x28] sm:$0xf]
        %v4541 = vld [vmem:[%s4529 + $0x2c] sm:$0xf]
        %v4542 = vld [vmem:[%s4529 + $0x30] sm:$0xf]
        %v4543 = vld [vmem:[%s4529 + $0x34] sm:$0xf]
        %v4544 = vld [vmem:[%s4529 + $0x38] sm:$0xf]
        %v4545 = vld [vmem:[%s4529 + $0x3c] sm:$0xf]
        %v4578 = vunpack.c.l.b16 %v4497
        %v4579 = vunpack.c.l.b16 %v4498
        %v4580 = vunpack.c.l.b16 %v4499
        %v4581 = vunpack.c.l.b16 %v4500
        %v4582 = vunpack.c.l.b16 %v4501
        %v4583 = vunpack.c.l.b16 %v4502
        %v4584 = vunpack.c.l.b16 %v4503
        %v4585 = vunpack.c.l.b16 %v4504
        %v4586 = vunpack.c.l.b16 %v4505
        %v4587 = vunpack.c.l.b16 %v4506
        %v4588 = vunpack.c.l.b16 %v4507
        %v4589 = vunpack.c.l.b16 %v4508
        %v4590 = vunpack.c.l.b16 %v4509
        %v4591 = vunpack.c.l.b16 %v4510
        %v4592 = vunpack.c.l.b16 %v4511
        %v4593 = vunpack.c.l.b16 %v4512
        %v4594 = vunpack.c.l.b16 %v4513
        %v4595 = vunpack.c.l.b16 %v4514
        %v4596 = vunpack.c.l.b16 %v4515
        %v4597 = vunpack.c.l.b16 %v4516
        %v4598 = vunpack.c.l.b16 %v4517
        %v4599 = vunpack.c.l.b16 %v4518
        %v4600 = vunpack.c.l.b16 %v4519
        %v4601 = vunpack.c.l.b16 %v4520
        %v4602 = vunpack.c.l.b16 %v4521
        %v4603 = vunpack.c.l.b16 %v4522
        %v4604 = vunpack.c.l.b16 %v4523
        %v4605 = vunpack.c.l.b16 %v4524
        %v4606 = vunpack.c.l.b16 %v4525
        %v4607 = vunpack.c.l.b16 %v4526
        %v4608 = vunpack.c.l.b16 %v4527
        %v4609 = vunpack.c.l.b16 %v4528
        %v4610 = vpack.c.b16 %v4579, %v4578
        %v4611 = vpack.c.b16 %v4581, %v4580
        %v4612 = vpack.c.b16 %v4583, %v4582
        %v4613 = vpack.c.b16 %v4585, %v4584
        %v4614 = vpack.c.b16 %v4587, %v4586
        %v4615 = vpack.c.b16 %v4589, %v4588
        %v4616 = vpack.c.b16 %v4591, %v4590
        %v4617 = vpack.c.b16 %v4593, %v4592
        %v4618 = vpack.c.b16 %v4595, %v4594
        %v4619 = vpack.c.b16 %v4597, %v4596
        %v4620 = vpack.c.b16 %v4599, %v4598
        %v4621 = vpack.c.b16 %v4601, %v4600
        %v4622 = vpack.c.b16 %v4603, %v4602
        %v4623 = vpack.c.b16 %v4605, %v4604
        %v4624 = vpack.c.b16 %v4607, %v4606
        %v4625 = vpack.c.b16 %v4609, %v4608
        %v4658 = vunpack.c.l.b16 %v4530
        %v4659 = vunpack.c.l.b16 %v4531
        %v4660 = vunpack.c.l.b16 %v4532
        %v4661 = vunpack.c.l.b16 %v4533
        %v4662 = vunpack.c.l.b16 %v4534
        %v4663 = vunpack.c.l.b16 %v4535
        %v4664 = vunpack.c.l.b16 %v4536
        %v4665 = vunpack.c.l.b16 %v4537
        %v4666 = vunpack.c.l.b16 %v4538
        %v4667 = vunpack.c.l.b16 %v4539
        %v4668 = vunpack.c.l.b16 %v4540
        %v4669 = vunpack.c.l.b16 %v4541
        %v4670 = vunpack.c.l.b16 %v4542
        %v4671 = vunpack.c.l.b16 %v4543
        %v4672 = vunpack.c.l.b16 %v4544
        %v4673 = vunpack.c.l.b16 %v4545
        %v4674 = vpack.c.b16 %v4659, %v4658
        %v4675 = vpack.c.b16 %v4661, %v4660
        %v4676 = vpack.c.b16 %v4663, %v4662
        %v4677 = vpack.c.b16 %v4665, %v4664
        %v4678 = vpack.c.b16 %v4667, %v4666
        %v4679 = vpack.c.b16 %v4669, %v4668
        %v4680 = vpack.c.b16 %v4671, %v4670
        %v4681 = vpack.c.b16 %v4673, %v4672
        %4690 = vmatprep.subr.bf16.mxu0 0
        %4691 = vmatpush1.bf16.msra.mxu0 %v4681
        %4692 = vmatprep.subr.bf16.mxu0 0
        %4693 = vmatpush1.bf16.msra.mxu0 %v4680
        %4694 = vmatprep.subr.bf16.mxu0 0
        %4695 = vmatpush1.bf16.msra.mxu0 %v4679
        %4696 = vmatprep.subr.bf16.mxu0 0
        %4697 = vmatpush1.bf16.msra.mxu0 %v4678
        %4698 = vmatprep.subr.bf16.mxu0 0
        %4699 = vmatpush1.bf16.msra.mxu0 %v4677
        %4700 = vmatprep.subr.bf16.mxu0 0
        %4701 = vmatpush1.bf16.msra.mxu0 %v4676
        %4702 = vmatprep.subr.bf16.mxu0 0
        %4703 = vmatpush1.bf16.msra.mxu0 %v4675
        %4704 = vmatprep.subr.bf16.mxu0 0
        %4705 = vmatpush1.bf16.msra.mxu0 %v4674
        %4706 = vmatprep.subr.bf16.mxu0 0
        %4707 = vmatpush2.bf16.msra.mxu0 0
        %4708 = vmatprep.subr.bf16.mxu0 0
        %4709 = vmatpush2.bf16.msra.mxu0 0
        %4710 = vmatprep.subr.bf16.mxu0 0
        %4711 = vmatpush2.bf16.msra.mxu0 0
        %4712 = vmatprep.subr.bf16.mxu0 0
        %4713 = vmatpush2.bf16.msra.mxu0 0
        %4714 = vmatprep.subr.bf16.mxu0 0
        %4715 = vmatpush2.bf16.msra.mxu0 0
        %4716 = vmatprep.subr.bf16.mxu0 0
        %4717 = vmatpush2.bf16.msra.mxu0 0
        %4718 = vmatprep.subr.bf16.mxu0 0
        %4719 = vmatpush2.bf16.msra.mxu0 0
        %4720 = vmatprep.subr.bf16.mxu0 0
        %4721 = vmatpush2.bf16.msra.mxu0 0
        %4722 = vmatprep.mubr.bf16.mxu0 0
        %4723 = vmatmul.mubr.bf16.gmra.mxu0 %v4610
        %v4724 = vpop.f32.mrf.mxu0
        %v4725 = vadd.f32 0.0, %v4724
        %v4726 = vpop.f32.mrf.mxu0
        %v4727 = vpop.f32.mrf.mxu0
        %v4728 = vadd.f32 0.0, %v4727
        %v4729 = vpop.f32.mrf.mxu0
        %4730 = vmatprep.mubr.bf16.mxu0 0
        %4731 = vmatmul.mubr.bf16.gmra.mxu0 %v4611
        %v4732 = vpop.f32.mrf.mxu0
        %v4733 = vadd.f32 0.0, %v4732
        %v4734 = vpop.f32.mrf.mxu0
        %v4735 = vpop.f32.mrf.mxu0
        %v4736 = vadd.f32 0.0, %v4735
        %v4737 = vpop.f32.mrf.mxu0
        %4738 = vmatprep.mubr.bf16.mxu0 0
        %4739 = vmatmul.mubr.bf16.gmra.mxu0 %v4612
        %v4740 = vpop.f32.mrf.mxu0
        %v4741 = vadd.f32 0.0, %v4740
        %v4742 = vpop.f32.mrf.mxu0
        %v4743 = vpop.f32.mrf.mxu0
        %v4744 = vadd.f32 0.0, %v4743
        %v4745 = vpop.f32.mrf.mxu0
        %4746 = vmatprep.mubr.bf16.mxu0 0
        %4747 = vmatmul.mubr.bf16.gmra.mxu0 %v4613
        %v4748 = vpop.f32.mrf.mxu0
        %v4749 = vadd.f32 0.0, %v4748
        %v4750 = vpop.f32.mrf.mxu0
        %v4751 = vpop.f32.mrf.mxu0
        %v4752 = vadd.f32 0.0, %v4751
        %v4753 = vpop.f32.mrf.mxu0
        %4754 = vmatprep.mubr.bf16.mxu0 0
        %4755 = vmatmul.mubr.bf16.gmra.mxu0 %v4614
        %v4756 = vpop.f32.mrf.mxu0
        %v4757 = vadd.f32 0.0, %v4756
        %v4758 = vpop.f32.mrf.mxu0
        %v4759 = vpop.f32.mrf.mxu0
        %v4760 = vadd.f32 0.0, %v4759
        %v4761 = vpop.f32.mrf.mxu0
        %4762 = vmatprep.mubr.bf16.mxu0 0
        %4763 = vmatmul.mubr.bf16.gmra.mxu0 %v4615
        %v4764 = vpop.f32.mrf.mxu0
        %v4765 = vadd.f32 0.0, %v4764
        %v4766 = vpop.f32.mrf.mxu0
        %v4767 = vpop.f32.mrf.mxu0
        %v4768 = vadd.f32 0.0, %v4767
        %v4769 = vpop.f32.mrf.mxu0
        %4770 = vmatprep.mubr.bf16.mxu0 0
        %4771 = vmatmul.mubr.bf16.gmra.mxu0 %v4616
        %v4772 = vpop.f32.mrf.mxu0
        %v4773 = vadd.f32 0.0, %v4772
        %v4774 = vpop.f32.mrf.mxu0
        %v4775 = vpop.f32.mrf.mxu0
        %v4776 = vadd.f32 0.0, %v4775
        %v4777 = vpop.f32.mrf.mxu0
        %4778 = vmatprep.mubr.bf16.mxu0 0
        %4779 = vmatmul.mubr.bf16.gmra.mxu0 %v4617
        %v4780 = vpop.f32.mrf.mxu0
        %v4781 = vadd.f32 0.0, %v4780
        %v4782 = vpop.f32.mrf.mxu0
        %v4783 = vpop.f32.mrf.mxu0
        %v4784 = vadd.f32 0.0, %v4783
        %v4785 = vpop.f32.mrf.mxu0
        %4786 = vmatprep.mubr.bf16.mxu0 0
        %4787 = vmatmul.mubr.bf16.gmra.mxu0 %v4618
        %v4788 = vpop.f32.mrf.mxu0
        %v4789 = vadd.f32 0.0, %v4788
        %v4790 = vpop.f32.mrf.mxu0
        %v4791 = vpop.f32.mrf.mxu0
        %v4792 = vadd.f32 0.0, %v4791
        %v4793 = vpop.f32.mrf.mxu0
        %4794 = vmatprep.mubr.bf16.mxu0 0
        %4795 = vmatmul.mubr.bf16.gmra.mxu0 %v4619
        %v4796 = vpop.f32.mrf.mxu0
        %v4797 = vadd.f32 0.0, %v4796
        %v4798 = vpop.f32.mrf.mxu0
        %v4799 = vpop.f32.mrf.mxu0
        %v4800 = vadd.f32 0.0, %v4799
        %v4801 = vpop.f32.mrf.mxu0
        %4802 = vmatprep.mubr.bf16.mxu0 0
        %4803 = vmatmul.mubr.bf16.gmra.mxu0 %v4620
        %v4804 = vpop.f32.mrf.mxu0
        %v4805 = vadd.f32 0.0, %v4804
        %v4806 = vpop.f32.mrf.mxu0
        %v4807 = vpop.f32.mrf.mxu0
        %v4808 = vadd.f32 0.0, %v4807
        %v4809 = vpop.f32.mrf.mxu0
        %4810 = vmatprep.mubr.bf16.mxu0 0
        %4811 = vmatmul.mubr.bf16.gmra.mxu0 %v4621
        %v4812 = vpop.f32.mrf.mxu0
        %v4813 = vadd.f32 0.0, %v4812
        %v4814 = vpop.f32.mrf.mxu0
        %v4815 = vpop.f32.mrf.mxu0
        %v4816 = vadd.f32 0.0, %v4815
        %v4817 = vpop.f32.mrf.mxu0
        %4818 = vmatprep.mubr.bf16.mxu0 0
        %4819 = vmatmul.mubr.bf16.gmra.mxu0 %v4622
        %v4820 = vpop.f32.mrf.mxu0
        %v4821 = vadd.f32 0.0, %v4820
        %v4822 = vpop.f32.mrf.mxu0
        %v4823 = vpop.f32.mrf.mxu0
        %v4824 = vadd.f32 0.0, %v4823
        %v4825 = vpop.f32.mrf.mxu0
        %4826 = vmatprep.mubr.bf16.mxu0 0
        %4827 = vmatmul.mubr.bf16.gmra.mxu0 %v4623
        %v4828 = vpop.f32.mrf.mxu0
        %v4829 = vadd.f32 0.0, %v4828
        %v4830 = vpop.f32.mrf.mxu0
        %v4831 = vpop.f32.mrf.mxu0
        %v4832 = vadd.f32 0.0, %v4831
        %v4833 = vpop.f32.mrf.mxu0
        %4834 = vmatprep.mubr.bf16.mxu0 0
        %4835 = vmatmul.mubr.bf16.gmra.mxu0 %v4624
        %v4836 = vpop.f32.mrf.mxu0
        %v4837 = vadd.f32 0.0, %v4836
        %v4838 = vpop.f32.mrf.mxu0
        %v4839 = vpop.f32.mrf.mxu0
        %v4840 = vadd.f32 0.0, %v4839
        %v4841 = vpop.f32.mrf.mxu0
        %4842 = vmatprep.mubr.bf16.mxu0 0
        %4843 = vmatmul.mubr.bf16.gmra.mxu0 %v4625
        %v4844 = vpop.f32.mrf.mxu0
        %v4845 = vadd.f32 0.0, %v4844
        %v4846 = vpop.f32.mrf.mxu0
        %v4847 = vpop.f32.mrf.mxu0
        %v4848 = vadd.f32 0.0, %v4847
        %v4849 = vpop.f32.mrf.mxu0
        %4850 = vdwg.mxu0
        %v4851 = vadd.f32 %v4464, %v4725
        %v4852 = vadd.f32 %v4465, %v4728
        %v4853 = vadd.f32 %v4466, %v4733
        %v4854 = vadd.f32 %v4467, %v4736
        %v4855 = vadd.f32 %v4468, %v4741
        %v4856 = vadd.f32 %v4469, %v4744
        %v4857 = vadd.f32 %v4470, %v4749
        %v4858 = vadd.f32 %v4471, %v4752
        %v4859 = vadd.f32 %v4472, %v4757
        %v4860 = vadd.f32 %v4473, %v4760
        %v4861 = vadd.f32 %v4474, %v4765
        %v4862 = vadd.f32 %v4475, %v4768
        %v4863 = vadd.f32 %v4476, %v4773
        %v4864 = vadd.f32 %v4477, %v4776
        %v4865 = vadd.f32 %v4478, %v4781
        %v4866 = vadd.f32 %v4479, %v4784
        %v4867 = vadd.f32 %v4480, %v4789
        %v4868 = vadd.f32 %v4481, %v4792
        %v4869 = vadd.f32 %v4482, %v4797
        %v4870 = vadd.f32 %v4483, %v4800
        %v4871 = vadd.f32 %v4484, %v4805
        %v4872 = vadd.f32 %v4485, %v4808
        %v4873 = vadd.f32 %v4486, %v4813
        %v4874 = vadd.f32 %v4487, %v4816
        %v4875 = vadd.f32 %v4488, %v4821
        %v4876 = vadd.f32 %v4489, %v4824
        %v4877 = vadd.f32 %v4490, %v4829
        %v4878 = vadd.f32 %v4491, %v4832
        %v4879 = vadd.f32 %v4492, %v4837
        %v4880 = vadd.f32 %v4493, %v4840
        %v4881 = vadd.f32 %v4494, %v4845
        %v4882 = vadd.f32 %v4495, %v4848
        %v4883 = vld [vmem:[%s4496] sm:$0xf]
        %v4884 = vld [vmem:[%s4496 + $0x4] sm:$0xf]
        %v4885 = vld [vmem:[%s4496 + $0x8] sm:$0x1]
        %v4886 = vld [vmem:[%s4496 + $0xc] sm:$0xf]
        %v4887 = vld [vmem:[%s4496 + $0x10] sm:$0xf]
        %v4888 = vld [vmem:[%s4496 + $0x14] sm:$0x1]
        %v4889 = vld [vmem:[%s4496 + $0x18] sm:$0xf]
        %v4890 = vld [vmem:[%s4496 + $0x1c] sm:$0xf]
        %v4891 = vld [vmem:[%s4496 + $0x20] sm:$0x1]
        %v4892 = vld [vmem:[%s4496 + $0x24] sm:$0xf]
        %v4893 = vld [vmem:[%s4496 + $0x28] sm:$0xf]
        %v4894 = vld [vmem:[%s4496 + $0x2c] sm:$0x1]
        %v4895 = vld [vmem:[%s4496 + $0x30] sm:$0xf]
        %v4896 = vld [vmem:[%s4496 + $0x34] sm:$0xf]
        %v4897 = vld [vmem:[%s4496 + $0x38] sm:$0x1]
        %v4898 = vld [vmem:[%s4496 + $0x3c] sm:$0xf]
        %v4899 = vld [vmem:[%s4496 + $0x40] sm:$0xf]
        %v4900 = vld [vmem:[%s4496 + $0x44] sm:$0x1]
        %v4901 = vld [vmem:[%s4496 + $0x48] sm:$0xf]
        %v4902 = vld [vmem:[%s4496 + $0x4c] sm:$0xf]
        %v4903 = vld [vmem:[%s4496 + $0x50] sm:$0x1]
        %v4904 = vld [vmem:[%s4496 + $0x54] sm:$0xf]
        %v4905 = vld [vmem:[%s4496 + $0x58] sm:$0xf]
        %v4906 = vld [vmem:[%s4496 + $0x5c] sm:$0x1]
        %v4907 = vld [vmem:[%s4496 + $0x60] sm:$0xf]
        %v4908 = vld [vmem:[%s4496 + $0x64] sm:$0xf]
        %v4909 = vld [vmem:[%s4496 + $0x68] sm:$0x1]
        %v4910 = vld [vmem:[%s4496 + $0x6c] sm:$0xf]
        %v4911 = vld [vmem:[%s4496 + $0x70] sm:$0xf]
        %v4912 = vld [vmem:[%s4496 + $0x74] sm:$0x1]
        %v4913 = vld [vmem:[%s4496 + $0x78] sm:$0xf]
        %v4914 = vld [vmem:[%s4496 + $0x7c] sm:$0xf]
        %v4915 = vld [vmem:[%s4496 + $0x80] sm:$0x1]
        %v4916 = vld [vmem:[%s4496 + $0x84] sm:$0xf]
        %v4917 = vld [vmem:[%s4496 + $0x88] sm:$0xf]
        %v4918 = vld [vmem:[%s4496 + $0x8c] sm:$0x1]
        %v4919 = vld [vmem:[%s4496 + $0x90] sm:$0xf]
        %v4920 = vld [vmem:[%s4496 + $0x94] sm:$0xf]
        %v4921 = vld [vmem:[%s4496 + $0x98] sm:$0x1]
        %v4922 = vld [vmem:[%s4496 + $0x9c] sm:$0xf]
        %v4923 = vld [vmem:[%s4496 + $0xa0] sm:$0xf]
        %v4924 = vld [vmem:[%s4496 + $0xa4] sm:$0x1]
        %v4925 = vld [vmem:[%s4496 + $0xa8] sm:$0xf]
        %v4926 = vld [vmem:[%s4496 + $0xac] sm:$0xf]
        %v4927 = vld [vmem:[%s4496 + $0xb0] sm:$0x1]
        %v4928 = vld [vmem:[%s4496 + $0xb4] sm:$0xf]
        %v4929 = vld [vmem:[%s4496 + $0xb8] sm:$0xf]
        %v4930 = vld [vmem:[%s4496 + $0xbc] sm:$0x1]
        %v4932 = vshrl.u32 %v4883, 16
        %v4934 = vrot.slane %v4932, 4
        %v4935 = vshll.u32 %v4883, 16
        %v4937 = vrot.slane %v4935, 5
        %v4938 = vor.u32 %v4934, %v4937
        %v4939 = vrot.slane %v4938, 4
        %v4941 = vshll.u32 %v4884, 16
        %v4943 = vrot.slane %v4941, 5
        %v4944 = vsel %vm1393, %v4939, %v4943
        %v4945 = vshrl.u32 %v4884, 16
        %v4947 = vrot.slane %v4945, 4
        %v4948 = vor.u32 %v4947, %v4943
        %v4949 = vrot.slane %v4948, 4
        %v4951 = vshll.u32 %v4885, 16
        %v4953 = vrot.slane %v4951, 5
        %v4954 = vsel %vm1393, %v4949, %v4953
        %v4956 = vshrl.u32 %v4886, 16
        %v4958 = vrot.slane %v4956, 4
        %v4959 = vshll.u32 %v4886, 16
        %v4961 = vrot.slane %v4959, 5
        %v4962 = vor.u32 %v4958, %v4961
        %v4963 = vrot.slane %v4962, 4
        %v4965 = vshll.u32 %v4887, 16
        %v4967 = vrot.slane %v4965, 5
        %v4968 = vsel %vm1393, %v4963, %v4967
        %v4969 = vshrl.u32 %v4887, 16
        %v4971 = vrot.slane %v4969, 4
        %v4972 = vor.u32 %v4971, %v4967
        %v4973 = vrot.slane %v4972, 4
        %v4975 = vshll.u32 %v4888, 16
        %v4977 = vrot.slane %v4975, 5
        %v4978 = vsel %vm1393, %v4973, %v4977
        %v4980 = vshrl.u32 %v4889, 16
        %v4982 = vrot.slane %v4980, 4
        %v4983 = vshll.u32 %v4889, 16
        %v4985 = vrot.slane %v4983, 5
        %v4986 = vor.u32 %v4982, %v4985
        %v4987 = vrot.slane %v4986, 4
        %v4989 = vshll.u32 %v4890, 16
        %v4991 = vrot.slane %v4989, 5
        %v4992 = vsel %vm1393, %v4987, %v4991
        %v4993 = vshrl.u32 %v4890, 16
        %v4995 = vrot.slane %v4993, 4
        %v4996 = vor.u32 %v4995, %v4991
        %v4997 = vrot.slane %v4996, 4
        %v4999 = vshll.u32 %v4891, 16
        %v5001 = vrot.slane %v4999, 5
        %v5002 = vsel %vm1393, %v4997, %v5001
        %v5004 = vshrl.u32 %v4892, 16
        %v5006 = vrot.slane %v5004, 4
        %v5007 = vshll.u32 %v4892, 16
        %v5009 = vrot.slane %v5007, 5
        %v5010 = vor.u32 %v5006, %v5009
        %v5011 = vrot.slane %v5010, 4
        %v5013 = vshll.u32 %v4893, 16
        %v5015 = vrot.slane %v5013, 5
        %v5016 = vsel %vm1393, %v5011, %v5015
        %v5017 = vshrl.u32 %v4893, 16
        %v5019 = vrot.slane %v5017, 4
        %v5020 = vor.u32 %v5019, %v5015
        %v5021 = vrot.slane %v5020, 4
        %v5023 = vshll.u32 %v4894, 16
        %v5025 = vrot.slane %v5023, 5
        %v5026 = vsel %vm1393, %v5021, %v5025
        %v5028 = vshrl.u32 %v4895, 16
        %v5030 = vrot.slane %v5028, 4
        %v5031 = vshll.u32 %v4895, 16
        %v5033 = vrot.slane %v5031, 5
        %v5034 = vor.u32 %v5030, %v5033
        %v5035 = vrot.slane %v5034, 4
        %v5037 = vshll.u32 %v4896, 16
        %v5039 = vrot.slane %v5037, 5
        %v5040 = vsel %vm1393, %v5035, %v5039
        %v5041 = vshrl.u32 %v4896, 16
        %v5043 = vrot.slane %v5041, 4
        %v5044 = vor.u32 %v5043, %v5039
        %v5045 = vrot.slane %v5044, 4
        %v5047 = vshll.u32 %v4897, 16
        %v5049 = vrot.slane %v5047, 5
        %v5050 = vsel %vm1393, %v5045, %v5049
        %v5052 = vshrl.u32 %v4898, 16
        %v5054 = vrot.slane %v5052, 4
        %v5055 = vshll.u32 %v4898, 16
        %v5057 = vrot.slane %v5055, 5
        %v5058 = vor.u32 %v5054, %v5057
        %v5059 = vrot.slane %v5058, 4
        %v5061 = vshll.u32 %v4899, 16
        %v5063 = vrot.slane %v5061, 5
        %v5064 = vsel %vm1393, %v5059, %v5063
        %v5065 = vshrl.u32 %v4899, 16
        %v5067 = vrot.slane %v5065, 4
        %v5068 = vor.u32 %v5067, %v5063
        %v5069 = vrot.slane %v5068, 4
        %v5071 = vshll.u32 %v4900, 16
        %v5073 = vrot.slane %v5071, 5
        %v5074 = vsel %vm1393, %v5069, %v5073
        %v5076 = vshrl.u32 %v4901, 16
        %v5078 = vrot.slane %v5076, 4
        %v5079 = vshll.u32 %v4901, 16
        %v5081 = vrot.slane %v5079, 5
        %v5082 = vor.u32 %v5078, %v5081
        %v5083 = vrot.slane %v5082, 4
        %v5085 = vshll.u32 %v4902, 16
        %v5087 = vrot.slane %v5085, 5
        %v5088 = vsel %vm1393, %v5083, %v5087
        %v5089 = vshrl.u32 %v4902, 16
        %v5091 = vrot.slane %v5089, 4
        %v5092 = vor.u32 %v5091, %v5087
        %v5093 = vrot.slane %v5092, 4
        %v5095 = vshll.u32 %v4903, 16
        %v5097 = vrot.slane %v5095, 5
        %v5098 = vsel %vm1393, %v5093, %v5097
        %v5100 = vshrl.u32 %v4904, 16
        %v5102 = vrot.slane %v5100, 4
        %v5103 = vshll.u32 %v4904, 16
        %v5105 = vrot.slane %v5103, 5
        %v5106 = vor.u32 %v5102, %v5105
        %v5107 = vrot.slane %v5106, 4
        %v5109 = vshll.u32 %v4905, 16
        %v5111 = vrot.slane %v5109, 5
        %v5112 = vsel %vm1393, %v5107, %v5111
        %v5113 = vshrl.u32 %v4905, 16
        %v5115 = vrot.slane %v5113, 4
        %v5116 = vor.u32 %v5115, %v5111
        %v5117 = vrot.slane %v5116, 4
        %v5119 = vshll.u32 %v4906, 16
        %v5121 = vrot.slane %v5119, 5
        %v5122 = vsel %vm1393, %v5117, %v5121
        %v5124 = vshrl.u32 %v4907, 16
        %v5126 = vrot.slane %v5124, 4
        %v5127 = vshll.u32 %v4907, 16
        %v5129 = vrot.slane %v5127, 5
        %v5130 = vor.u32 %v5126, %v5129
        %v5131 = vrot.slane %v5130, 4
        %v5133 = vshll.u32 %v4908, 16
        %v5135 = vrot.slane %v5133, 5
        %v5136 = vsel %vm1393, %v5131, %v5135
        %v5137 = vshrl.u32 %v4908, 16
        %v5139 = vrot.slane %v5137, 4
        %v5140 = vor.u32 %v5139, %v5135
        %v5141 = vrot.slane %v5140, 4
        %v5143 = vshll.u32 %v4909, 16
        %v5145 = vrot.slane %v5143, 5
        %v5146 = vsel %vm1393, %v5141, %v5145
        %v5148 = vshrl.u32 %v4910, 16
        %v5150 = vrot.slane %v5148, 4
        %v5151 = vshll.u32 %v4910, 16
        %v5153 = vrot.slane %v5151, 5
        %v5154 = vor.u32 %v5150, %v5153
        %v5155 = vrot.slane %v5154, 4
        %v5157 = vshll.u32 %v4911, 16
        %v5159 = vrot.slane %v5157, 5
        %v5160 = vsel %vm1393, %v5155, %v5159
        %v5161 = vshrl.u32 %v4911, 16
        %v5163 = vrot.slane %v5161, 4
        %v5164 = vor.u32 %v5163, %v5159
        %v5165 = vrot.slane %v5164, 4
        %v5167 = vshll.u32 %v4912, 16
        %v5169 = vrot.slane %v5167, 5
        %v5170 = vsel %vm1393, %v5165, %v5169
        %v5172 = vshrl.u32 %v4913, 16
        %v5174 = vrot.slane %v5172, 4
        %v5175 = vshll.u32 %v4913, 16
        %v5177 = vrot.slane %v5175, 5
        %v5178 = vor.u32 %v5174, %v5177
        %v5179 = vrot.slane %v5178, 4
        %v5181 = vshll.u32 %v4914, 16
        %v5183 = vrot.slane %v5181, 5
        %v5184 = vsel %vm1393, %v5179, %v5183
        %v5185 = vshrl.u32 %v4914, 16
        %v5187 = vrot.slane %v5185, 4
        %v5188 = vor.u32 %v5187, %v5183
        %v5189 = vrot.slane %v5188, 4
        %v5191 = vshll.u32 %v4915, 16
        %v5193 = vrot.slane %v5191, 5
        %v5194 = vsel %vm1393, %v5189, %v5193
        %v5196 = vshrl.u32 %v4916, 16
        %v5198 = vrot.slane %v5196, 4
        %v5199 = vshll.u32 %v4916, 16
        %v5201 = vrot.slane %v5199, 5
        %v5202 = vor.u32 %v5198, %v5201
        %v5203 = vrot.slane %v5202, 4
        %v5205 = vshll.u32 %v4917, 16
        %v5207 = vrot.slane %v5205, 5
        %v5208 = vsel %vm1393, %v5203, %v5207
        %v5209 = vshrl.u32 %v4917, 16
        %v5211 = vrot.slane %v5209, 4
        %v5212 = vor.u32 %v5211, %v5207
        %v5213 = vrot.slane %v5212, 4
        %v5215 = vshll.u32 %v4918, 16
        %v5217 = vrot.slane %v5215, 5
        %v5218 = vsel %vm1393, %v5213, %v5217
        %v5220 = vshrl.u32 %v4919, 16
        %v5222 = vrot.slane %v5220, 4
        %v5223 = vshll.u32 %v4919, 16
        %v5225 = vrot.slane %v5223, 5
        %v5226 = vor.u32 %v5222, %v5225
        %v5227 = vrot.slane %v5226, 4
        %v5229 = vshll.u32 %v4920, 16
        %v5231 = vrot.slane %v5229, 5
        %v5232 = vsel %vm1393, %v5227, %v5231
        %v5233 = vshrl.u32 %v4920, 16
        %v5235 = vrot.slane %v5233, 4
        %v5236 = vor.u32 %v5235, %v5231
        %v5237 = vrot.slane %v5236, 4
        %v5239 = vshll.u32 %v4921, 16
        %v5241 = vrot.slane %v5239, 5
        %v5242 = vsel %vm1393, %v5237, %v5241
        %v5244 = vshrl.u32 %v4922, 16
        %v5246 = vrot.slane %v5244, 4
        %v5247 = vshll.u32 %v4922, 16
        %v5249 = vrot.slane %v5247, 5
        %v5250 = vor.u32 %v5246, %v5249
        %v5251 = vrot.slane %v5250, 4
        %v5253 = vshll.u32 %v4923, 16
        %v5255 = vrot.slane %v5253, 5
        %v5256 = vsel %vm1393, %v5251, %v5255
        %v5257 = vshrl.u32 %v4923, 16
        %v5259 = vrot.slane %v5257, 4
        %v5260 = vor.u32 %v5259, %v5255
        %v5261 = vrot.slane %v5260, 4
        %v5263 = vshll.u32 %v4924, 16
        %v5265 = vrot.slane %v5263, 5
        %v5266 = vsel %vm1393, %v5261, %v5265
        %v5268 = vshrl.u32 %v4925, 16
        %v5270 = vrot.slane %v5268, 4
        %v5271 = vshll.u32 %v4925, 16
        %v5273 = vrot.slane %v5271, 5
        %v5274 = vor.u32 %v5270, %v5273
        %v5275 = vrot.slane %v5274, 4
        %v5277 = vshll.u32 %v4926, 16
        %v5279 = vrot.slane %v5277, 5
        %v5280 = vsel %vm1393, %v5275, %v5279
        %v5281 = vshrl.u32 %v4926, 16
        %v5283 = vrot.slane %v5281, 4
        %v5284 = vor.u32 %v5283, %v5279
        %v5285 = vrot.slane %v5284, 4
        %v5287 = vshll.u32 %v4927, 16
        %v5289 = vrot.slane %v5287, 5
        %v5290 = vsel %vm1393, %v5285, %v5289
        %v5292 = vshrl.u32 %v4928, 16
        %v5294 = vrot.slane %v5292, 4
        %v5295 = vshll.u32 %v4928, 16
        %v5297 = vrot.slane %v5295, 5
        %v5298 = vor.u32 %v5294, %v5297
        %v5299 = vrot.slane %v5298, 4
        %v5301 = vshll.u32 %v4929, 16
        %v5303 = vrot.slane %v5301, 5
        %v5304 = vsel %vm1393, %v5299, %v5303
        %v5305 = vshrl.u32 %v4929, 16
        %v5307 = vrot.slane %v5305, 4
        %v5308 = vor.u32 %v5307, %v5303
        %v5309 = vrot.slane %v5308, 4
        %v5311 = vshll.u32 %v4930, 16
        %v5313 = vrot.slane %v5311, 5
        %v5314 = vsel %vm1393, %v5309, %v5313
        %s5315 = scalar_lea.vmem %s3, 448
        %v5316 = vld [vmem:[%s5315] sm:$0xf]
        %v5317 = vld [vmem:[%s5315 + $0x4] sm:$0xf]
        %v5318 = vld [vmem:[%s5315 + $0x8] sm:$0xf]
        %v5319 = vld [vmem:[%s5315 + $0xc] sm:$0xf]
        %v5320 = vld [vmem:[%s5315 + $0x10] sm:$0xf]
        %v5321 = vld [vmem:[%s5315 + $0x14] sm:$0xf]
        %v5322 = vld [vmem:[%s5315 + $0x18] sm:$0xf]
        %v5323 = vld [vmem:[%s5315 + $0x1c] sm:$0xf]
        %v5324 = vld [vmem:[%s5315 + $0x20] sm:$0xf]
        %v5325 = vld [vmem:[%s5315 + $0x24] sm:$0xf]
        %v5326 = vld [vmem:[%s5315 + $0x28] sm:$0xf]
        %v5327 = vld [vmem:[%s5315 + $0x2c] sm:$0xf]
        %v5328 = vld [vmem:[%s5315 + $0x30] sm:$0xf]
        %v5329 = vld [vmem:[%s5315 + $0x34] sm:$0xf]
        %v5330 = vld [vmem:[%s5315 + $0x38] sm:$0xf]
        %v5331 = vld [vmem:[%s5315 + $0x3c] sm:$0xf]
        %v5332 = vunpack.c.l.b16 %v4944
        %v5333 = vunpack.c.l.b16 %v4954
        %v5334 = vunpack.c.l.b16 %v4968
        %v5335 = vunpack.c.l.b16 %v4978
        %v5336 = vunpack.c.l.b16 %v4992
        %v5337 = vunpack.c.l.b16 %v5002
        %v5338 = vunpack.c.l.b16 %v5016
        %v5339 = vunpack.c.l.b16 %v5026
        %v5340 = vunpack.c.l.b16 %v5040
        %v5341 = vunpack.c.l.b16 %v5050
        %v5342 = vunpack.c.l.b16 %v5064
        %v5343 = vunpack.c.l.b16 %v5074
        %v5344 = vunpack.c.l.b16 %v5088
        %v5345 = vunpack.c.l.b16 %v5098
        %v5346 = vunpack.c.l.b16 %v5112
        %v5347 = vunpack.c.l.b16 %v5122
        %v5348 = vunpack.c.l.b16 %v5136
        %v5349 = vunpack.c.l.b16 %v5146
        %v5350 = vunpack.c.l.b16 %v5160
        %v5351 = vunpack.c.l.b16 %v5170
        %v5352 = vunpack.c.l.b16 %v5184
        %v5353 = vunpack.c.l.b16 %v5194
        %v5354 = vunpack.c.l.b16 %v5208
        %v5355 = vunpack.c.l.b16 %v5218
        %v5356 = vunpack.c.l.b16 %v5232
        %v5357 = vunpack.c.l.b16 %v5242
        %v5358 = vunpack.c.l.b16 %v5256
        %v5359 = vunpack.c.l.b16 %v5266
        %v5360 = vunpack.c.l.b16 %v5280
        %v5361 = vunpack.c.l.b16 %v5290
        %v5362 = vunpack.c.l.b16 %v5304
        %v5363 = vunpack.c.l.b16 %v5314
        %v5364 = vpack.c.b16 %v5333, %v5332
        %v5365 = vpack.c.b16 %v5335, %v5334
        %v5366 = vpack.c.b16 %v5337, %v5336
        %v5367 = vpack.c.b16 %v5339, %v5338
        %v5368 = vpack.c.b16 %v5341, %v5340
        %v5369 = vpack.c.b16 %v5343, %v5342
        %v5370 = vpack.c.b16 %v5345, %v5344
        %v5371 = vpack.c.b16 %v5347, %v5346
        %v5372 = vpack.c.b16 %v5349, %v5348
        %v5373 = vpack.c.b16 %v5351, %v5350
        %v5374 = vpack.c.b16 %v5353, %v5352
        %v5375 = vpack.c.b16 %v5355, %v5354
        %v5376 = vpack.c.b16 %v5357, %v5356
        %v5377 = vpack.c.b16 %v5359, %v5358
        %v5378 = vpack.c.b16 %v5361, %v5360
        %v5379 = vpack.c.b16 %v5363, %v5362
        %v5412 = vunpack.c.l.b16 %v5316
        %v5413 = vunpack.c.l.b16 %v5317
        %v5414 = vunpack.c.l.b16 %v5318
        %v5415 = vunpack.c.l.b16 %v5319
        %v5416 = vunpack.c.l.b16 %v5320
        %v5417 = vunpack.c.l.b16 %v5321
        %v5418 = vunpack.c.l.b16 %v5322
        %v5419 = vunpack.c.l.b16 %v5323
        %v5420 = vunpack.c.l.b16 %v5324
        %v5421 = vunpack.c.l.b16 %v5325
        %v5422 = vunpack.c.l.b16 %v5326
        %v5423 = vunpack.c.l.b16 %v5327
        %v5424 = vunpack.c.l.b16 %v5328
        %v5425 = vunpack.c.l.b16 %v5329
        %v5426 = vunpack.c.l.b16 %v5330
        %v5427 = vunpack.c.l.b16 %v5331
        %v5428 = vpack.c.b16 %v5413, %v5412
        %v5429 = vpack.c.b16 %v5415, %v5414
        %v5430 = vpack.c.b16 %v5417, %v5416
        %v5431 = vpack.c.b16 %v5419, %v5418
        %v5432 = vpack.c.b16 %v5421, %v5420
        %v5433 = vpack.c.b16 %v5423, %v5422
        %v5434 = vpack.c.b16 %v5425, %v5424
        %v5435 = vpack.c.b16 %v5427, %v5426
        %5444 = vmatprep.subr.bf16.mxu0 0
        %5445 = vmatpush1.bf16.msra.mxu0 %v5435
        %5446 = vmatprep.subr.bf16.mxu0 0
        %5447 = vmatpush1.bf16.msra.mxu0 %v5434
        %5448 = vmatprep.subr.bf16.mxu0 0
        %5449 = vmatpush1.bf16.msra.mxu0 %v5433
        %5450 = vmatprep.subr.bf16.mxu0 0
        %5451 = vmatpush1.bf16.msra.mxu0 %v5432
        %5452 = vmatprep.subr.bf16.mxu0 0
        %5453 = vmatpush1.bf16.msra.mxu0 %v5431
        %5454 = vmatprep.subr.bf16.mxu0 0
        %5455 = vmatpush1.bf16.msra.mxu0 %v5430
        %5456 = vmatprep.subr.bf16.mxu0 0
        %5457 = vmatpush1.bf16.msra.mxu0 %v5429
        %5458 = vmatprep.subr.bf16.mxu0 0
        %5459 = vmatpush1.bf16.msra.mxu0 %v5428
        %5460 = vmatprep.subr.bf16.mxu0 0
        %5461 = vmatpush2.bf16.msra.mxu0 0
        %5462 = vmatprep.subr.bf16.mxu0 0
        %5463 = vmatpush2.bf16.msra.mxu0 0
        %5464 = vmatprep.subr.bf16.mxu0 0
        %5465 = vmatpush2.bf16.msra.mxu0 0
        %5466 = vmatprep.subr.bf16.mxu0 0
        %5467 = vmatpush2.bf16.msra.mxu0 0
        %5468 = vmatprep.subr.bf16.mxu0 0
        %5469 = vmatpush2.bf16.msra.mxu0 0
        %5470 = vmatprep.subr.bf16.mxu0 0
        %5471 = vmatpush2.bf16.msra.mxu0 0
        %5472 = vmatprep.subr.bf16.mxu0 0
        %5473 = vmatpush2.bf16.msra.mxu0 0
        %5474 = vmatprep.subr.bf16.mxu0 0
        %5475 = vmatpush2.bf16.msra.mxu0 0
        %5476 = vmatprep.mubr.bf16.mxu0 0
        %5477 = vmatmul.mubr.bf16.gmra.mxu0 %v5364
        %v5478 = vpop.f32.mrf.mxu0
        %v5479 = vadd.f32 0.0, %v5478
        %v5480 = vpop.f32.mrf.mxu0
        %v5481 = vpop.f32.mrf.mxu0
        %v5482 = vadd.f32 0.0, %v5481
        %v5483 = vpop.f32.mrf.mxu0
        %5484 = vmatprep.mubr.bf16.mxu0 0
        %5485 = vmatmul.mubr.bf16.gmra.mxu0 %v5365
        %v5486 = vpop.f32.mrf.mxu0
        %v5487 = vadd.f32 0.0, %v5486
        %v5488 = vpop.f32.mrf.mxu0
        %v5489 = vpop.f32.mrf.mxu0
        %v5490 = vadd.f32 0.0, %v5489
        %v5491 = vpop.f32.mrf.mxu0
        %5492 = vmatprep.mubr.bf16.mxu0 0
        %5493 = vmatmul.mubr.bf16.gmra.mxu0 %v5366
        %v5494 = vpop.f32.mrf.mxu0
        %v5495 = vadd.f32 0.0, %v5494
        %v5496 = vpop.f32.mrf.mxu0
        %v5497 = vpop.f32.mrf.mxu0
        %v5498 = vadd.f32 0.0, %v5497
        %v5499 = vpop.f32.mrf.mxu0
        %5500 = vmatprep.mubr.bf16.mxu0 0
        %5501 = vmatmul.mubr.bf16.gmra.mxu0 %v5367
        %v5502 = vpop.f32.mrf.mxu0
        %v5503 = vadd.f32 0.0, %v5502
        %v5504 = vpop.f32.mrf.mxu0
        %v5505 = vpop.f32.mrf.mxu0
        %v5506 = vadd.f32 0.0, %v5505
        %v5507 = vpop.f32.mrf.mxu0
        %5508 = vmatprep.mubr.bf16.mxu0 0
        %5509 = vmatmul.mubr.bf16.gmra.mxu0 %v5368
        %v5510 = vpop.f32.mrf.mxu0
        %v5511 = vadd.f32 0.0, %v5510
        %v5512 = vpop.f32.mrf.mxu0
        %v5513 = vpop.f32.mrf.mxu0
        %v5514 = vadd.f32 0.0, %v5513
        %v5515 = vpop.f32.mrf.mxu0
        %5516 = vmatprep.mubr.bf16.mxu0 0
        %5517 = vmatmul.mubr.bf16.gmra.mxu0 %v5369
        %v5518 = vpop.f32.mrf.mxu0
        %v5519 = vadd.f32 0.0, %v5518
        %v5520 = vpop.f32.mrf.mxu0
        %v5521 = vpop.f32.mrf.mxu0
        %v5522 = vadd.f32 0.0, %v5521
        %v5523 = vpop.f32.mrf.mxu0
        %5524 = vmatprep.mubr.bf16.mxu0 0
        %5525 = vmatmul.mubr.bf16.gmra.mxu0 %v5370
        %v5526 = vpop.f32.mrf.mxu0
        %v5527 = vadd.f32 0.0, %v5526
        %v5528 = vpop.f32.mrf.mxu0
        %v5529 = vpop.f32.mrf.mxu0
        %v5530 = vadd.f32 0.0, %v5529
        %v5531 = vpop.f32.mrf.mxu0
        %5532 = vmatprep.mubr.bf16.mxu0 0
        %5533 = vmatmul.mubr.bf16.gmra.mxu0 %v5371
        %v5534 = vpop.f32.mrf.mxu0
        %v5535 = vadd.f32 0.0, %v5534
        %v5536 = vpop.f32.mrf.mxu0
        %v5537 = vpop.f32.mrf.mxu0
        %v5538 = vadd.f32 0.0, %v5537
        %v5539 = vpop.f32.mrf.mxu0
        %5540 = vmatprep.mubr.bf16.mxu0 0
        %5541 = vmatmul.mubr.bf16.gmra.mxu0 %v5372
        %v5542 = vpop.f32.mrf.mxu0
        %v5543 = vadd.f32 0.0, %v5542
        %v5544 = vpop.f32.mrf.mxu0
        %v5545 = vpop.f32.mrf.mxu0
        %v5546 = vadd.f32 0.0, %v5545
        %v5547 = vpop.f32.mrf.mxu0
        %5548 = vmatprep.mubr.bf16.mxu0 0
        %5549 = vmatmul.mubr.bf16.gmra.mxu0 %v5373
        %v5550 = vpop.f32.mrf.mxu0
        %v5551 = vadd.f32 0.0, %v5550
        %v5552 = vpop.f32.mrf.mxu0
        %v5553 = vpop.f32.mrf.mxu0
        %v5554 = vadd.f32 0.0, %v5553
        %v5555 = vpop.f32.mrf.mxu0
        %5556 = vmatprep.mubr.bf16.mxu0 0
        %5557 = vmatmul.mubr.bf16.gmra.mxu0 %v5374
        %v5558 = vpop.f32.mrf.mxu0
        %v5559 = vadd.f32 0.0, %v5558
        %v5560 = vpop.f32.mrf.mxu0
        %v5561 = vpop.f32.mrf.mxu0
        %v5562 = vadd.f32 0.0, %v5561
        %v5563 = vpop.f32.mrf.mxu0
        %5564 = vmatprep.mubr.bf16.mxu0 0
        %5565 = vmatmul.mubr.bf16.gmra.mxu0 %v5375
        %v5566 = vpop.f32.mrf.mxu0
        %v5567 = vadd.f32 0.0, %v5566
        %v5568 = vpop.f32.mrf.mxu0
        %v5569 = vpop.f32.mrf.mxu0
        %v5570 = vadd.f32 0.0, %v5569
        %v5571 = vpop.f32.mrf.mxu0
        %5572 = vmatprep.mubr.bf16.mxu0 0
        %5573 = vmatmul.mubr.bf16.gmra.mxu0 %v5376
        %v5574 = vpop.f32.mrf.mxu0
        %v5575 = vadd.f32 0.0, %v5574
        %v5576 = vpop.f32.mrf.mxu0
        %v5577 = vpop.f32.mrf.mxu0
        %v5578 = vadd.f32 0.0, %v5577
        %v5579 = vpop.f32.mrf.mxu0
        %5580 = vmatprep.mubr.bf16.mxu0 0
        %5581 = vmatmul.mubr.bf16.gmra.mxu0 %v5377
        %v5582 = vpop.f32.mrf.mxu0
        %v5583 = vadd.f32 0.0, %v5582
        %v5584 = vpop.f32.mrf.mxu0
        %v5585 = vpop.f32.mrf.mxu0
        %v5586 = vadd.f32 0.0, %v5585
        %v5587 = vpop.f32.mrf.mxu0
        %5588 = vmatprep.mubr.bf16.mxu0 0
        %5589 = vmatmul.mubr.bf16.gmra.mxu0 %v5378
        %v5590 = vpop.f32.mrf.mxu0
        %v5591 = vadd.f32 0.0, %v5590
        %v5592 = vpop.f32.mrf.mxu0
        %v5593 = vpop.f32.mrf.mxu0
        %v5594 = vadd.f32 0.0, %v5593
        %v5595 = vpop.f32.mrf.mxu0
        %5596 = vmatprep.mubr.bf16.mxu0 0
        %5597 = vmatmul.mubr.bf16.gmra.mxu0 %v5379
        %v5598 = vpop.f32.mrf.mxu0
        %v5599 = vadd.f32 0.0, %v5598
        %v5600 = vpop.f32.mrf.mxu0
        %v5601 = vpop.f32.mrf.mxu0
        %v5602 = vadd.f32 0.0, %v5601
        %v5603 = vpop.f32.mrf.mxu0
        %5604 = vdwg.mxu0
        %v5605 = vadd.f32 %v4851, %v5479
        %v5606 = vadd.f32 %v4852, %v5482
        %v5607 = vadd.f32 %v4853, %v5487
        %v5608 = vadd.f32 %v4854, %v5490
        %v5609 = vadd.f32 %v4855, %v5495
        %v5610 = vadd.f32 %v4856, %v5498
        %v5611 = vadd.f32 %v4857, %v5503
        %v5612 = vadd.f32 %v4858, %v5506
        %v5613 = vadd.f32 %v4859, %v5511
        %v5614 = vadd.f32 %v4860, %v5514
        %v5615 = vadd.f32 %v4861, %v5519
        %v5616 = vadd.f32 %v4862, %v5522
        %v5617 = vadd.f32 %v4863, %v5527
        %v5618 = vadd.f32 %v4864, %v5530
        %v5619 = vadd.f32 %v4865, %v5535
        %v5620 = vadd.f32 %v4866, %v5538
        %v5621 = vadd.f32 %v4867, %v5543
        %v5622 = vadd.f32 %v4868, %v5546
        %v5623 = vadd.f32 %v4869, %v5551
        %v5624 = vadd.f32 %v4870, %v5554
        %v5625 = vadd.f32 %v4871, %v5559
        %v5626 = vadd.f32 %v4872, %v5562
        %v5627 = vadd.f32 %v4873, %v5567
        %v5628 = vadd.f32 %v4874, %v5570
        %v5629 = vadd.f32 %v4875, %v5575
        %v5630 = vadd.f32 %v4876, %v5578
        %v5631 = vadd.f32 %v4877, %v5583
        %v5632 = vadd.f32 %v4878, %v5586
        %v5633 = vadd.f32 %v4879, %v5591
        %v5634 = vadd.f32 %v4880, %v5594
        %v5635 = vadd.f32 %v4881, %v5599
        %v5636 = vadd.f32 %v4882, %v5602
        %v5637 = vld [vmem:[%s4496] sm:$0xe]
        %v5638 = vld [vmem:[%s4496 + $0xc] sm:$0xe]
        %v5639 = vld [vmem:[%s4496 + $0x18] sm:$0xe]
        %v5640 = vld [vmem:[%s4496 + $0x24] sm:$0xe]
        %v5641 = vld [vmem:[%s4496 + $0x30] sm:$0xe]
        %v5642 = vld [vmem:[%s4496 + $0x3c] sm:$0xe]
        %v5643 = vld [vmem:[%s4496 + $0x48] sm:$0xe]
        %v5644 = vld [vmem:[%s4496 + $0x54] sm:$0xe]
        %v5645 = vld [vmem:[%s4496 + $0x60] sm:$0xe]
        %v5646 = vld [vmem:[%s4496 + $0x6c] sm:$0xe]
        %v5647 = vld [vmem:[%s4496 + $0x78] sm:$0xe]
        %v5648 = vld [vmem:[%s4496 + $0x84] sm:$0xe]
        %v5649 = vld [vmem:[%s4496 + $0x90] sm:$0xe]
        %v5650 = vld [vmem:[%s4496 + $0x9c] sm:$0xe]
        %v5651 = vld [vmem:[%s4496 + $0xa8] sm:$0xe]
        %v5652 = vld [vmem:[%s4496 + $0xb4] sm:$0xe]
        %v5701 = vrot.slane %v5637, 5
        %v5702 = vrot.slane %v5701, 4
        %v5703 = vrot.slane %v4884, 5
        %v5704 = vsel %vm2423, %v5702, %v5703
        %v5705 = vrot.slane %v5703, 4
        %v5706 = vrot.slane %v4885, 5
        %v5707 = vsel %vm2423, %v5705, %v5706
        %v5708 = vrot.slane %v5638, 5
        %v5709 = vrot.slane %v5708, 4
        %v5710 = vrot.slane %v4887, 5
        %v5711 = vsel %vm2423, %v5709, %v5710
        %v5712 = vrot.slane %v5710, 4
        %v5713 = vrot.slane %v4888, 5
        %v5714 = vsel %vm2423, %v5712, %v5713
        %v5715 = vrot.slane %v5639, 5
        %v5716 = vrot.slane %v5715, 4
        %v5717 = vrot.slane %v4890, 5
        %v5718 = vsel %vm2423, %v5716, %v5717
        %v5719 = vrot.slane %v5717, 4
        %v5720 = vrot.slane %v4891, 5
        %v5721 = vsel %vm2423, %v5719, %v5720
        %v5722 = vrot.slane %v5640, 5
        %v5723 = vrot.slane %v5722, 4
        %v5724 = vrot.slane %v4893, 5
        %v5725 = vsel %vm2423, %v5723, %v5724
        %v5726 = vrot.slane %v5724, 4
        %v5727 = vrot.slane %v4894, 5
        %v5728 = vsel %vm2423, %v5726, %v5727
        %v5729 = vrot.slane %v5641, 5
        %v5730 = vrot.slane %v5729, 4
        %v5731 = vrot.slane %v4896, 5
        %v5732 = vsel %vm2423, %v5730, %v5731
        %v5733 = vrot.slane %v5731, 4
        %v5734 = vrot.slane %v4897, 5
        %v5735 = vsel %vm2423, %v5733, %v5734
        %v5736 = vrot.slane %v5642, 5
        %v5737 = vrot.slane %v5736, 4
        %v5738 = vrot.slane %v4899, 5
        %v5739 = vsel %vm2423, %v5737, %v5738
        %v5740 = vrot.slane %v5738, 4
        %v5741 = vrot.slane %v4900, 5
        %v5742 = vsel %vm2423, %v5740, %v5741
        %v5743 = vrot.slane %v5643, 5
        %v5744 = vrot.slane %v5743, 4
        %v5745 = vrot.slane %v4902, 5
        %v5746 = vsel %vm2423, %v5744, %v5745
        %v5747 = vrot.slane %v5745, 4
        %v5748 = vrot.slane %v4903, 5
        %v5749 = vsel %vm2423, %v5747, %v5748
        %v5750 = vrot.slane %v5644, 5
        %v5751 = vrot.slane %v5750, 4
        %v5752 = vrot.slane %v4905, 5
        %v5753 = vsel %vm2423, %v5751, %v5752
        %v5754 = vrot.slane %v5752, 4
        %v5755 = vrot.slane %v4906, 5
        %v5756 = vsel %vm2423, %v5754, %v5755
        %v5757 = vrot.slane %v5645, 5
        %v5758 = vrot.slane %v5757, 4
        %v5759 = vrot.slane %v4908, 5
        %v5760 = vsel %vm2423, %v5758, %v5759
        %v5761 = vrot.slane %v5759, 4
        %v5762 = vrot.slane %v4909, 5
        %v5763 = vsel %vm2423, %v5761, %v5762
        %v5764 = vrot.slane %v5646, 5
        %v5765 = vrot.slane %v5764, 4
        %v5766 = vrot.slane %v4911, 5
        %v5767 = vsel %vm2423, %v5765, %v5766
        %v5768 = vrot.slane %v5766, 4
        %v5769 = vrot.slane %v4912, 5
        %v5770 = vsel %vm2423, %v5768, %v5769
        %v5771 = vrot.slane %v5647, 5
        %v5772 = vrot.slane %v5771, 4
        %v5773 = vrot.slane %v4914, 5
        %v5774 = vsel %vm2423, %v5772, %v5773
        %v5775 = vrot.slane %v5773, 4
        %v5776 = vrot.slane %v4915, 5
        %v5777 = vsel %vm2423, %v5775, %v5776
        %v5778 = vrot.slane %v5648, 5
        %v5779 = vrot.slane %v5778, 4
        %v5780 = vrot.slane %v4917, 5
        %v5781 = vsel %vm2423, %v5779, %v5780
        %v5782 = vrot.slane %v5780, 4
        %v5783 = vrot.slane %v4918, 5
        %v5784 = vsel %vm2423, %v5782, %v5783
        %v5785 = vrot.slane %v5649, 5
        %v5786 = vrot.slane %v5785, 4
        %v5787 = vrot.slane %v4920, 5
        %v5788 = vsel %vm2423, %v5786, %v5787
        %v5789 = vrot.slane %v5787, 4
        %v5790 = vrot.slane %v4921, 5
        %v5791 = vsel %vm2423, %v5789, %v5790
        %v5792 = vrot.slane %v5650, 5
        %v5793 = vrot.slane %v5792, 4
        %v5794 = vrot.slane %v4923, 5
        %v5795 = vsel %vm2423, %v5793, %v5794
        %v5796 = vrot.slane %v5794, 4
        %v5797 = vrot.slane %v4924, 5
        %v5798 = vsel %vm2423, %v5796, %v5797
        %v5799 = vrot.slane %v5651, 5
        %v5800 = vrot.slane %v5799, 4
        %v5801 = vrot.slane %v4926, 5
        %v5802 = vsel %vm2423, %v5800, %v5801
        %v5803 = vrot.slane %v5801, 4
        %v5804 = vrot.slane %v4927, 5
        %v5805 = vsel %vm2423, %v5803, %v5804
        %v5806 = vrot.slane %v5652, 5
        %v5807 = vrot.slane %v5806, 4
        %v5808 = vrot.slane %v4929, 5
        %v5809 = vsel %vm2423, %v5807, %v5808
        %v5810 = vrot.slane %v5808, 4
        %v5811 = vrot.slane %v4930, 5
        %v5812 = vsel %vm2423, %v5810, %v5811
        %s5813 = scalar_lea.vmem %s3, 512
        %v5814 = vld [vmem:[%s5813] sm:$0xf]
        %v5815 = vld [vmem:[%s5813 + $0x4] sm:$0xf]
        %v5816 = vld [vmem:[%s5813 + $0x8] sm:$0xf]
        %v5817 = vld [vmem:[%s5813 + $0xc] sm:$0xf]
        %v5818 = vld [vmem:[%s5813 + $0x10] sm:$0xf]
        %v5819 = vld [vmem:[%s5813 + $0x14] sm:$0xf]
        %v5820 = vld [vmem:[%s5813 + $0x18] sm:$0xf]
        %v5821 = vld [vmem:[%s5813 + $0x1c] sm:$0xf]
        %v5822 = vld [vmem:[%s5813 + $0x20] sm:$0xf]
        %v5823 = vld [vmem:[%s5813 + $0x24] sm:$0xf]
        %v5824 = vld [vmem:[%s5813 + $0x28] sm:$0xf]
        %v5825 = vld [vmem:[%s5813 + $0x2c] sm:$0xf]
        %v5826 = vld [vmem:[%s5813 + $0x30] sm:$0xf]
        %v5827 = vld [vmem:[%s5813 + $0x34] sm:$0xf]
        %v5828 = vld [vmem:[%s5813 + $0x38] sm:$0xf]
        %v5829 = vld [vmem:[%s5813 + $0x3c] sm:$0xf]
        %v5830 = vunpack.c.l.b16 %v5704
        %v5831 = vunpack.c.l.b16 %v5707
        %v5832 = vunpack.c.l.b16 %v5711
        %v5833 = vunpack.c.l.b16 %v5714
        %v5834 = vunpack.c.l.b16 %v5718
        %v5835 = vunpack.c.l.b16 %v5721
        %v5836 = vunpack.c.l.b16 %v5725
        %v5837 = vunpack.c.l.b16 %v5728
        %v5838 = vunpack.c.l.b16 %v5732
        %v5839 = vunpack.c.l.b16 %v5735
        %v5840 = vunpack.c.l.b16 %v5739
        %v5841 = vunpack.c.l.b16 %v5742
        %v5842 = vunpack.c.l.b16 %v5746
        %v5843 = vunpack.c.l.b16 %v5749
        %v5844 = vunpack.c.l.b16 %v5753
        %v5845 = vunpack.c.l.b16 %v5756
        %v5846 = vunpack.c.l.b16 %v5760
        %v5847 = vunpack.c.l.b16 %v5763
        %v5848 = vunpack.c.l.b16 %v5767
        %v5849 = vunpack.c.l.b16 %v5770
        %v5850 = vunpack.c.l.b16 %v5774
        %v5851 = vunpack.c.l.b16 %v5777
        %v5852 = vunpack.c.l.b16 %v5781
        %v5853 = vunpack.c.l.b16 %v5784
        %v5854 = vunpack.c.l.b16 %v5788
        %v5855 = vunpack.c.l.b16 %v5791
        %v5856 = vunpack.c.l.b16 %v5795
        %v5857 = vunpack.c.l.b16 %v5798
        %v5858 = vunpack.c.l.b16 %v5802
        %v5859 = vunpack.c.l.b16 %v5805
        %v5860 = vunpack.c.l.b16 %v5809
        %v5861 = vunpack.c.l.b16 %v5812
        %v5862 = vpack.c.b16 %v5831, %v5830
        %v5863 = vpack.c.b16 %v5833, %v5832
        %v5864 = vpack.c.b16 %v5835, %v5834
        %v5865 = vpack.c.b16 %v5837, %v5836
        %v5866 = vpack.c.b16 %v5839, %v5838
        %v5867 = vpack.c.b16 %v5841, %v5840
        %v5868 = vpack.c.b16 %v5843, %v5842
        %v5869 = vpack.c.b16 %v5845, %v5844
        %v5870 = vpack.c.b16 %v5847, %v5846
        %v5871 = vpack.c.b16 %v5849, %v5848
        %v5872 = vpack.c.b16 %v5851, %v5850
        %v5873 = vpack.c.b16 %v5853, %v5852
        %v5874 = vpack.c.b16 %v5855, %v5854
        %v5875 = vpack.c.b16 %v5857, %v5856
        %v5876 = vpack.c.b16 %v5859, %v5858
        %v5877 = vpack.c.b16 %v5861, %v5860
        %v5910 = vunpack.c.l.b16 %v5814
        %v5911 = vunpack.c.l.b16 %v5815
        %v5912 = vunpack.c.l.b16 %v5816
        %v5913 = vunpack.c.l.b16 %v5817
        %v5914 = vunpack.c.l.b16 %v5818
        %v5915 = vunpack.c.l.b16 %v5819
        %v5916 = vunpack.c.l.b16 %v5820
        %v5917 = vunpack.c.l.b16 %v5821
        %v5918 = vunpack.c.l.b16 %v5822
        %v5919 = vunpack.c.l.b16 %v5823
        %v5920 = vunpack.c.l.b16 %v5824
        %v5921 = vunpack.c.l.b16 %v5825
        %v5922 = vunpack.c.l.b16 %v5826
        %v5923 = vunpack.c.l.b16 %v5827
        %v5924 = vunpack.c.l.b16 %v5828
        %v5925 = vunpack.c.l.b16 %v5829
        %v5926 = vpack.c.b16 %v5911, %v5910
        %v5927 = vpack.c.b16 %v5913, %v5912
        %v5928 = vpack.c.b16 %v5915, %v5914
        %v5929 = vpack.c.b16 %v5917, %v5916
        %v5930 = vpack.c.b16 %v5919, %v5918
        %v5931 = vpack.c.b16 %v5921, %v5920
        %v5932 = vpack.c.b16 %v5923, %v5922
        %v5933 = vpack.c.b16 %v5925, %v5924
        %5942 = vmatprep.subr.bf16.mxu0 0
        %5943 = vmatpush1.bf16.msra.mxu0 %v5933
        %5944 = vmatprep.subr.bf16.mxu0 0
        %5945 = vmatpush1.bf16.msra.mxu0 %v5932
        %5946 = vmatprep.subr.bf16.mxu0 0
        %5947 = vmatpush1.bf16.msra.mxu0 %v5931
        %5948 = vmatprep.subr.bf16.mxu0 0
        %5949 = vmatpush1.bf16.msra.mxu0 %v5930
        %5950 = vmatprep.subr.bf16.mxu0 0
        %5951 = vmatpush1.bf16.msra.mxu0 %v5929
        %5952 = vmatprep.subr.bf16.mxu0 0
        %5953 = vmatpush1.bf16.msra.mxu0 %v5928
        %5954 = vmatprep.subr.bf16.mxu0 0
        %5955 = vmatpush1.bf16.msra.mxu0 %v5927
        %5956 = vmatprep.subr.bf16.mxu0 0
        %5957 = vmatpush1.bf16.msra.mxu0 %v5926
        %5958 = vmatprep.subr.bf16.mxu0 0
        %5959 = vmatpush2.bf16.msra.mxu0 0
        %5960 = vmatprep.subr.bf16.mxu0 0
        %5961 = vmatpush2.bf16.msra.mxu0 0
        %5962 = vmatprep.subr.bf16.mxu0 0
        %5963 = vmatpush2.bf16.msra.mxu0 0
        %5964 = vmatprep.subr.bf16.mxu0 0
        %5965 = vmatpush2.bf16.msra.mxu0 0
        %5966 = vmatprep.subr.bf16.mxu0 0
        %5967 = vmatpush2.bf16.msra.mxu0 0
        %5968 = vmatprep.subr.bf16.mxu0 0
        %5969 = vmatpush2.bf16.msra.mxu0 0
        %5970 = vmatprep.subr.bf16.mxu0 0
        %5971 = vmatpush2.bf16.msra.mxu0 0
        %5972 = vmatprep.subr.bf16.mxu0 0
        %5973 = vmatpush2.bf16.msra.mxu0 0
        %5974 = vmatprep.mubr.bf16.mxu0 0
        %5975 = vmatmul.mubr.bf16.gmra.mxu0 %v5862
        %v5976 = vpop.f32.mrf.mxu0
        %v5977 = vadd.f32 0.0, %v5976
        %v5978 = vpop.f32.mrf.mxu0
        %v5979 = vpop.f32.mrf.mxu0
        %v5980 = vadd.f32 0.0, %v5979
        %v5981 = vpop.f32.mrf.mxu0
        %5982 = vmatprep.mubr.bf16.mxu0 0
        %5983 = vmatmul.mubr.bf16.gmra.mxu0 %v5863
        %v5984 = vpop.f32.mrf.mxu0
        %v5985 = vadd.f32 0.0, %v5984
        %v5986 = vpop.f32.mrf.mxu0
        %v5987 = vpop.f32.mrf.mxu0
        %v5988 = vadd.f32 0.0, %v5987
        %v5989 = vpop.f32.mrf.mxu0
        %5990 = vmatprep.mubr.bf16.mxu0 0
        %5991 = vmatmul.mubr.bf16.gmra.mxu0 %v5864
        %v5992 = vpop.f32.mrf.mxu0
        %v5993 = vadd.f32 0.0, %v5992
        %v5994 = vpop.f32.mrf.mxu0
        %v5995 = vpop.f32.mrf.mxu0
        %v5996 = vadd.f32 0.0, %v5995
        %v5997 = vpop.f32.mrf.mxu0
        %5998 = vmatprep.mubr.bf16.mxu0 0
        %5999 = vmatmul.mubr.bf16.gmra.mxu0 %v5865
        %v6000 = vpop.f32.mrf.mxu0
        %v6001 = vadd.f32 0.0, %v6000
        %v6002 = vpop.f32.mrf.mxu0
        %v6003 = vpop.f32.mrf.mxu0
        %v6004 = vadd.f32 0.0, %v6003
        %v6005 = vpop.f32.mrf.mxu0
        %6006 = vmatprep.mubr.bf16.mxu0 0
        %6007 = vmatmul.mubr.bf16.gmra.mxu0 %v5866
        %v6008 = vpop.f32.mrf.mxu0
        %v6009 = vadd.f32 0.0, %v6008
        %v6010 = vpop.f32.mrf.mxu0
        %v6011 = vpop.f32.mrf.mxu0
        %v6012 = vadd.f32 0.0, %v6011
        %v6013 = vpop.f32.mrf.mxu0
        %6014 = vmatprep.mubr.bf16.mxu0 0
        %6015 = vmatmul.mubr.bf16.gmra.mxu0 %v5867
        %v6016 = vpop.f32.mrf.mxu0
        %v6017 = vadd.f32 0.0, %v6016
        %v6018 = vpop.f32.mrf.mxu0
        %v6019 = vpop.f32.mrf.mxu0
        %v6020 = vadd.f32 0.0, %v6019
        %v6021 = vpop.f32.mrf.mxu0
        %6022 = vmatprep.mubr.bf16.mxu0 0
        %6023 = vmatmul.mubr.bf16.gmra.mxu0 %v5868
        %v6024 = vpop.f32.mrf.mxu0
        %v6025 = vadd.f32 0.0, %v6024
        %v6026 = vpop.f32.mrf.mxu0
        %v6027 = vpop.f32.mrf.mxu0
        %v6028 = vadd.f32 0.0, %v6027
        %v6029 = vpop.f32.mrf.mxu0
        %6030 = vmatprep.mubr.bf16.mxu0 0
        %6031 = vmatmul.mubr.bf16.gmra.mxu0 %v5869
        %v6032 = vpop.f32.mrf.mxu0
        %v6033 = vadd.f32 0.0, %v6032
        %v6034 = vpop.f32.mrf.mxu0
        %v6035 = vpop.f32.mrf.mxu0
        %v6036 = vadd.f32 0.0, %v6035
        %v6037 = vpop.f32.mrf.mxu0
        %6038 = vmatprep.mubr.bf16.mxu0 0
        %6039 = vmatmul.mubr.bf16.gmra.mxu0 %v5870
        %v6040 = vpop.f32.mrf.mxu0
        %v6041 = vadd.f32 0.0, %v6040
        %v6042 = vpop.f32.mrf.mxu0
        %v6043 = vpop.f32.mrf.mxu0
        %v6044 = vadd.f32 0.0, %v6043
        %v6045 = vpop.f32.mrf.mxu0
        %6046 = vmatprep.mubr.bf16.mxu0 0
        %6047 = vmatmul.mubr.bf16.gmra.mxu0 %v5871
        %v6048 = vpop.f32.mrf.mxu0
        %v6049 = vadd.f32 0.0, %v6048
        %v6050 = vpop.f32.mrf.mxu0
        %v6051 = vpop.f32.mrf.mxu0
        %v6052 = vadd.f32 0.0, %v6051
        %v6053 = vpop.f32.mrf.mxu0
        %6054 = vmatprep.mubr.bf16.mxu0 0
        %6055 = vmatmul.mubr.bf16.gmra.mxu0 %v5872
        %v6056 = vpop.f32.mrf.mxu0
        %v6057 = vadd.f32 0.0, %v6056
        %v6058 = vpop.f32.mrf.mxu0
        %v6059 = vpop.f32.mrf.mxu0
        %v6060 = vadd.f32 0.0, %v6059
        %v6061 = vpop.f32.mrf.mxu0
        %6062 = vmatprep.mubr.bf16.mxu0 0
        %6063 = vmatmul.mubr.bf16.gmra.mxu0 %v5873
        %v6064 = vpop.f32.mrf.mxu0
        %v6065 = vadd.f32 0.0, %v6064
        %v6066 = vpop.f32.mrf.mxu0
        %v6067 = vpop.f32.mrf.mxu0
        %v6068 = vadd.f32 0.0, %v6067
        %v6069 = vpop.f32.mrf.mxu0
        %6070 = vmatprep.mubr.bf16.mxu0 0
        %6071 = vmatmul.mubr.bf16.gmra.mxu0 %v5874
        %v6072 = vpop.f32.mrf.mxu0
        %v6073 = vadd.f32 0.0, %v6072
        %v6074 = vpop.f32.mrf.mxu0
        %v6075 = vpop.f32.mrf.mxu0
        %v6076 = vadd.f32 0.0, %v6075
        %v6077 = vpop.f32.mrf.mxu0
        %6078 = vmatprep.mubr.bf16.mxu0 0
        %6079 = vmatmul.mubr.bf16.gmra.mxu0 %v5875
        %v6080 = vpop.f32.mrf.mxu0
        %v6081 = vadd.f32 0.0, %v6080
        %v6082 = vpop.f32.mrf.mxu0
        %v6083 = vpop.f32.mrf.mxu0
        %v6084 = vadd.f32 0.0, %v6083
        %v6085 = vpop.f32.mrf.mxu0
        %6086 = vmatprep.mubr.bf16.mxu0 0
        %6087 = vmatmul.mubr.bf16.gmra.mxu0 %v5876
        %v6088 = vpop.f32.mrf.mxu0
        %v6089 = vadd.f32 0.0, %v6088
        %v6090 = vpop.f32.mrf.mxu0
        %v6091 = vpop.f32.mrf.mxu0
        %v6092 = vadd.f32 0.0, %v6091
        %v6093 = vpop.f32.mrf.mxu0
        %6094 = vmatprep.mubr.bf16.mxu0 0
        %6095 = vmatmul.mubr.bf16.gmra.mxu0 %v5877
        %v6096 = vpop.f32.mrf.mxu0
        %v6097 = vadd.f32 0.0, %v6096
        %v6098 = vpop.f32.mrf.mxu0
        %v6099 = vpop.f32.mrf.mxu0
        %v6100 = vadd.f32 0.0, %v6099
        %v6101 = vpop.f32.mrf.mxu0
        %6102 = vdwg.mxu0
        %v6103 = vadd.f32 %v5605, %v5977
        %v6104 = vadd.f32 %v5606, %v5980
        %v6105 = vadd.f32 %v5607, %v5985
        %v6106 = vadd.f32 %v5608, %v5988
        %v6107 = vadd.f32 %v5609, %v5993
        %v6108 = vadd.f32 %v5610, %v5996
        %v6109 = vadd.f32 %v5611, %v6001
        %v6110 = vadd.f32 %v5612, %v6004
        %v6111 = vadd.f32 %v5613, %v6009
        %v6112 = vadd.f32 %v5614, %v6012
        %v6113 = vadd.f32 %v5615, %v6017
        %v6114 = vadd.f32 %v5616, %v6020
        %v6115 = vadd.f32 %v5617, %v6025
        %v6116 = vadd.f32 %v5618, %v6028
        %v6117 = vadd.f32 %v5619, %v6033
        %v6118 = vadd.f32 %v5620, %v6036
        %v6119 = vadd.f32 %v5621, %v6041
        %v6120 = vadd.f32 %v5622, %v6044
        %v6121 = vadd.f32 %v5623, %v6049
        %v6122 = vadd.f32 %v5624, %v6052
        %v6123 = vadd.f32 %v5625, %v6057
        %v6124 = vadd.f32 %v5626, %v6060
        %v6125 = vadd.f32 %v5627, %v6065
        %v6126 = vadd.f32 %v5628, %v6068
        %v6127 = vadd.f32 %v5629, %v6073
        %v6128 = vadd.f32 %v5630, %v6076
        %v6129 = vadd.f32 %v5631, %v6081
        %v6130 = vadd.f32 %v5632, %v6084
        %v6131 = vadd.f32 %v5633, %v6089
        %v6132 = vadd.f32 %v5634, %v6092
        %v6133 = vadd.f32 %v5635, %v6097
        %v6134 = vadd.f32 %v5636, %v6100
        %v6135 = vld [vmem:[%s4] sm:$0x1]
        %v6137 = vlaneseq
        %v6138 = vshrl.u32 %v6137, 7
        %v6139 = vsub.s32 0, %v6138
        %v6140 = vrot.slane %v6135, %v6139
        %v6142 = vadd.f32 %v6103, %v6140
        %v6143 = vadd.f32 %v6104, %v6140
        %v6144 = vadd.f32 %v6105, %v6140
        %v6145 = vadd.f32 %v6106, %v6140
        %v6146 = vadd.f32 %v6107, %v6140
        %v6147 = vadd.f32 %v6108, %v6140
        %v6148 = vadd.f32 %v6109, %v6140
        %v6149 = vadd.f32 %v6110, %v6140
        %v6150 = vadd.f32 %v6111, %v6140
        %v6151 = vadd.f32 %v6112, %v6140
        %v6152 = vadd.f32 %v6113, %v6140
        %v6153 = vadd.f32 %v6114, %v6140
        %v6154 = vadd.f32 %v6115, %v6140
        %v6155 = vadd.f32 %v6116, %v6140
        %v6156 = vadd.f32 %v6117, %v6140
        %v6157 = vadd.f32 %v6118, %v6140
        %v6158 = vadd.f32 %v6119, %v6140
        %v6159 = vadd.f32 %v6120, %v6140
        %v6160 = vadd.f32 %v6121, %v6140
        %v6161 = vadd.f32 %v6122, %v6140
        %v6162 = vadd.f32 %v6123, %v6140
        %v6163 = vadd.f32 %v6124, %v6140
        %v6164 = vadd.f32 %v6125, %v6140
        %v6165 = vadd.f32 %v6126, %v6140
        %v6166 = vadd.f32 %v6127, %v6140
        %v6167 = vadd.f32 %v6128, %v6140
        %v6168 = vadd.f32 %v6129, %v6140
        %v6169 = vadd.f32 %v6130, %v6140
        %v6170 = vadd.f32 %v6131, %v6140
        %v6171 = vadd.f32 %v6132, %v6140
        %v6172 = vadd.f32 %v6133, %v6140
        %v6173 = vadd.f32 %v6134, %v6140
        %v6174 = vpack.c.bf16 %v6143, %v6142
        %v6175 = vpack.c.bf16 %v6145, %v6144
        %v6176 = vpack.c.bf16 %v6147, %v6146
        %v6177 = vpack.c.bf16 %v6149, %v6148
        %v6178 = vpack.c.bf16 %v6151, %v6150
        %v6179 = vpack.c.bf16 %v6153, %v6152
        %v6180 = vpack.c.bf16 %v6155, %v6154
        %v6181 = vpack.c.bf16 %v6157, %v6156
        %v6182 = vpack.c.bf16 %v6159, %v6158
        %v6183 = vpack.c.bf16 %v6161, %v6160
        %v6184 = vpack.c.bf16 %v6163, %v6162
        %v6185 = vpack.c.bf16 %v6165, %v6164
        %v6186 = vpack.c.bf16 %v6167, %v6166
        %v6187 = vpack.c.bf16 %v6169, %v6168
        %v6188 = vpack.c.bf16 %v6171, %v6170
        %v6189 = vpack.c.bf16 %v6173, %v6172
        %v6206 = vunpack.c.l.b16 %v6174
        %v6207 = vunpack.c.h.b16 %v6174
        %v6208 = vunpack.c.l.b16 %v6175
        %v6209 = vunpack.c.h.b16 %v6175
        %v6210 = vunpack.c.l.b16 %v6176
        %v6211 = vunpack.c.h.b16 %v6176
        %v6212 = vunpack.c.l.b16 %v6177
        %v6213 = vunpack.c.h.b16 %v6177
        %v6214 = vunpack.c.l.b16 %v6178
        %v6215 = vunpack.c.h.b16 %v6178
        %v6216 = vunpack.c.l.b16 %v6179
        %v6217 = vunpack.c.h.b16 %v6179
        %v6218 = vunpack.c.l.b16 %v6180
        %v6219 = vunpack.c.h.b16 %v6180
        %v6220 = vunpack.c.l.b16 %v6181
        %v6221 = vunpack.c.h.b16 %v6181
        %v6222 = vunpack.c.l.b16 %v6182
        %v6223 = vunpack.c.h.b16 %v6182
        %v6224 = vunpack.c.l.b16 %v6183
        %v6225 = vunpack.c.h.b16 %v6183
        %v6226 = vunpack.c.l.b16 %v6184
        %v6227 = vunpack.c.h.b16 %v6184
        %v6228 = vunpack.c.l.b16 %v6185
        %v6229 = vunpack.c.h.b16 %v6185
        %v6230 = vunpack.c.l.b16 %v6186
        %v6231 = vunpack.c.h.b16 %v6186
        %v6232 = vunpack.c.l.b16 %v6187
        %v6233 = vunpack.c.h.b16 %v6187
        %v6234 = vunpack.c.l.b16 %v6188
        %v6235 = vunpack.c.h.b16 %v6188
        %v6236 = vunpack.c.l.b16 %v6189
        %v6237 = vunpack.c.h.b16 %v6189
        %v6238 = vpack.c.b16 %v6206, %v6206
        %v6239 = vpack.c.b16 %v6207, %v6207
        %v6240 = vpack.c.b16 %v6208, %v6208
        %v6241 = vpack.c.b16 %v6209, %v6209
        %v6242 = vpack.c.b16 %v6210, %v6210
        %v6243 = vpack.c.b16 %v6211, %v6211
        %v6244 = vpack.c.b16 %v6212, %v6212
        %v6245 = vpack.c.b16 %v6213, %v6213
        %v6246 = vpack.c.b16 %v6214, %v6214
        %v6247 = vpack.c.b16 %v6215, %v6215
        %v6248 = vpack.c.b16 %v6216, %v6216
        %v6249 = vpack.c.b16 %v6217, %v6217
        %v6250 = vpack.c.b16 %v6218, %v6218
        %v6251 = vpack.c.b16 %v6219, %v6219
        %v6252 = vpack.c.b16 %v6220, %v6220
        %v6253 = vpack.c.b16 %v6221, %v6221
        %v6254 = vpack.c.b16 %v6222, %v6222
        %v6255 = vpack.c.b16 %v6223, %v6223
        %v6256 = vpack.c.b16 %v6224, %v6224
        %v6257 = vpack.c.b16 %v6225, %v6225
        %v6258 = vpack.c.b16 %v6226, %v6226
        %v6259 = vpack.c.b16 %v6227, %v6227
        %v6260 = vpack.c.b16 %v6228, %v6228
        %v6261 = vpack.c.b16 %v6229, %v6229
        %v6262 = vpack.c.b16 %v6230, %v6230
        %v6263 = vpack.c.b16 %v6231, %v6231
        %v6264 = vpack.c.b16 %v6232, %v6232
        %v6265 = vpack.c.b16 %v6233, %v6233
        %v6266 = vpack.c.b16 %v6234, %v6234
        %v6267 = vpack.c.b16 %v6235, %v6235
        %v6268 = vpack.c.b16 %v6236, %v6236
        %v6269 = vpack.c.b16 %v6237, %v6237
        %v6271 = vshrl.u32 %v6238, 16
        %v6273 = vrot.slane %v6271, 7
        %v6274 = vshll.u32 %v6238, 16
        %v6276 = vor.u32 %v6273, %v6274
        %v6277 = vrot.slane %v6273, 4
        %v6279 = vshrl.u32 %v6239, 16
        %v6281 = vrot.slane %v6279, 7
        %v6282 = vshll.u32 %v6239, 16
        %v6284 = vor.u32 %v6281, %v6282
        %v6285 = vsel %vm888, %v6277, %v6284
        %v6286 = vrot.slane %v6281, 4
        %v6288 = vshrl.u32 %v6240, 16
        %v6290 = vrot.slane %v6288, 7
        %v6291 = vshll.u32 %v6240, 16
        %v6293 = vor.u32 %v6290, %v6291
        %v6294 = vrot.slane %v6290, 4
        %v6296 = vshrl.u32 %v6241, 16
        %v6298 = vrot.slane %v6296, 7
        %v6299 = vshll.u32 %v6241, 16
        %v6301 = vor.u32 %v6298, %v6299
        %v6302 = vsel %vm888, %v6294, %v6301
        %v6303 = vrot.slane %v6298, 4
        %v6305 = vshrl.u32 %v6242, 16
        %v6307 = vrot.slane %v6305, 7
        %v6308 = vshll.u32 %v6242, 16
        %v6310 = vor.u32 %v6307, %v6308
        %v6311 = vrot.slane %v6307, 4
        %v6313 = vshrl.u32 %v6243, 16
        %v6315 = vrot.slane %v6313, 7
        %v6316 = vshll.u32 %v6243, 16
        %v6318 = vor.u32 %v6315, %v6316
        %v6319 = vsel %vm888, %v6311, %v6318
        %v6320 = vrot.slane %v6315, 4
        %v6322 = vshrl.u32 %v6244, 16
        %v6324 = vrot.slane %v6322, 7
        %v6325 = vshll.u32 %v6244, 16
        %v6327 = vor.u32 %v6324, %v6325
        %v6328 = vrot.slane %v6324, 4
        %v6330 = vshrl.u32 %v6245, 16
        %v6332 = vrot.slane %v6330, 7
        %v6333 = vshll.u32 %v6245, 16
        %v6335 = vor.u32 %v6332, %v6333
        %v6336 = vsel %vm888, %v6328, %v6335
        %v6337 = vrot.slane %v6332, 4
        %v6339 = vshrl.u32 %v6246, 16
        %v6341 = vrot.slane %v6339, 7
        %v6342 = vshll.u32 %v6246, 16
        %v6344 = vor.u32 %v6341, %v6342
        %v6345 = vrot.slane %v6341, 4
        %v6347 = vshrl.u32 %v6247, 16
        %v6349 = vrot.slane %v6347, 7
        %v6350 = vshll.u32 %v6247, 16
        %v6352 = vor.u32 %v6349, %v6350
        %v6353 = vsel %vm888, %v6345, %v6352
        %v6354 = vrot.slane %v6349, 4
        %v6356 = vshrl.u32 %v6248, 16
        %v6358 = vrot.slane %v6356, 7
        %v6359 = vshll.u32 %v6248, 16
        %v6361 = vor.u32 %v6358, %v6359
        %v6362 = vrot.slane %v6358, 4
        %v6364 = vshrl.u32 %v6249, 16
        %v6366 = vrot.slane %v6364, 7
        %v6367 = vshll.u32 %v6249, 16
        %v6369 = vor.u32 %v6366, %v6367
        %v6370 = vsel %vm888, %v6362, %v6369
        %v6371 = vrot.slane %v6366, 4
        %v6373 = vshrl.u32 %v6250, 16
        %v6375 = vrot.slane %v6373, 7
        %v6376 = vshll.u32 %v6250, 16
        %v6378 = vor.u32 %v6375, %v6376
        %v6379 = vrot.slane %v6375, 4
        %v6381 = vshrl.u32 %v6251, 16
        %v6383 = vrot.slane %v6381, 7
        %v6384 = vshll.u32 %v6251, 16
        %v6386 = vor.u32 %v6383, %v6384
        %v6387 = vsel %vm888, %v6379, %v6386
        %v6388 = vrot.slane %v6383, 4
        %v6390 = vshrl.u32 %v6252, 16
        %v6392 = vrot.slane %v6390, 7
        %v6393 = vshll.u32 %v6252, 16
        %v6395 = vor.u32 %v6392, %v6393
        %v6396 = vrot.slane %v6392, 4
        %v6398 = vshrl.u32 %v6253, 16
        %v6400 = vrot.slane %v6398, 7
        %v6401 = vshll.u32 %v6253, 16
        %v6403 = vor.u32 %v6400, %v6401
        %v6404 = vsel %vm888, %v6396, %v6403
        %v6405 = vrot.slane %v6400, 4
        %v6407 = vshrl.u32 %v6254, 16
        %v6409 = vrot.slane %v6407, 7
        %v6410 = vshll.u32 %v6254, 16
        %v6412 = vor.u32 %v6409, %v6410
        %v6413 = vrot.slane %v6409, 4
        %v6415 = vshrl.u32 %v6255, 16
        %v6417 = vrot.slane %v6415, 7
        %v6418 = vshll.u32 %v6255, 16
        %v6420 = vor.u32 %v6417, %v6418
        %v6421 = vsel %vm888, %v6413, %v6420
        %v6422 = vrot.slane %v6417, 4
        %v6424 = vshrl.u32 %v6256, 16
        %v6426 = vrot.slane %v6424, 7
        %v6427 = vshll.u32 %v6256, 16
        %v6429 = vor.u32 %v6426, %v6427
        %v6430 = vrot.slane %v6426, 4
        %v6432 = vshrl.u32 %v6257, 16
        %v6434 = vrot.slane %v6432, 7
        %v6435 = vshll.u32 %v6257, 16
        %v6437 = vor.u32 %v6434, %v6435
        %v6438 = vsel %vm888, %v6430, %v6437
        %v6439 = vrot.slane %v6434, 4
        %v6441 = vshrl.u32 %v6258, 16
        %v6443 = vrot.slane %v6441, 7
        %v6444 = vshll.u32 %v6258, 16
        %v6446 = vor.u32 %v6443, %v6444
        %v6447 = vrot.slane %v6443, 4
        %v6449 = vshrl.u32 %v6259, 16
        %v6451 = vrot.slane %v6449, 7
        %v6452 = vshll.u32 %v6259, 16
        %v6454 = vor.u32 %v6451, %v6452
        %v6455 = vsel %vm888, %v6447, %v6454
        %v6456 = vrot.slane %v6451, 4
        %v6458 = vshrl.u32 %v6260, 16
        %v6460 = vrot.slane %v6458, 7
        %v6461 = vshll.u32 %v6260, 16
        %v6463 = vor.u32 %v6460, %v6461
        %v6464 = vrot.slane %v6460, 4
        %v6466 = vshrl.u32 %v6261, 16
        %v6468 = vrot.slane %v6466, 7
        %v6469 = vshll.u32 %v6261, 16
        %v6471 = vor.u32 %v6468, %v6469
        %v6472 = vsel %vm888, %v6464, %v6471
        %v6473 = vrot.slane %v6468, 4
        %v6475 = vshrl.u32 %v6262, 16
        %v6477 = vrot.slane %v6475, 7
        %v6478 = vshll.u32 %v6262, 16
        %v6480 = vor.u32 %v6477, %v6478
        %v6481 = vrot.slane %v6477, 4
        %v6483 = vshrl.u32 %v6263, 16
        %v6485 = vrot.slane %v6483, 7
        %v6486 = vshll.u32 %v6263, 16
        %v6488 = vor.u32 %v6485, %v6486
        %v6489 = vsel %vm888, %v6481, %v6488
        %v6490 = vrot.slane %v6485, 4
        %v6492 = vshrl.u32 %v6264, 16
        %v6494 = vrot.slane %v6492, 7
        %v6495 = vshll.u32 %v6264, 16
        %v6497 = vor.u32 %v6494, %v6495
        %v6498 = vrot.slane %v6494, 4
        %v6500 = vshrl.u32 %v6265, 16
        %v6502 = vrot.slane %v6500, 7
        %v6503 = vshll.u32 %v6265, 16
        %v6505 = vor.u32 %v6502, %v6503
        %v6506 = vsel %vm888, %v6498, %v6505
        %v6507 = vrot.slane %v6502, 4
        %v6509 = vshrl.u32 %v6266, 16
        %v6511 = vrot.slane %v6509, 7
        %v6512 = vshll.u32 %v6266, 16
        %v6514 = vor.u32 %v6511, %v6512
        %v6515 = vrot.slane %v6511, 4
        %v6517 = vshrl.u32 %v6267, 16
        %v6519 = vrot.slane %v6517, 7
        %v6520 = vshll.u32 %v6267, 16
        %v6522 = vor.u32 %v6519, %v6520
        %v6523 = vsel %vm888, %v6515, %v6522
        %v6524 = vrot.slane %v6519, 4
        %v6526 = vshrl.u32 %v6268, 16
        %v6528 = vrot.slane %v6526, 7
        %v6529 = vshll.u32 %v6268, 16
        %v6531 = vor.u32 %v6528, %v6529
        %v6532 = vrot.slane %v6528, 4
        %v6534 = vshrl.u32 %v6269, 16
        %v6536 = vrot.slane %v6534, 7
        %v6537 = vshll.u32 %v6269, 16
        %v6539 = vor.u32 %v6536, %v6537
        %v6540 = vsel %vm888, %v6532, %v6539
        %v6541 = vrot.slane %v6536, 4
        %v6590 = vsel %vm1212, %v6276, %v3244
        %6591 = vst [vmem:[%s1209] sm:$0xf] %v6590
        %6592 = vst [vmem:[%s1209 + $0x4] sm:$0xf] %v6285
        %v6593 = vld [vmem:[%s1209 + $0x8] sm:$0x1]
        %v6594 = vsel %vm1218, %v6286, %v6593
        %6595 = vst [vmem:[%s1209 + $0x8] sm:$0x1] %v6594
        %v6596 = vld [vmem:[%s1209 + $0xc] sm:$0xf]
        %v6597 = vsel %vm1212, %v6293, %v6596
        %6598 = vst [vmem:[%s1209 + $0xc] sm:$0xf] %v6597
        %6599 = vst [vmem:[%s1209 + $0x10] sm:$0xf] %v6302
        %v6600 = vld [vmem:[%s1209 + $0x14] sm:$0x1]
        %v6601 = vsel %vm1218, %v6303, %v6600
        %6602 = vst [vmem:[%s1209 + $0x14] sm:$0x1] %v6601
        %v6603 = vld [vmem:[%s1209 + $0x18] sm:$0xf]
        %v6604 = vsel %vm1212, %v6310, %v6603
        %6605 = vst [vmem:[%s1209 + $0x18] sm:$0xf] %v6604
        %6606 = vst [vmem:[%s1209 + $0x1c] sm:$0xf] %v6319
        %v6607 = vld [vmem:[%s1209 + $0x20] sm:$0x1]
        %v6608 = vsel %vm1218, %v6320, %v6607
        %6609 = vst [vmem:[%s1209 + $0x20] sm:$0x1] %v6608
        %v6610 = vld [vmem:[%s1209 + $0x24] sm:$0xf]
        %v6611 = vsel %vm1212, %v6327, %v6610
        %6612 = vst [vmem:[%s1209 + $0x24] sm:$0xf] %v6611
        %6613 = vst [vmem:[%s1209 + $0x28] sm:$0xf] %v6336
        %v6614 = vld [vmem:[%s1209 + $0x2c] sm:$0x1]
        %v6615 = vsel %vm1218, %v6337, %v6614
        %6616 = vst [vmem:[%s1209 + $0x2c] sm:$0x1] %v6615
        %v6617 = vld [vmem:[%s1209 + $0x30] sm:$0xf]
        %v6618 = vsel %vm1212, %v6344, %v6617
        %6619 = vst [vmem:[%s1209 + $0x30] sm:$0xf] %v6618
        %6620 = vst [vmem:[%s1209 + $0x34] sm:$0xf] %v6353
        %v6621 = vld [vmem:[%s1209 + $0x38] sm:$0x1]
        %v6622 = vsel %vm1218, %v6354, %v6621
        %6623 = vst [vmem:[%s1209 + $0x38] sm:$0x1] %v6622
        %v6624 = vld [vmem:[%s1209 + $0x3c] sm:$0xf]
        %v6625 = vsel %vm1212, %v6361, %v6624
        %6626 = vst [vmem:[%s1209 + $0x3c] sm:$0xf] %v6625
        %6627 = vst [vmem:[%s1209 + $0x40] sm:$0xf] %v6370
        %v6628 = vld [vmem:[%s1209 + $0x44] sm:$0x1]
        %v6629 = vsel %vm1218, %v6371, %v6628
        %6630 = vst [vmem:[%s1209 + $0x44] sm:$0x1] %v6629
        %v6631 = vld [vmem:[%s1209 + $0x48] sm:$0xf]
        %v6632 = vsel %vm1212, %v6378, %v6631
        %6633 = vst [vmem:[%s1209 + $0x48] sm:$0xf] %v6632
        %6634 = vst [vmem:[%s1209 + $0x4c] sm:$0xf] %v6387
        %v6635 = vld [vmem:[%s1209 + $0x50] sm:$0x1]
        %v6636 = vsel %vm1218, %v6388, %v6635
        %6637 = vst [vmem:[%s1209 + $0x50] sm:$0x1] %v6636
        %v6638 = vld [vmem:[%s1209 + $0x54] sm:$0xf]
        %v6639 = vsel %vm1212, %v6395, %v6638
        %6640 = vst [vmem:[%s1209 + $0x54] sm:$0xf] %v6639
        %6641 = vst [vmem:[%s1209 + $0x58] sm:$0xf] %v6404
        %v6642 = vld [vmem:[%s1209 + $0x5c] sm:$0x1]
        %v6643 = vsel %vm1218, %v6405, %v6642
        %6644 = vst [vmem:[%s1209 + $0x5c] sm:$0x1] %v6643
        %v6645 = vld [vmem:[%s1209 + $0x60] sm:$0xf]
        %v6646 = vsel %vm1212, %v6412, %v6645
        %6647 = vst [vmem:[%s1209 + $0x60] sm:$0xf] %v6646
        %6648 = vst [vmem:[%s1209 + $0x64] sm:$0xf] %v6421
        %v6649 = vld [vmem:[%s1209 + $0x68] sm:$0x1]
        %v6650 = vsel %vm1218, %v6422, %v6649
        %6651 = vst [vmem:[%s1209 + $0x68] sm:$0x1] %v6650
        %v6652 = vld [vmem:[%s1209 + $0x6c] sm:$0xf]
        %v6653 = vsel %vm1212, %v6429, %v6652
        %6654 = vst [vmem:[%s1209 + $0x6c] sm:$0xf] %v6653
        %6655 = vst [vmem:[%s1209 + $0x70] sm:$0xf] %v6438
        %v6656 = vld [vmem:[%s1209 + $0x74] sm:$0x1]
        %v6657 = vsel %vm1218, %v6439, %v6656
        %6658 = vst [vmem:[%s1209 + $0x74] sm:$0x1] %v6657
        %v6659 = vld [vmem:[%s1209 + $0x78] sm:$0xf]
        %v6660 = vsel %vm1212, %v6446, %v6659
        %6661 = vst [vmem:[%s1209 + $0x78] sm:$0xf] %v6660
        %6662 = vst [vmem:[%s1209 + $0x7c] sm:$0xf] %v6455
        %v6663 = vld [vmem:[%s1209 + $0x80] sm:$0x1]
        %v6664 = vsel %vm1218, %v6456, %v6663
        %6665 = vst [vmem:[%s1209 + $0x80] sm:$0x1] %v6664
        %v6666 = vld [vmem:[%s1209 + $0x84] sm:$0xf]
        %v6667 = vsel %vm1212, %v6463, %v6666
        %6668 = vst [vmem:[%s1209 + $0x84] sm:$0xf] %v6667
        %6669 = vst [vmem:[%s1209 + $0x88] sm:$0xf] %v6472
        %v6670 = vld [vmem:[%s1209 + $0x8c] sm:$0x1]
        %v6671 = vsel %vm1218, %v6473, %v6670
        %6672 = vst [vmem:[%s1209 + $0x8c] sm:$0x1] %v6671
        %v6673 = vld [vmem:[%s1209 + $0x90] sm:$0xf]
        %v6674 = vsel %vm1212, %v6480, %v6673
        %6675 = vst [vmem:[%s1209 + $0x90] sm:$0xf] %v6674
        %6676 = vst [vmem:[%s1209 + $0x94] sm:$0xf] %v6489
        %v6677 = vld [vmem:[%s1209 + $0x98] sm:$0x1]
        %v6678 = vsel %vm1218, %v6490, %v6677
        %6679 = vst [vmem:[%s1209 + $0x98] sm:$0x1] %v6678
        %v6680 = vld [vmem:[%s1209 + $0x9c] sm:$0xf]
        %v6681 = vsel %vm1212, %v6497, %v6680
        %6682 = vst [vmem:[%s1209 + $0x9c] sm:$0xf] %v6681
        %6683 = vst [vmem:[%s1209 + $0xa0] sm:$0xf] %v6506
        %v6684 = vld [vmem:[%s1209 + $0xa4] sm:$0x1]
        %v6685 = vsel %vm1218, %v6507, %v6684
        %6686 = vst [vmem:[%s1209 + $0xa4] sm:$0x1] %v6685
        %v6687 = vld [vmem:[%s1209 + $0xa8] sm:$0xf]
        %v6688 = vsel %vm1212, %v6514, %v6687
        %6689 = vst [vmem:[%s1209 + $0xa8] sm:$0xf] %v6688
        %6690 = vst [vmem:[%s1209 + $0xac] sm:$0xf] %v6523
        %v6691 = vld [vmem:[%s1209 + $0xb0] sm:$0x1]
        %v6692 = vsel %vm1218, %v6524, %v6691
        %6693 = vst [vmem:[%s1209 + $0xb0] sm:$0x1] %v6692
        %v6694 = vld [vmem:[%s1209 + $0xb4] sm:$0xf]
        %v6695 = vsel %vm1212, %v6531, %v6694
        %6696 = vst [vmem:[%s1209 + $0xb4] sm:$0xf] %v6695
        %6697 = vst [vmem:[%s1209 + $0xb8] sm:$0xf] %v6540
        %v6698 = vld [vmem:[%s1209 + $0xbc] sm:$0x1]
        %v6699 = vsel %vm1218, %v6541, %v6698
        %6700 = vst [vmem:[%s1209 + $0xbc] sm:$0x1] %v6699
        %v6701 = vld [vmem:[#allocation2] sm:$0xf]
        %v6702 = vld [vmem:[#allocation2 + $0x4] sm:$0xf]
        %v6703 = vld [vmem:[#allocation2 + $0xc] sm:$0xf]
        %v6704 = vld [vmem:[#allocation2 + $0x10] sm:$0xf]
        %v6705 = vld [vmem:[#allocation2 + $0x18] sm:$0xf]
        %v6706 = vld [vmem:[#allocation2 + $0x1c] sm:$0xf]
        %v6707 = vld [vmem:[#allocation2 + $0x24] sm:$0xf]
        %v6708 = vld [vmem:[#allocation2 + $0x28] sm:$0xf]
        %v6709 = vld [vmem:[#allocation2 + $0x30] sm:$0xf]
        %v6710 = vld [vmem:[#allocation2 + $0x34] sm:$0xf]
        %v6711 = vld [vmem:[#allocation2 + $0x3c] sm:$0xf]
        %v6712 = vld [vmem:[#allocation2 + $0x40] sm:$0xf]
        %v6713 = vld [vmem:[#allocation2 + $0x48] sm:$0xf]
        %v6714 = vld [vmem:[#allocation2 + $0x4c] sm:$0xf]
        %v6715 = vld [vmem:[#allocation2 + $0x54] sm:$0xf]
        %v6716 = vld [vmem:[#allocation2 + $0x58] sm:$0xf]
        %v6717 = vld [vmem:[#allocation2 + $0x60] sm:$0xf]
        %v6718 = vld [vmem:[#allocation2 + $0x64] sm:$0xf]
        %v6719 = vld [vmem:[#allocation2 + $0x6c] sm:$0xf]
        %v6720 = vld [vmem:[#allocation2 + $0x70] sm:$0xf]
        %v6721 = vld [vmem:[#allocation2 + $0x78] sm:$0xf]
        %v6722 = vld [vmem:[#allocation2 + $0x7c] sm:$0xf]
        %v6723 = vld [vmem:[#allocation2 + $0x84] sm:$0xf]
        %v6724 = vld [vmem:[#allocation2 + $0x88] sm:$0xf]
        %v6725 = vld [vmem:[#allocation2 + $0x90] sm:$0xf]
        %v6726 = vld [vmem:[#allocation2 + $0x94] sm:$0xf]
        %v6727 = vld [vmem:[#allocation2 + $0x9c] sm:$0xf]
        %v6728 = vld [vmem:[#allocation2 + $0xa0] sm:$0xf]
        %v6729 = vld [vmem:[#allocation2 + $0xa8] sm:$0xf]
        %v6730 = vld [vmem:[#allocation2 + $0xac] sm:$0xf]
        %v6731 = vld [vmem:[#allocation2 + $0xb4] sm:$0xf]
        %v6732 = vld [vmem:[#allocation2 + $0xb8] sm:$0xf]
        %v6733 = vld [vmem:[#allocation3] sm:$0xf]
        %v6734 = vld [vmem:[#allocation3 + $0x4] sm:$0xf]
        %v6735 = vld [vmem:[#allocation3 + $0x8] sm:$0xf]
        %v6736 = vld [vmem:[#allocation3 + $0xc] sm:$0xf]
        %v6737 = vld [vmem:[#allocation3 + $0x10] sm:$0xf]
        %v6738 = vld [vmem:[#allocation3 + $0x14] sm:$0xf]
        %v6739 = vld [vmem:[#allocation3 + $0x18] sm:$0xf]
        %v6740 = vld [vmem:[#allocation3 + $0x1c] sm:$0xf]
        %v6741 = vld [vmem:[#allocation3 + $0x20] sm:$0xf]
        %v6742 = vld [vmem:[#allocation3 + $0x24] sm:$0xf]
        %v6743 = vld [vmem:[#allocation3 + $0x28] sm:$0xf]
        %v6744 = vld [vmem:[#allocation3 + $0x2c] sm:$0xf]
        %v6745 = vld [vmem:[#allocation3 + $0x30] sm:$0xf]
        %v6746 = vld [vmem:[#allocation3 + $0x34] sm:$0xf]
        %v6747 = vld [vmem:[#allocation3 + $0x38] sm:$0xf]
        %v6748 = vld [vmem:[#allocation3 + $0x3c] sm:$0xf]
        %v6749 = vld [vmem:[#allocation2 + $0x8] sm:$0x1]
        %v6750 = vld [vmem:[#allocation2 + $0x14] sm:$0x1]
        %v6751 = vld [vmem:[#allocation2 + $0x20] sm:$0x1]
        %v6752 = vld [vmem:[#allocation2 + $0x2c] sm:$0x1]
        %v6753 = vld [vmem:[#allocation2 + $0x38] sm:$0x1]
        %v6754 = vld [vmem:[#allocation2 + $0x44] sm:$0x1]
        %v6755 = vld [vmem:[#allocation2 + $0x50] sm:$0x1]
        %v6756 = vld [vmem:[#allocation2 + $0x5c] sm:$0x1]
        %v6757 = vld [vmem:[#allocation2 + $0x68] sm:$0x1]
        %v6758 = vld [vmem:[#allocation2 + $0x74] sm:$0x1]
        %v6759 = vld [vmem:[#allocation2 + $0x80] sm:$0x1]
        %v6760 = vld [vmem:[#allocation2 + $0x8c] sm:$0x1]
        %v6761 = vld [vmem:[#allocation2 + $0x98] sm:$0x1]
        %v6762 = vld [vmem:[#allocation2 + $0xa4] sm:$0x1]
        %v6763 = vld [vmem:[#allocation2 + $0xb0] sm:$0x1]
        %v6764 = vld [vmem:[#allocation2 + $0xbc] sm:$0x1]
        %v6766 = vshrl.u32 %v6701, 16
        %v6768 = vrot.slane %v6766, 4
        %v6769 = vshll.u32 %v6701, 16
        %v6771 = vrot.slane %v6769, 5
        %v6772 = vor.u32 %v6768, %v6771
        %v6773 = vrot.slane %v6772, 4
        %v6775 = vshll.u32 %v6702, 16
        %v6777 = vrot.slane %v6775, 5
        %v6778 = vsel %vm1393, %v6773, %v6777
        %v6779 = vshrl.u32 %v6702, 16
        %v6781 = vrot.slane %v6779, 4
        %v6782 = vor.u32 %v6781, %v6777
        %v6783 = vrot.slane %v6782, 4
        %v6785 = vshll.u32 %v6749, 16
        %v6787 = vrot.slane %v6785, 5
        %v6788 = vsel %vm1393, %v6783, %v6787
        %v6790 = vshrl.u32 %v6703, 16
        %v6792 = vrot.slane %v6790, 4
        %v6793 = vshll.u32 %v6703, 16
        %v6795 = vrot.slane %v6793, 5
        %v6796 = vor.u32 %v6792, %v6795
        %v6797 = vrot.slane %v6796, 4
        %v6799 = vshll.u32 %v6704, 16
        %v6801 = vrot.slane %v6799, 5
        %v6802 = vsel %vm1393, %v6797, %v6801
        %v6803 = vshrl.u32 %v6704, 16
        %v6805 = vrot.slane %v6803, 4
        %v6806 = vor.u32 %v6805, %v6801
        %v6807 = vrot.slane %v6806, 4
        %v6809 = vshll.u32 %v6750, 16
        %v6811 = vrot.slane %v6809, 5
        %v6812 = vsel %vm1393, %v6807, %v6811
        %v6814 = vshrl.u32 %v6705, 16
        %v6816 = vrot.slane %v6814, 4
        %v6817 = vshll.u32 %v6705, 16
        %v6819 = vrot.slane %v6817, 5
        %v6820 = vor.u32 %v6816, %v6819
        %v6821 = vrot.slane %v6820, 4
        %v6823 = vshll.u32 %v6706, 16
        %v6825 = vrot.slane %v6823, 5
        %v6826 = vsel %vm1393, %v6821, %v6825
        %v6827 = vshrl.u32 %v6706, 16
        %v6829 = vrot.slane %v6827, 4
        %v6830 = vor.u32 %v6829, %v6825
        %v6831 = vrot.slane %v6830, 4
        %v6833 = vshll.u32 %v6751, 16
        %v6835 = vrot.slane %v6833, 5
        %v6836 = vsel %vm1393, %v6831, %v6835
        %v6838 = vshrl.u32 %v6707, 16
        %v6840 = vrot.slane %v6838, 4
        %v6841 = vshll.u32 %v6707, 16
        %v6843 = vrot.slane %v6841, 5
        %v6844 = vor.u32 %v6840, %v6843
        %v6845 = vrot.slane %v6844, 4
        %v6847 = vshll.u32 %v6708, 16
        %v6849 = vrot.slane %v6847, 5
        %v6850 = vsel %vm1393, %v6845, %v6849
        %v6851 = vshrl.u32 %v6708, 16
        %v6853 = vrot.slane %v6851, 4
        %v6854 = vor.u32 %v6853, %v6849
        %v6855 = vrot.slane %v6854, 4
        %v6857 = vshll.u32 %v6752, 16
        %v6859 = vrot.slane %v6857, 5
        %v6860 = vsel %vm1393, %v6855, %v6859
        %v6862 = vshrl.u32 %v6709, 16
        %v6864 = vrot.slane %v6862, 4
        %v6865 = vshll.u32 %v6709, 16
        %v6867 = vrot.slane %v6865, 5
        %v6868 = vor.u32 %v6864, %v6867
        %v6869 = vrot.slane %v6868, 4
        %v6871 = vshll.u32 %v6710, 16
        %v6873 = vrot.slane %v6871, 5
        %v6874 = vsel %vm1393, %v6869, %v6873
        %v6875 = vshrl.u32 %v6710, 16
        %v6877 = vrot.slane %v6875, 4
        %v6878 = vor.u32 %v6877, %v6873
        %v6879 = vrot.slane %v6878, 4
        %v6881 = vshll.u32 %v6753, 16
        %v6883 = vrot.slane %v6881, 5
        %v6884 = vsel %vm1393, %v6879, %v6883
        %v6886 = vshrl.u32 %v6711, 16
        %v6888 = vrot.slane %v6886, 4
        %v6889 = vshll.u32 %v6711, 16
        %v6891 = vrot.slane %v6889, 5
        %v6892 = vor.u32 %v6888, %v6891
        %v6893 = vrot.slane %v6892, 4
        %v6895 = vshll.u32 %v6712, 16
        %v6897 = vrot.slane %v6895, 5
        %v6898 = vsel %vm1393, %v6893, %v6897
        %v6899 = vshrl.u32 %v6712, 16
        %v6901 = vrot.slane %v6899, 4
        %v6902 = vor.u32 %v6901, %v6897
        %v6903 = vrot.slane %v6902, 4
        %v6905 = vshll.u32 %v6754, 16
        %v6907 = vrot.slane %v6905, 5
        %v6908 = vsel %vm1393, %v6903, %v6907
        %v6910 = vshrl.u32 %v6713, 16
        %v6912 = vrot.slane %v6910, 4
        %v6913 = vshll.u32 %v6713, 16
        %v6915 = vrot.slane %v6913, 5
        %v6916 = vor.u32 %v6912, %v6915
        %v6917 = vrot.slane %v6916, 4
        %v6919 = vshll.u32 %v6714, 16
        %v6921 = vrot.slane %v6919, 5
        %v6922 = vsel %vm1393, %v6917, %v6921
        %v6923 = vshrl.u32 %v6714, 16
        %v6925 = vrot.slane %v6923, 4
        %v6926 = vor.u32 %v6925, %v6921
        %v6927 = vrot.slane %v6926, 4
        %v6929 = vshll.u32 %v6755, 16
        %v6931 = vrot.slane %v6929, 5
        %v6932 = vsel %vm1393, %v6927, %v6931
        %v6934 = vshrl.u32 %v6715, 16
        %v6936 = vrot.slane %v6934, 4
        %v6937 = vshll.u32 %v6715, 16
        %v6939 = vrot.slane %v6937, 5
        %v6940 = vor.u32 %v6936, %v6939
        %v6941 = vrot.slane %v6940, 4
        %v6943 = vshll.u32 %v6716, 16
        %v6945 = vrot.slane %v6943, 5
        %v6946 = vsel %vm1393, %v6941, %v6945
        %v6947 = vshrl.u32 %v6716, 16
        %v6949 = vrot.slane %v6947, 4
        %v6950 = vor.u32 %v6949, %v6945
        %v6951 = vrot.slane %v6950, 4
        %v6953 = vshll.u32 %v6756, 16
        %v6955 = vrot.slane %v6953, 5
        %v6956 = vsel %vm1393, %v6951, %v6955
        %v6958 = vshrl.u32 %v6717, 16
        %v6960 = vrot.slane %v6958, 4
        %v6961 = vshll.u32 %v6717, 16
        %v6963 = vrot.slane %v6961, 5
        %v6964 = vor.u32 %v6960, %v6963
        %v6965 = vrot.slane %v6964, 4
        %v6967 = vshll.u32 %v6718, 16
        %v6969 = vrot.slane %v6967, 5
        %v6970 = vsel %vm1393, %v6965, %v6969
        %v6971 = vshrl.u32 %v6718, 16
        %v6973 = vrot.slane %v6971, 4
        %v6974 = vor.u32 %v6973, %v6969
        %v6975 = vrot.slane %v6974, 4
        %v6977 = vshll.u32 %v6757, 16
        %v6979 = vrot.slane %v6977, 5
        %v6980 = vsel %vm1393, %v6975, %v6979
        %v6982 = vshrl.u32 %v6719, 16
        %v6984 = vrot.slane %v6982, 4
        %v6985 = vshll.u32 %v6719, 16
        %v6987 = vrot.slane %v6985, 5
        %v6988 = vor.u32 %v6984, %v6987
        %v6989 = vrot.slane %v6988, 4
        %v6991 = vshll.u32 %v6720, 16
        %v6993 = vrot.slane %v6991, 5
        %v6994 = vsel %vm1393, %v6989, %v6993
        %v6995 = vshrl.u32 %v6720, 16
        %v6997 = vrot.slane %v6995, 4
        %v6998 = vor.u32 %v6997, %v6993
        %v6999 = vrot.slane %v6998, 4
        %v7001 = vshll.u32 %v6758, 16
        %v7003 = vrot.slane %v7001, 5
        %v7004 = vsel %vm1393, %v6999, %v7003
        %v7006 = vshrl.u32 %v6721, 16
        %v7008 = vrot.slane %v7006, 4
        %v7009 = vshll.u32 %v6721, 16
        %v7011 = vrot.slane %v7009, 5
        %v7012 = vor.u32 %v7008, %v7011
        %v7013 = vrot.slane %v7012, 4
        %v7015 = vshll.u32 %v6722, 16
        %v7017 = vrot.slane %v7015, 5
        %v7018 = vsel %vm1393, %v7013, %v7017
        %v7019 = vshrl.u32 %v6722, 16
        %v7021 = vrot.slane %v7019, 4
        %v7022 = vor.u32 %v7021, %v7017
        %v7023 = vrot.slane %v7022, 4
        %v7025 = vshll.u32 %v6759, 16
        %v7027 = vrot.slane %v7025, 5
        %v7028 = vsel %vm1393, %v7023, %v7027
        %v7030 = vshrl.u32 %v6723, 16
        %v7032 = vrot.slane %v7030, 4
        %v7033 = vshll.u32 %v6723, 16
        %v7035 = vrot.slane %v7033, 5
        %v7036 = vor.u32 %v7032, %v7035
        %v7037 = vrot.slane %v7036, 4
        %v7039 = vshll.u32 %v6724, 16
        %v7041 = vrot.slane %v7039, 5
        %v7042 = vsel %vm1393, %v7037, %v7041
        %v7043 = vshrl.u32 %v6724, 16
        %v7045 = vrot.slane %v7043, 4
        %v7046 = vor.u32 %v7045, %v7041
        %v7047 = vrot.slane %v7046, 4
        %v7049 = vshll.u32 %v6760, 16
        %v7051 = vrot.slane %v7049, 5
        %v7052 = vsel %vm1393, %v7047, %v7051
        %v7054 = vshrl.u32 %v6725, 16
        %v7056 = vrot.slane %v7054, 4
        %v7057 = vshll.u32 %v6725, 16
        %v7059 = vrot.slane %v7057, 5
        %v7060 = vor.u32 %v7056, %v7059
        %v7061 = vrot.slane %v7060, 4
        %v7063 = vshll.u32 %v6726, 16
        %v7065 = vrot.slane %v7063, 5
        %v7066 = vsel %vm1393, %v7061, %v7065
        %v7067 = vshrl.u32 %v6726, 16
        %v7069 = vrot.slane %v7067, 4
        %v7070 = vor.u32 %v7069, %v7065
        %v7071 = vrot.slane %v7070, 4
        %v7073 = vshll.u32 %v6761, 16
        %v7075 = vrot.slane %v7073, 5
        %v7076 = vsel %vm1393, %v7071, %v7075
        %v7078 = vshrl.u32 %v6727, 16
        %v7080 = vrot.slane %v7078, 4
        %v7081 = vshll.u32 %v6727, 16
        %v7083 = vrot.slane %v7081, 5
        %v7084 = vor.u32 %v7080, %v7083
        %v7085 = vrot.slane %v7084, 4
        %v7087 = vshll.u32 %v6728, 16
        %v7089 = vrot.slane %v7087, 5
        %v7090 = vsel %vm1393, %v7085, %v7089
        %v7091 = vshrl.u32 %v6728, 16
        %v7093 = vrot.slane %v7091, 4
        %v7094 = vor.u32 %v7093, %v7089
        %v7095 = vrot.slane %v7094, 4
        %v7097 = vshll.u32 %v6762, 16
        %v7099 = vrot.slane %v7097, 5
        %v7100 = vsel %vm1393, %v7095, %v7099
        %v7102 = vshrl.u32 %v6729, 16
        %v7104 = vrot.slane %v7102, 4
        %v7105 = vshll.u32 %v6729, 16
        %v7107 = vrot.slane %v7105, 5
        %v7108 = vor.u32 %v7104, %v7107
        %v7109 = vrot.slane %v7108, 4
        %v7111 = vshll.u32 %v6730, 16
        %v7113 = vrot.slane %v7111, 5
        %v7114 = vsel %vm1393, %v7109, %v7113
        %v7115 = vshrl.u32 %v6730, 16
        %v7117 = vrot.slane %v7115, 4
        %v7118 = vor.u32 %v7117, %v7113
        %v7119 = vrot.slane %v7118, 4
        %v7121 = vshll.u32 %v6763, 16
        %v7123 = vrot.slane %v7121, 5
        %v7124 = vsel %vm1393, %v7119, %v7123
        %v7126 = vshrl.u32 %v6731, 16
        %v7128 = vrot.slane %v7126, 4
        %v7129 = vshll.u32 %v6731, 16
        %v7131 = vrot.slane %v7129, 5
        %v7132 = vor.u32 %v7128, %v7131
        %v7133 = vrot.slane %v7132, 4
        %v7135 = vshll.u32 %v6732, 16
        %v7137 = vrot.slane %v7135, 5
        %v7138 = vsel %vm1393, %v7133, %v7137
        %v7139 = vshrl.u32 %v6732, 16
        %v7141 = vrot.slane %v7139, 4
        %v7142 = vor.u32 %v7141, %v7137
        %v7143 = vrot.slane %v7142, 4
        %v7145 = vshll.u32 %v6764, 16
        %v7147 = vrot.slane %v7145, 5
        %v7148 = vsel %vm1393, %v7143, %v7147
        %s7149 = scalar_lea.vmem [#allocation3], 64
        %v7150 = vld [vmem:[%s7149] sm:$0xf]
        %v7151 = vld [vmem:[%s7149 + $0x4] sm:$0xf]
        %v7152 = vld [vmem:[%s7149 + $0x8] sm:$0xf]
        %v7153 = vld [vmem:[%s7149 + $0xc] sm:$0xf]
        %v7154 = vld [vmem:[%s7149 + $0x10] sm:$0xf]
        %v7155 = vld [vmem:[%s7149 + $0x14] sm:$0xf]
        %v7156 = vld [vmem:[%s7149 + $0x18] sm:$0xf]
        %v7157 = vld [vmem:[%s7149 + $0x1c] sm:$0xf]
        %v7158 = vld [vmem:[%s7149 + $0x20] sm:$0xf]
        %v7159 = vld [vmem:[%s7149 + $0x24] sm:$0xf]
        %v7160 = vld [vmem:[%s7149 + $0x28] sm:$0xf]
        %v7161 = vld [vmem:[%s7149 + $0x2c] sm:$0xf]
        %v7162 = vld [vmem:[%s7149 + $0x30] sm:$0xf]
        %v7163 = vld [vmem:[%s7149 + $0x34] sm:$0xf]
        %v7164 = vld [vmem:[%s7149 + $0x38] sm:$0xf]
        %v7165 = vld [vmem:[%s7149 + $0x3c] sm:$0xf]
        %v7166 = vunpack.c.l.b16 %v6778
        %v7167 = vunpack.c.l.b16 %v6788
        %v7168 = vunpack.c.l.b16 %v6802
        %v7169 = vunpack.c.l.b16 %v6812
        %v7170 = vunpack.c.l.b16 %v6826
        %v7171 = vunpack.c.l.b16 %v6836
        %v7172 = vunpack.c.l.b16 %v6850
        %v7173 = vunpack.c.l.b16 %v6860
        %v7174 = vunpack.c.l.b16 %v6874
        %v7175 = vunpack.c.l.b16 %v6884
        %v7176 = vunpack.c.l.b16 %v6898
        %v7177 = vunpack.c.l.b16 %v6908
        %v7178 = vunpack.c.l.b16 %v6922
        %v7179 = vunpack.c.l.b16 %v6932
        %v7180 = vunpack.c.l.b16 %v6946
        %v7181 = vunpack.c.l.b16 %v6956
        %v7182 = vunpack.c.l.b16 %v6970
        %v7183 = vunpack.c.l.b16 %v6980
        %v7184 = vunpack.c.l.b16 %v6994
        %v7185 = vunpack.c.l.b16 %v7004
        %v7186 = vunpack.c.l.b16 %v7018
        %v7187 = vunpack.c.l.b16 %v7028
        %v7188 = vunpack.c.l.b16 %v7042
        %v7189 = vunpack.c.l.b16 %v7052
        %v7190 = vunpack.c.l.b16 %v7066
        %v7191 = vunpack.c.l.b16 %v7076
        %v7192 = vunpack.c.l.b16 %v7090
        %v7193 = vunpack.c.l.b16 %v7100
        %v7194 = vunpack.c.l.b16 %v7114
        %v7195 = vunpack.c.l.b16 %v7124
        %v7196 = vunpack.c.l.b16 %v7138
        %v7197 = vunpack.c.l.b16 %v7148
        %v7198 = vpack.c.b16 %v7167, %v7166
        %v7199 = vpack.c.b16 %v7169, %v7168
        %v7200 = vpack.c.b16 %v7171, %v7170
        %v7201 = vpack.c.b16 %v7173, %v7172
        %v7202 = vpack.c.b16 %v7175, %v7174
        %v7203 = vpack.c.b16 %v7177, %v7176
        %v7204 = vpack.c.b16 %v7179, %v7178
        %v7205 = vpack.c.b16 %v7181, %v7180
        %v7206 = vpack.c.b16 %v7183, %v7182
        %v7207 = vpack.c.b16 %v7185, %v7184
        %v7208 = vpack.c.b16 %v7187, %v7186
        %v7209 = vpack.c.b16 %v7189, %v7188
        %v7210 = vpack.c.b16 %v7191, %v7190
        %v7211 = vpack.c.b16 %v7193, %v7192
        %v7212 = vpack.c.b16 %v7195, %v7194
        %v7213 = vpack.c.b16 %v7197, %v7196
        %v7246 = vunpack.c.l.b16 %v7150
        %v7247 = vunpack.c.l.b16 %v7151
        %v7248 = vunpack.c.l.b16 %v7152
        %v7249 = vunpack.c.l.b16 %v7153
        %v7250 = vunpack.c.l.b16 %v7154
        %v7251 = vunpack.c.l.b16 %v7155
        %v7252 = vunpack.c.l.b16 %v7156
        %v7253 = vunpack.c.l.b16 %v7157
        %v7254 = vunpack.c.l.b16 %v7158
        %v7255 = vunpack.c.l.b16 %v7159
        %v7256 = vunpack.c.l.b16 %v7160
        %v7257 = vunpack.c.l.b16 %v7161
        %v7258 = vunpack.c.l.b16 %v7162
        %v7259 = vunpack.c.l.b16 %v7163
        %v7260 = vunpack.c.l.b16 %v7164
        %v7261 = vunpack.c.l.b16 %v7165
        %v7262 = vpack.c.b16 %v7247, %v7246
        %v7263 = vpack.c.b16 %v7249, %v7248
        %v7264 = vpack.c.b16 %v7251, %v7250
        %v7265 = vpack.c.b16 %v7253, %v7252
        %v7266 = vpack.c.b16 %v7255, %v7254
        %v7267 = vpack.c.b16 %v7257, %v7256
        %v7268 = vpack.c.b16 %v7259, %v7258
        %v7269 = vpack.c.b16 %v7261, %v7260
        %7278 = vmatprep.subr.bf16.mxu0 0
        %7279 = vmatpush1.bf16.msra.mxu0 %v7269
        %7280 = vmatprep.subr.bf16.mxu0 0
        %7281 = vmatpush1.bf16.msra.mxu0 %v7268
        %7282 = vmatprep.subr.bf16.mxu0 0
        %7283 = vmatpush1.bf16.msra.mxu0 %v7267
        %7284 = vmatprep.subr.bf16.mxu0 0
        %7285 = vmatpush1.bf16.msra.mxu0 %v7266
        %7286 = vmatprep.subr.bf16.mxu0 0
        %7287 = vmatpush1.bf16.msra.mxu0 %v7265
        %7288 = vmatprep.subr.bf16.mxu0 0
        %7289 = vmatpush1.bf16.msra.mxu0 %v7264
        %7290 = vmatprep.subr.bf16.mxu0 0
        %7291 = vmatpush1.bf16.msra.mxu0 %v7263
        %7292 = vmatprep.subr.bf16.mxu0 0
        %7293 = vmatpush1.bf16.msra.mxu0 %v7262
        %7294 = vmatprep.subr.bf16.mxu0 0
        %7295 = vmatpush2.bf16.msra.mxu0 0
        %7296 = vmatprep.subr.bf16.mxu0 0
        %7297 = vmatpush2.bf16.msra.mxu0 0
        %7298 = vmatprep.subr.bf16.mxu0 0
        %7299 = vmatpush2.bf16.msra.mxu0 0
        %7300 = vmatprep.subr.bf16.mxu0 0
        %7301 = vmatpush2.bf16.msra.mxu0 0
        %7302 = vmatprep.subr.bf16.mxu0 0
        %7303 = vmatpush2.bf16.msra.mxu0 0
        %7304 = vmatprep.subr.bf16.mxu0 0
        %7305 = vmatpush2.bf16.msra.mxu0 0
        %7306 = vmatprep.subr.bf16.mxu0 0
        %7307 = vmatpush2.bf16.msra.mxu0 0
        %7308 = vmatprep.subr.bf16.mxu0 0
        %7309 = vmatpush2.bf16.msra.mxu0 0
        %7310 = vmatprep.mubr.bf16.mxu0 0
        %7311 = vmatmul.mubr.bf16.gmra.mxu0 %v7198
        %v7312 = vpop.f32.mrf.mxu0
        %v7313 = vadd.f32 0.0, %v7312
        %v7314 = vpop.f32.mrf.mxu0
        %v7315 = vpop.f32.mrf.mxu0
        %v7316 = vadd.f32 0.0, %v7315
        %v7317 = vpop.f32.mrf.mxu0
        %7318 = vmatprep.mubr.bf16.mxu0 0
        %7319 = vmatmul.mubr.bf16.gmra.mxu0 %v7199
        %v7320 = vpop.f32.mrf.mxu0
        %v7321 = vadd.f32 0.0, %v7320
        %v7322 = vpop.f32.mrf.mxu0
        %v7323 = vpop.f32.mrf.mxu0
        %v7324 = vadd.f32 0.0, %v7323
        %v7325 = vpop.f32.mrf.mxu0
        %7326 = vmatprep.mubr.bf16.mxu0 0
        %7327 = vmatmul.mubr.bf16.gmra.mxu0 %v7200
        %v7328 = vpop.f32.mrf.mxu0
        %v7329 = vadd.f32 0.0, %v7328
        %v7330 = vpop.f32.mrf.mxu0
        %v7331 = vpop.f32.mrf.mxu0
        %v7332 = vadd.f32 0.0, %v7331
        %v7333 = vpop.f32.mrf.mxu0
        %7334 = vmatprep.mubr.bf16.mxu0 0
        %7335 = vmatmul.mubr.bf16.gmra.mxu0 %v7201
        %v7336 = vpop.f32.mrf.mxu0
        %v7337 = vadd.f32 0.0, %v7336
        %v7338 = vpop.f32.mrf.mxu0
        %v7339 = vpop.f32.mrf.mxu0
        %v7340 = vadd.f32 0.0, %v7339
        %v7341 = vpop.f32.mrf.mxu0
        %7342 = vmatprep.mubr.bf16.mxu0 0
        %7343 = vmatmul.mubr.bf16.gmra.mxu0 %v7202
        %v7344 = vpop.f32.mrf.mxu0
        %v7345 = vadd.f32 0.0, %v7344
        %v7346 = vpop.f32.mrf.mxu0
        %v7347 = vpop.f32.mrf.mxu0
        %v7348 = vadd.f32 0.0, %v7347
        %v7349 = vpop.f32.mrf.mxu0
        %7350 = vmatprep.mubr.bf16.mxu0 0
        %7351 = vmatmul.mubr.bf16.gmra.mxu0 %v7203
        %v7352 = vpop.f32.mrf.mxu0
        %v7353 = vadd.f32 0.0, %v7352
        %v7354 = vpop.f32.mrf.mxu0
        %v7355 = vpop.f32.mrf.mxu0
        %v7356 = vadd.f32 0.0, %v7355
        %v7357 = vpop.f32.mrf.mxu0
        %7358 = vmatprep.mubr.bf16.mxu0 0
        %7359 = vmatmul.mubr.bf16.gmra.mxu0 %v7204
        %v7360 = vpop.f32.mrf.mxu0
        %v7361 = vadd.f32 0.0, %v7360
        %v7362 = vpop.f32.mrf.mxu0
        %v7363 = vpop.f32.mrf.mxu0
        %v7364 = vadd.f32 0.0, %v7363
        %v7365 = vpop.f32.mrf.mxu0
        %7366 = vmatprep.mubr.bf16.mxu0 0
        %7367 = vmatmul.mubr.bf16.gmra.mxu0 %v7205
        %v7368 = vpop.f32.mrf.mxu0
        %v7369 = vadd.f32 0.0, %v7368
        %v7370 = vpop.f32.mrf.mxu0
        %v7371 = vpop.f32.mrf.mxu0
        %v7372 = vadd.f32 0.0, %v7371
        %v7373 = vpop.f32.mrf.mxu0
        %7374 = vmatprep.mubr.bf16.mxu0 0
        %7375 = vmatmul.mubr.bf16.gmra.mxu0 %v7206
        %v7376 = vpop.f32.mrf.mxu0
        %v7377 = vadd.f32 0.0, %v7376
        %v7378 = vpop.f32.mrf.mxu0
        %v7379 = vpop.f32.mrf.mxu0
        %v7380 = vadd.f32 0.0, %v7379
        %v7381 = vpop.f32.mrf.mxu0
        %7382 = vmatprep.mubr.bf16.mxu0 0
        %7383 = vmatmul.mubr.bf16.gmra.mxu0 %v7207
        %v7384 = vpop.f32.mrf.mxu0
        %v7385 = vadd.f32 0.0, %v7384
        %v7386 = vpop.f32.mrf.mxu0
        %v7387 = vpop.f32.mrf.mxu0
        %v7388 = vadd.f32 0.0, %v7387
        %v7389 = vpop.f32.mrf.mxu0
        %7390 = vmatprep.mubr.bf16.mxu0 0
        %7391 = vmatmul.mubr.bf16.gmra.mxu0 %v7208
        %v7392 = vpop.f32.mrf.mxu0
        %v7393 = vadd.f32 0.0, %v7392
        %v7394 = vpop.f32.mrf.mxu0
        %v7395 = vpop.f32.mrf.mxu0
        %v7396 = vadd.f32 0.0, %v7395
        %v7397 = vpop.f32.mrf.mxu0
        %7398 = vmatprep.mubr.bf16.mxu0 0
        %7399 = vmatmul.mubr.bf16.gmra.mxu0 %v7209
        %v7400 = vpop.f32.mrf.mxu0
        %v7401 = vadd.f32 0.0, %v7400
        %v7402 = vpop.f32.mrf.mxu0
        %v7403 = vpop.f32.mrf.mxu0
        %v7404 = vadd.f32 0.0, %v7403
        %v7405 = vpop.f32.mrf.mxu0
        %7406 = vmatprep.mubr.bf16.mxu0 0
        %7407 = vmatmul.mubr.bf16.gmra.mxu0 %v7210
        %v7408 = vpop.f32.mrf.mxu0
        %v7409 = vadd.f32 0.0, %v7408
        %v7410 = vpop.f32.mrf.mxu0
        %v7411 = vpop.f32.mrf.mxu0
        %v7412 = vadd.f32 0.0, %v7411
        %v7413 = vpop.f32.mrf.mxu0
        %7414 = vmatprep.mubr.bf16.mxu0 0
        %7415 = vmatmul.mubr.bf16.gmra.mxu0 %v7211
        %v7416 = vpop.f32.mrf.mxu0
        %v7417 = vadd.f32 0.0, %v7416
        %v7418 = vpop.f32.mrf.mxu0
        %v7419 = vpop.f32.mrf.mxu0
        %v7420 = vadd.f32 0.0, %v7419
        %v7421 = vpop.f32.mrf.mxu0
        %7422 = vmatprep.mubr.bf16.mxu0 0
        %7423 = vmatmul.mubr.bf16.gmra.mxu0 %v7212
        %v7424 = vpop.f32.mrf.mxu0
        %v7425 = vadd.f32 0.0, %v7424
        %v7426 = vpop.f32.mrf.mxu0
        %v7427 = vpop.f32.mrf.mxu0
        %v7428 = vadd.f32 0.0, %v7427
        %v7429 = vpop.f32.mrf.mxu0
        %7430 = vmatprep.mubr.bf16.mxu0 0
        %7431 = vmatmul.mubr.bf16.gmra.mxu0 %v7213
        %v7432 = vpop.f32.mrf.mxu0
        %v7433 = vadd.f32 0.0, %v7432
        %v7434 = vpop.f32.mrf.mxu0
        %v7435 = vpop.f32.mrf.mxu0
        %v7436 = vadd.f32 0.0, %v7435
        %v7437 = vpop.f32.mrf.mxu0
        %7438 = vdwg.mxu0
        %v7471 = vunpack.c.l.b16 %v6701
        %v7472 = vunpack.c.l.b16 %v6702
        %v7473 = vunpack.c.l.b16 %v6703
        %v7474 = vunpack.c.l.b16 %v6704
        %v7475 = vunpack.c.l.b16 %v6705
        %v7476 = vunpack.c.l.b16 %v6706
        %v7477 = vunpack.c.l.b16 %v6707
        %v7478 = vunpack.c.l.b16 %v6708
        %v7479 = vunpack.c.l.b16 %v6709
        %v7480 = vunpack.c.l.b16 %v6710
        %v7481 = vunpack.c.l.b16 %v6711
        %v7482 = vunpack.c.l.b16 %v6712
        %v7483 = vunpack.c.l.b16 %v6713
        %v7484 = vunpack.c.l.b16 %v6714
        %v7485 = vunpack.c.l.b16 %v6715
        %v7486 = vunpack.c.l.b16 %v6716
        %v7487 = vunpack.c.l.b16 %v6717
        %v7488 = vunpack.c.l.b16 %v6718
        %v7489 = vunpack.c.l.b16 %v6719
        %v7490 = vunpack.c.l.b16 %v6720
        %v7491 = vunpack.c.l.b16 %v6721
        %v7492 = vunpack.c.l.b16 %v6722
        %v7493 = vunpack.c.l.b16 %v6723
        %v7494 = vunpack.c.l.b16 %v6724
        %v7495 = vunpack.c.l.b16 %v6725
        %v7496 = vunpack.c.l.b16 %v6726
        %v7497 = vunpack.c.l.b16 %v6727
        %v7498 = vunpack.c.l.b16 %v6728
        %v7499 = vunpack.c.l.b16 %v6729
        %v7500 = vunpack.c.l.b16 %v6730
        %v7501 = vunpack.c.l.b16 %v6731
        %v7502 = vunpack.c.l.b16 %v6732
        %v7503 = vpack.c.b16 %v7472, %v7471
        %v7504 = vpack.c.b16 %v7474, %v7473
        %v7505 = vpack.c.b16 %v7476, %v7475
        %v7506 = vpack.c.b16 %v7478, %v7477
        %v7507 = vpack.c.b16 %v7480, %v7479
        %v7508 = vpack.c.b16 %v7482, %v7481
        %v7509 = vpack.c.b16 %v7484, %v7483
        %v7510 = vpack.c.b16 %v7486, %v7485
        %v7511 = vpack.c.b16 %v7488, %v7487
        %v7512 = vpack.c.b16 %v7490, %v7489
        %v7513 = vpack.c.b16 %v7492, %v7491
        %v7514 = vpack.c.b16 %v7494, %v7493
        %v7515 = vpack.c.b16 %v7496, %v7495
        %v7516 = vpack.c.b16 %v7498, %v7497
        %v7517 = vpack.c.b16 %v7500, %v7499
        %v7518 = vpack.c.b16 %v7502, %v7501
        %v7551 = vunpack.c.l.b16 %v6733
        %v7552 = vunpack.c.l.b16 %v6734
        %v7553 = vunpack.c.l.b16 %v6735
        %v7554 = vunpack.c.l.b16 %v6736
        %v7555 = vunpack.c.l.b16 %v6737
        %v7556 = vunpack.c.l.b16 %v6738
        %v7557 = vunpack.c.l.b16 %v6739
        %v7558 = vunpack.c.l.b16 %v6740
        %v7559 = vunpack.c.l.b16 %v6741
        %v7560 = vunpack.c.l.b16 %v6742
        %v7561 = vunpack.c.l.b16 %v6743
        %v7562 = vunpack.c.l.b16 %v6744
        %v7563 = vunpack.c.l.b16 %v6745
        %v7564 = vunpack.c.l.b16 %v6746
        %v7565 = vunpack.c.l.b16 %v6747
        %v7566 = vunpack.c.l.b16 %v6748
        %v7567 = vpack.c.b16 %v7552, %v7551
        %v7568 = vpack.c.b16 %v7554, %v7553
        %v7569 = vpack.c.b16 %v7556, %v7555
        %v7570 = vpack.c.b16 %v7558, %v7557
        %v7571 = vpack.c.b16 %v7560, %v7559
        %v7572 = vpack.c.b16 %v7562, %v7561
        %v7573 = vpack.c.b16 %v7564, %v7563
        %v7574 = vpack.c.b16 %v7566, %v7565
        %7583 = vmatprep.subr.bf16.mxu0 0
        %7584 = vmatpush1.bf16.msra.mxu0 %v7574
        %7585 = vmatprep.subr.bf16.mxu0 0
        %7586 = vmatpush1.bf16.msra.mxu0 %v7573
        %7587 = vmatprep.subr.bf16.mxu0 0
        %7588 = vmatpush1.bf16.msra.mxu0 %v7572
        %7589 = vmatprep.subr.bf16.mxu0 0
        %7590 = vmatpush1.bf16.msra.mxu0 %v7571
        %7591 = vmatprep.subr.bf16.mxu0 0
        %7592 = vmatpush1.bf16.msra.mxu0 %v7570
        %7593 = vmatprep.subr.bf16.mxu0 0
        %7594 = vmatpush1.bf16.msra.mxu0 %v7569
        %7595 = vmatprep.subr.bf16.mxu0 0
        %7596 = vmatpush1.bf16.msra.mxu0 %v7568
        %7597 = vmatprep.subr.bf16.mxu0 0
        %7598 = vmatpush1.bf16.msra.mxu0 %v7567
        %7599 = vmatprep.subr.bf16.mxu0 0
        %7600 = vmatpush2.bf16.msra.mxu0 0
        %7601 = vmatprep.subr.bf16.mxu0 0
        %7602 = vmatpush2.bf16.msra.mxu0 0
        %7603 = vmatprep.subr.bf16.mxu0 0
        %7604 = vmatpush2.bf16.msra.mxu0 0
        %7605 = vmatprep.subr.bf16.mxu0 0
        %7606 = vmatpush2.bf16.msra.mxu0 0
        %7607 = vmatprep.subr.bf16.mxu0 0
        %7608 = vmatpush2.bf16.msra.mxu0 0
        %7609 = vmatprep.subr.bf16.mxu0 0
        %7610 = vmatpush2.bf16.msra.mxu0 0
        %7611 = vmatprep.subr.bf16.mxu0 0
        %7612 = vmatpush2.bf16.msra.mxu0 0
        %7613 = vmatprep.subr.bf16.mxu0 0
        %7614 = vmatpush2.bf16.msra.mxu0 0
        %7615 = vmatprep.mubr.bf16.mxu0 0
        %7616 = vmatmul.mubr.bf16.gmra.mxu0 %v7503
        %v7617 = vpop.f32.mrf.mxu0
        %v7618 = vadd.f32 %v7313, %v7617
        %v7619 = vpop.f32.mrf.mxu0
        %v7620 = vpop.f32.mrf.mxu0
        %v7621 = vadd.f32 %v7316, %v7620
        %v7622 = vpop.f32.mrf.mxu0
        %7623 = vmatprep.mubr.bf16.mxu0 0
        %7624 = vmatmul.mubr.bf16.gmra.mxu0 %v7504
        %v7625 = vpop.f32.mrf.mxu0
        %v7626 = vadd.f32 %v7321, %v7625
        %v7627 = vpop.f32.mrf.mxu0
        %v7628 = vpop.f32.mrf.mxu0
        %v7629 = vadd.f32 %v7324, %v7628
        %v7630 = vpop.f32.mrf.mxu0
        %7631 = vmatprep.mubr.bf16.mxu0 0
        %7632 = vmatmul.mubr.bf16.gmra.mxu0 %v7505
        %v7633 = vpop.f32.mrf.mxu0
        %v7634 = vadd.f32 %v7329, %v7633
        %v7635 = vpop.f32.mrf.mxu0
        %v7636 = vpop.f32.mrf.mxu0
        %v7637 = vadd.f32 %v7332, %v7636
        %v7638 = vpop.f32.mrf.mxu0
        %7639 = vmatprep.mubr.bf16.mxu0 0
        %7640 = vmatmul.mubr.bf16.gmra.mxu0 %v7506
        %v7641 = vpop.f32.mrf.mxu0
        %v7642 = vadd.f32 %v7337, %v7641
        %v7643 = vpop.f32.mrf.mxu0
        %v7644 = vpop.f32.mrf.mxu0
        %v7645 = vadd.f32 %v7340, %v7644
        %v7646 = vpop.f32.mrf.mxu0
        %7647 = vmatprep.mubr.bf16.mxu0 0
        %7648 = vmatmul.mubr.bf16.gmra.mxu0 %v7507
        %v7649 = vpop.f32.mrf.mxu0
        %v7650 = vadd.f32 %v7345, %v7649
        %v7651 = vpop.f32.mrf.mxu0
        %v7652 = vpop.f32.mrf.mxu0
        %v7653 = vadd.f32 %v7348, %v7652
        %v7654 = vpop.f32.mrf.mxu0
        %7655 = vmatprep.mubr.bf16.mxu0 0
        %7656 = vmatmul.mubr.bf16.gmra.mxu0 %v7508
        %v7657 = vpop.f32.mrf.mxu0
        %v7658 = vadd.f32 %v7353, %v7657
        %v7659 = vpop.f32.mrf.mxu0
        %v7660 = vpop.f32.mrf.mxu0
        %v7661 = vadd.f32 %v7356, %v7660
        %v7662 = vpop.f32.mrf.mxu0
        %7663 = vmatprep.mubr.bf16.mxu0 0
        %7664 = vmatmul.mubr.bf16.gmra.mxu0 %v7509
        %v7665 = vpop.f32.mrf.mxu0
        %v7666 = vadd.f32 %v7361, %v7665
        %v7667 = vpop.f32.mrf.mxu0
        %v7668 = vpop.f32.mrf.mxu0
        %v7669 = vadd.f32 %v7364, %v7668
        %v7670 = vpop.f32.mrf.mxu0
        %7671 = vmatprep.mubr.bf16.mxu0 0
        %7672 = vmatmul.mubr.bf16.gmra.mxu0 %v7510
        %v7673 = vpop.f32.mrf.mxu0
        %v7674 = vadd.f32 %v7369, %v7673
        %v7675 = vpop.f32.mrf.mxu0
        %v7676 = vpop.f32.mrf.mxu0
        %v7677 = vadd.f32 %v7372, %v7676
        %v7678 = vpop.f32.mrf.mxu0
        %7679 = vmatprep.mubr.bf16.mxu0 0
        %7680 = vmatmul.mubr.bf16.gmra.mxu0 %v7511
        %v7681 = vpop.f32.mrf.mxu0
        %v7682 = vadd.f32 %v7377, %v7681
        %v7683 = vpop.f32.mrf.mxu0
        %v7684 = vpop.f32.mrf.mxu0
        %v7685 = vadd.f32 %v7380, %v7684
        %v7686 = vpop.f32.mrf.mxu0
        %7687 = vmatprep.mubr.bf16.mxu0 0
        %7688 = vmatmul.mubr.bf16.gmra.mxu0 %v7512
        %v7689 = vpop.f32.mrf.mxu0
        %v7690 = vadd.f32 %v7385, %v7689
        %v7691 = vpop.f32.mrf.mxu0
        %v7692 = vpop.f32.mrf.mxu0
        %v7693 = vadd.f32 %v7388, %v7692
        %v7694 = vpop.f32.mrf.mxu0
        %7695 = vmatprep.mubr.bf16.mxu0 0
        %7696 = vmatmul.mubr.bf16.gmra.mxu0 %v7513
        %v7697 = vpop.f32.mrf.mxu0
        %v7698 = vadd.f32 %v7393, %v7697
        %v7699 = vpop.f32.mrf.mxu0
        %v7700 = vpop.f32.mrf.mxu0
        %v7701 = vadd.f32 %v7396, %v7700
        %v7702 = vpop.f32.mrf.mxu0
        %7703 = vmatprep.mubr.bf16.mxu0 0
        %7704 = vmatmul.mubr.bf16.gmra.mxu0 %v7514
        %v7705 = vpop.f32.mrf.mxu0
        %v7706 = vadd.f32 %v7401, %v7705
        %v7707 = vpop.f32.mrf.mxu0
        %v7708 = vpop.f32.mrf.mxu0
        %v7709 = vadd.f32 %v7404, %v7708
        %v7710 = vpop.f32.mrf.mxu0
        %7711 = vmatprep.mubr.bf16.mxu0 0
        %7712 = vmatmul.mubr.bf16.gmra.mxu0 %v7515
        %v7713 = vpop.f32.mrf.mxu0
        %v7714 = vadd.f32 %v7409, %v7713
        %v7715 = vpop.f32.mrf.mxu0
        %v7716 = vpop.f32.mrf.mxu0
        %v7717 = vadd.f32 %v7412, %v7716
        %v7718 = vpop.f32.mrf.mxu0
        %7719 = vmatprep.mubr.bf16.mxu0 0
        %7720 = vmatmul.mubr.bf16.gmra.mxu0 %v7516
        %v7721 = vpop.f32.mrf.mxu0
        %v7722 = vadd.f32 %v7417, %v7721
        %v7723 = vpop.f32.mrf.mxu0
        %v7724 = vpop.f32.mrf.mxu0
        %v7725 = vadd.f32 %v7420, %v7724
        %v7726 = vpop.f32.mrf.mxu0
        %7727 = vmatprep.mubr.bf16.mxu0 0
        %7728 = vmatmul.mubr.bf16.gmra.mxu0 %v7517
        %v7729 = vpop.f32.mrf.mxu0
        %v7730 = vadd.f32 %v7425, %v7729
        %v7731 = vpop.f32.mrf.mxu0
        %v7732 = vpop.f32.mrf.mxu0
        %v7733 = vadd.f32 %v7428, %v7732
        %v7734 = vpop.f32.mrf.mxu0
        %7735 = vmatprep.mubr.bf16.mxu0 0
        %7736 = vmatmul.mubr.bf16.gmra.mxu0 %v7518
        %v7737 = vpop.f32.mrf.mxu0
        %v7738 = vadd.f32 %v7433, %v7737
        %v7739 = vpop.f32.mrf.mxu0
        %v7740 = vpop.f32.mrf.mxu0
        %v7741 = vadd.f32 %v7436, %v7740
        %v7742 = vpop.f32.mrf.mxu0
        %7743 = vdwg.mxu0
        %v7744 = vld [vmem:[#allocation2] sm:$0xe]
        %v7745 = vld [vmem:[#allocation2 + $0xc] sm:$0xe]
        %v7746 = vld [vmem:[#allocation2 + $0x18] sm:$0xe]
        %v7747 = vld [vmem:[#allocation2 + $0x24] sm:$0xe]
        %v7748 = vld [vmem:[#allocation2 + $0x30] sm:$0xe]
        %v7749 = vld [vmem:[#allocation2 + $0x3c] sm:$0xe]
        %v7750 = vld [vmem:[#allocation2 + $0x48] sm:$0xe]
        %v7751 = vld [vmem:[#allocation2 + $0x54] sm:$0xe]
        %v7752 = vld [vmem:[#allocation2 + $0x60] sm:$0xe]
        %v7753 = vld [vmem:[#allocation2 + $0x6c] sm:$0xe]
        %v7754 = vld [vmem:[#allocation2 + $0x78] sm:$0xe]
        %v7755 = vld [vmem:[#allocation2 + $0x84] sm:$0xe]
        %v7756 = vld [vmem:[#allocation2 + $0x90] sm:$0xe]
        %v7757 = vld [vmem:[#allocation2 + $0x9c] sm:$0xe]
        %v7758 = vld [vmem:[#allocation2 + $0xa8] sm:$0xe]
        %v7759 = vld [vmem:[#allocation2 + $0xb4] sm:$0xe]
        %v7792 = vrot.slane %v7744, 5
        %v7793 = vrot.slane %v7792, 4
        %v7794 = vrot.slane %v6702, 5
        %v7795 = vsel %vm2423, %v7793, %v7794
        %v7796 = vrot.slane %v7794, 4
        %v7797 = vrot.slane %v6749, 5
        %v7798 = vsel %vm2423, %v7796, %v7797
        %v7799 = vrot.slane %v7745, 5
        %v7800 = vrot.slane %v7799, 4
        %v7801 = vrot.slane %v6704, 5
        %v7802 = vsel %vm2423, %v7800, %v7801
        %v7803 = vrot.slane %v7801, 4
        %v7804 = vrot.slane %v6750, 5
        %v7805 = vsel %vm2423, %v7803, %v7804
        %v7806 = vrot.slane %v7746, 5
        %v7807 = vrot.slane %v7806, 4
        %v7808 = vrot.slane %v6706, 5
        %v7809 = vsel %vm2423, %v7807, %v7808
        %v7810 = vrot.slane %v7808, 4
        %v7811 = vrot.slane %v6751, 5
        %v7812 = vsel %vm2423, %v7810, %v7811
        %v7813 = vrot.slane %v7747, 5
        %v7814 = vrot.slane %v7813, 4
        %v7815 = vrot.slane %v6708, 5
        %v7816 = vsel %vm2423, %v7814, %v7815
        %v7817 = vrot.slane %v7815, 4
        %v7818 = vrot.slane %v6752, 5
        %v7819 = vsel %vm2423, %v7817, %v7818
        %v7820 = vrot.slane %v7748, 5
        %v7821 = vrot.slane %v7820, 4
        %v7822 = vrot.slane %v6710, 5
        %v7823 = vsel %vm2423, %v7821, %v7822
        %v7824 = vrot.slane %v7822, 4
        %v7825 = vrot.slane %v6753, 5
        %v7826 = vsel %vm2423, %v7824, %v7825
        %v7827 = vrot.slane %v7749, 5
        %v7828 = vrot.slane %v7827, 4
        %v7829 = vrot.slane %v6712, 5
        %v7830 = vsel %vm2423, %v7828, %v7829
        %v7831 = vrot.slane %v7829, 4
        %v7832 = vrot.slane %v6754, 5
        %v7833 = vsel %vm2423, %v7831, %v7832
        %v7834 = vrot.slane %v7750, 5
        %v7835 = vrot.slane %v7834, 4
        %v7836 = vrot.slane %v6714, 5
        %v7837 = vsel %vm2423, %v7835, %v7836
        %v7838 = vrot.slane %v7836, 4
        %v7839 = vrot.slane %v6755, 5
        %v7840 = vsel %vm2423, %v7838, %v7839
        %v7841 = vrot.slane %v7751, 5
        %v7842 = vrot.slane %v7841, 4
        %v7843 = vrot.slane %v6716, 5
        %v7844 = vsel %vm2423, %v7842, %v7843
        %v7845 = vrot.slane %v7843, 4
        %v7846 = vrot.slane %v6756, 5
        %v7847 = vsel %vm2423, %v7845, %v7846
        %v7848 = vrot.slane %v7752, 5
        %v7849 = vrot.slane %v7848, 4
        %v7850 = vrot.slane %v6718, 5
        %v7851 = vsel %vm2423, %v7849, %v7850
        %v7852 = vrot.slane %v7850, 4
        %v7853 = vrot.slane %v6757, 5
        %v7854 = vsel %vm2423, %v7852, %v7853
        %v7855 = vrot.slane %v7753, 5
        %v7856 = vrot.slane %v7855, 4
        %v7857 = vrot.slane %v6720, 5
        %v7858 = vsel %vm2423, %v7856, %v7857
        %v7859 = vrot.slane %v7857, 4
        %v7860 = vrot.slane %v6758, 5
        %v7861 = vsel %vm2423, %v7859, %v7860
        %v7862 = vrot.slane %v7754, 5
        %v7863 = vrot.slane %v7862, 4
        %v7864 = vrot.slane %v6722, 5
        %v7865 = vsel %vm2423, %v7863, %v7864
        %v7866 = vrot.slane %v7864, 4
        %v7867 = vrot.slane %v6759, 5
        %v7868 = vsel %vm2423, %v7866, %v7867
        %v7869 = vrot.slane %v7755, 5
        %v7870 = vrot.slane %v7869, 4
        %v7871 = vrot.slane %v6724, 5
        %v7872 = vsel %vm2423, %v7870, %v7871
        %v7873 = vrot.slane %v7871, 4
        %v7874 = vrot.slane %v6760, 5
        %v7875 = vsel %vm2423, %v7873, %v7874
        %v7876 = vrot.slane %v7756, 5
        %v7877 = vrot.slane %v7876, 4
        %v7878 = vrot.slane %v6726, 5
        %v7879 = vsel %vm2423, %v7877, %v7878
        %v7880 = vrot.slane %v7878, 4
        %v7881 = vrot.slane %v6761, 5
        %v7882 = vsel %vm2423, %v7880, %v7881
        %v7883 = vrot.slane %v7757, 5
        %v7884 = vrot.slane %v7883, 4
        %v7885 = vrot.slane %v6728, 5
        %v7886 = vsel %vm2423, %v7884, %v7885
        %v7887 = vrot.slane %v7885, 4
        %v7888 = vrot.slane %v6762, 5
        %v7889 = vsel %vm2423, %v7887, %v7888
        %v7890 = vrot.slane %v7758, 5
        %v7891 = vrot.slane %v7890, 4
        %v7892 = vrot.slane %v6730, 5
        %v7893 = vsel %vm2423, %v7891, %v7892
        %v7894 = vrot.slane %v7892, 4
        %v7895 = vrot.slane %v6763, 5
        %v7896 = vsel %vm2423, %v7894, %v7895
        %v7897 = vrot.slane %v7759, 5
        %v7898 = vrot.slane %v7897, 4
        %v7899 = vrot.slane %v6732, 5
        %v7900 = vsel %vm2423, %v7898, %v7899
        %v7901 = vrot.slane %v7899, 4
        %v7902 = vrot.slane %v6764, 5
        %v7903 = vsel %vm2423, %v7901, %v7902
        %s7904 = scalar_lea.vmem [#allocation3], 128
        %v7905 = vld [vmem:[%s7904] sm:$0xf]
        %v7906 = vld [vmem:[%s7904 + $0x4] sm:$0xf]
        %v7907 = vld [vmem:[%s7904 + $0x8] sm:$0xf]
        %v7908 = vld [vmem:[%s7904 + $0xc] sm:$0xf]
        %v7909 = vld [vmem:[%s7904 + $0x10] sm:$0xf]
        %v7910 = vld [vmem:[%s7904 + $0x14] sm:$0xf]
        %v7911 = vld [vmem:[%s7904 + $0x18] sm:$0xf]
        %v7912 = vld [vmem:[%s7904 + $0x1c] sm:$0xf]
        %v7913 = vld [vmem:[%s7904 + $0x20] sm:$0xf]
        %v7914 = vld [vmem:[%s7904 + $0x24] sm:$0xf]
        %v7915 = vld [vmem:[%s7904 + $0x28] sm:$0xf]
        %v7916 = vld [vmem:[%s7904 + $0x2c] sm:$0xf]
        %v7917 = vld [vmem:[%s7904 + $0x30] sm:$0xf]
        %v7918 = vld [vmem:[%s7904 + $0x34] sm:$0xf]
        %v7919 = vld [vmem:[%s7904 + $0x38] sm:$0xf]
        %v7920 = vld [vmem:[%s7904 + $0x3c] sm:$0xf]
        %v7921 = vunpack.c.l.b16 %v7795
        %v7922 = vunpack.c.l.b16 %v7798
        %v7923 = vunpack.c.l.b16 %v7802
        %v7924 = vunpack.c.l.b16 %v7805
        %v7925 = vunpack.c.l.b16 %v7809
        %v7926 = vunpack.c.l.b16 %v7812
        %v7927 = vunpack.c.l.b16 %v7816
        %v7928 = vunpack.c.l.b16 %v7819
        %v7929 = vunpack.c.l.b16 %v7823
        %v7930 = vunpack.c.l.b16 %v7826
        %v7931 = vunpack.c.l.b16 %v7830
        %v7932 = vunpack.c.l.b16 %v7833
        %v7933 = vunpack.c.l.b16 %v7837
        %v7934 = vunpack.c.l.b16 %v7840
        %v7935 = vunpack.c.l.b16 %v7844
        %v7936 = vunpack.c.l.b16 %v7847
        %v7937 = vunpack.c.l.b16 %v7851
        %v7938 = vunpack.c.l.b16 %v7854
        %v7939 = vunpack.c.l.b16 %v7858
        %v7940 = vunpack.c.l.b16 %v7861
        %v7941 = vunpack.c.l.b16 %v7865
        %v7942 = vunpack.c.l.b16 %v7868
        %v7943 = vunpack.c.l.b16 %v7872
        %v7944 = vunpack.c.l.b16 %v7875
        %v7945 = vunpack.c.l.b16 %v7879
        %v7946 = vunpack.c.l.b16 %v7882
        %v7947 = vunpack.c.l.b16 %v7886
        %v7948 = vunpack.c.l.b16 %v7889
        %v7949 = vunpack.c.l.b16 %v7893
        %v7950 = vunpack.c.l.b16 %v7896
        %v7951 = vunpack.c.l.b16 %v7900
        %v7952 = vunpack.c.l.b16 %v7903
        %v7953 = vpack.c.b16 %v7922, %v7921
        %v7954 = vpack.c.b16 %v7924, %v7923
        %v7955 = vpack.c.b16 %v7926, %v7925
        %v7956 = vpack.c.b16 %v7928, %v7927
        %v7957 = vpack.c.b16 %v7930, %v7929
        %v7958 = vpack.c.b16 %v7932, %v7931
        %v7959 = vpack.c.b16 %v7934, %v7933
        %v7960 = vpack.c.b16 %v7936, %v7935
        %v7961 = vpack.c.b16 %v7938, %v7937
        %v7962 = vpack.c.b16 %v7940, %v7939
        %v7963 = vpack.c.b16 %v7942, %v7941
        %v7964 = vpack.c.b16 %v7944, %v7943
        %v7965 = vpack.c.b16 %v7946, %v7945
        %v7966 = vpack.c.b16 %v7948, %v7947
        %v7967 = vpack.c.b16 %v7950, %v7949
        %v7968 = vpack.c.b16 %v7952, %v7951
        %v8001 = vunpack.c.l.b16 %v7905
        %v8002 = vunpack.c.l.b16 %v7906
        %v8003 = vunpack.c.l.b16 %v7907
        %v8004 = vunpack.c.l.b16 %v7908
        %v8005 = vunpack.c.l.b16 %v7909
        %v8006 = vunpack.c.l.b16 %v7910
        %v8007 = vunpack.c.l.b16 %v7911
        %v8008 = vunpack.c.l.b16 %v7912
        %v8009 = vunpack.c.l.b16 %v7913
        %v8010 = vunpack.c.l.b16 %v7914
        %v8011 = vunpack.c.l.b16 %v7915
        %v8012 = vunpack.c.l.b16 %v7916
        %v8013 = vunpack.c.l.b16 %v7917
        %v8014 = vunpack.c.l.b16 %v7918
        %v8015 = vunpack.c.l.b16 %v7919
        %v8016 = vunpack.c.l.b16 %v7920
        %v8017 = vpack.c.b16 %v8002, %v8001
        %v8018 = vpack.c.b16 %v8004, %v8003
        %v8019 = vpack.c.b16 %v8006, %v8005
        %v8020 = vpack.c.b16 %v8008, %v8007
        %v8021 = vpack.c.b16 %v8010, %v8009
        %v8022 = vpack.c.b16 %v8012, %v8011
        %v8023 = vpack.c.b16 %v8014, %v8013
        %v8024 = vpack.c.b16 %v8016, %v8015
        %8033 = vmatprep.subr.bf16.mxu0 0
        %8034 = vmatpush1.bf16.msra.mxu0 %v8024
        %8035 = vmatprep.subr.bf16.mxu0 0
        %8036 = vmatpush1.bf16.msra.mxu0 %v8023
        %8037 = vmatprep.subr.bf16.mxu0 0
        %8038 = vmatpush1.bf16.msra.mxu0 %v8022
        %8039 = vmatprep.subr.bf16.mxu0 0
        %8040 = vmatpush1.bf16.msra.mxu0 %v8021
        %8041 = vmatprep.subr.bf16.mxu0 0
        %8042 = vmatpush1.bf16.msra.mxu0 %v8020
        %8043 = vmatprep.subr.bf16.mxu0 0
        %8044 = vmatpush1.bf16.msra.mxu0 %v8019
        %8045 = vmatprep.subr.bf16.mxu0 0
        %8046 = vmatpush1.bf16.msra.mxu0 %v8018
        %8047 = vmatprep.subr.bf16.mxu0 0
        %8048 = vmatpush1.bf16.msra.mxu0 %v8017
        %8049 = vmatprep.subr.bf16.mxu0 0
        %8050 = vmatpush2.bf16.msra.mxu0 0
        %8051 = vmatprep.subr.bf16.mxu0 0
        %8052 = vmatpush2.bf16.msra.mxu0 0
        %8053 = vmatprep.subr.bf16.mxu0 0
        %8054 = vmatpush2.bf16.msra.mxu0 0
        %8055 = vmatprep.subr.bf16.mxu0 0
        %8056 = vmatpush2.bf16.msra.mxu0 0
        %8057 = vmatprep.subr.bf16.mxu0 0
        %8058 = vmatpush2.bf16.msra.mxu0 0
        %8059 = vmatprep.subr.bf16.mxu0 0
        %8060 = vmatpush2.bf16.msra.mxu0 0
        %8061 = vmatprep.subr.bf16.mxu0 0
        %8062 = vmatpush2.bf16.msra.mxu0 0
        %8063 = vmatprep.subr.bf16.mxu0 0
        %8064 = vmatpush2.bf16.msra.mxu0 0
        %8065 = vmatprep.mubr.bf16.mxu0 0
        %8066 = vmatmul.mubr.bf16.gmra.mxu0 %v7953
        %v8067 = vpop.f32.mrf.mxu0
        %v8068 = vadd.f32 0.0, %v8067
        %v8069 = vpop.f32.mrf.mxu0
        %v8070 = vpop.f32.mrf.mxu0
        %v8071 = vadd.f32 0.0, %v8070
        %v8072 = vpop.f32.mrf.mxu0
        %8073 = vmatprep.mubr.bf16.mxu0 0
        %8074 = vmatmul.mubr.bf16.gmra.mxu0 %v7954
        %v8075 = vpop.f32.mrf.mxu0
        %v8076 = vadd.f32 0.0, %v8075
        %v8077 = vpop.f32.mrf.mxu0
        %v8078 = vpop.f32.mrf.mxu0
        %v8079 = vadd.f32 0.0, %v8078
        %v8080 = vpop.f32.mrf.mxu0
        %8081 = vmatprep.mubr.bf16.mxu0 0
        %8082 = vmatmul.mubr.bf16.gmra.mxu0 %v7955
        %v8083 = vpop.f32.mrf.mxu0
        %v8084 = vadd.f32 0.0, %v8083
        %v8085 = vpop.f32.mrf.mxu0
        %v8086 = vpop.f32.mrf.mxu0
        %v8087 = vadd.f32 0.0, %v8086
        %v8088 = vpop.f32.mrf.mxu0
        %8089 = vmatprep.mubr.bf16.mxu0 0
        %8090 = vmatmul.mubr.bf16.gmra.mxu0 %v7956
        %v8091 = vpop.f32.mrf.mxu0
        %v8092 = vadd.f32 0.0, %v8091
        %v8093 = vpop.f32.mrf.mxu0
        %v8094 = vpop.f32.mrf.mxu0
        %v8095 = vadd.f32 0.0, %v8094
        %v8096 = vpop.f32.mrf.mxu0
        %8097 = vmatprep.mubr.bf16.mxu0 0
        %8098 = vmatmul.mubr.bf16.gmra.mxu0 %v7957
        %v8099 = vpop.f32.mrf.mxu0
        %v8100 = vadd.f32 0.0, %v8099
        %v8101 = vpop.f32.mrf.mxu0
        %v8102 = vpop.f32.mrf.mxu0
        %v8103 = vadd.f32 0.0, %v8102
        %v8104 = vpop.f32.mrf.mxu0
        %8105 = vmatprep.mubr.bf16.mxu0 0
        %8106 = vmatmul.mubr.bf16.gmra.mxu0 %v7958
        %v8107 = vpop.f32.mrf.mxu0
        %v8108 = vadd.f32 0.0, %v8107
        %v8109 = vpop.f32.mrf.mxu0
        %v8110 = vpop.f32.mrf.mxu0
        %v8111 = vadd.f32 0.0, %v8110
        %v8112 = vpop.f32.mrf.mxu0
        %8113 = vmatprep.mubr.bf16.mxu0 0
        %8114 = vmatmul.mubr.bf16.gmra.mxu0 %v7959
        %v8115 = vpop.f32.mrf.mxu0
        %v8116 = vadd.f32 0.0, %v8115
        %v8117 = vpop.f32.mrf.mxu0
        %v8118 = vpop.f32.mrf.mxu0
        %v8119 = vadd.f32 0.0, %v8118
        %v8120 = vpop.f32.mrf.mxu0
        %8121 = vmatprep.mubr.bf16.mxu0 0
        %8122 = vmatmul.mubr.bf16.gmra.mxu0 %v7960
        %v8123 = vpop.f32.mrf.mxu0
        %v8124 = vadd.f32 0.0, %v8123
        %v8125 = vpop.f32.mrf.mxu0
        %v8126 = vpop.f32.mrf.mxu0
        %v8127 = vadd.f32 0.0, %v8126
        %v8128 = vpop.f32.mrf.mxu0
        %8129 = vmatprep.mubr.bf16.mxu0 0
        %8130 = vmatmul.mubr.bf16.gmra.mxu0 %v7961
        %v8131 = vpop.f32.mrf.mxu0
        %v8132 = vadd.f32 0.0, %v8131
        %v8133 = vpop.f32.mrf.mxu0
        %v8134 = vpop.f32.mrf.mxu0
        %v8135 = vadd.f32 0.0, %v8134
        %v8136 = vpop.f32.mrf.mxu0
        %8137 = vmatprep.mubr.bf16.mxu0 0
        %8138 = vmatmul.mubr.bf16.gmra.mxu0 %v7962
        %v8139 = vpop.f32.mrf.mxu0
        %v8140 = vadd.f32 0.0, %v8139
        %v8141 = vpop.f32.mrf.mxu0
        %v8142 = vpop.f32.mrf.mxu0
        %v8143 = vadd.f32 0.0, %v8142
        %v8144 = vpop.f32.mrf.mxu0
        %8145 = vmatprep.mubr.bf16.mxu0 0
        %8146 = vmatmul.mubr.bf16.gmra.mxu0 %v7963
        %v8147 = vpop.f32.mrf.mxu0
        %v8148 = vadd.f32 0.0, %v8147
        %v8149 = vpop.f32.mrf.mxu0
        %v8150 = vpop.f32.mrf.mxu0
        %v8151 = vadd.f32 0.0, %v8150
        %v8152 = vpop.f32.mrf.mxu0
        %8153 = vmatprep.mubr.bf16.mxu0 0
        %8154 = vmatmul.mubr.bf16.gmra.mxu0 %v7964
        %v8155 = vpop.f32.mrf.mxu0
        %v8156 = vadd.f32 0.0, %v8155
        %v8157 = vpop.f32.mrf.mxu0
        %v8158 = vpop.f32.mrf.mxu0
        %v8159 = vadd.f32 0.0, %v8158
        %v8160 = vpop.f32.mrf.mxu0
        %8161 = vmatprep.mubr.bf16.mxu0 0
        %8162 = vmatmul.mubr.bf16.gmra.mxu0 %v7965
        %v8163 = vpop.f32.mrf.mxu0
        %v8164 = vadd.f32 0.0, %v8163
        %v8165 = vpop.f32.mrf.mxu0
        %v8166 = vpop.f32.mrf.mxu0
        %v8167 = vadd.f32 0.0, %v8166
        %v8168 = vpop.f32.mrf.mxu0
        %8169 = vmatprep.mubr.bf16.mxu0 0
        %8170 = vmatmul.mubr.bf16.gmra.mxu0 %v7966
        %v8171 = vpop.f32.mrf.mxu0
        %v8172 = vadd.f32 0.0, %v8171
        %v8173 = vpop.f32.mrf.mxu0
        %v8174 = vpop.f32.mrf.mxu0
        %v8175 = vadd.f32 0.0, %v8174
        %v8176 = vpop.f32.mrf.mxu0
        %8177 = vmatprep.mubr.bf16.mxu0 0
        %8178 = vmatmul.mubr.bf16.gmra.mxu0 %v7967
        %v8179 = vpop.f32.mrf.mxu0
        %v8180 = vadd.f32 0.0, %v8179
        %v8181 = vpop.f32.mrf.mxu0
        %v8182 = vpop.f32.mrf.mxu0
        %v8183 = vadd.f32 0.0, %v8182
        %v8184 = vpop.f32.mrf.mxu0
        %8185 = vmatprep.mubr.bf16.mxu0 0
        %8186 = vmatmul.mubr.bf16.gmra.mxu0 %v7968
        %v8187 = vpop.f32.mrf.mxu0
        %v8188 = vadd.f32 0.0, %v8187
        %v8189 = vpop.f32.mrf.mxu0
        %v8190 = vpop.f32.mrf.mxu0
        %v8191 = vadd.f32 0.0, %v8190
        %v8192 = vpop.f32.mrf.mxu0
        %8193 = vdwg.mxu0
        %v8194 = vadd.f32 %v7618, %v8068
        %v8195 = vadd.f32 %v7621, %v8071
        %v8196 = vadd.f32 %v7626, %v8076
        %v8197 = vadd.f32 %v7629, %v8079
        %v8198 = vadd.f32 %v7634, %v8084
        %v8199 = vadd.f32 %v7637, %v8087
        %v8200 = vadd.f32 %v7642, %v8092
        %v8201 = vadd.f32 %v7645, %v8095
        %v8202 = vadd.f32 %v7650, %v8100
        %v8203 = vadd.f32 %v7653, %v8103
        %v8204 = vadd.f32 %v7658, %v8108
        %v8205 = vadd.f32 %v7661, %v8111
        %v8206 = vadd.f32 %v7666, %v8116
        %v8207 = vadd.f32 %v7669, %v8119
        %v8208 = vadd.f32 %v7674, %v8124
        %v8209 = vadd.f32 %v7677, %v8127
        %v8210 = vadd.f32 %v7682, %v8132
        %v8211 = vadd.f32 %v7685, %v8135
        %v8212 = vadd.f32 %v7690, %v8140
        %v8213 = vadd.f32 %v7693, %v8143
        %v8214 = vadd.f32 %v7698, %v8148
        %v8215 = vadd.f32 %v7701, %v8151
        %v8216 = vadd.f32 %v7706, %v8156
        %v8217 = vadd.f32 %v7709, %v8159
        %v8218 = vadd.f32 %v7714, %v8164
        %v8219 = vadd.f32 %v7717, %v8167
        %v8220 = vadd.f32 %v7722, %v8172
        %v8221 = vadd.f32 %v7725, %v8175
        %v8222 = vadd.f32 %v7730, %v8180
        %v8223 = vadd.f32 %v7733, %v8183
        %v8224 = vadd.f32 %v7738, %v8188
        %v8225 = vadd.f32 %v7741, %v8191
        %v8226 = vld [vmem:[%s1209] sm:$0xf]
        %v8227 = vld [vmem:[%s1209 + $0x4] sm:$0xf]
        %v8228 = vld [vmem:[%s1209 + $0xc] sm:$0xf]
        %v8229 = vld [vmem:[%s1209 + $0x10] sm:$0xf]
        %v8230 = vld [vmem:[%s1209 + $0x18] sm:$0xf]
        %v8231 = vld [vmem:[%s1209 + $0x1c] sm:$0xf]
        %v8232 = vld [vmem:[%s1209 + $0x24] sm:$0xf]
        %v8233 = vld [vmem:[%s1209 + $0x28] sm:$0xf]
        %v8234 = vld [vmem:[%s1209 + $0x30] sm:$0xf]
        %v8235 = vld [vmem:[%s1209 + $0x34] sm:$0xf]
        %v8236 = vld [vmem:[%s1209 + $0x3c] sm:$0xf]
        %v8237 = vld [vmem:[%s1209 + $0x40] sm:$0xf]
        %v8238 = vld [vmem:[%s1209 + $0x48] sm:$0xf]
        %v8239 = vld [vmem:[%s1209 + $0x4c] sm:$0xf]
        %v8240 = vld [vmem:[%s1209 + $0x54] sm:$0xf]
        %v8241 = vld [vmem:[%s1209 + $0x58] sm:$0xf]
        %v8242 = vld [vmem:[%s1209 + $0x60] sm:$0xf]
        %v8243 = vld [vmem:[%s1209 + $0x64] sm:$0xf]
        %v8244 = vld [vmem:[%s1209 + $0x6c] sm:$0xf]
        %v8245 = vld [vmem:[%s1209 + $0x70] sm:$0xf]
        %v8246 = vld [vmem:[%s1209 + $0x78] sm:$0xf]
        %v8247 = vld [vmem:[%s1209 + $0x7c] sm:$0xf]
        %v8248 = vld [vmem:[%s1209 + $0x84] sm:$0xf]
        %v8249 = vld [vmem:[%s1209 + $0x88] sm:$0xf]
        %v8250 = vld [vmem:[%s1209 + $0x90] sm:$0xf]
        %v8251 = vld [vmem:[%s1209 + $0x94] sm:$0xf]
        %v8252 = vld [vmem:[%s1209 + $0x9c] sm:$0xf]
        %v8253 = vld [vmem:[%s1209 + $0xa0] sm:$0xf]
        %v8254 = vld [vmem:[%s1209 + $0xa8] sm:$0xf]
        %v8255 = vld [vmem:[%s1209 + $0xac] sm:$0xf]
        %v8256 = vld [vmem:[%s1209 + $0xb4] sm:$0xf]
        %v8257 = vld [vmem:[%s1209 + $0xb8] sm:$0xf]
        %s8258 = scalar_lea.vmem [#allocation3], 192
        %v8259 = vld [vmem:[%s8258] sm:$0xf]
        %v8260 = vld [vmem:[%s8258 + $0x4] sm:$0xf]
        %v8261 = vld [vmem:[%s8258 + $0x8] sm:$0xf]
        %v8262 = vld [vmem:[%s8258 + $0xc] sm:$0xf]
        %v8263 = vld [vmem:[%s8258 + $0x10] sm:$0xf]
        %v8264 = vld [vmem:[%s8258 + $0x14] sm:$0xf]
        %v8265 = vld [vmem:[%s8258 + $0x18] sm:$0xf]
        %v8266 = vld [vmem:[%s8258 + $0x1c] sm:$0xf]
        %v8267 = vld [vmem:[%s8258 + $0x20] sm:$0xf]
        %v8268 = vld [vmem:[%s8258 + $0x24] sm:$0xf]
        %v8269 = vld [vmem:[%s8258 + $0x28] sm:$0xf]
        %v8270 = vld [vmem:[%s8258 + $0x2c] sm:$0xf]
        %v8271 = vld [vmem:[%s8258 + $0x30] sm:$0xf]
        %v8272 = vld [vmem:[%s8258 + $0x34] sm:$0xf]
        %v8273 = vld [vmem:[%s8258 + $0x38] sm:$0xf]
        %v8274 = vld [vmem:[%s8258 + $0x3c] sm:$0xf]
        %v8307 = vunpack.c.l.b16 %v8226
        %v8308 = vunpack.c.l.b16 %v8227
        %v8309 = vunpack.c.l.b16 %v8228
        %v8310 = vunpack.c.l.b16 %v8229
        %v8311 = vunpack.c.l.b16 %v8230
        %v8312 = vunpack.c.l.b16 %v8231
        %v8313 = vunpack.c.l.b16 %v8232
        %v8314 = vunpack.c.l.b16 %v8233
        %v8315 = vunpack.c.l.b16 %v8234
        %v8316 = vunpack.c.l.b16 %v8235
        %v8317 = vunpack.c.l.b16 %v8236
        %v8318 = vunpack.c.l.b16 %v8237
        %v8319 = vunpack.c.l.b16 %v8238
        %v8320 = vunpack.c.l.b16 %v8239
        %v8321 = vunpack.c.l.b16 %v8240
        %v8322 = vunpack.c.l.b16 %v8241
        %v8323 = vunpack.c.l.b16 %v8242
        %v8324 = vunpack.c.l.b16 %v8243
        %v8325 = vunpack.c.l.b16 %v8244
        %v8326 = vunpack.c.l.b16 %v8245
        %v8327 = vunpack.c.l.b16 %v8246
        %v8328 = vunpack.c.l.b16 %v8247
        %v8329 = vunpack.c.l.b16 %v8248
        %v8330 = vunpack.c.l.b16 %v8249
        %v8331 = vunpack.c.l.b16 %v8250
        %v8332 = vunpack.c.l.b16 %v8251
        %v8333 = vunpack.c.l.b16 %v8252
        %v8334 = vunpack.c.l.b16 %v8253
        %v8335 = vunpack.c.l.b16 %v8254
        %v8336 = vunpack.c.l.b16 %v8255
        %v8337 = vunpack.c.l.b16 %v8256
        %v8338 = vunpack.c.l.b16 %v8257
        %v8339 = vpack.c.b16 %v8308, %v8307
        %v8340 = vpack.c.b16 %v8310, %v8309
        %v8341 = vpack.c.b16 %v8312, %v8311
        %v8342 = vpack.c.b16 %v8314, %v8313
        %v8343 = vpack.c.b16 %v8316, %v8315
        %v8344 = vpack.c.b16 %v8318, %v8317
        %v8345 = vpack.c.b16 %v8320, %v8319
        %v8346 = vpack.c.b16 %v8322, %v8321
        %v8347 = vpack.c.b16 %v8324, %v8323
        %v8348 = vpack.c.b16 %v8326, %v8325
        %v8349 = vpack.c.b16 %v8328, %v8327
        %v8350 = vpack.c.b16 %v8330, %v8329
        %v8351 = vpack.c.b16 %v8332, %v8331
        %v8352 = vpack.c.b16 %v8334, %v8333
        %v8353 = vpack.c.b16 %v8336, %v8335
        %v8354 = vpack.c.b16 %v8338, %v8337
        %v8387 = vunpack.c.l.b16 %v8259
        %v8388 = vunpack.c.l.b16 %v8260
        %v8389 = vunpack.c.l.b16 %v8261
        %v8390 = vunpack.c.l.b16 %v8262
        %v8391 = vunpack.c.l.b16 %v8263
        %v8392 = vunpack.c.l.b16 %v8264
        %v8393 = vunpack.c.l.b16 %v8265
        %v8394 = vunpack.c.l.b16 %v8266
        %v8395 = vunpack.c.l.b16 %v8267
        %v8396 = vunpack.c.l.b16 %v8268
        %v8397 = vunpack.c.l.b16 %v8269
        %v8398 = vunpack.c.l.b16 %v8270
        %v8399 = vunpack.c.l.b16 %v8271
        %v8400 = vunpack.c.l.b16 %v8272
        %v8401 = vunpack.c.l.b16 %v8273
        %v8402 = vunpack.c.l.b16 %v8274
        %v8403 = vpack.c.b16 %v8388, %v8387
        %v8404 = vpack.c.b16 %v8390, %v8389
        %v8405 = vpack.c.b16 %v8392, %v8391
        %v8406 = vpack.c.b16 %v8394, %v8393
        %v8407 = vpack.c.b16 %v8396, %v8395
        %v8408 = vpack.c.b16 %v8398, %v8397
        %v8409 = vpack.c.b16 %v8400, %v8399
        %v8410 = vpack.c.b16 %v8402, %v8401
        %8419 = vmatprep.subr.bf16.mxu0 0
        %8420 = vmatpush1.bf16.msra.mxu0 %v8410
        %8421 = vmatprep.subr.bf16.mxu0 0
        %8422 = vmatpush1.bf16.msra.mxu0 %v8409
        %8423 = vmatprep.subr.bf16.mxu0 0
        %8424 = vmatpush1.bf16.msra.mxu0 %v8408
        %8425 = vmatprep.subr.bf16.mxu0 0
        %8426 = vmatpush1.bf16.msra.mxu0 %v8407
        %8427 = vmatprep.subr.bf16.mxu0 0
        %8428 = vmatpush1.bf16.msra.mxu0 %v8406
        %8429 = vmatprep.subr.bf16.mxu0 0
        %8430 = vmatpush1.bf16.msra.mxu0 %v8405
        %8431 = vmatprep.subr.bf16.mxu0 0
        %8432 = vmatpush1.bf16.msra.mxu0 %v8404
        %8433 = vmatprep.subr.bf16.mxu0 0
        %8434 = vmatpush1.bf16.msra.mxu0 %v8403
        %8435 = vmatprep.subr.bf16.mxu0 0
        %8436 = vmatpush2.bf16.msra.mxu0 0
        %8437 = vmatprep.subr.bf16.mxu0 0
        %8438 = vmatpush2.bf16.msra.mxu0 0
        %8439 = vmatprep.subr.bf16.mxu0 0
        %8440 = vmatpush2.bf16.msra.mxu0 0
        %8441 = vmatprep.subr.bf16.mxu0 0
        %8442 = vmatpush2.bf16.msra.mxu0 0
        %8443 = vmatprep.subr.bf16.mxu0 0
        %8444 = vmatpush2.bf16.msra.mxu0 0
        %8445 = vmatprep.subr.bf16.mxu0 0
        %8446 = vmatpush2.bf16.msra.mxu0 0
        %8447 = vmatprep.subr.bf16.mxu0 0
        %8448 = vmatpush2.bf16.msra.mxu0 0
        %8449 = vmatprep.subr.bf16.mxu0 0
        %8450 = vmatpush2.bf16.msra.mxu0 0
        %8451 = vmatprep.mubr.bf16.mxu0 0
        %8452 = vmatmul.mubr.bf16.gmra.mxu0 %v8339
        %v8453 = vpop.f32.mrf.mxu0
        %v8454 = vadd.f32 0.0, %v8453
        %v8455 = vpop.f32.mrf.mxu0
        %v8456 = vpop.f32.mrf.mxu0
        %v8457 = vadd.f32 0.0, %v8456
        %v8458 = vpop.f32.mrf.mxu0
        %8459 = vmatprep.mubr.bf16.mxu0 0
        %8460 = vmatmul.mubr.bf16.gmra.mxu0 %v8340
        %v8461 = vpop.f32.mrf.mxu0
        %v8462 = vadd.f32 0.0, %v8461
        %v8463 = vpop.f32.mrf.mxu0
        %v8464 = vpop.f32.mrf.mxu0
        %v8465 = vadd.f32 0.0, %v8464
        %v8466 = vpop.f32.mrf.mxu0
        %8467 = vmatprep.mubr.bf16.mxu0 0
        %8468 = vmatmul.mubr.bf16.gmra.mxu0 %v8341
        %v8469 = vpop.f32.mrf.mxu0
        %v8470 = vadd.f32 0.0, %v8469
        %v8471 = vpop.f32.mrf.mxu0
        %v8472 = vpop.f32.mrf.mxu0
        %v8473 = vadd.f32 0.0, %v8472
        %v8474 = vpop.f32.mrf.mxu0
        %8475 = vmatprep.mubr.bf16.mxu0 0
        %8476 = vmatmul.mubr.bf16.gmra.mxu0 %v8342
        %v8477 = vpop.f32.mrf.mxu0
        %v8478 = vadd.f32 0.0, %v8477
        %v8479 = vpop.f32.mrf.mxu0
        %v8480 = vpop.f32.mrf.mxu0
        %v8481 = vadd.f32 0.0, %v8480
        %v8482 = vpop.f32.mrf.mxu0
        %8483 = vmatprep.mubr.bf16.mxu0 0
        %8484 = vmatmul.mubr.bf16.gmra.mxu0 %v8343
        %v8485 = vpop.f32.mrf.mxu0
        %v8486 = vadd.f32 0.0, %v8485
        %v8487 = vpop.f32.mrf.mxu0
        %v8488 = vpop.f32.mrf.mxu0
        %v8489 = vadd.f32 0.0, %v8488
        %v8490 = vpop.f32.mrf.mxu0
        %8491 = vmatprep.mubr.bf16.mxu0 0
        %8492 = vmatmul.mubr.bf16.gmra.mxu0 %v8344
        %v8493 = vpop.f32.mrf.mxu0
        %v8494 = vadd.f32 0.0, %v8493
        %v8495 = vpop.f32.mrf.mxu0
        %v8496 = vpop.f32.mrf.mxu0
        %v8497 = vadd.f32 0.0, %v8496
        %v8498 = vpop.f32.mrf.mxu0
        %8499 = vmatprep.mubr.bf16.mxu0 0
        %8500 = vmatmul.mubr.bf16.gmra.mxu0 %v8345
        %v8501 = vpop.f32.mrf.mxu0
        %v8502 = vadd.f32 0.0, %v8501
        %v8503 = vpop.f32.mrf.mxu0
        %v8504 = vpop.f32.mrf.mxu0
        %v8505 = vadd.f32 0.0, %v8504
        %v8506 = vpop.f32.mrf.mxu0
        %8507 = vmatprep.mubr.bf16.mxu0 0
        %8508 = vmatmul.mubr.bf16.gmra.mxu0 %v8346
        %v8509 = vpop.f32.mrf.mxu0
        %v8510 = vadd.f32 0.0, %v8509
        %v8511 = vpop.f32.mrf.mxu0
        %v8512 = vpop.f32.mrf.mxu0
        %v8513 = vadd.f32 0.0, %v8512
        %v8514 = vpop.f32.mrf.mxu0
        %8515 = vmatprep.mubr.bf16.mxu0 0
        %8516 = vmatmul.mubr.bf16.gmra.mxu0 %v8347
        %v8517 = vpop.f32.mrf.mxu0
        %v8518 = vadd.f32 0.0, %v8517
        %v8519 = vpop.f32.mrf.mxu0
        %v8520 = vpop.f32.mrf.mxu0
        %v8521 = vadd.f32 0.0, %v8520
        %v8522 = vpop.f32.mrf.mxu0
        %8523 = vmatprep.mubr.bf16.mxu0 0
        %8524 = vmatmul.mubr.bf16.gmra.mxu0 %v8348
        %v8525 = vpop.f32.mrf.mxu0
        %v8526 = vadd.f32 0.0, %v8525
        %v8527 = vpop.f32.mrf.mxu0
        %v8528 = vpop.f32.mrf.mxu0
        %v8529 = vadd.f32 0.0, %v8528
        %v8530 = vpop.f32.mrf.mxu0
        %8531 = vmatprep.mubr.bf16.mxu0 0
        %8532 = vmatmul.mubr.bf16.gmra.mxu0 %v8349
        %v8533 = vpop.f32.mrf.mxu0
        %v8534 = vadd.f32 0.0, %v8533
        %v8535 = vpop.f32.mrf.mxu0
        %v8536 = vpop.f32.mrf.mxu0
        %v8537 = vadd.f32 0.0, %v8536
        %v8538 = vpop.f32.mrf.mxu0
        %8539 = vmatprep.mubr.bf16.mxu0 0
        %8540 = vmatmul.mubr.bf16.gmra.mxu0 %v8350
        %v8541 = vpop.f32.mrf.mxu0
        %v8542 = vadd.f32 0.0, %v8541
        %v8543 = vpop.f32.mrf.mxu0
        %v8544 = vpop.f32.mrf.mxu0
        %v8545 = vadd.f32 0.0, %v8544
        %v8546 = vpop.f32.mrf.mxu0
        %8547 = vmatprep.mubr.bf16.mxu0 0
        %8548 = vmatmul.mubr.bf16.gmra.mxu0 %v8351
        %v8549 = vpop.f32.mrf.mxu0
        %v8550 = vadd.f32 0.0, %v8549
        %v8551 = vpop.f32.mrf.mxu0
        %v8552 = vpop.f32.mrf.mxu0
        %v8553 = vadd.f32 0.0, %v8552
        %v8554 = vpop.f32.mrf.mxu0
        %8555 = vmatprep.mubr.bf16.mxu0 0
        %8556 = vmatmul.mubr.bf16.gmra.mxu0 %v8352
        %v8557 = vpop.f32.mrf.mxu0
        %v8558 = vadd.f32 0.0, %v8557
        %v8559 = vpop.f32.mrf.mxu0
        %v8560 = vpop.f32.mrf.mxu0
        %v8561 = vadd.f32 0.0, %v8560
        %v8562 = vpop.f32.mrf.mxu0
        %8563 = vmatprep.mubr.bf16.mxu0 0
        %8564 = vmatmul.mubr.bf16.gmra.mxu0 %v8353
        %v8565 = vpop.f32.mrf.mxu0
        %v8566 = vadd.f32 0.0, %v8565
        %v8567 = vpop.f32.mrf.mxu0
        %v8568 = vpop.f32.mrf.mxu0
        %v8569 = vadd.f32 0.0, %v8568
        %v8570 = vpop.f32.mrf.mxu0
        %8571 = vmatprep.mubr.bf16.mxu0 0
        %8572 = vmatmul.mubr.bf16.gmra.mxu0 %v8354
        %v8573 = vpop.f32.mrf.mxu0
        %v8574 = vadd.f32 0.0, %v8573
        %v8575 = vpop.f32.mrf.mxu0
        %v8576 = vpop.f32.mrf.mxu0
        %v8577 = vadd.f32 0.0, %v8576
        %v8578 = vpop.f32.mrf.mxu0
        %8579 = vdwg.mxu0
        %v8580 = vadd.f32 %v8194, %v8454
        %v8581 = vadd.f32 %v8195, %v8457
        %v8582 = vadd.f32 %v8196, %v8462
        %v8583 = vadd.f32 %v8197, %v8465
        %v8584 = vadd.f32 %v8198, %v8470
        %v8585 = vadd.f32 %v8199, %v8473
        %v8586 = vadd.f32 %v8200, %v8478
        %v8587 = vadd.f32 %v8201, %v8481
        %v8588 = vadd.f32 %v8202, %v8486
        %v8589 = vadd.f32 %v8203, %v8489
        %v8590 = vadd.f32 %v8204, %v8494
        %v8591 = vadd.f32 %v8205, %v8497
        %v8592 = vadd.f32 %v8206, %v8502
        %v8593 = vadd.f32 %v8207, %v8505
        %v8594 = vadd.f32 %v8208, %v8510
        %v8595 = vadd.f32 %v8209, %v8513
        %v8596 = vadd.f32 %v8210, %v8518
        %v8597 = vadd.f32 %v8211, %v8521
        %v8598 = vadd.f32 %v8212, %v8526
        %v8599 = vadd.f32 %v8213, %v8529
        %v8600 = vadd.f32 %v8214, %v8534
        %v8601 = vadd.f32 %v8215, %v8537
        %v8602 = vadd.f32 %v8216, %v8542
        %v8603 = vadd.f32 %v8217, %v8545
        %v8604 = vadd.f32 %v8218, %v8550
        %v8605 = vadd.f32 %v8219, %v8553
        %v8606 = vadd.f32 %v8220, %v8558
        %v8607 = vadd.f32 %v8221, %v8561
        %v8608 = vadd.f32 %v8222, %v8566
        %v8609 = vadd.f32 %v8223, %v8569
        %v8610 = vadd.f32 %v8224, %v8574
        %v8611 = vadd.f32 %v8225, %v8577
        %v8612 = vld [vmem:[%s1209] sm:$0xf]
        %v8613 = vld [vmem:[%s1209 + $0x4] sm:$0xf]
        %v8614 = vld [vmem:[%s1209 + $0x8] sm:$0x1]
        %v8615 = vld [vmem:[%s1209 + $0xc] sm:$0xf]
        %v8616 = vld [vmem:[%s1209 + $0x10] sm:$0xf]
        %v8617 = vld [vmem:[%s1209 + $0x14] sm:$0x1]
        %v8618 = vld [vmem:[%s1209 + $0x18] sm:$0xf]
        %v8619 = vld [vmem:[%s1209 + $0x1c] sm:$0xf]
        %v8620 = vld [vmem:[%s1209 + $0x20] sm:$0x1]
        %v8621 = vld [vmem:[%s1209 + $0x24] sm:$0xf]
        %v8622 = vld [vmem:[%s1209 + $0x28] sm:$0xf]
        %v8623 = vld [vmem:[%s1209 + $0x2c] sm:$0x1]
        %v8624 = vld [vmem:[%s1209 + $0x30] sm:$0xf]
        %v8625 = vld [vmem:[%s1209 + $0x34] sm:$0xf]
        %v8626 = vld [vmem:[%s1209 + $0x38] sm:$0x1]
        %v8627 = vld [vmem:[%s1209 + $0x3c] sm:$0xf]
        %v8628 = vld [vmem:[%s1209 + $0x40] sm:$0xf]
        %v8629 = vld [vmem:[%s1209 + $0x44] sm:$0x1]
        %v8630 = vld [vmem:[%s1209 + $0x48] sm:$0xf]
        %v8631 = vld [vmem:[%s1209 + $0x4c] sm:$0xf]
        %v8632 = vld [vmem:[%s1209 + $0x50] sm:$0x1]
        %v8633 = vld [vmem:[%s1209 + $0x54] sm:$0xf]
        %v8634 = vld [vmem:[%s1209 + $0x58] sm:$0xf]
        %v8635 = vld [vmem:[%s1209 + $0x5c] sm:$0x1]
        %v8636 = vld [vmem:[%s1209 + $0x60] sm:$0xf]
        %v8637 = vld [vmem:[%s1209 + $0x64] sm:$0xf]
        %v8638 = vld [vmem:[%s1209 + $0x68] sm:$0x1]
        %v8639 = vld [vmem:[%s1209 + $0x6c] sm:$0xf]
        %v8640 = vld [vmem:[%s1209 + $0x70] sm:$0xf]
        %v8641 = vld [vmem:[%s1209 + $0x74] sm:$0x1]
        %v8642 = vld [vmem:[%s1209 + $0x78] sm:$0xf]
        %v8643 = vld [vmem:[%s1209 + $0x7c] sm:$0xf]
        %v8644 = vld [vmem:[%s1209 + $0x80] sm:$0x1]
        %v8645 = vld [vmem:[%s1209 + $0x84] sm:$0xf]
        %v8646 = vld [vmem:[%s1209 + $0x88] sm:$0xf]
        %v8647 = vld [vmem:[%s1209 + $0x8c] sm:$0x1]
        %v8648 = vld [vmem:[%s1209 + $0x90] sm:$0xf]
        %v8649 = vld [vmem:[%s1209 + $0x94] sm:$0xf]
        %v8650 = vld [vmem:[%s1209 + $0x98] sm:$0x1]
        %v8651 = vld [vmem:[%s1209 + $0x9c] sm:$0xf]
        %v8652 = vld [vmem:[%s1209 + $0xa0] sm:$0xf]
        %v8653 = vld [vmem:[%s1209 + $0xa4] sm:$0x1]
        %v8654 = vld [vmem:[%s1209 + $0xa8] sm:$0xf]
        %v8655 = vld [vmem:[%s1209 + $0xac] sm:$0xf]
        %v8656 = vld [vmem:[%s1209 + $0xb0] sm:$0x1]
        %v8657 = vld [vmem:[%s1209 + $0xb4] sm:$0xf]
        %v8658 = vld [vmem:[%s1209 + $0xb8] sm:$0xf]
        %v8659 = vld [vmem:[%s1209 + $0xbc] sm:$0x1]
        %v8661 = vshrl.u32 %v8612, 16
        %v8663 = vrot.slane %v8661, 4
        %v8664 = vshll.u32 %v8612, 16
        %v8666 = vrot.slane %v8664, 5
        %v8667 = vor.u32 %v8663, %v8666
        %v8668 = vrot.slane %v8667, 4
        %v8670 = vshll.u32 %v8613, 16
        %v8672 = vrot.slane %v8670, 5
        %v8673 = vsel %vm1393, %v8668, %v8672
        %v8674 = vshrl.u32 %v8613, 16
        %v8676 = vrot.slane %v8674, 4
        %v8677 = vor.u32 %v8676, %v8672
        %v8678 = vrot.slane %v8677, 4
        %v8680 = vshll.u32 %v8614, 16
        %v8682 = vrot.slane %v8680, 5
        %v8683 = vsel %vm1393, %v8678, %v8682
        %v8685 = vshrl.u32 %v8615, 16
        %v8687 = vrot.slane %v8685, 4
        %v8688 = vshll.u32 %v8615, 16
        %v8690 = vrot.slane %v8688, 5
        %v8691 = vor.u32 %v8687, %v8690
        %v8692 = vrot.slane %v8691, 4
        %v8694 = vshll.u32 %v8616, 16
        %v8696 = vrot.slane %v8694, 5
        %v8697 = vsel %vm1393, %v8692, %v8696
        %v8698 = vshrl.u32 %v8616, 16
        %v8700 = vrot.slane %v8698, 4
        %v8701 = vor.u32 %v8700, %v8696
        %v8702 = vrot.slane %v8701, 4
        %v8704 = vshll.u32 %v8617, 16
        %v8706 = vrot.slane %v8704, 5
        %v8707 = vsel %vm1393, %v8702, %v8706
        %v8709 = vshrl.u32 %v8618, 16
        %v8711 = vrot.slane %v8709, 4
        %v8712 = vshll.u32 %v8618, 16
        %v8714 = vrot.slane %v8712, 5
        %v8715 = vor.u32 %v8711, %v8714
        %v8716 = vrot.slane %v8715, 4
        %v8718 = vshll.u32 %v8619, 16
        %v8720 = vrot.slane %v8718, 5
        %v8721 = vsel %vm1393, %v8716, %v8720
        %v8722 = vshrl.u32 %v8619, 16
        %v8724 = vrot.slane %v8722, 4
        %v8725 = vor.u32 %v8724, %v8720
        %v8726 = vrot.slane %v8725, 4
        %v8728 = vshll.u32 %v8620, 16
        %v8730 = vrot.slane %v8728, 5
        %v8731 = vsel %vm1393, %v8726, %v8730
        %v8733 = vshrl.u32 %v8621, 16
        %v8735 = vrot.slane %v8733, 4
        %v8736 = vshll.u32 %v8621, 16
        %v8738 = vrot.slane %v8736, 5
        %v8739 = vor.u32 %v8735, %v8738
        %v8740 = vrot.slane %v8739, 4
        %v8742 = vshll.u32 %v8622, 16
        %v8744 = vrot.slane %v8742, 5
        %v8745 = vsel %vm1393, %v8740, %v8744
        %v8746 = vshrl.u32 %v8622, 16
        %v8748 = vrot.slane %v8746, 4
        %v8749 = vor.u32 %v8748, %v8744
        %v8750 = vrot.slane %v8749, 4
        %v8752 = vshll.u32 %v8623, 16
        %v8754 = vrot.slane %v8752, 5
        %v8755 = vsel %vm1393, %v8750, %v8754
        %v8757 = vshrl.u32 %v8624, 16
        %v8759 = vrot.slane %v8757, 4
        %v8760 = vshll.u32 %v8624, 16
        %v8762 = vrot.slane %v8760, 5
        %v8763 = vor.u32 %v8759, %v8762
        %v8764 = vrot.slane %v8763, 4
        %v8766 = vshll.u32 %v8625, 16
        %v8768 = vrot.slane %v8766, 5
        %v8769 = vsel %vm1393, %v8764, %v8768
        %v8770 = vshrl.u32 %v8625, 16
        %v8772 = vrot.slane %v8770, 4
        %v8773 = vor.u32 %v8772, %v8768
        %v8774 = vrot.slane %v8773, 4
        %v8776 = vshll.u32 %v8626, 16
        %v8778 = vrot.slane %v8776, 5
        %v8779 = vsel %vm1393, %v8774, %v8778
        %v8781 = vshrl.u32 %v8627, 16
        %v8783 = vrot.slane %v8781, 4
        %v8784 = vshll.u32 %v8627, 16
        %v8786 = vrot.slane %v8784, 5
        %v8787 = vor.u32 %v8783, %v8786
        %v8788 = vrot.slane %v8787, 4
        %v8790 = vshll.u32 %v8628, 16
        %v8792 = vrot.slane %v8790, 5
        %v8793 = vsel %vm1393, %v8788, %v8792
        %v8794 = vshrl.u32 %v8628, 16
        %v8796 = vrot.slane %v8794, 4
        %v8797 = vor.u32 %v8796, %v8792
        %v8798 = vrot.slane %v8797, 4
        %v8800 = vshll.u32 %v8629, 16
        %v8802 = vrot.slane %v8800, 5
        %v8803 = vsel %vm1393, %v8798, %v8802
        %v8805 = vshrl.u32 %v8630, 16
        %v8807 = vrot.slane %v8805, 4
        %v8808 = vshll.u32 %v8630, 16
        %v8810 = vrot.slane %v8808, 5
        %v8811 = vor.u32 %v8807, %v8810
        %v8812 = vrot.slane %v8811, 4
        %v8814 = vshll.u32 %v8631, 16
        %v8816 = vrot.slane %v8814, 5
        %v8817 = vsel %vm1393, %v8812, %v8816
        %v8818 = vshrl.u32 %v8631, 16
        %v8820 = vrot.slane %v8818, 4
        %v8821 = vor.u32 %v8820, %v8816
        %v8822 = vrot.slane %v8821, 4
        %v8824 = vshll.u32 %v8632, 16
        %v8826 = vrot.slane %v8824, 5
        %v8827 = vsel %vm1393, %v8822, %v8826
        %v8829 = vshrl.u32 %v8633, 16
        %v8831 = vrot.slane %v8829, 4
        %v8832 = vshll.u32 %v8633, 16
        %v8834 = vrot.slane %v8832, 5
        %v8835 = vor.u32 %v8831, %v8834
        %v8836 = vrot.slane %v8835, 4
        %v8838 = vshll.u32 %v8634, 16
        %v8840 = vrot.slane %v8838, 5
        %v8841 = vsel %vm1393, %v8836, %v8840
        %v8842 = vshrl.u32 %v8634, 16
        %v8844 = vrot.slane %v8842, 4
        %v8845 = vor.u32 %v8844, %v8840
        %v8846 = vrot.slane %v8845, 4
        %v8848 = vshll.u32 %v8635, 16
        %v8850 = vrot.slane %v8848, 5
        %v8851 = vsel %vm1393, %v8846, %v8850
        %v8853 = vshrl.u32 %v8636, 16
        %v8855 = vrot.slane %v8853, 4
        %v8856 = vshll.u32 %v8636, 16
        %v8858 = vrot.slane %v8856, 5
        %v8859 = vor.u32 %v8855, %v8858
        %v8860 = vrot.slane %v8859, 4
        %v8862 = vshll.u32 %v8637, 16
        %v8864 = vrot.slane %v8862, 5
        %v8865 = vsel %vm1393, %v8860, %v8864
        %v8866 = vshrl.u32 %v8637, 16
        %v8868 = vrot.slane %v8866, 4
        %v8869 = vor.u32 %v8868, %v8864
        %v8870 = vrot.slane %v8869, 4
        %v8872 = vshll.u32 %v8638, 16
        %v8874 = vrot.slane %v8872, 5
        %v8875 = vsel %vm1393, %v8870, %v8874
        %v8877 = vshrl.u32 %v8639, 16
        %v8879 = vrot.slane %v8877, 4
        %v8880 = vshll.u32 %v8639, 16
        %v8882 = vrot.slane %v8880, 5
        %v8883 = vor.u32 %v8879, %v8882
        %v8884 = vrot.slane %v8883, 4
        %v8886 = vshll.u32 %v8640, 16
        %v8888 = vrot.slane %v8886, 5
        %v8889 = vsel %vm1393, %v8884, %v8888
        %v8890 = vshrl.u32 %v8640, 16
        %v8892 = vrot.slane %v8890, 4
        %v8893 = vor.u32 %v8892, %v8888
        %v8894 = vrot.slane %v8893, 4
        %v8896 = vshll.u32 %v8641, 16
        %v8898 = vrot.slane %v8896, 5
        %v8899 = vsel %vm1393, %v8894, %v8898
        %v8901 = vshrl.u32 %v8642, 16
        %v8903 = vrot.slane %v8901, 4
        %v8904 = vshll.u32 %v8642, 16
        %v8906 = vrot.slane %v8904, 5
        %v8907 = vor.u32 %v8903, %v8906
        %v8908 = vrot.slane %v8907, 4
        %v8910 = vshll.u32 %v8643, 16
        %v8912 = vrot.slane %v8910, 5
        %v8913 = vsel %vm1393, %v8908, %v8912
        %v8914 = vshrl.u32 %v8643, 16
        %v8916 = vrot.slane %v8914, 4
        %v8917 = vor.u32 %v8916, %v8912
        %v8918 = vrot.slane %v8917, 4
        %v8920 = vshll.u32 %v8644, 16
        %v8922 = vrot.slane %v8920, 5
        %v8923 = vsel %vm1393, %v8918, %v8922
        %v8925 = vshrl.u32 %v8645, 16
        %v8927 = vrot.slane %v8925, 4
        %v8928 = vshll.u32 %v8645, 16
        %v8930 = vrot.slane %v8928, 5
        %v8931 = vor.u32 %v8927, %v8930
        %v8932 = vrot.slane %v8931, 4
        %v8934 = vshll.u32 %v8646, 16
        %v8936 = vrot.slane %v8934, 5
        %v8937 = vsel %vm1393, %v8932, %v8936
        %v8938 = vshrl.u32 %v8646, 16
        %v8940 = vrot.slane %v8938, 4
        %v8941 = vor.u32 %v8940, %v8936
        %v8942 = vrot.slane %v8941, 4
        %v8944 = vshll.u32 %v8647, 16
        %v8946 = vrot.slane %v8944, 5
        %v8947 = vsel %vm1393, %v8942, %v8946
        %v8949 = vshrl.u32 %v8648, 16
        %v8951 = vrot.slane %v8949, 4
        %v8952 = vshll.u32 %v8648, 16
        %v8954 = vrot.slane %v8952, 5
        %v8955 = vor.u32 %v8951, %v8954
        %v8956 = vrot.slane %v8955, 4
        %v8958 = vshll.u32 %v8649, 16
        %v8960 = vrot.slane %v8958, 5
        %v8961 = vsel %vm1393, %v8956, %v8960
        %v8962 = vshrl.u32 %v8649, 16
        %v8964 = vrot.slane %v8962, 4
        %v8965 = vor.u32 %v8964, %v8960
        %v8966 = vrot.slane %v8965, 4
        %v8968 = vshll.u32 %v8650, 16
        %v8970 = vrot.slane %v8968, 5
        %v8971 = vsel %vm1393, %v8966, %v8970
        %v8973 = vshrl.u32 %v8651, 16
        %v8975 = vrot.slane %v8973, 4
        %v8976 = vshll.u32 %v8651, 16
        %v8978 = vrot.slane %v8976, 5
        %v8979 = vor.u32 %v8975, %v8978
        %v8980 = vrot.slane %v8979, 4
        %v8982 = vshll.u32 %v8652, 16
        %v8984 = vrot.slane %v8982, 5
        %v8985 = vsel %vm1393, %v8980, %v8984
        %v8986 = vshrl.u32 %v8652, 16
        %v8988 = vrot.slane %v8986, 4
        %v8989 = vor.u32 %v8988, %v8984
        %v8990 = vrot.slane %v8989, 4
        %v8992 = vshll.u32 %v8653, 16
        %v8994 = vrot.slane %v8992, 5
        %v8995 = vsel %vm1393, %v8990, %v8994
        %v8997 = vshrl.u32 %v8654, 16
        %v8999 = vrot.slane %v8997, 4
        %v9000 = vshll.u32 %v8654, 16
        %v9002 = vrot.slane %v9000, 5
        %v9003 = vor.u32 %v8999, %v9002
        %v9004 = vrot.slane %v9003, 4
        %v9006 = vshll.u32 %v8655, 16
        %v9008 = vrot.slane %v9006, 5
        %v9009 = vsel %vm1393, %v9004, %v9008
        %v9010 = vshrl.u32 %v8655, 16
        %v9012 = vrot.slane %v9010, 4
        %v9013 = vor.u32 %v9012, %v9008
        %v9014 = vrot.slane %v9013, 4
        %v9016 = vshll.u32 %v8656, 16
        %v9018 = vrot.slane %v9016, 5
        %v9019 = vsel %vm1393, %v9014, %v9018
        %v9021 = vshrl.u32 %v8657, 16
        %v9023 = vrot.slane %v9021, 4
        %v9024 = vshll.u32 %v8657, 16
        %v9026 = vrot.slane %v9024, 5
        %v9027 = vor.u32 %v9023, %v9026
        %v9028 = vrot.slane %v9027, 4
        %v9030 = vshll.u32 %v8658, 16
        %v9032 = vrot.slane %v9030, 5
        %v9033 = vsel %vm1393, %v9028, %v9032
        %v9034 = vshrl.u32 %v8658, 16
        %v9036 = vrot.slane %v9034, 4
        %v9037 = vor.u32 %v9036, %v9032
        %v9038 = vrot.slane %v9037, 4
        %v9040 = vshll.u32 %v8659, 16
        %v9042 = vrot.slane %v9040, 5
        %v9043 = vsel %vm1393, %v9038, %v9042
        %s9044 = scalar_lea.vmem [#allocation3], 256
        %v9045 = vld [vmem:[%s9044] sm:$0xf]
        %v9046 = vld [vmem:[%s9044 + $0x4] sm:$0xf]
        %v9047 = vld [vmem:[%s9044 + $0x8] sm:$0xf]
        %v9048 = vld [vmem:[%s9044 + $0xc] sm:$0xf]
        %v9049 = vld [vmem:[%s9044 + $0x10] sm:$0xf]
        %v9050 = vld [vmem:[%s9044 + $0x14] sm:$0xf]
        %v9051 = vld [vmem:[%s9044 + $0x18] sm:$0xf]
        %v9052 = vld [vmem:[%s9044 + $0x1c] sm:$0xf]
        %v9053 = vld [vmem:[%s9044 + $0x20] sm:$0xf]
        %v9054 = vld [vmem:[%s9044 + $0x24] sm:$0xf]
        %v9055 = vld [vmem:[%s9044 + $0x28] sm:$0xf]
        %v9056 = vld [vmem:[%s9044 + $0x2c] sm:$0xf]
        %v9057 = vld [vmem:[%s9044 + $0x30] sm:$0xf]
        %v9058 = vld [vmem:[%s9044 + $0x34] sm:$0xf]
        %v9059 = vld [vmem:[%s9044 + $0x38] sm:$0xf]
        %v9060 = vld [vmem:[%s9044 + $0x3c] sm:$0xf]
        %v9061 = vunpack.c.l.b16 %v8673
        %v9062 = vunpack.c.l.b16 %v8683
        %v9063 = vunpack.c.l.b16 %v8697
        %v9064 = vunpack.c.l.b16 %v8707
        %v9065 = vunpack.c.l.b16 %v8721
        %v9066 = vunpack.c.l.b16 %v8731
        %v9067 = vunpack.c.l.b16 %v8745
        %v9068 = vunpack.c.l.b16 %v8755
        %v9069 = vunpack.c.l.b16 %v8769
        %v9070 = vunpack.c.l.b16 %v8779
        %v9071 = vunpack.c.l.b16 %v8793
        %v9072 = vunpack.c.l.b16 %v8803
        %v9073 = vunpack.c.l.b16 %v8817
        %v9074 = vunpack.c.l.b16 %v8827
        %v9075 = vunpack.c.l.b16 %v8841
        %v9076 = vunpack.c.l.b16 %v8851
        %v9077 = vunpack.c.l.b16 %v8865
        %v9078 = vunpack.c.l.b16 %v8875
        %v9079 = vunpack.c.l.b16 %v8889
        %v9080 = vunpack.c.l.b16 %v8899
        %v9081 = vunpack.c.l.b16 %v8913
        %v9082 = vunpack.c.l.b16 %v8923
        %v9083 = vunpack.c.l.b16 %v8937
        %v9084 = vunpack.c.l.b16 %v8947
        %v9085 = vunpack.c.l.b16 %v8961
        %v9086 = vunpack.c.l.b16 %v8971
        %v9087 = vunpack.c.l.b16 %v8985
        %v9088 = vunpack.c.l.b16 %v8995
        %v9089 = vunpack.c.l.b16 %v9009
        %v9090 = vunpack.c.l.b16 %v9019
        %v9091 = vunpack.c.l.b16 %v9033
        %v9092 = vunpack.c.l.b16 %v9043
        %v9093 = vpack.c.b16 %v9062, %v9061
        %v9094 = vpack.c.b16 %v9064, %v9063
        %v9095 = vpack.c.b16 %v9066, %v9065
        %v9096 = vpack.c.b16 %v9068, %v9067
        %v9097 = vpack.c.b16 %v9070, %v9069
        %v9098 = vpack.c.b16 %v9072, %v9071
        %v9099 = vpack.c.b16 %v9074, %v9073
        %v9100 = vpack.c.b16 %v9076, %v9075
        %v9101 = vpack.c.b16 %v9078, %v9077
        %v9102 = vpack.c.b16 %v9080, %v9079
        %v9103 = vpack.c.b16 %v9082, %v9081
        %v9104 = vpack.c.b16 %v9084, %v9083
        %v9105 = vpack.c.b16 %v9086, %v9085
        %v9106 = vpack.c.b16 %v9088, %v9087
        %v9107 = vpack.c.b16 %v9090, %v9089
        %v9108 = vpack.c.b16 %v9092, %v9091
        %v9141 = vunpack.c.l.b16 %v9045
        %v9142 = vunpack.c.l.b16 %v9046
        %v9143 = vunpack.c.l.b16 %v9047
        %v9144 = vunpack.c.l.b16 %v9048
        %v9145 = vunpack.c.l.b16 %v9049
        %v9146 = vunpack.c.l.b16 %v9050
        %v9147 = vunpack.c.l.b16 %v9051
        %v9148 = vunpack.c.l.b16 %v9052
        %v9149 = vunpack.c.l.b16 %v9053
        %v9150 = vunpack.c.l.b16 %v9054
        %v9151 = vunpack.c.l.b16 %v9055
        %v9152 = vunpack.c.l.b16 %v9056
        %v9153 = vunpack.c.l.b16 %v9057
        %v9154 = vunpack.c.l.b16 %v9058
        %v9155 = vunpack.c.l.b16 %v9059
        %v9156 = vunpack.c.l.b16 %v9060
        %v9157 = vpack.c.b16 %v9142, %v9141
        %v9158 = vpack.c.b16 %v9144, %v9143
        %v9159 = vpack.c.b16 %v9146, %v9145
        %v9160 = vpack.c.b16 %v9148, %v9147
        %v9161 = vpack.c.b16 %v9150, %v9149
        %v9162 = vpack.c.b16 %v9152, %v9151
        %v9163 = vpack.c.b16 %v9154, %v9153
        %v9164 = vpack.c.b16 %v9156, %v9155
        %9173 = vmatprep.subr.bf16.mxu0 0
        %9174 = vmatpush1.bf16.msra.mxu0 %v9164
        %9175 = vmatprep.subr.bf16.mxu0 0
        %9176 = vmatpush1.bf16.msra.mxu0 %v9163
        %9177 = vmatprep.subr.bf16.mxu0 0
        %9178 = vmatpush1.bf16.msra.mxu0 %v9162
        %9179 = vmatprep.subr.bf16.mxu0 0
        %9180 = vmatpush1.bf16.msra.mxu0 %v9161
        %9181 = vmatprep.subr.bf16.mxu0 0
        %9182 = vmatpush1.bf16.msra.mxu0 %v9160
        %9183 = vmatprep.subr.bf16.mxu0 0
        %9184 = vmatpush1.bf16.msra.mxu0 %v9159
        %9185 = vmatprep.subr.bf16.mxu0 0
        %9186 = vmatpush1.bf16.msra.mxu0 %v9158
        %9187 = vmatprep.subr.bf16.mxu0 0
        %9188 = vmatpush1.bf16.msra.mxu0 %v9157
        %9189 = vmatprep.subr.bf16.mxu0 0
        %9190 = vmatpush2.bf16.msra.mxu0 0
        %9191 = vmatprep.subr.bf16.mxu0 0
        %9192 = vmatpush2.bf16.msra.mxu0 0
        %9193 = vmatprep.subr.bf16.mxu0 0
        %9194 = vmatpush2.bf16.msra.mxu0 0
        %9195 = vmatprep.subr.bf16.mxu0 0
        %9196 = vmatpush2.bf16.msra.mxu0 0
        %9197 = vmatprep.subr.bf16.mxu0 0
        %9198 = vmatpush2.bf16.msra.mxu0 0
        %9199 = vmatprep.subr.bf16.mxu0 0
        %9200 = vmatpush2.bf16.msra.mxu0 0
        %9201 = vmatprep.subr.bf16.mxu0 0
        %9202 = vmatpush2.bf16.msra.mxu0 0
        %9203 = vmatprep.subr.bf16.mxu0 0
        %9204 = vmatpush2.bf16.msra.mxu0 0
        %9205 = vmatprep.mubr.bf16.mxu0 0
        %9206 = vmatmul.mubr.bf16.gmra.mxu0 %v9093
        %v9207 = vpop.f32.mrf.mxu0
        %v9208 = vadd.f32 0.0, %v9207
        %v9209 = vpop.f32.mrf.mxu0
        %v9210 = vpop.f32.mrf.mxu0
        %v9211 = vadd.f32 0.0, %v9210
        %v9212 = vpop.f32.mrf.mxu0
        %9213 = vmatprep.mubr.bf16.mxu0 0
        %9214 = vmatmul.mubr.bf16.gmra.mxu0 %v9094
        %v9215 = vpop.f32.mrf.mxu0
        %v9216 = vadd.f32 0.0, %v9215
        %v9217 = vpop.f32.mrf.mxu0
        %v9218 = vpop.f32.mrf.mxu0
        %v9219 = vadd.f32 0.0, %v9218
        %v9220 = vpop.f32.mrf.mxu0
        %9221 = vmatprep.mubr.bf16.mxu0 0
        %9222 = vmatmul.mubr.bf16.gmra.mxu0 %v9095
        %v9223 = vpop.f32.mrf.mxu0
        %v9224 = vadd.f32 0.0, %v9223
        %v9225 = vpop.f32.mrf.mxu0
        %v9226 = vpop.f32.mrf.mxu0
        %v9227 = vadd.f32 0.0, %v9226
        %v9228 = vpop.f32.mrf.mxu0
        %9229 = vmatprep.mubr.bf16.mxu0 0
        %9230 = vmatmul.mubr.bf16.gmra.mxu0 %v9096
        %v9231 = vpop.f32.mrf.mxu0
        %v9232 = vadd.f32 0.0, %v9231
        %v9233 = vpop.f32.mrf.mxu0
        %v9234 = vpop.f32.mrf.mxu0
        %v9235 = vadd.f32 0.0, %v9234
        %v9236 = vpop.f32.mrf.mxu0
        %9237 = vmatprep.mubr.bf16.mxu0 0
        %9238 = vmatmul.mubr.bf16.gmra.mxu0 %v9097
        %v9239 = vpop.f32.mrf.mxu0
        %v9240 = vadd.f32 0.0, %v9239
        %v9241 = vpop.f32.mrf.mxu0
        %v9242 = vpop.f32.mrf.mxu0
        %v9243 = vadd.f32 0.0, %v9242
        %v9244 = vpop.f32.mrf.mxu0
        %9245 = vmatprep.mubr.bf16.mxu0 0
        %9246 = vmatmul.mubr.bf16.gmra.mxu0 %v9098
        %v9247 = vpop.f32.mrf.mxu0
        %v9248 = vadd.f32 0.0, %v9247
        %v9249 = vpop.f32.mrf.mxu0
        %v9250 = vpop.f32.mrf.mxu0
        %v9251 = vadd.f32 0.0, %v9250
        %v9252 = vpop.f32.mrf.mxu0
        %9253 = vmatprep.mubr.bf16.mxu0 0
        %9254 = vmatmul.mubr.bf16.gmra.mxu0 %v9099
        %v9255 = vpop.f32.mrf.mxu0
        %v9256 = vadd.f32 0.0, %v9255
        %v9257 = vpop.f32.mrf.mxu0
        %v9258 = vpop.f32.mrf.mxu0
        %v9259 = vadd.f32 0.0, %v9258
        %v9260 = vpop.f32.mrf.mxu0
        %9261 = vmatprep.mubr.bf16.mxu0 0
        %9262 = vmatmul.mubr.bf16.gmra.mxu0 %v9100
        %v9263 = vpop.f32.mrf.mxu0
        %v9264 = vadd.f32 0.0, %v9263
        %v9265 = vpop.f32.mrf.mxu0
        %v9266 = vpop.f32.mrf.mxu0
        %v9267 = vadd.f32 0.0, %v9266
        %v9268 = vpop.f32.mrf.mxu0
        %9269 = vmatprep.mubr.bf16.mxu0 0
        %9270 = vmatmul.mubr.bf16.gmra.mxu0 %v9101
        %v9271 = vpop.f32.mrf.mxu0
        %v9272 = vadd.f32 0.0, %v9271
        %v9273 = vpop.f32.mrf.mxu0
        %v9274 = vpop.f32.mrf.mxu0
        %v9275 = vadd.f32 0.0, %v9274
        %v9276 = vpop.f32.mrf.mxu0
        %9277 = vmatprep.mubr.bf16.mxu0 0
        %9278 = vmatmul.mubr.bf16.gmra.mxu0 %v9102
        %v9279 = vpop.f32.mrf.mxu0
        %v9280 = vadd.f32 0.0, %v9279
        %v9281 = vpop.f32.mrf.mxu0
        %v9282 = vpop.f32.mrf.mxu0
        %v9283 = vadd.f32 0.0, %v9282
        %v9284 = vpop.f32.mrf.mxu0
        %9285 = vmatprep.mubr.bf16.mxu0 0
        %9286 = vmatmul.mubr.bf16.gmra.mxu0 %v9103
        %v9287 = vpop.f32.mrf.mxu0
        %v9288 = vadd.f32 0.0, %v9287
        %v9289 = vpop.f32.mrf.mxu0
        %v9290 = vpop.f32.mrf.mxu0
        %v9291 = vadd.f32 0.0, %v9290
        %v9292 = vpop.f32.mrf.mxu0
        %9293 = vmatprep.mubr.bf16.mxu0 0
        %9294 = vmatmul.mubr.bf16.gmra.mxu0 %v9104
        %v9295 = vpop.f32.mrf.mxu0
        %v9296 = vadd.f32 0.0, %v9295
        %v9297 = vpop.f32.mrf.mxu0
        %v9298 = vpop.f32.mrf.mxu0
        %v9299 = vadd.f32 0.0, %v9298
        %v9300 = vpop.f32.mrf.mxu0
        %9301 = vmatprep.mubr.bf16.mxu0 0
        %9302 = vmatmul.mubr.bf16.gmra.mxu0 %v9105
        %v9303 = vpop.f32.mrf.mxu0
        %v9304 = vadd.f32 0.0, %v9303
        %v9305 = vpop.f32.mrf.mxu0
        %v9306 = vpop.f32.mrf.mxu0
        %v9307 = vadd.f32 0.0, %v9306
        %v9308 = vpop.f32.mrf.mxu0
        %9309 = vmatprep.mubr.bf16.mxu0 0
        %9310 = vmatmul.mubr.bf16.gmra.mxu0 %v9106
        %v9311 = vpop.f32.mrf.mxu0
        %v9312 = vadd.f32 0.0, %v9311
        %v9313 = vpop.f32.mrf.mxu0
        %v9314 = vpop.f32.mrf.mxu0
        %v9315 = vadd.f32 0.0, %v9314
        %v9316 = vpop.f32.mrf.mxu0
        %9317 = vmatprep.mubr.bf16.mxu0 0
        %9318 = vmatmul.mubr.bf16.gmra.mxu0 %v9107
        %v9319 = vpop.f32.mrf.mxu0
        %v9320 = vadd.f32 0.0, %v9319
        %v9321 = vpop.f32.mrf.mxu0
        %v9322 = vpop.f32.mrf.mxu0
        %v9323 = vadd.f32 0.0, %v9322
        %v9324 = vpop.f32.mrf.mxu0
        %9325 = vmatprep.mubr.bf16.mxu0 0
        %9326 = vmatmul.mubr.bf16.gmra.mxu0 %v9108
        %v9327 = vpop.f32.mrf.mxu0
        %v9328 = vadd.f32 0.0, %v9327
        %v9329 = vpop.f32.mrf.mxu0
        %v9330 = vpop.f32.mrf.mxu0
        %v9331 = vadd.f32 0.0, %v9330
        %v9332 = vpop.f32.mrf.mxu0
        %9333 = vdwg.mxu0
        %v9334 = vadd.f32 %v8580, %v9208
        %v9335 = vadd.f32 %v8581, %v9211
        %v9336 = vadd.f32 %v8582, %v9216
        %v9337 = vadd.f32 %v8583, %v9219
        %v9338 = vadd.f32 %v8584, %v9224
        %v9339 = vadd.f32 %v8585, %v9227
        %v9340 = vadd.f32 %v8586, %v9232
        %v9341 = vadd.f32 %v8587, %v9235
        %v9342 = vadd.f32 %v8588, %v9240
        %v9343 = vadd.f32 %v8589, %v9243
        %v9344 = vadd.f32 %v8590, %v9248
        %v9345 = vadd.f32 %v8591, %v9251
        %v9346 = vadd.f32 %v8592, %v9256
        %v9347 = vadd.f32 %v8593, %v9259
        %v9348 = vadd.f32 %v8594, %v9264
        %v9349 = vadd.f32 %v8595, %v9267
        %v9350 = vadd.f32 %v8596, %v9272
        %v9351 = vadd.f32 %v8597, %v9275
        %v9352 = vadd.f32 %v8598, %v9280
        %v9353 = vadd.f32 %v8599, %v9283
        %v9354 = vadd.f32 %v8600, %v9288
        %v9355 = vadd.f32 %v8601, %v9291
        %v9356 = vadd.f32 %v8602, %v9296
        %v9357 = vadd.f32 %v8603, %v9299
        %v9358 = vadd.f32 %v8604, %v9304
        %v9359 = vadd.f32 %v8605, %v9307
        %v9360 = vadd.f32 %v8606, %v9312
        %v9361 = vadd.f32 %v8607, %v9315
        %v9362 = vadd.f32 %v8608, %v9320
        %v9363 = vadd.f32 %v8609, %v9323
        %v9364 = vadd.f32 %v8610, %v9328
        %v9365 = vadd.f32 %v8611, %v9331
        %v9366 = vld [vmem:[%s1209] sm:$0xe]
        %v9367 = vld [vmem:[%s1209 + $0xc] sm:$0xe]
        %v9368 = vld [vmem:[%s1209 + $0x18] sm:$0xe]
        %v9369 = vld [vmem:[%s1209 + $0x24] sm:$0xe]
        %v9370 = vld [vmem:[%s1209 + $0x30] sm:$0xe]
        %v9371 = vld [vmem:[%s1209 + $0x3c] sm:$0xe]
        %v9372 = vld [vmem:[%s1209 + $0x48] sm:$0xe]
        %v9373 = vld [vmem:[%s1209 + $0x54] sm:$0xe]
        %v9374 = vld [vmem:[%s1209 + $0x60] sm:$0xe]
        %v9375 = vld [vmem:[%s1209 + $0x6c] sm:$0xe]
        %v9376 = vld [vmem:[%s1209 + $0x78] sm:$0xe]
        %v9377 = vld [vmem:[%s1209 + $0x84] sm:$0xe]
        %v9378 = vld [vmem:[%s1209 + $0x90] sm:$0xe]
        %v9379 = vld [vmem:[%s1209 + $0x9c] sm:$0xe]
        %v9380 = vld [vmem:[%s1209 + $0xa8] sm:$0xe]
        %v9381 = vld [vmem:[%s1209 + $0xb4] sm:$0xe]
        %v9430 = vrot.slane %v9366, 5
        %v9431 = vrot.slane %v9430, 4
        %v9432 = vrot.slane %v8613, 5
        %v9433 = vsel %vm2423, %v9431, %v9432
        %v9434 = vrot.slane %v9432, 4
        %v9435 = vrot.slane %v8614, 5
        %v9436 = vsel %vm2423, %v9434, %v9435
        %v9437 = vrot.slane %v9367, 5
        %v9438 = vrot.slane %v9437, 4
        %v9439 = vrot.slane %v8616, 5
        %v9440 = vsel %vm2423, %v9438, %v9439
        %v9441 = vrot.slane %v9439, 4
        %v9442 = vrot.slane %v8617, 5
        %v9443 = vsel %vm2423, %v9441, %v9442
        %v9444 = vrot.slane %v9368, 5
        %v9445 = vrot.slane %v9444, 4
        %v9446 = vrot.slane %v8619, 5
        %v9447 = vsel %vm2423, %v9445, %v9446
        %v9448 = vrot.slane %v9446, 4
        %v9449 = vrot.slane %v8620, 5
        %v9450 = vsel %vm2423, %v9448, %v9449
        %v9451 = vrot.slane %v9369, 5
        %v9452 = vrot.slane %v9451, 4
        %v9453 = vrot.slane %v8622, 5
        %v9454 = vsel %vm2423, %v9452, %v9453
        %v9455 = vrot.slane %v9453, 4
        %v9456 = vrot.slane %v8623, 5
        %v9457 = vsel %vm2423, %v9455, %v9456
        %v9458 = vrot.slane %v9370, 5
        %v9459 = vrot.slane %v9458, 4
        %v9460 = vrot.slane %v8625, 5
        %v9461 = vsel %vm2423, %v9459, %v9460
        %v9462 = vrot.slane %v9460, 4
        %v9463 = vrot.slane %v8626, 5
        %v9464 = vsel %vm2423, %v9462, %v9463
        %v9465 = vrot.slane %v9371, 5
        %v9466 = vrot.slane %v9465, 4
        %v9467 = vrot.slane %v8628, 5
        %v9468 = vsel %vm2423, %v9466, %v9467
        %v9469 = vrot.slane %v9467, 4
        %v9470 = vrot.slane %v8629, 5
        %v9471 = vsel %vm2423, %v9469, %v9470
        %v9472 = vrot.slane %v9372, 5
        %v9473 = vrot.slane %v9472, 4
        %v9474 = vrot.slane %v8631, 5
        %v9475 = vsel %vm2423, %v9473, %v9474
        %v9476 = vrot.slane %v9474, 4
        %v9477 = vrot.slane %v8632, 5
        %v9478 = vsel %vm2423, %v9476, %v9477
        %v9479 = vrot.slane %v9373, 5
        %v9480 = vrot.slane %v9479, 4
        %v9481 = vrot.slane %v8634, 5
        %v9482 = vsel %vm2423, %v9480, %v9481
        %v9483 = vrot.slane %v9481, 4
        %v9484 = vrot.slane %v8635, 5
        %v9485 = vsel %vm2423, %v9483, %v9484
        %v9486 = vrot.slane %v9374, 5
        %v9487 = vrot.slane %v9486, 4
        %v9488 = vrot.slane %v8637, 5
        %v9489 = vsel %vm2423, %v9487, %v9488
        %v9490 = vrot.slane %v9488, 4
        %v9491 = vrot.slane %v8638, 5
        %v9492 = vsel %vm2423, %v9490, %v9491
        %v9493 = vrot.slane %v9375, 5
        %v9494 = vrot.slane %v9493, 4
        %v9495 = vrot.slane %v8640, 5
        %v9496 = vsel %vm2423, %v9494, %v9495
        %v9497 = vrot.slane %v9495, 4
        %v9498 = vrot.slane %v8641, 5
        %v9499 = vsel %vm2423, %v9497, %v9498
        %v9500 = vrot.slane %v9376, 5
        %v9501 = vrot.slane %v9500, 4
        %v9502 = vrot.slane %v8643, 5
        %v9503 = vsel %vm2423, %v9501, %v9502
        %v9504 = vrot.slane %v9502, 4
        %v9505 = vrot.slane %v8644, 5
        %v9506 = vsel %vm2423, %v9504, %v9505
        %v9507 = vrot.slane %v9377, 5
        %v9508 = vrot.slane %v9507, 4
        %v9509 = vrot.slane %v8646, 5
        %v9510 = vsel %vm2423, %v9508, %v9509
        %v9511 = vrot.slane %v9509, 4
        %v9512 = vrot.slane %v8647, 5
        %v9513 = vsel %vm2423, %v9511, %v9512
        %v9514 = vrot.slane %v9378, 5
        %v9515 = vrot.slane %v9514, 4
        %v9516 = vrot.slane %v8649, 5
        %v9517 = vsel %vm2423, %v9515, %v9516
        %v9518 = vrot.slane %v9516, 4
        %v9519 = vrot.slane %v8650, 5
        %v9520 = vsel %vm2423, %v9518, %v9519
        %v9521 = vrot.slane %v9379, 5
        %v9522 = vrot.slane %v9521, 4
        %v9523 = vrot.slane %v8652, 5
        %v9524 = vsel %vm2423, %v9522, %v9523
        %v9525 = vrot.slane %v9523, 4
        %v9526 = vrot.slane %v8653, 5
        %v9527 = vsel %vm2423, %v9525, %v9526
        %v9528 = vrot.slane %v9380, 5
        %v9529 = vrot.slane %v9528, 4
        %v9530 = vrot.slane %v8655, 5
        %v9531 = vsel %vm2423, %v9529, %v9530
        %v9532 = vrot.slane %v9530, 4
        %v9533 = vrot.slane %v8656, 5
        %v9534 = vsel %vm2423, %v9532, %v9533
        %v9535 = vrot.slane %v9381, 5
        %v9536 = vrot.slane %v9535, 4
        %v9537 = vrot.slane %v8658, 5
        %v9538 = vsel %vm2423, %v9536, %v9537
        %v9539 = vrot.slane %v9537, 4
        %v9540 = vrot.slane %v8659, 5
        %v9541 = vsel %vm2423, %v9539, %v9540
        %s9542 = scalar_lea.vmem [#allocation3], 320
        %v9543 = vld [vmem:[%s9542] sm:$0xf]
        %v9544 = vld [vmem:[%s9542 + $0x4] sm:$0xf]
        %v9545 = vld [vmem:[%s9542 + $0x8] sm:$0xf]
        %v9546 = vld [vmem:[%s9542 + $0xc] sm:$0xf]
        %v9547 = vld [vmem:[%s9542 + $0x10] sm:$0xf]
        %v9548 = vld [vmem:[%s9542 + $0x14] sm:$0xf]
        %v9549 = vld [vmem:[%s9542 + $0x18] sm:$0xf]
        %v9550 = vld [vmem:[%s9542 + $0x1c] sm:$0xf]
        %v9551 = vld [vmem:[%s9542 + $0x20] sm:$0xf]
        %v9552 = vld [vmem:[%s9542 + $0x24] sm:$0xf]
        %v9553 = vld [vmem:[%s9542 + $0x28] sm:$0xf]
        %v9554 = vld [vmem:[%s9542 + $0x2c] sm:$0xf]
        %v9555 = vld [vmem:[%s9542 + $0x30] sm:$0xf]
        %v9556 = vld [vmem:[%s9542 + $0x34] sm:$0xf]
        %v9557 = vld [vmem:[%s9542 + $0x38] sm:$0xf]
        %v9558 = vld [vmem:[%s9542 + $0x3c] sm:$0xf]
        %v9559 = vunpack.c.l.b16 %v9433
        %v9560 = vunpack.c.l.b16 %v9436
        %v9561 = vunpack.c.l.b16 %v9440
        %v9562 = vunpack.c.l.b16 %v9443
        %v9563 = vunpack.c.l.b16 %v9447
        %v9564 = vunpack.c.l.b16 %v9450
        %v9565 = vunpack.c.l.b16 %v9454
        %v9566 = vunpack.c.l.b16 %v9457
        %v9567 = vunpack.c.l.b16 %v9461
        %v9568 = vunpack.c.l.b16 %v9464
        %v9569 = vunpack.c.l.b16 %v9468
        %v9570 = vunpack.c.l.b16 %v9471
        %v9571 = vunpack.c.l.b16 %v9475
        %v9572 = vunpack.c.l.b16 %v9478
        %v9573 = vunpack.c.l.b16 %v9482
        %v9574 = vunpack.c.l.b16 %v9485
        %v9575 = vunpack.c.l.b16 %v9489
        %v9576 = vunpack.c.l.b16 %v9492
        %v9577 = vunpack.c.l.b16 %v9496
        %v9578 = vunpack.c.l.b16 %v9499
        %v9579 = vunpack.c.l.b16 %v9503
        %v9580 = vunpack.c.l.b16 %v9506
        %v9581 = vunpack.c.l.b16 %v9510
        %v9582 = vunpack.c.l.b16 %v9513
        %v9583 = vunpack.c.l.b16 %v9517
        %v9584 = vunpack.c.l.b16 %v9520
        %v9585 = vunpack.c.l.b16 %v9524
        %v9586 = vunpack.c.l.b16 %v9527
        %v9587 = vunpack.c.l.b16 %v9531
        %v9588 = vunpack.c.l.b16 %v9534
        %v9589 = vunpack.c.l.b16 %v9538
        %v9590 = vunpack.c.l.b16 %v9541
        %v9591 = vpack.c.b16 %v9560, %v9559
        %v9592 = vpack.c.b16 %v9562, %v9561
        %v9593 = vpack.c.b16 %v9564, %v9563
        %v9594 = vpack.c.b16 %v9566, %v9565
        %v9595 = vpack.c.b16 %v9568, %v9567
        %v9596 = vpack.c.b16 %v9570, %v9569
        %v9597 = vpack.c.b16 %v9572, %v9571
        %v9598 = vpack.c.b16 %v9574, %v9573
        %v9599 = vpack.c.b16 %v9576, %v9575
        %v9600 = vpack.c.b16 %v9578, %v9577
        %v9601 = vpack.c.b16 %v9580, %v9579
        %v9602 = vpack.c.b16 %v9582, %v9581
        %v9603 = vpack.c.b16 %v9584, %v9583
        %v9604 = vpack.c.b16 %v9586, %v9585
        %v9605 = vpack.c.b16 %v9588, %v9587
        %v9606 = vpack.c.b16 %v9590, %v9589
        %v9639 = vunpack.c.l.b16 %v9543
        %v9640 = vunpack.c.l.b16 %v9544
        %v9641 = vunpack.c.l.b16 %v9545
        %v9642 = vunpack.c.l.b16 %v9546
        %v9643 = vunpack.c.l.b16 %v9547
        %v9644 = vunpack.c.l.b16 %v9548
        %v9645 = vunpack.c.l.b16 %v9549
        %v9646 = vunpack.c.l.b16 %v9550
        %v9647 = vunpack.c.l.b16 %v9551
        %v9648 = vunpack.c.l.b16 %v9552
        %v9649 = vunpack.c.l.b16 %v9553
        %v9650 = vunpack.c.l.b16 %v9554
        %v9651 = vunpack.c.l.b16 %v9555
        %v9652 = vunpack.c.l.b16 %v9556
        %v9653 = vunpack.c.l.b16 %v9557
        %v9654 = vunpack.c.l.b16 %v9558
        %v9655 = vpack.c.b16 %v9640, %v9639
        %v9656 = vpack.c.b16 %v9642, %v9641
        %v9657 = vpack.c.b16 %v9644, %v9643
        %v9658 = vpack.c.b16 %v9646, %v9645
        %v9659 = vpack.c.b16 %v9648, %v9647
        %v9660 = vpack.c.b16 %v9650, %v9649
        %v9661 = vpack.c.b16 %v9652, %v9651
        %v9662 = vpack.c.b16 %v9654, %v9653
        %9671 = vmatprep.subr.bf16.mxu0 0
        %9672 = vmatpush1.bf16.msra.mxu0 %v9662
        %9673 = vmatprep.subr.bf16.mxu0 0
        %9674 = vmatpush1.bf16.msra.mxu0 %v9661
        %9675 = vmatprep.subr.bf16.mxu0 0
        %9676 = vmatpush1.bf16.msra.mxu0 %v9660
        %9677 = vmatprep.subr.bf16.mxu0 0
        %9678 = vmatpush1.bf16.msra.mxu0 %v9659
        %9679 = vmatprep.subr.bf16.mxu0 0
        %9680 = vmatpush1.bf16.msra.mxu0 %v9658
        %9681 = vmatprep.subr.bf16.mxu0 0
        %9682 = vmatpush1.bf16.msra.mxu0 %v9657
        %9683 = vmatprep.subr.bf16.mxu0 0
        %9684 = vmatpush1.bf16.msra.mxu0 %v9656
        %9685 = vmatprep.subr.bf16.mxu0 0
        %9686 = vmatpush1.bf16.msra.mxu0 %v9655
        %9687 = vmatprep.subr.bf16.mxu0 0
        %9688 = vmatpush2.bf16.msra.mxu0 0
        %9689 = vmatprep.subr.bf16.mxu0 0
        %9690 = vmatpush2.bf16.msra.mxu0 0
        %9691 = vmatprep.subr.bf16.mxu0 0
        %9692 = vmatpush2.bf16.msra.mxu0 0
        %9693 = vmatprep.subr.bf16.mxu0 0
        %9694 = vmatpush2.bf16.msra.mxu0 0
        %9695 = vmatprep.subr.bf16.mxu0 0
        %9696 = vmatpush2.bf16.msra.mxu0 0
        %9697 = vmatprep.subr.bf16.mxu0 0
        %9698 = vmatpush2.bf16.msra.mxu0 0
        %9699 = vmatprep.subr.bf16.mxu0 0
        %9700 = vmatpush2.bf16.msra.mxu0 0
        %9701 = vmatprep.subr.bf16.mxu0 0
        %9702 = vmatpush2.bf16.msra.mxu0 0
        %9703 = vmatprep.mubr.bf16.mxu0 0
        %9704 = vmatmul.mubr.bf16.gmra.mxu0 %v9591
        %v9705 = vpop.f32.mrf.mxu0
        %v9706 = vadd.f32 0.0, %v9705
        %v9707 = vpop.f32.mrf.mxu0
        %v9708 = vpop.f32.mrf.mxu0
        %v9709 = vadd.f32 0.0, %v9708
        %v9710 = vpop.f32.mrf.mxu0
        %9711 = vmatprep.mubr.bf16.mxu0 0
        %9712 = vmatmul.mubr.bf16.gmra.mxu0 %v9592
        %v9713 = vpop.f32.mrf.mxu0
        %v9714 = vadd.f32 0.0, %v9713
        %v9715 = vpop.f32.mrf.mxu0
        %v9716 = vpop.f32.mrf.mxu0
        %v9717 = vadd.f32 0.0, %v9716
        %v9718 = vpop.f32.mrf.mxu0
        %9719 = vmatprep.mubr.bf16.mxu0 0
        %9720 = vmatmul.mubr.bf16.gmra.mxu0 %v9593
        %v9721 = vpop.f32.mrf.mxu0
        %v9722 = vadd.f32 0.0, %v9721
        %v9723 = vpop.f32.mrf.mxu0
        %v9724 = vpop.f32.mrf.mxu0
        %v9725 = vadd.f32 0.0, %v9724
        %v9726 = vpop.f32.mrf.mxu0
        %9727 = vmatprep.mubr.bf16.mxu0 0
        %9728 = vmatmul.mubr.bf16.gmra.mxu0 %v9594
        %v9729 = vpop.f32.mrf.mxu0
        %v9730 = vadd.f32 0.0, %v9729
        %v9731 = vpop.f32.mrf.mxu0
        %v9732 = vpop.f32.mrf.mxu0
        %v9733 = vadd.f32 0.0, %v9732
        %v9734 = vpop.f32.mrf.mxu0
        %9735 = vmatprep.mubr.bf16.mxu0 0
        %9736 = vmatmul.mubr.bf16.gmra.mxu0 %v9595
        %v9737 = vpop.f32.mrf.mxu0
        %v9738 = vadd.f32 0.0, %v9737
        %v9739 = vpop.f32.mrf.mxu0
        %v9740 = vpop.f32.mrf.mxu0
        %v9741 = vadd.f32 0.0, %v9740
        %v9742 = vpop.f32.mrf.mxu0
        %9743 = vmatprep.mubr.bf16.mxu0 0
        %9744 = vmatmul.mubr.bf16.gmra.mxu0 %v9596
        %v9745 = vpop.f32.mrf.mxu0
        %v9746 = vadd.f32 0.0, %v9745
        %v9747 = vpop.f32.mrf.mxu0
        %v9748 = vpop.f32.mrf.mxu0
        %v9749 = vadd.f32 0.0, %v9748
        %v9750 = vpop.f32.mrf.mxu0
        %9751 = vmatprep.mubr.bf16.mxu0 0
        %9752 = vmatmul.mubr.bf16.gmra.mxu0 %v9597
        %v9753 = vpop.f32.mrf.mxu0
        %v9754 = vadd.f32 0.0, %v9753
        %v9755 = vpop.f32.mrf.mxu0
        %v9756 = vpop.f32.mrf.mxu0
        %v9757 = vadd.f32 0.0, %v9756
        %v9758 = vpop.f32.mrf.mxu0
        %9759 = vmatprep.mubr.bf16.mxu0 0
        %9760 = vmatmul.mubr.bf16.gmra.mxu0 %v9598
        %v9761 = vpop.f32.mrf.mxu0
        %v9762 = vadd.f32 0.0, %v9761
        %v9763 = vpop.f32.mrf.mxu0
        %v9764 = vpop.f32.mrf.mxu0
        %v9765 = vadd.f32 0.0, %v9764
        %v9766 = vpop.f32.mrf.mxu0
        %9767 = vmatprep.mubr.bf16.mxu0 0
        %9768 = vmatmul.mubr.bf16.gmra.mxu0 %v9599
        %v9769 = vpop.f32.mrf.mxu0
        %v9770 = vadd.f32 0.0, %v9769
        %v9771 = vpop.f32.mrf.mxu0
        %v9772 = vpop.f32.mrf.mxu0
        %v9773 = vadd.f32 0.0, %v9772
        %v9774 = vpop.f32.mrf.mxu0
        %9775 = vmatprep.mubr.bf16.mxu0 0
        %9776 = vmatmul.mubr.bf16.gmra.mxu0 %v9600
        %v9777 = vpop.f32.mrf.mxu0
        %v9778 = vadd.f32 0.0, %v9777
        %v9779 = vpop.f32.mrf.mxu0
        %v9780 = vpop.f32.mrf.mxu0
        %v9781 = vadd.f32 0.0, %v9780
        %v9782 = vpop.f32.mrf.mxu0
        %9783 = vmatprep.mubr.bf16.mxu0 0
        %9784 = vmatmul.mubr.bf16.gmra.mxu0 %v9601
        %v9785 = vpop.f32.mrf.mxu0
        %v9786 = vadd.f32 0.0, %v9785
        %v9787 = vpop.f32.mrf.mxu0
        %v9788 = vpop.f32.mrf.mxu0
        %v9789 = vadd.f32 0.0, %v9788
        %v9790 = vpop.f32.mrf.mxu0
        %9791 = vmatprep.mubr.bf16.mxu0 0
        %9792 = vmatmul.mubr.bf16.gmra.mxu0 %v9602
        %v9793 = vpop.f32.mrf.mxu0
        %v9794 = vadd.f32 0.0, %v9793
        %v9795 = vpop.f32.mrf.mxu0
        %v9796 = vpop.f32.mrf.mxu0
        %v9797 = vadd.f32 0.0, %v9796
        %v9798 = vpop.f32.mrf.mxu0
        %9799 = vmatprep.mubr.bf16.mxu0 0
        %9800 = vmatmul.mubr.bf16.gmra.mxu0 %v9603
        %v9801 = vpop.f32.mrf.mxu0
        %v9802 = vadd.f32 0.0, %v9801
        %v9803 = vpop.f32.mrf.mxu0
        %v9804 = vpop.f32.mrf.mxu0
        %v9805 = vadd.f32 0.0, %v9804
        %v9806 = vpop.f32.mrf.mxu0
        %9807 = vmatprep.mubr.bf16.mxu0 0
        %9808 = vmatmul.mubr.bf16.gmra.mxu0 %v9604
        %v9809 = vpop.f32.mrf.mxu0
        %v9810 = vadd.f32 0.0, %v9809
        %v9811 = vpop.f32.mrf.mxu0
        %v9812 = vpop.f32.mrf.mxu0
        %v9813 = vadd.f32 0.0, %v9812
        %v9814 = vpop.f32.mrf.mxu0
        %9815 = vmatprep.mubr.bf16.mxu0 0
        %9816 = vmatmul.mubr.bf16.gmra.mxu0 %v9605
        %v9817 = vpop.f32.mrf.mxu0
        %v9818 = vadd.f32 0.0, %v9817
        %v9819 = vpop.f32.mrf.mxu0
        %v9820 = vpop.f32.mrf.mxu0
        %v9821 = vadd.f32 0.0, %v9820
        %v9822 = vpop.f32.mrf.mxu0
        %9823 = vmatprep.mubr.bf16.mxu0 0
        %9824 = vmatmul.mubr.bf16.gmra.mxu0 %v9606
        %v9825 = vpop.f32.mrf.mxu0
        %v9826 = vadd.f32 0.0, %v9825
        %v9827 = vpop.f32.mrf.mxu0
        %v9828 = vpop.f32.mrf.mxu0
        %v9829 = vadd.f32 0.0, %v9828
        %v9830 = vpop.f32.mrf.mxu0
        %9831 = vdwg.mxu0
        %v9832 = vadd.f32 %v9334, %v9706
        %v9833 = vadd.f32 %v9335, %v9709
        %v9834 = vadd.f32 %v9336, %v9714
        %v9835 = vadd.f32 %v9337, %v9717
        %v9836 = vadd.f32 %v9338, %v9722
        %v9837 = vadd.f32 %v9339, %v9725
        %v9838 = vadd.f32 %v9340, %v9730
        %v9839 = vadd.f32 %v9341, %v9733
        %v9840 = vadd.f32 %v9342, %v9738
        %v9841 = vadd.f32 %v9343, %v9741
        %v9842 = vadd.f32 %v9344, %v9746
        %v9843 = vadd.f32 %v9345, %v9749
        %v9844 = vadd.f32 %v9346, %v9754
        %v9845 = vadd.f32 %v9347, %v9757
        %v9846 = vadd.f32 %v9348, %v9762
        %v9847 = vadd.f32 %v9349, %v9765
        %v9848 = vadd.f32 %v9350, %v9770
        %v9849 = vadd.f32 %v9351, %v9773
        %v9850 = vadd.f32 %v9352, %v9778
        %v9851 = vadd.f32 %v9353, %v9781
        %v9852 = vadd.f32 %v9354, %v9786
        %v9853 = vadd.f32 %v9355, %v9789
        %v9854 = vadd.f32 %v9356, %v9794
        %v9855 = vadd.f32 %v9357, %v9797
        %v9856 = vadd.f32 %v9358, %v9802
        %v9857 = vadd.f32 %v9359, %v9805
        %v9858 = vadd.f32 %v9360, %v9810
        %v9859 = vadd.f32 %v9361, %v9813
        %v9860 = vadd.f32 %v9362, %v9818
        %v9861 = vadd.f32 %v9363, %v9821
        %v9862 = vadd.f32 %v9364, %v9826
        %v9863 = vadd.f32 %v9365, %v9829
        %v9864 = vld [vmem:[%s4496] sm:$0xf]
        %v9865 = vld [vmem:[%s4496 + $0x4] sm:$0xf]
        %v9866 = vld [vmem:[%s4496 + $0xc] sm:$0xf]
        %v9867 = vld [vmem:[%s4496 + $0x10] sm:$0xf]
        %v9868 = vld [vmem:[%s4496 + $0x18] sm:$0xf]
        %v9869 = vld [vmem:[%s4496 + $0x1c] sm:$0xf]
        %v9870 = vld [vmem:[%s4496 + $0x24] sm:$0xf]
        %v9871 = vld [vmem:[%s4496 + $0x28] sm:$0xf]
        %v9872 = vld [vmem:[%s4496 + $0x30] sm:$0xf]
        %v9873 = vld [vmem:[%s4496 + $0x34] sm:$0xf]
        %v9874 = vld [vmem:[%s4496 + $0x3c] sm:$0xf]
        %v9875 = vld [vmem:[%s4496 + $0x40] sm:$0xf]
        %v9876 = vld [vmem:[%s4496 + $0x48] sm:$0xf]
        %v9877 = vld [vmem:[%s4496 + $0x4c] sm:$0xf]
        %v9878 = vld [vmem:[%s4496 + $0x54] sm:$0xf]
        %v9879 = vld [vmem:[%s4496 + $0x58] sm:$0xf]
        %v9880 = vld [vmem:[%s4496 + $0x60] sm:$0xf]
        %v9881 = vld [vmem:[%s4496 + $0x64] sm:$0xf]
        %v9882 = vld [vmem:[%s4496 + $0x6c] sm:$0xf]
        %v9883 = vld [vmem:[%s4496 + $0x70] sm:$0xf]
        %v9884 = vld [vmem:[%s4496 + $0x78] sm:$0xf]
        %v9885 = vld [vmem:[%s4496 + $0x7c] sm:$0xf]
        %v9886 = vld [vmem:[%s4496 + $0x84] sm:$0xf]
        %v9887 = vld [vmem:[%s4496 + $0x88] sm:$0xf]
        %v9888 = vld [vmem:[%s4496 + $0x90] sm:$0xf]
        %v9889 = vld [vmem:[%s4496 + $0x94] sm:$0xf]
        %v9890 = vld [vmem:[%s4496 + $0x9c] sm:$0xf]
        %v9891 = vld [vmem:[%s4496 + $0xa0] sm:$0xf]
        %v9892 = vld [vmem:[%s4496 + $0xa8] sm:$0xf]
        %v9893 = vld [vmem:[%s4496 + $0xac] sm:$0xf]
        %v9894 = vld [vmem:[%s4496 + $0xb4] sm:$0xf]
        %v9895 = vld [vmem:[%s4496 + $0xb8] sm:$0xf]
        %s9896 = scalar_lea.vmem [#allocation3], 384
        %v9897 = vld [vmem:[%s9896] sm:$0xf]
        %v9898 = vld [vmem:[%s9896 + $0x4] sm:$0xf]
        %v9899 = vld [vmem:[%s9896 + $0x8] sm:$0xf]
        %v9900 = vld [vmem:[%s9896 + $0xc] sm:$0xf]
        %v9901 = vld [vmem:[%s9896 + $0x10] sm:$0xf]
        %v9902 = vld [vmem:[%s9896 + $0x14] sm:$0xf]
        %v9903 = vld [vmem:[%s9896 + $0x18] sm:$0xf]
        %v9904 = vld [vmem:[%s9896 + $0x1c] sm:$0xf]
        %v9905 = vld [vmem:[%s9896 + $0x20] sm:$0xf]
        %v9906 = vld [vmem:[%s9896 + $0x24] sm:$0xf]
        %v9907 = vld [vmem:[%s9896 + $0x28] sm:$0xf]
        %v9908 = vld [vmem:[%s9896 + $0x2c] sm:$0xf]
        %v9909 = vld [vmem:[%s9896 + $0x30] sm:$0xf]
        %v9910 = vld [vmem:[%s9896 + $0x34] sm:$0xf]
        %v9911 = vld [vmem:[%s9896 + $0x38] sm:$0xf]
        %v9912 = vld [vmem:[%s9896 + $0x3c] sm:$0xf]
        %v9945 = vunpack.c.l.b16 %v9864
        %v9946 = vunpack.c.l.b16 %v9865
        %v9947 = vunpack.c.l.b16 %v9866
        %v9948 = vunpack.c.l.b16 %v9867
        %v9949 = vunpack.c.l.b16 %v9868
        %v9950 = vunpack.c.l.b16 %v9869
        %v9951 = vunpack.c.l.b16 %v9870
        %v9952 = vunpack.c.l.b16 %v9871
        %v9953 = vunpack.c.l.b16 %v9872
        %v9954 = vunpack.c.l.b16 %v9873
        %v9955 = vunpack.c.l.b16 %v9874
        %v9956 = vunpack.c.l.b16 %v9875
        %v9957 = vunpack.c.l.b16 %v9876
        %v9958 = vunpack.c.l.b16 %v9877
        %v9959 = vunpack.c.l.b16 %v9878
        %v9960 = vunpack.c.l.b16 %v9879
        %v9961 = vunpack.c.l.b16 %v9880
        %v9962 = vunpack.c.l.b16 %v9881
        %v9963 = vunpack.c.l.b16 %v9882
        %v9964 = vunpack.c.l.b16 %v9883
        %v9965 = vunpack.c.l.b16 %v9884
        %v9966 = vunpack.c.l.b16 %v9885
        %v9967 = vunpack.c.l.b16 %v9886
        %v9968 = vunpack.c.l.b16 %v9887
        %v9969 = vunpack.c.l.b16 %v9888
        %v9970 = vunpack.c.l.b16 %v9889
        %v9971 = vunpack.c.l.b16 %v9890
        %v9972 = vunpack.c.l.b16 %v9891
        %v9973 = vunpack.c.l.b16 %v9892
        %v9974 = vunpack.c.l.b16 %v9893
        %v9975 = vunpack.c.l.b16 %v9894
        %v9976 = vunpack.c.l.b16 %v9895
        %v9977 = vpack.c.b16 %v9946, %v9945
        %v9978 = vpack.c.b16 %v9948, %v9947
        %v9979 = vpack.c.b16 %v9950, %v9949
        %v9980 = vpack.c.b16 %v9952, %v9951
        %v9981 = vpack.c.b16 %v9954, %v9953
        %v9982 = vpack.c.b16 %v9956, %v9955
        %v9983 = vpack.c.b16 %v9958, %v9957
        %v9984 = vpack.c.b16 %v9960, %v9959
        %v9985 = vpack.c.b16 %v9962, %v9961
        %v9986 = vpack.c.b16 %v9964, %v9963
        %v9987 = vpack.c.b16 %v9966, %v9965
        %v9988 = vpack.c.b16 %v9968, %v9967
        %v9989 = vpack.c.b16 %v9970, %v9969
        %v9990 = vpack.c.b16 %v9972, %v9971
        %v9991 = vpack.c.b16 %v9974, %v9973
        %v9992 = vpack.c.b16 %v9976, %v9975
        %v10025 = vunpack.c.l.b16 %v9897
        %v10026 = vunpack.c.l.b16 %v9898
        %v10027 = vunpack.c.l.b16 %v9899
        %v10028 = vunpack.c.l.b16 %v9900
        %v10029 = vunpack.c.l.b16 %v9901
        %v10030 = vunpack.c.l.b16 %v9902
        %v10031 = vunpack.c.l.b16 %v9903
        %v10032 = vunpack.c.l.b16 %v9904
        %v10033 = vunpack.c.l.b16 %v9905
        %v10034 = vunpack.c.l.b16 %v9906
        %v10035 = vunpack.c.l.b16 %v9907
        %v10036 = vunpack.c.l.b16 %v9908
        %v10037 = vunpack.c.l.b16 %v9909
        %v10038 = vunpack.c.l.b16 %v9910
        %v10039 = vunpack.c.l.b16 %v9911
        %v10040 = vunpack.c.l.b16 %v9912
        %v10041 = vpack.c.b16 %v10026, %v10025
        %v10042 = vpack.c.b16 %v10028, %v10027
        %v10043 = vpack.c.b16 %v10030, %v10029
        %v10044 = vpack.c.b16 %v10032, %v10031
        %v10045 = vpack.c.b16 %v10034, %v10033
        %v10046 = vpack.c.b16 %v10036, %v10035
        %v10047 = vpack.c.b16 %v10038, %v10037
        %v10048 = vpack.c.b16 %v10040, %v10039
        %10057 = vmatprep.subr.bf16.mxu0 0
        %10058 = vmatpush1.bf16.msra.mxu0 %v10048
        %10059 = vmatprep.subr.bf16.mxu0 0
        %10060 = vmatpush1.bf16.msra.mxu0 %v10047
        %10061 = vmatprep.subr.bf16.mxu0 0
        %10062 = vmatpush1.bf16.msra.mxu0 %v10046
        %10063 = vmatprep.subr.bf16.mxu0 0
        %10064 = vmatpush1.bf16.msra.mxu0 %v10045
        %10065 = vmatprep.subr.bf16.mxu0 0
        %10066 = vmatpush1.bf16.msra.mxu0 %v10044
        %10067 = vmatprep.subr.bf16.mxu0 0
        %10068 = vmatpush1.bf16.msra.mxu0 %v10043
        %10069 = vmatprep.subr.bf16.mxu0 0
        %10070 = vmatpush1.bf16.msra.mxu0 %v10042
        %10071 = vmatprep.subr.bf16.mxu0 0
        %10072 = vmatpush1.bf16.msra.mxu0 %v10041
        %10073 = vmatprep.subr.bf16.mxu0 0
        %10074 = vmatpush2.bf16.msra.mxu0 0
        %10075 = vmatprep.subr.bf16.mxu0 0
        %10076 = vmatpush2.bf16.msra.mxu0 0
        %10077 = vmatprep.subr.bf16.mxu0 0
        %10078 = vmatpush2.bf16.msra.mxu0 0
        %10079 = vmatprep.subr.bf16.mxu0 0
        %10080 = vmatpush2.bf16.msra.mxu0 0
        %10081 = vmatprep.subr.bf16.mxu0 0
        %10082 = vmatpush2.bf16.msra.mxu0 0
        %10083 = vmatprep.subr.bf16.mxu0 0
        %10084 = vmatpush2.bf16.msra.mxu0 0
        %10085 = vmatprep.subr.bf16.mxu0 0
        %10086 = vmatpush2.bf16.msra.mxu0 0
        %10087 = vmatprep.subr.bf16.mxu0 0
        %10088 = vmatpush2.bf16.msra.mxu0 0
        %10089 = vmatprep.mubr.bf16.mxu0 0
        %10090 = vmatmul.mubr.bf16.gmra.mxu0 %v9977
        %v10091 = vpop.f32.mrf.mxu0
        %v10092 = vadd.f32 0.0, %v10091
        %v10093 = vpop.f32.mrf.mxu0
        %v10094 = vpop.f32.mrf.mxu0
        %v10095 = vadd.f32 0.0, %v10094
        %v10096 = vpop.f32.mrf.mxu0
        %10097 = vmatprep.mubr.bf16.mxu0 0
        %10098 = vmatmul.mubr.bf16.gmra.mxu0 %v9978
        %v10099 = vpop.f32.mrf.mxu0
        %v10100 = vadd.f32 0.0, %v10099
        %v10101 = vpop.f32.mrf.mxu0
        %v10102 = vpop.f32.mrf.mxu0
        %v10103 = vadd.f32 0.0, %v10102
        %v10104 = vpop.f32.mrf.mxu0
        %10105 = vmatprep.mubr.bf16.mxu0 0
        %10106 = vmatmul.mubr.bf16.gmra.mxu0 %v9979
        %v10107 = vpop.f32.mrf.mxu0
        %v10108 = vadd.f32 0.0, %v10107
        %v10109 = vpop.f32.mrf.mxu0
        %v10110 = vpop.f32.mrf.mxu0
        %v10111 = vadd.f32 0.0, %v10110
        %v10112 = vpop.f32.mrf.mxu0
        %10113 = vmatprep.mubr.bf16.mxu0 0
        %10114 = vmatmul.mubr.bf16.gmra.mxu0 %v9980
        %v10115 = vpop.f32.mrf.mxu0
        %v10116 = vadd.f32 0.0, %v10115
        %v10117 = vpop.f32.mrf.mxu0
        %v10118 = vpop.f32.mrf.mxu0
        %v10119 = vadd.f32 0.0, %v10118
        %v10120 = vpop.f32.mrf.mxu0
        %10121 = vmatprep.mubr.bf16.mxu0 0
        %10122 = vmatmul.mubr.bf16.gmra.mxu0 %v9981
        %v10123 = vpop.f32.mrf.mxu0
        %v10124 = vadd.f32 0.0, %v10123
        %v10125 = vpop.f32.mrf.mxu0
        %v10126 = vpop.f32.mrf.mxu0
        %v10127 = vadd.f32 0.0, %v10126
        %v10128 = vpop.f32.mrf.mxu0
        %10129 = vmatprep.mubr.bf16.mxu0 0
        %10130 = vmatmul.mubr.bf16.gmra.mxu0 %v9982
        %v10131 = vpop.f32.mrf.mxu0
        %v10132 = vadd.f32 0.0, %v10131
        %v10133 = vpop.f32.mrf.mxu0
        %v10134 = vpop.f32.mrf.mxu0
        %v10135 = vadd.f32 0.0, %v10134
        %v10136 = vpop.f32.mrf.mxu0
        %10137 = vmatprep.mubr.bf16.mxu0 0
        %10138 = vmatmul.mubr.bf16.gmra.mxu0 %v9983
        %v10139 = vpop.f32.mrf.mxu0
        %v10140 = vadd.f32 0.0, %v10139
        %v10141 = vpop.f32.mrf.mxu0
        %v10142 = vpop.f32.mrf.mxu0
        %v10143 = vadd.f32 0.0, %v10142
        %v10144 = vpop.f32.mrf.mxu0
        %10145 = vmatprep.mubr.bf16.mxu0 0
        %10146 = vmatmul.mubr.bf16.gmra.mxu0 %v9984
        %v10147 = vpop.f32.mrf.mxu0
        %v10148 = vadd.f32 0.0, %v10147
        %v10149 = vpop.f32.mrf.mxu0
        %v10150 = vpop.f32.mrf.mxu0
        %v10151 = vadd.f32 0.0, %v10150
        %v10152 = vpop.f32.mrf.mxu0
        %10153 = vmatprep.mubr.bf16.mxu0 0
        %10154 = vmatmul.mubr.bf16.gmra.mxu0 %v9985
        %v10155 = vpop.f32.mrf.mxu0
        %v10156 = vadd.f32 0.0, %v10155
        %v10157 = vpop.f32.mrf.mxu0
        %v10158 = vpop.f32.mrf.mxu0
        %v10159 = vadd.f32 0.0, %v10158
        %v10160 = vpop.f32.mrf.mxu0
        %10161 = vmatprep.mubr.bf16.mxu0 0
        %10162 = vmatmul.mubr.bf16.gmra.mxu0 %v9986
        %v10163 = vpop.f32.mrf.mxu0
        %v10164 = vadd.f32 0.0, %v10163
        %v10165 = vpop.f32.mrf.mxu0
        %v10166 = vpop.f32.mrf.mxu0
        %v10167 = vadd.f32 0.0, %v10166
        %v10168 = vpop.f32.mrf.mxu0
        %10169 = vmatprep.mubr.bf16.mxu0 0
        %10170 = vmatmul.mubr.bf16.gmra.mxu0 %v9987
        %v10171 = vpop.f32.mrf.mxu0
        %v10172 = vadd.f32 0.0, %v10171
        %v10173 = vpop.f32.mrf.mxu0
        %v10174 = vpop.f32.mrf.mxu0
        %v10175 = vadd.f32 0.0, %v10174
        %v10176 = vpop.f32.mrf.mxu0
        %10177 = vmatprep.mubr.bf16.mxu0 0
        %10178 = vmatmul.mubr.bf16.gmra.mxu0 %v9988
        %v10179 = vpop.f32.mrf.mxu0
        %v10180 = vadd.f32 0.0, %v10179
        %v10181 = vpop.f32.mrf.mxu0
        %v10182 = vpop.f32.mrf.mxu0
        %v10183 = vadd.f32 0.0, %v10182
        %v10184 = vpop.f32.mrf.mxu0
        %10185 = vmatprep.mubr.bf16.mxu0 0
        %10186 = vmatmul.mubr.bf16.gmra.mxu0 %v9989
        %v10187 = vpop.f32.mrf.mxu0
        %v10188 = vadd.f32 0.0, %v10187
        %v10189 = vpop.f32.mrf.mxu0
        %v10190 = vpop.f32.mrf.mxu0
        %v10191 = vadd.f32 0.0, %v10190
        %v10192 = vpop.f32.mrf.mxu0
        %10193 = vmatprep.mubr.bf16.mxu0 0
        %10194 = vmatmul.mubr.bf16.gmra.mxu0 %v9990
        %v10195 = vpop.f32.mrf.mxu0
        %v10196 = vadd.f32 0.0, %v10195
        %v10197 = vpop.f32.mrf.mxu0
        %v10198 = vpop.f32.mrf.mxu0
        %v10199 = vadd.f32 0.0, %v10198
        %v10200 = vpop.f32.mrf.mxu0
        %10201 = vmatprep.mubr.bf16.mxu0 0
        %10202 = vmatmul.mubr.bf16.gmra.mxu0 %v9991
        %v10203 = vpop.f32.mrf.mxu0
        %v10204 = vadd.f32 0.0, %v10203
        %v10205 = vpop.f32.mrf.mxu0
        %v10206 = vpop.f32.mrf.mxu0
        %v10207 = vadd.f32 0.0, %v10206
        %v10208 = vpop.f32.mrf.mxu0
        %10209 = vmatprep.mubr.bf16.mxu0 0
        %10210 = vmatmul.mubr.bf16.gmra.mxu0 %v9992
        %v10211 = vpop.f32.mrf.mxu0
        %v10212 = vadd.f32 0.0, %v10211
        %v10213 = vpop.f32.mrf.mxu0
        %v10214 = vpop.f32.mrf.mxu0
        %v10215 = vadd.f32 0.0, %v10214
        %v10216 = vpop.f32.mrf.mxu0
        %10217 = vdwg.mxu0
        %v10218 = vadd.f32 %v9832, %v10092
        %v10219 = vadd.f32 %v9833, %v10095
        %v10220 = vadd.f32 %v9834, %v10100
        %v10221 = vadd.f32 %v9835, %v10103
        %v10222 = vadd.f32 %v9836, %v10108
        %v10223 = vadd.f32 %v9837, %v10111
        %v10224 = vadd.f32 %v9838, %v10116
        %v10225 = vadd.f32 %v9839, %v10119
        %v10226 = vadd.f32 %v9840, %v10124
        %v10227 = vadd.f32 %v9841, %v10127
        %v10228 = vadd.f32 %v9842, %v10132
        %v10229 = vadd.f32 %v9843, %v10135
        %v10230 = vadd.f32 %v9844, %v10140
        %v10231 = vadd.f32 %v9845, %v10143
        %v10232 = vadd.f32 %v9846, %v10148
        %v10233 = vadd.f32 %v9847, %v10151
        %v10234 = vadd.f32 %v9848, %v10156
        %v10235 = vadd.f32 %v9849, %v10159
        %v10236 = vadd.f32 %v9850, %v10164
        %v10237 = vadd.f32 %v9851, %v10167
        %v10238 = vadd.f32 %v9852, %v10172
        %v10239 = vadd.f32 %v9853, %v10175
        %v10240 = vadd.f32 %v9854, %v10180
        %v10241 = vadd.f32 %v9855, %v10183
        %v10242 = vadd.f32 %v9856, %v10188
        %v10243 = vadd.f32 %v9857, %v10191
        %v10244 = vadd.f32 %v9858, %v10196
        %v10245 = vadd.f32 %v9859, %v10199
        %v10246 = vadd.f32 %v9860, %v10204
        %v10247 = vadd.f32 %v9861, %v10207
        %v10248 = vadd.f32 %v9862, %v10212
        %v10249 = vadd.f32 %v9863, %v10215
        %v10250 = vld [vmem:[%s4496] sm:$0xf]
        %v10251 = vld [vmem:[%s4496 + $0x4] sm:$0xf]
        %v10252 = vld [vmem:[%s4496 + $0x8] sm:$0x1]
        %v10253 = vld [vmem:[%s4496 + $0xc] sm:$0xf]
        %v10254 = vld [vmem:[%s4496 + $0x10] sm:$0xf]
        %v10255 = vld [vmem:[%s4496 + $0x14] sm:$0x1]
        %v10256 = vld [vmem:[%s4496 + $0x18] sm:$0xf]
        %v10257 = vld [vmem:[%s4496 + $0x1c] sm:$0xf]
        %v10258 = vld [vmem:[%s4496 + $0x20] sm:$0x1]
        %v10259 = vld [vmem:[%s4496 + $0x24] sm:$0xf]
        %v10260 = vld [vmem:[%s4496 + $0x28] sm:$0xf]
        %v10261 = vld [vmem:[%s4496 + $0x2c] sm:$0x1]
        %v10262 = vld [vmem:[%s4496 + $0x30] sm:$0xf]
        %v10263 = vld [vmem:[%s4496 + $0x34] sm:$0xf]
        %v10264 = vld [vmem:[%s4496 + $0x38] sm:$0x1]
        %v10265 = vld [vmem:[%s4496 + $0x3c] sm:$0xf]
        %v10266 = vld [vmem:[%s4496 + $0x40] sm:$0xf]
        %v10267 = vld [vmem:[%s4496 + $0x44] sm:$0x1]
        %v10268 = vld [vmem:[%s4496 + $0x48] sm:$0xf]
        %v10269 = vld [vmem:[%s4496 + $0x4c] sm:$0xf]
        %v10270 = vld [vmem:[%s4496 + $0x50] sm:$0x1]
        %v10271 = vld [vmem:[%s4496 + $0x54] sm:$0xf]
        %v10272 = vld [vmem:[%s4496 + $0x58] sm:$0xf]
        %v10273 = vld [vmem:[%s4496 + $0x5c] sm:$0x1]
        %v10274 = vld [vmem:[%s4496 + $0x60] sm:$0xf]
        %v10275 = vld [vmem:[%s4496 + $0x64] sm:$0xf]
        %v10276 = vld [vmem:[%s4496 + $0x68] sm:$0x1]
        %v10277 = vld [vmem:[%s4496 + $0x6c] sm:$0xf]
        %v10278 = vld [vmem:[%s4496 + $0x70] sm:$0xf]
        %v10279 = vld [vmem:[%s4496 + $0x74] sm:$0x1]
        %v10280 = vld [vmem:[%s4496 + $0x78] sm:$0xf]
        %v10281 = vld [vmem:[%s4496 + $0x7c] sm:$0xf]
        %v10282 = vld [vmem:[%s4496 + $0x80] sm:$0x1]
        %v10283 = vld [vmem:[%s4496 + $0x84] sm:$0xf]
        %v10284 = vld [vmem:[%s4496 + $0x88] sm:$0xf]
        %v10285 = vld [vmem:[%s4496 + $0x8c] sm:$0x1]
        %v10286 = vld [vmem:[%s4496 + $0x90] sm:$0xf]
        %v10287 = vld [vmem:[%s4496 + $0x94] sm:$0xf]
        %v10288 = vld [vmem:[%s4496 + $0x98] sm:$0x1]
        %v10289 = vld [vmem:[%s4496 + $0x9c] sm:$0xf]
        %v10290 = vld [vmem:[%s4496 + $0xa0] sm:$0xf]
        %v10291 = vld [vmem:[%s4496 + $0xa4] sm:$0x1]
        %v10292 = vld [vmem:[%s4496 + $0xa8] sm:$0xf]
        %v10293 = vld [vmem:[%s4496 + $0xac] sm:$0xf]
        %v10294 = vld [vmem:[%s4496 + $0xb0] sm:$0x1]
        %v10295 = vld [vmem:[%s4496 + $0xb4] sm:$0xf]
        %v10296 = vld [vmem:[%s4496 + $0xb8] sm:$0xf]
        %v10297 = vld [vmem:[%s4496 + $0xbc] sm:$0x1]
        %v10299 = vshrl.u32 %v10250, 16
        %v10301 = vrot.slane %v10299, 4
        %v10302 = vshll.u32 %v10250, 16
        %v10304 = vrot.slane %v10302, 5
        %v10305 = vor.u32 %v10301, %v10304
        %v10306 = vrot.slane %v10305, 4
        %v10308 = vshll.u32 %v10251, 16
        %v10310 = vrot.slane %v10308, 5
        %v10311 = vsel %vm1393, %v10306, %v10310
        %v10312 = vshrl.u32 %v10251, 16
        %v10314 = vrot.slane %v10312, 4
        %v10315 = vor.u32 %v10314, %v10310
        %v10316 = vrot.slane %v10315, 4
        %v10318 = vshll.u32 %v10252, 16
        %v10320 = vrot.slane %v10318, 5
        %v10321 = vsel %vm1393, %v10316, %v10320
        %v10323 = vshrl.u32 %v10253, 16
        %v10325 = vrot.slane %v10323, 4
        %v10326 = vshll.u32 %v10253, 16
        %v10328 = vrot.slane %v10326, 5
        %v10329 = vor.u32 %v10325, %v10328
        %v10330 = vrot.slane %v10329, 4
        %v10332 = vshll.u32 %v10254, 16
        %v10334 = vrot.slane %v10332, 5
        %v10335 = vsel %vm1393, %v10330, %v10334
        %v10336 = vshrl.u32 %v10254, 16
        %v10338 = vrot.slane %v10336, 4
        %v10339 = vor.u32 %v10338, %v10334
        %v10340 = vrot.slane %v10339, 4
        %v10342 = vshll.u32 %v10255, 16
        %v10344 = vrot.slane %v10342, 5
        %v10345 = vsel %vm1393, %v10340, %v10344
        %v10347 = vshrl.u32 %v10256, 16
        %v10349 = vrot.slane %v10347, 4
        %v10350 = vshll.u32 %v10256, 16
        %v10352 = vrot.slane %v10350, 5
        %v10353 = vor.u32 %v10349, %v10352
        %v10354 = vrot.slane %v10353, 4
        %v10356 = vshll.u32 %v10257, 16
        %v10358 = vrot.slane %v10356, 5
        %v10359 = vsel %vm1393, %v10354, %v10358
        %v10360 = vshrl.u32 %v10257, 16
        %v10362 = vrot.slane %v10360, 4
        %v10363 = vor.u32 %v10362, %v10358
        %v10364 = vrot.slane %v10363, 4
        %v10366 = vshll.u32 %v10258, 16
        %v10368 = vrot.slane %v10366, 5
        %v10369 = vsel %vm1393, %v10364, %v10368
        %v10371 = vshrl.u32 %v10259, 16
        %v10373 = vrot.slane %v10371, 4
        %v10374 = vshll.u32 %v10259, 16
        %v10376 = vrot.slane %v10374, 5
        %v10377 = vor.u32 %v10373, %v10376
        %v10378 = vrot.slane %v10377, 4
        %v10380 = vshll.u32 %v10260, 16
        %v10382 = vrot.slane %v10380, 5
        %v10383 = vsel %vm1393, %v10378, %v10382
        %v10384 = vshrl.u32 %v10260, 16
        %v10386 = vrot.slane %v10384, 4
        %v10387 = vor.u32 %v10386, %v10382
        %v10388 = vrot.slane %v10387, 4
        %v10390 = vshll.u32 %v10261, 16
        %v10392 = vrot.slane %v10390, 5
        %v10393 = vsel %vm1393, %v10388, %v10392
        %v10395 = vshrl.u32 %v10262, 16
        %v10397 = vrot.slane %v10395, 4
        %v10398 = vshll.u32 %v10262, 16
        %v10400 = vrot.slane %v10398, 5
        %v10401 = vor.u32 %v10397, %v10400
        %v10402 = vrot.slane %v10401, 4
        %v10404 = vshll.u32 %v10263, 16
        %v10406 = vrot.slane %v10404, 5
        %v10407 = vsel %vm1393, %v10402, %v10406
        %v10408 = vshrl.u32 %v10263, 16
        %v10410 = vrot.slane %v10408, 4
        %v10411 = vor.u32 %v10410, %v10406
        %v10412 = vrot.slane %v10411, 4
        %v10414 = vshll.u32 %v10264, 16
        %v10416 = vrot.slane %v10414, 5
        %v10417 = vsel %vm1393, %v10412, %v10416
        %v10419 = vshrl.u32 %v10265, 16
        %v10421 = vrot.slane %v10419, 4
        %v10422 = vshll.u32 %v10265, 16
        %v10424 = vrot.slane %v10422, 5
        %v10425 = vor.u32 %v10421, %v10424
        %v10426 = vrot.slane %v10425, 4
        %v10428 = vshll.u32 %v10266, 16
        %v10430 = vrot.slane %v10428, 5
        %v10431 = vsel %vm1393, %v10426, %v10430
        %v10432 = vshrl.u32 %v10266, 16
        %v10434 = vrot.slane %v10432, 4
        %v10435 = vor.u32 %v10434, %v10430
        %v10436 = vrot.slane %v10435, 4
        %v10438 = vshll.u32 %v10267, 16
        %v10440 = vrot.slane %v10438, 5
        %v10441 = vsel %vm1393, %v10436, %v10440
        %v10443 = vshrl.u32 %v10268, 16
        %v10445 = vrot.slane %v10443, 4
        %v10446 = vshll.u32 %v10268, 16
        %v10448 = vrot.slane %v10446, 5
        %v10449 = vor.u32 %v10445, %v10448
        %v10450 = vrot.slane %v10449, 4
        %v10452 = vshll.u32 %v10269, 16
        %v10454 = vrot.slane %v10452, 5
        %v10455 = vsel %vm1393, %v10450, %v10454
        %v10456 = vshrl.u32 %v10269, 16
        %v10458 = vrot.slane %v10456, 4
        %v10459 = vor.u32 %v10458, %v10454
        %v10460 = vrot.slane %v10459, 4
        %v10462 = vshll.u32 %v10270, 16
        %v10464 = vrot.slane %v10462, 5
        %v10465 = vsel %vm1393, %v10460, %v10464
        %v10467 = vshrl.u32 %v10271, 16
        %v10469 = vrot.slane %v10467, 4
        %v10470 = vshll.u32 %v10271, 16
        %v10472 = vrot.slane %v10470, 5
        %v10473 = vor.u32 %v10469, %v10472
        %v10474 = vrot.slane %v10473, 4
        %v10476 = vshll.u32 %v10272, 16
        %v10478 = vrot.slane %v10476, 5
        %v10479 = vsel %vm1393, %v10474, %v10478
        %v10480 = vshrl.u32 %v10272, 16
        %v10482 = vrot.slane %v10480, 4
        %v10483 = vor.u32 %v10482, %v10478
        %v10484 = vrot.slane %v10483, 4
        %v10486 = vshll.u32 %v10273, 16
        %v10488 = vrot.slane %v10486, 5
        %v10489 = vsel %vm1393, %v10484, %v10488
        %v10491 = vshrl.u32 %v10274, 16
        %v10493 = vrot.slane %v10491, 4
        %v10494 = vshll.u32 %v10274, 16
        %v10496 = vrot.slane %v10494, 5
        %v10497 = vor.u32 %v10493, %v10496
        %v10498 = vrot.slane %v10497, 4
        %v10500 = vshll.u32 %v10275, 16
        %v10502 = vrot.slane %v10500, 5
        %v10503 = vsel %vm1393, %v10498, %v10502
        %v10504 = vshrl.u32 %v10275, 16
        %v10506 = vrot.slane %v10504, 4
        %v10507 = vor.u32 %v10506, %v10502
        %v10508 = vrot.slane %v10507, 4
        %v10510 = vshll.u32 %v10276, 16
        %v10512 = vrot.slane %v10510, 5
        %v10513 = vsel %vm1393, %v10508, %v10512
        %v10515 = vshrl.u32 %v10277, 16
        %v10517 = vrot.slane %v10515, 4
        %v10518 = vshll.u32 %v10277, 16
        %v10520 = vrot.slane %v10518, 5
        %v10521 = vor.u32 %v10517, %v10520
        %v10522 = vrot.slane %v10521, 4
        %v10524 = vshll.u32 %v10278, 16
        %v10526 = vrot.slane %v10524, 5
        %v10527 = vsel %vm1393, %v10522, %v10526
        %v10528 = vshrl.u32 %v10278, 16
        %v10530 = vrot.slane %v10528, 4
        %v10531 = vor.u32 %v10530, %v10526
        %v10532 = vrot.slane %v10531, 4
        %v10534 = vshll.u32 %v10279, 16
        %v10536 = vrot.slane %v10534, 5
        %v10537 = vsel %vm1393, %v10532, %v10536
        %v10539 = vshrl.u32 %v10280, 16
        %v10541 = vrot.slane %v10539, 4
        %v10542 = vshll.u32 %v10280, 16
        %v10544 = vrot.slane %v10542, 5
        %v10545 = vor.u32 %v10541, %v10544
        %v10546 = vrot.slane %v10545, 4
        %v10548 = vshll.u32 %v10281, 16
        %v10550 = vrot.slane %v10548, 5
        %v10551 = vsel %vm1393, %v10546, %v10550
        %v10552 = vshrl.u32 %v10281, 16
        %v10554 = vrot.slane %v10552, 4
        %v10555 = vor.u32 %v10554, %v10550
        %v10556 = vrot.slane %v10555, 4
        %v10558 = vshll.u32 %v10282, 16
        %v10560 = vrot.slane %v10558, 5
        %v10561 = vsel %vm1393, %v10556, %v10560
        %v10563 = vshrl.u32 %v10283, 16
        %v10565 = vrot.slane %v10563, 4
        %v10566 = vshll.u32 %v10283, 16
        %v10568 = vrot.slane %v10566, 5
        %v10569 = vor.u32 %v10565, %v10568
        %v10570 = vrot.slane %v10569, 4
        %v10572 = vshll.u32 %v10284, 16
        %v10574 = vrot.slane %v10572, 5
        %v10575 = vsel %vm1393, %v10570, %v10574
        %v10576 = vshrl.u32 %v10284, 16
        %v10578 = vrot.slane %v10576, 4
        %v10579 = vor.u32 %v10578, %v10574
        %v10580 = vrot.slane %v10579, 4
        %v10582 = vshll.u32 %v10285, 16
        %v10584 = vrot.slane %v10582, 5
        %v10585 = vsel %vm1393, %v10580, %v10584
        %v10587 = vshrl.u32 %v10286, 16
        %v10589 = vrot.slane %v10587, 4
        %v10590 = vshll.u32 %v10286, 16
        %v10592 = vrot.slane %v10590, 5
        %v10593 = vor.u32 %v10589, %v10592
        %v10594 = vrot.slane %v10593, 4
        %v10596 = vshll.u32 %v10287, 16
        %v10598 = vrot.slane %v10596, 5
        %v10599 = vsel %vm1393, %v10594, %v10598
        %v10600 = vshrl.u32 %v10287, 16
        %v10602 = vrot.slane %v10600, 4
        %v10603 = vor.u32 %v10602, %v10598
        %v10604 = vrot.slane %v10603, 4
        %v10606 = vshll.u32 %v10288, 16
        %v10608 = vrot.slane %v10606, 5
        %v10609 = vsel %vm1393, %v10604, %v10608
        %v10611 = vshrl.u32 %v10289, 16
        %v10613 = vrot.slane %v10611, 4
        %v10614 = vshll.u32 %v10289, 16
        %v10616 = vrot.slane %v10614, 5
        %v10617 = vor.u32 %v10613, %v10616
        %v10618 = vrot.slane %v10617, 4
        %v10620 = vshll.u32 %v10290, 16
        %v10622 = vrot.slane %v10620, 5
        %v10623 = vsel %vm1393, %v10618, %v10622
        %v10624 = vshrl.u32 %v10290, 16
        %v10626 = vrot.slane %v10624, 4
        %v10627 = vor.u32 %v10626, %v10622
        %v10628 = vrot.slane %v10627, 4
        %v10630 = vshll.u32 %v10291, 16
        %v10632 = vrot.slane %v10630, 5
        %v10633 = vsel %vm1393, %v10628, %v10632
        %v10635 = vshrl.u32 %v10292, 16
        %v10637 = vrot.slane %v10635, 4
        %v10638 = vshll.u32 %v10292, 16
        %v10640 = vrot.slane %v10638, 5
        %v10641 = vor.u32 %v10637, %v10640
        %v10642 = vrot.slane %v10641, 4
        %v10644 = vshll.u32 %v10293, 16
        %v10646 = vrot.slane %v10644, 5
        %v10647 = vsel %vm1393, %v10642, %v10646
        %v10648 = vshrl.u32 %v10293, 16
        %v10650 = vrot.slane %v10648, 4
        %v10651 = vor.u32 %v10650, %v10646
        %v10652 = vrot.slane %v10651, 4
        %v10654 = vshll.u32 %v10294, 16
        %v10656 = vrot.slane %v10654, 5
        %v10657 = vsel %vm1393, %v10652, %v10656
        %v10659 = vshrl.u32 %v10295, 16
        %v10661 = vrot.slane %v10659, 4
        %v10662 = vshll.u32 %v10295, 16
        %v10664 = vrot.slane %v10662, 5
        %v10665 = vor.u32 %v10661, %v10664
        %v10666 = vrot.slane %v10665, 4
        %v10668 = vshll.u32 %v10296, 16
        %v10670 = vrot.slane %v10668, 5
        %v10671 = vsel %vm1393, %v10666, %v10670
        %v10672 = vshrl.u32 %v10296, 16
        %v10674 = vrot.slane %v10672, 4
        %v10675 = vor.u32 %v10674, %v10670
        %v10676 = vrot.slane %v10675, 4
        %v10678 = vshll.u32 %v10297, 16
        %v10680 = vrot.slane %v10678, 5
        %v10681 = vsel %vm1393, %v10676, %v10680
        %s10682 = scalar_lea.vmem [#allocation3], 448
        %v10683 = vld [vmem:[%s10682] sm:$0xf]
        %v10684 = vld [vmem:[%s10682 + $0x4] sm:$0xf]
        %v10685 = vld [vmem:[%s10682 + $0x8] sm:$0xf]
        %v10686 = vld [vmem:[%s10682 + $0xc] sm:$0xf]
        %v10687 = vld [vmem:[%s10682 + $0x10] sm:$0xf]
        %v10688 = vld [vmem:[%s10682 + $0x14] sm:$0xf]
        %v10689 = vld [vmem:[%s10682 + $0x18] sm:$0xf]
        %v10690 = vld [vmem:[%s10682 + $0x1c] sm:$0xf]
        %v10691 = vld [vmem:[%s10682 + $0x20] sm:$0xf]
        %v10692 = vld [vmem:[%s10682 + $0x24] sm:$0xf]
        %v10693 = vld [vmem:[%s10682 + $0x28] sm:$0xf]
        %v10694 = vld [vmem:[%s10682 + $0x2c] sm:$0xf]
        %v10695 = vld [vmem:[%s10682 + $0x30] sm:$0xf]
        %v10696 = vld [vmem:[%s10682 + $0x34] sm:$0xf]
        %v10697 = vld [vmem:[%s10682 + $0x38] sm:$0xf]
        %v10698 = vld [vmem:[%s10682 + $0x3c] sm:$0xf]
        %v10699 = vunpack.c.l.b16 %v10311
        %v10700 = vunpack.c.l.b16 %v10321
        %v10701 = vunpack.c.l.b16 %v10335
        %v10702 = vunpack.c.l.b16 %v10345
        %v10703 = vunpack.c.l.b16 %v10359
        %v10704 = vunpack.c.l.b16 %v10369
        %v10705 = vunpack.c.l.b16 %v10383
        %v10706 = vunpack.c.l.b16 %v10393
        %v10707 = vunpack.c.l.b16 %v10407
        %v10708 = vunpack.c.l.b16 %v10417
        %v10709 = vunpack.c.l.b16 %v10431
        %v10710 = vunpack.c.l.b16 %v10441
        %v10711 = vunpack.c.l.b16 %v10455
        %v10712 = vunpack.c.l.b16 %v10465
        %v10713 = vunpack.c.l.b16 %v10479
        %v10714 = vunpack.c.l.b16 %v10489
        %v10715 = vunpack.c.l.b16 %v10503
        %v10716 = vunpack.c.l.b16 %v10513
        %v10717 = vunpack.c.l.b16 %v10527
        %v10718 = vunpack.c.l.b16 %v10537
        %v10719 = vunpack.c.l.b16 %v10551
        %v10720 = vunpack.c.l.b16 %v10561
        %v10721 = vunpack.c.l.b16 %v10575
        %v10722 = vunpack.c.l.b16 %v10585
        %v10723 = vunpack.c.l.b16 %v10599
        %v10724 = vunpack.c.l.b16 %v10609
        %v10725 = vunpack.c.l.b16 %v10623
        %v10726 = vunpack.c.l.b16 %v10633
        %v10727 = vunpack.c.l.b16 %v10647
        %v10728 = vunpack.c.l.b16 %v10657
        %v10729 = vunpack.c.l.b16 %v10671
        %v10730 = vunpack.c.l.b16 %v10681
        %v10731 = vpack.c.b16 %v10700, %v10699
        %v10732 = vpack.c.b16 %v10702, %v10701
        %v10733 = vpack.c.b16 %v10704, %v10703
        %v10734 = vpack.c.b16 %v10706, %v10705
        %v10735 = vpack.c.b16 %v10708, %v10707
        %v10736 = vpack.c.b16 %v10710, %v10709
        %v10737 = vpack.c.b16 %v10712, %v10711
        %v10738 = vpack.c.b16 %v10714, %v10713
        %v10739 = vpack.c.b16 %v10716, %v10715
        %v10740 = vpack.c.b16 %v10718, %v10717
        %v10741 = vpack.c.b16 %v10720, %v10719
        %v10742 = vpack.c.b16 %v10722, %v10721
        %v10743 = vpack.c.b16 %v10724, %v10723
        %v10744 = vpack.c.b16 %v10726, %v10725
        %v10745 = vpack.c.b16 %v10728, %v10727
        %v10746 = vpack.c.b16 %v10730, %v10729
        %v10779 = vunpack.c.l.b16 %v10683
        %v10780 = vunpack.c.l.b16 %v10684
        %v10781 = vunpack.c.l.b16 %v10685
        %v10782 = vunpack.c.l.b16 %v10686
        %v10783 = vunpack.c.l.b16 %v10687
        %v10784 = vunpack.c.l.b16 %v10688
        %v10785 = vunpack.c.l.b16 %v10689
        %v10786 = vunpack.c.l.b16 %v10690
        %v10787 = vunpack.c.l.b16 %v10691
        %v10788 = vunpack.c.l.b16 %v10692
        %v10789 = vunpack.c.l.b16 %v10693
        %v10790 = vunpack.c.l.b16 %v10694
        %v10791 = vunpack.c.l.b16 %v10695
        %v10792 = vunpack.c.l.b16 %v10696
        %v10793 = vunpack.c.l.b16 %v10697
        %v10794 = vunpack.c.l.b16 %v10698
        %v10795 = vpack.c.b16 %v10780, %v10779
        %v10796 = vpack.c.b16 %v10782, %v10781
        %v10797 = vpack.c.b16 %v10784, %v10783
        %v10798 = vpack.c.b16 %v10786, %v10785
        %v10799 = vpack.c.b16 %v10788, %v10787
        %v10800 = vpack.c.b16 %v10790, %v10789
        %v10801 = vpack.c.b16 %v10792, %v10791
        %v10802 = vpack.c.b16 %v10794, %v10793
        %10811 = vmatprep.subr.bf16.mxu0 0
        %10812 = vmatpush1.bf16.msra.mxu0 %v10802
        %10813 = vmatprep.subr.bf16.mxu0 0
        %10814 = vmatpush1.bf16.msra.mxu0 %v10801
        %10815 = vmatprep.subr.bf16.mxu0 0
        %10816 = vmatpush1.bf16.msra.mxu0 %v10800
        %10817 = vmatprep.subr.bf16.mxu0 0
        %10818 = vmatpush1.bf16.msra.mxu0 %v10799
        %10819 = vmatprep.subr.bf16.mxu0 0
        %10820 = vmatpush1.bf16.msra.mxu0 %v10798
        %10821 = vmatprep.subr.bf16.mxu0 0
        %10822 = vmatpush1.bf16.msra.mxu0 %v10797
        %10823 = vmatprep.subr.bf16.mxu0 0
        %10824 = vmatpush1.bf16.msra.mxu0 %v10796
        %10825 = vmatprep.subr.bf16.mxu0 0
        %10826 = vmatpush1.bf16.msra.mxu0 %v10795
        %10827 = vmatprep.subr.bf16.mxu0 0
        %10828 = vmatpush2.bf16.msra.mxu0 0
        %10829 = vmatprep.subr.bf16.mxu0 0
        %10830 = vmatpush2.bf16.msra.mxu0 0
        %10831 = vmatprep.subr.bf16.mxu0 0
        %10832 = vmatpush2.bf16.msra.mxu0 0
        %10833 = vmatprep.subr.bf16.mxu0 0
        %10834 = vmatpush2.bf16.msra.mxu0 0
        %10835 = vmatprep.subr.bf16.mxu0 0
        %10836 = vmatpush2.bf16.msra.mxu0 0
        %10837 = vmatprep.subr.bf16.mxu0 0
        %10838 = vmatpush2.bf16.msra.mxu0 0
        %10839 = vmatprep.subr.bf16.mxu0 0
        %10840 = vmatpush2.bf16.msra.mxu0 0
        %10841 = vmatprep.subr.bf16.mxu0 0
        %10842 = vmatpush2.bf16.msra.mxu0 0
        %10843 = vmatprep.mubr.bf16.mxu0 0
        %10844 = vmatmul.mubr.bf16.gmra.mxu0 %v10731
        %v10845 = vpop.f32.mrf.mxu0
        %v10846 = vadd.f32 0.0, %v10845
        %v10847 = vpop.f32.mrf.mxu0
        %v10848 = vpop.f32.mrf.mxu0
        %v10849 = vadd.f32 0.0, %v10848
        %v10850 = vpop.f32.mrf.mxu0
        %10851 = vmatprep.mubr.bf16.mxu0 0
        %10852 = vmatmul.mubr.bf16.gmra.mxu0 %v10732
        %v10853 = vpop.f32.mrf.mxu0
        %v10854 = vadd.f32 0.0, %v10853
        %v10855 = vpop.f32.mrf.mxu0
        %v10856 = vpop.f32.mrf.mxu0
        %v10857 = vadd.f32 0.0, %v10856
        %v10858 = vpop.f32.mrf.mxu0
        %10859 = vmatprep.mubr.bf16.mxu0 0
        %10860 = vmatmul.mubr.bf16.gmra.mxu0 %v10733
        %v10861 = vpop.f32.mrf.mxu0
        %v10862 = vadd.f32 0.0, %v10861
        %v10863 = vpop.f32.mrf.mxu0
        %v10864 = vpop.f32.mrf.mxu0
        %v10865 = vadd.f32 0.0, %v10864
        %v10866 = vpop.f32.mrf.mxu0
        %10867 = vmatprep.mubr.bf16.mxu0 0
        %10868 = vmatmul.mubr.bf16.gmra.mxu0 %v10734
        %v10869 = vpop.f32.mrf.mxu0
        %v10870 = vadd.f32 0.0, %v10869
        %v10871 = vpop.f32.mrf.mxu0
        %v10872 = vpop.f32.mrf.mxu0
        %v10873 = vadd.f32 0.0, %v10872
        %v10874 = vpop.f32.mrf.mxu0
        %10875 = vmatprep.mubr.bf16.mxu0 0
        %10876 = vmatmul.mubr.bf16.gmra.mxu0 %v10735
        %v10877 = vpop.f32.mrf.mxu0
        %v10878 = vadd.f32 0.0, %v10877
        %v10879 = vpop.f32.mrf.mxu0
        %v10880 = vpop.f32.mrf.mxu0
        %v10881 = vadd.f32 0.0, %v10880
        %v10882 = vpop.f32.mrf.mxu0
        %10883 = vmatprep.mubr.bf16.mxu0 0
        %10884 = vmatmul.mubr.bf16.gmra.mxu0 %v10736
        %v10885 = vpop.f32.mrf.mxu0
        %v10886 = vadd.f32 0.0, %v10885
        %v10887 = vpop.f32.mrf.mxu0
        %v10888 = vpop.f32.mrf.mxu0
        %v10889 = vadd.f32 0.0, %v10888
        %v10890 = vpop.f32.mrf.mxu0
        %10891 = vmatprep.mubr.bf16.mxu0 0
        %10892 = vmatmul.mubr.bf16.gmra.mxu0 %v10737
        %v10893 = vpop.f32.mrf.mxu0
        %v10894 = vadd.f32 0.0, %v10893
        %v10895 = vpop.f32.mrf.mxu0
        %v10896 = vpop.f32.mrf.mxu0
        %v10897 = vadd.f32 0.0, %v10896
        %v10898 = vpop.f32.mrf.mxu0
        %10899 = vmatprep.mubr.bf16.mxu0 0
        %10900 = vmatmul.mubr.bf16.gmra.mxu0 %v10738
        %v10901 = vpop.f32.mrf.mxu0
        %v10902 = vadd.f32 0.0, %v10901
        %v10903 = vpop.f32.mrf.mxu0
        %v10904 = vpop.f32.mrf.mxu0
        %v10905 = vadd.f32 0.0, %v10904
        %v10906 = vpop.f32.mrf.mxu0
        %10907 = vmatprep.mubr.bf16.mxu0 0
        %10908 = vmatmul.mubr.bf16.gmra.mxu0 %v10739
        %v10909 = vpop.f32.mrf.mxu0
        %v10910 = vadd.f32 0.0, %v10909
        %v10911 = vpop.f32.mrf.mxu0
        %v10912 = vpop.f32.mrf.mxu0
        %v10913 = vadd.f32 0.0, %v10912
        %v10914 = vpop.f32.mrf.mxu0
        %10915 = vmatprep.mubr.bf16.mxu0 0
        %10916 = vmatmul.mubr.bf16.gmra.mxu0 %v10740
        %v10917 = vpop.f32.mrf.mxu0
        %v10918 = vadd.f32 0.0, %v10917
        %v10919 = vpop.f32.mrf.mxu0
        %v10920 = vpop.f32.mrf.mxu0
        %v10921 = vadd.f32 0.0, %v10920
        %v10922 = vpop.f32.mrf.mxu0
        %10923 = vmatprep.mubr.bf16.mxu0 0
        %10924 = vmatmul.mubr.bf16.gmra.mxu0 %v10741
        %v10925 = vpop.f32.mrf.mxu0
        %v10926 = vadd.f32 0.0, %v10925
        %v10927 = vpop.f32.mrf.mxu0
        %v10928 = vpop.f32.mrf.mxu0
        %v10929 = vadd.f32 0.0, %v10928
        %v10930 = vpop.f32.mrf.mxu0
        %10931 = vmatprep.mubr.bf16.mxu0 0
        %10932 = vmatmul.mubr.bf16.gmra.mxu0 %v10742
        %v10933 = vpop.f32.mrf.mxu0
        %v10934 = vadd.f32 0.0, %v10933
        %v10935 = vpop.f32.mrf.mxu0
        %v10936 = vpop.f32.mrf.mxu0
        %v10937 = vadd.f32 0.0, %v10936
        %v10938 = vpop.f32.mrf.mxu0
        %10939 = vmatprep.mubr.bf16.mxu0 0
        %10940 = vmatmul.mubr.bf16.gmra.mxu0 %v10743
        %v10941 = vpop.f32.mrf.mxu0
        %v10942 = vadd.f32 0.0, %v10941
        %v10943 = vpop.f32.mrf.mxu0
        %v10944 = vpop.f32.mrf.mxu0
        %v10945 = vadd.f32 0.0, %v10944
        %v10946 = vpop.f32.mrf.mxu0
        %10947 = vmatprep.mubr.bf16.mxu0 0
        %10948 = vmatmul.mubr.bf16.gmra.mxu0 %v10744
        %v10949 = vpop.f32.mrf.mxu0
        %v10950 = vadd.f32 0.0, %v10949
        %v10951 = vpop.f32.mrf.mxu0
        %v10952 = vpop.f32.mrf.mxu0
        %v10953 = vadd.f32 0.0, %v10952
        %v10954 = vpop.f32.mrf.mxu0
        %10955 = vmatprep.mubr.bf16.mxu0 0
        %10956 = vmatmul.mubr.bf16.gmra.mxu0 %v10745
        %v10957 = vpop.f32.mrf.mxu0
        %v10958 = vadd.f32 0.0, %v10957
        %v10959 = vpop.f32.mrf.mxu0
        %v10960 = vpop.f32.mrf.mxu0
        %v10961 = vadd.f32 0.0, %v10960
        %v10962 = vpop.f32.mrf.mxu0
        %10963 = vmatprep.mubr.bf16.mxu0 0
        %10964 = vmatmul.mubr.bf16.gmra.mxu0 %v10746
        %v10965 = vpop.f32.mrf.mxu0
        %v10966 = vadd.f32 0.0, %v10965
        %v10967 = vpop.f32.mrf.mxu0
        %v10968 = vpop.f32.mrf.mxu0
        %v10969 = vadd.f32 0.0, %v10968
        %v10970 = vpop.f32.mrf.mxu0
        %10971 = vdwg.mxu0
        %v10972 = vadd.f32 %v10218, %v10846
        %v10973 = vadd.f32 %v10219, %v10849
        %v10974 = vadd.f32 %v10220, %v10854
        %v10975 = vadd.f32 %v10221, %v10857
        %v10976 = vadd.f32 %v10222, %v10862
        %v10977 = vadd.f32 %v10223, %v10865
        %v10978 = vadd.f32 %v10224, %v10870
        %v10979 = vadd.f32 %v10225, %v10873
        %v10980 = vadd.f32 %v10226, %v10878
        %v10981 = vadd.f32 %v10227, %v10881
        %v10982 = vadd.f32 %v10228, %v10886
        %v10983 = vadd.f32 %v10229, %v10889
        %v10984 = vadd.f32 %v10230, %v10894
        %v10985 = vadd.f32 %v10231, %v10897
        %v10986 = vadd.f32 %v10232, %v10902
        %v10987 = vadd.f32 %v10233, %v10905
        %v10988 = vadd.f32 %v10234, %v10910
        %v10989 = vadd.f32 %v10235, %v10913
        %v10990 = vadd.f32 %v10236, %v10918
        %v10991 = vadd.f32 %v10237, %v10921
        %v10992 = vadd.f32 %v10238, %v10926
        %v10993 = vadd.f32 %v10239, %v10929
        %v10994 = vadd.f32 %v10240, %v10934
        %v10995 = vadd.f32 %v10241, %v10937
        %v10996 = vadd.f32 %v10242, %v10942
        %v10997 = vadd.f32 %v10243, %v10945
        %v10998 = vadd.f32 %v10244, %v10950
        %v10999 = vadd.f32 %v10245, %v10953
        %v11000 = vadd.f32 %v10246, %v10958
        %v11001 = vadd.f32 %v10247, %v10961
        %v11002 = vadd.f32 %v10248, %v10966
        %v11003 = vadd.f32 %v10249, %v10969
        %v11004 = vld [vmem:[%s4496] sm:$0xe]
        %v11005 = vld [vmem:[%s4496 + $0xc] sm:$0xe]
        %v11006 = vld [vmem:[%s4496 + $0x18] sm:$0xe]
        %v11007 = vld [vmem:[%s4496 + $0x24] sm:$0xe]
        %v11008 = vld [vmem:[%s4496 + $0x30] sm:$0xe]
        %v11009 = vld [vmem:[%s4496 + $0x3c] sm:$0xe]
        %v11010 = vld [vmem:[%s4496 + $0x48] sm:$0xe]
        %v11011 = vld [vmem:[%s4496 + $0x54] sm:$0xe]
        %v11012 = vld [vmem:[%s4496 + $0x60] sm:$0xe]
        %v11013 = vld [vmem:[%s4496 + $0x6c] sm:$0xe]
        %v11014 = vld [vmem:[%s4496 + $0x78] sm:$0xe]
        %v11015 = vld [vmem:[%s4496 + $0x84] sm:$0xe]
        %v11016 = vld [vmem:[%s4496 + $0x90] sm:$0xe]
        %v11017 = vld [vmem:[%s4496 + $0x9c] sm:$0xe]
        %v11018 = vld [vmem:[%s4496 + $0xa8] sm:$0xe]
        %v11019 = vld [vmem:[%s4496 + $0xb4] sm:$0xe]
        %v11068 = vrot.slane %v11004, 5
        %v11069 = vrot.slane %v11068, 4
        %v11070 = vrot.slane %v10251, 5
        %v11071 = vsel %vm2423, %v11069, %v11070
        %v11072 = vrot.slane %v11070, 4
        %v11073 = vrot.slane %v10252, 5
        %v11074 = vsel %vm2423, %v11072, %v11073
        %v11075 = vrot.slane %v11005, 5
        %v11076 = vrot.slane %v11075, 4
        %v11077 = vrot.slane %v10254, 5
        %v11078 = vsel %vm2423, %v11076, %v11077
        %v11079 = vrot.slane %v11077, 4
        %v11080 = vrot.slane %v10255, 5
        %v11081 = vsel %vm2423, %v11079, %v11080
        %v11082 = vrot.slane %v11006, 5
        %v11083 = vrot.slane %v11082, 4
        %v11084 = vrot.slane %v10257, 5
        %v11085 = vsel %vm2423, %v11083, %v11084
        %v11086 = vrot.slane %v11084, 4
        %v11087 = vrot.slane %v10258, 5
        %v11088 = vsel %vm2423, %v11086, %v11087
        %v11089 = vrot.slane %v11007, 5
        %v11090 = vrot.slane %v11089, 4
        %v11091 = vrot.slane %v10260, 5
        %v11092 = vsel %vm2423, %v11090, %v11091
        %v11093 = vrot.slane %v11091, 4
        %v11094 = vrot.slane %v10261, 5
        %v11095 = vsel %vm2423, %v11093, %v11094
        %v11096 = vrot.slane %v11008, 5
        %v11097 = vrot.slane %v11096, 4
        %v11098 = vrot.slane %v10263, 5
        %v11099 = vsel %vm2423, %v11097, %v11098
        %v11100 = vrot.slane %v11098, 4
        %v11101 = vrot.slane %v10264, 5
        %v11102 = vsel %vm2423, %v11100, %v11101
        %v11103 = vrot.slane %v11009, 5
        %v11104 = vrot.slane %v11103, 4
        %v11105 = vrot.slane %v10266, 5
        %v11106 = vsel %vm2423, %v11104, %v11105
        %v11107 = vrot.slane %v11105, 4
        %v11108 = vrot.slane %v10267, 5
        %v11109 = vsel %vm2423, %v11107, %v11108
        %v11110 = vrot.slane %v11010, 5
        %v11111 = vrot.slane %v11110, 4
        %v11112 = vrot.slane %v10269, 5
        %v11113 = vsel %vm2423, %v11111, %v11112
        %v11114 = vrot.slane %v11112, 4
        %v11115 = vrot.slane %v10270, 5
        %v11116 = vsel %vm2423, %v11114, %v11115
        %v11117 = vrot.slane %v11011, 5
        %v11118 = vrot.slane %v11117, 4
        %v11119 = vrot.slane %v10272, 5
        %v11120 = vsel %vm2423, %v11118, %v11119
        %v11121 = vrot.slane %v11119, 4
        %v11122 = vrot.slane %v10273, 5
        %v11123 = vsel %vm2423, %v11121, %v11122
        %v11124 = vrot.slane %v11012, 5
        %v11125 = vrot.slane %v11124, 4
        %v11126 = vrot.slane %v10275, 5
        %v11127 = vsel %vm2423, %v11125, %v11126
        %v11128 = vrot.slane %v11126, 4
        %v11129 = vrot.slane %v10276, 5
        %v11130 = vsel %vm2423, %v11128, %v11129
        %v11131 = vrot.slane %v11013, 5
        %v11132 = vrot.slane %v11131, 4
        %v11133 = vrot.slane %v10278, 5
        %v11134 = vsel %vm2423, %v11132, %v11133
        %v11135 = vrot.slane %v11133, 4
        %v11136 = vrot.slane %v10279, 5
        %v11137 = vsel %vm2423, %v11135, %v11136
        %v11138 = vrot.slane %v11014, 5
        %v11139 = vrot.slane %v11138, 4
        %v11140 = vrot.slane %v10281, 5
        %v11141 = vsel %vm2423, %v11139, %v11140
        %v11142 = vrot.slane %v11140, 4
        %v11143 = vrot.slane %v10282, 5
        %v11144 = vsel %vm2423, %v11142, %v11143
        %v11145 = vrot.slane %v11015, 5
        %v11146 = vrot.slane %v11145, 4
        %v11147 = vrot.slane %v10284, 5
        %v11148 = vsel %vm2423, %v11146, %v11147
        %v11149 = vrot.slane %v11147, 4
        %v11150 = vrot.slane %v10285, 5
        %v11151 = vsel %vm2423, %v11149, %v11150
        %v11152 = vrot.slane %v11016, 5
        %v11153 = vrot.slane %v11152, 4
        %v11154 = vrot.slane %v10287, 5
        %v11155 = vsel %vm2423, %v11153, %v11154
        %v11156 = vrot.slane %v11154, 4
        %v11157 = vrot.slane %v10288, 5
        %v11158 = vsel %vm2423, %v11156, %v11157
        %v11159 = vrot.slane %v11017, 5
        %v11160 = vrot.slane %v11159, 4
        %v11161 = vrot.slane %v10290, 5
        %v11162 = vsel %vm2423, %v11160, %v11161
        %v11163 = vrot.slane %v11161, 4
        %v11164 = vrot.slane %v10291, 5
        %v11165 = vsel %vm2423, %v11163, %v11164
        %v11166 = vrot.slane %v11018, 5
        %v11167 = vrot.slane %v11166, 4
        %v11168 = vrot.slane %v10293, 5
        %v11169 = vsel %vm2423, %v11167, %v11168
        %v11170 = vrot.slane %v11168, 4
        %v11171 = vrot.slane %v10294, 5
        %v11172 = vsel %vm2423, %v11170, %v11171
        %v11173 = vrot.slane %v11019, 5
        %v11174 = vrot.slane %v11173, 4
        %v11175 = vrot.slane %v10296, 5
        %v11176 = vsel %vm2423, %v11174, %v11175
        %v11177 = vrot.slane %v11175, 4
        %v11178 = vrot.slane %v10297, 5
        %v11179 = vsel %vm2423, %v11177, %v11178
        %s11180 = scalar_lea.vmem [#allocation3], 512
        %v11181 = vld [vmem:[%s11180] sm:$0xf]
        %v11182 = vld [vmem:[%s11180 + $0x4] sm:$0xf]
        %v11183 = vld [vmem:[%s11180 + $0x8] sm:$0xf]
        %v11184 = vld [vmem:[%s11180 + $0xc] sm:$0xf]
        %v11185 = vld [vmem:[%s11180 + $0x10] sm:$0xf]
        %v11186 = vld [vmem:[%s11180 + $0x14] sm:$0xf]
        %v11187 = vld [vmem:[%s11180 + $0x18] sm:$0xf]
        %v11188 = vld [vmem:[%s11180 + $0x1c] sm:$0xf]
        %v11189 = vld [vmem:[%s11180 + $0x20] sm:$0xf]
        %v11190 = vld [vmem:[%s11180 + $0x24] sm:$0xf]
        %v11191 = vld [vmem:[%s11180 + $0x28] sm:$0xf]
        %v11192 = vld [vmem:[%s11180 + $0x2c] sm:$0xf]
        %v11193 = vld [vmem:[%s11180 + $0x30] sm:$0xf]
        %v11194 = vld [vmem:[%s11180 + $0x34] sm:$0xf]
        %v11195 = vld [vmem:[%s11180 + $0x38] sm:$0xf]
        %v11196 = vld [vmem:[%s11180 + $0x3c] sm:$0xf]
        %v11197 = vunpack.c.l.b16 %v11071
        %v11198 = vunpack.c.l.b16 %v11074
        %v11199 = vunpack.c.l.b16 %v11078
        %v11200 = vunpack.c.l.b16 %v11081
        %v11201 = vunpack.c.l.b16 %v11085
        %v11202 = vunpack.c.l.b16 %v11088
        %v11203 = vunpack.c.l.b16 %v11092
        %v11204 = vunpack.c.l.b16 %v11095
        %v11205 = vunpack.c.l.b16 %v11099
        %v11206 = vunpack.c.l.b16 %v11102
        %v11207 = vunpack.c.l.b16 %v11106
        %v11208 = vunpack.c.l.b16 %v11109
        %v11209 = vunpack.c.l.b16 %v11113
        %v11210 = vunpack.c.l.b16 %v11116
        %v11211 = vunpack.c.l.b16 %v11120
        %v11212 = vunpack.c.l.b16 %v11123
        %v11213 = vunpack.c.l.b16 %v11127
        %v11214 = vunpack.c.l.b16 %v11130
        %v11215 = vunpack.c.l.b16 %v11134
        %v11216 = vunpack.c.l.b16 %v11137
        %v11217 = vunpack.c.l.b16 %v11141
        %v11218 = vunpack.c.l.b16 %v11144
        %v11219 = vunpack.c.l.b16 %v11148
        %v11220 = vunpack.c.l.b16 %v11151
        %v11221 = vunpack.c.l.b16 %v11155
        %v11222 = vunpack.c.l.b16 %v11158
        %v11223 = vunpack.c.l.b16 %v11162
        %v11224 = vunpack.c.l.b16 %v11165
        %v11225 = vunpack.c.l.b16 %v11169
        %v11226 = vunpack.c.l.b16 %v11172
        %v11227 = vunpack.c.l.b16 %v11176
        %v11228 = vunpack.c.l.b16 %v11179
        %v11229 = vpack.c.b16 %v11198, %v11197
        %v11230 = vpack.c.b16 %v11200, %v11199
        %v11231 = vpack.c.b16 %v11202, %v11201
        %v11232 = vpack.c.b16 %v11204, %v11203
        %v11233 = vpack.c.b16 %v11206, %v11205
        %v11234 = vpack.c.b16 %v11208, %v11207
        %v11235 = vpack.c.b16 %v11210, %v11209
        %v11236 = vpack.c.b16 %v11212, %v11211
        %v11237 = vpack.c.b16 %v11214, %v11213
        %v11238 = vpack.c.b16 %v11216, %v11215
        %v11239 = vpack.c.b16 %v11218, %v11217
        %v11240 = vpack.c.b16 %v11220, %v11219
        %v11241 = vpack.c.b16 %v11222, %v11221
        %v11242 = vpack.c.b16 %v11224, %v11223
        %v11243 = vpack.c.b16 %v11226, %v11225
        %v11244 = vpack.c.b16 %v11228, %v11227
        %v11277 = vunpack.c.l.b16 %v11181
        %v11278 = vunpack.c.l.b16 %v11182
        %v11279 = vunpack.c.l.b16 %v11183
        %v11280 = vunpack.c.l.b16 %v11184
        %v11281 = vunpack.c.l.b16 %v11185
        %v11282 = vunpack.c.l.b16 %v11186
        %v11283 = vunpack.c.l.b16 %v11187
        %v11284 = vunpack.c.l.b16 %v11188
        %v11285 = vunpack.c.l.b16 %v11189
        %v11286 = vunpack.c.l.b16 %v11190
        %v11287 = vunpack.c.l.b16 %v11191
        %v11288 = vunpack.c.l.b16 %v11192
        %v11289 = vunpack.c.l.b16 %v11193
        %v11290 = vunpack.c.l.b16 %v11194
        %v11291 = vunpack.c.l.b16 %v11195
        %v11292 = vunpack.c.l.b16 %v11196
        %v11293 = vpack.c.b16 %v11278, %v11277
        %v11294 = vpack.c.b16 %v11280, %v11279
        %v11295 = vpack.c.b16 %v11282, %v11281
        %v11296 = vpack.c.b16 %v11284, %v11283
        %v11297 = vpack.c.b16 %v11286, %v11285
        %v11298 = vpack.c.b16 %v11288, %v11287
        %v11299 = vpack.c.b16 %v11290, %v11289
        %v11300 = vpack.c.b16 %v11292, %v11291
        %11309 = vmatprep.subr.bf16.mxu0 0
        %11310 = vmatpush1.bf16.msra.mxu0 %v11300
        %11311 = vmatprep.subr.bf16.mxu0 0
        %11312 = vmatpush1.bf16.msra.mxu0 %v11299
        %11313 = vmatprep.subr.bf16.mxu0 0
        %11314 = vmatpush1.bf16.msra.mxu0 %v11298
        %11315 = vmatprep.subr.bf16.mxu0 0
        %11316 = vmatpush1.bf16.msra.mxu0 %v11297
        %11317 = vmatprep.subr.bf16.mxu0 0
        %11318 = vmatpush1.bf16.msra.mxu0 %v11296
        %11319 = vmatprep.subr.bf16.mxu0 0
        %11320 = vmatpush1.bf16.msra.mxu0 %v11295
        %11321 = vmatprep.subr.bf16.mxu0 0
        %11322 = vmatpush1.bf16.msra.mxu0 %v11294
        %11323 = vmatprep.subr.bf16.mxu0 0
        %11324 = vmatpush1.bf16.msra.mxu0 %v11293
        %11325 = vmatprep.subr.bf16.mxu0 0
        %11326 = vmatpush2.bf16.msra.mxu0 0
        %11327 = vmatprep.subr.bf16.mxu0 0
        %11328 = vmatpush2.bf16.msra.mxu0 0
        %11329 = vmatprep.subr.bf16.mxu0 0
        %11330 = vmatpush2.bf16.msra.mxu0 0
        %11331 = vmatprep.subr.bf16.mxu0 0
        %11332 = vmatpush2.bf16.msra.mxu0 0
        %11333 = vmatprep.subr.bf16.mxu0 0
        %11334 = vmatpush2.bf16.msra.mxu0 0
        %11335 = vmatprep.subr.bf16.mxu0 0
        %11336 = vmatpush2.bf16.msra.mxu0 0
        %11337 = vmatprep.subr.bf16.mxu0 0
        %11338 = vmatpush2.bf16.msra.mxu0 0
        %11339 = vmatprep.subr.bf16.mxu0 0
        %11340 = vmatpush2.bf16.msra.mxu0 0
        %11341 = vmatprep.mubr.bf16.mxu0 0
        %11342 = vmatmul.mubr.bf16.gmra.mxu0 %v11229
        %v11343 = vpop.f32.mrf.mxu0
        %v11344 = vadd.f32 0.0, %v11343
        %v11345 = vpop.f32.mrf.mxu0
        %v11346 = vpop.f32.mrf.mxu0
        %v11347 = vadd.f32 0.0, %v11346
        %v11348 = vpop.f32.mrf.mxu0
        %11349 = vmatprep.mubr.bf16.mxu0 0
        %11350 = vmatmul.mubr.bf16.gmra.mxu0 %v11230
        %v11351 = vpop.f32.mrf.mxu0
        %v11352 = vadd.f32 0.0, %v11351
        %v11353 = vpop.f32.mrf.mxu0
        %v11354 = vpop.f32.mrf.mxu0
        %v11355 = vadd.f32 0.0, %v11354
        %v11356 = vpop.f32.mrf.mxu0
        %11357 = vmatprep.mubr.bf16.mxu0 0
        %11358 = vmatmul.mubr.bf16.gmra.mxu0 %v11231
        %v11359 = vpop.f32.mrf.mxu0
        %v11360 = vadd.f32 0.0, %v11359
        %v11361 = vpop.f32.mrf.mxu0
        %v11362 = vpop.f32.mrf.mxu0
        %v11363 = vadd.f32 0.0, %v11362
        %v11364 = vpop.f32.mrf.mxu0
        %11365 = vmatprep.mubr.bf16.mxu0 0
        %11366 = vmatmul.mubr.bf16.gmra.mxu0 %v11232
        %v11367 = vpop.f32.mrf.mxu0
        %v11368 = vadd.f32 0.0, %v11367
        %v11369 = vpop.f32.mrf.mxu0
        %v11370 = vpop.f32.mrf.mxu0
        %v11371 = vadd.f32 0.0, %v11370
        %v11372 = vpop.f32.mrf.mxu0
        %11373 = vmatprep.mubr.bf16.mxu0 0
        %11374 = vmatmul.mubr.bf16.gmra.mxu0 %v11233
        %v11375 = vpop.f32.mrf.mxu0
        %v11376 = vadd.f32 0.0, %v11375
        %v11377 = vpop.f32.mrf.mxu0
        %v11378 = vpop.f32.mrf.mxu0
        %v11379 = vadd.f32 0.0, %v11378
        %v11380 = vpop.f32.mrf.mxu0
        %11381 = vmatprep.mubr.bf16.mxu0 0
        %11382 = vmatmul.mubr.bf16.gmra.mxu0 %v11234
        %v11383 = vpop.f32.mrf.mxu0
        %v11384 = vadd.f32 0.0, %v11383
        %v11385 = vpop.f32.mrf.mxu0
        %v11386 = vpop.f32.mrf.mxu0
        %v11387 = vadd.f32 0.0, %v11386
        %v11388 = vpop.f32.mrf.mxu0
        %11389 = vmatprep.mubr.bf16.mxu0 0
        %11390 = vmatmul.mubr.bf16.gmra.mxu0 %v11235
        %v11391 = vpop.f32.mrf.mxu0
        %v11392 = vadd.f32 0.0, %v11391
        %v11393 = vpop.f32.mrf.mxu0
        %v11394 = vpop.f32.mrf.mxu0
        %v11395 = vadd.f32 0.0, %v11394
        %v11396 = vpop.f32.mrf.mxu0
        %11397 = vmatprep.mubr.bf16.mxu0 0
        %11398 = vmatmul.mubr.bf16.gmra.mxu0 %v11236
        %v11399 = vpop.f32.mrf.mxu0
        %v11400 = vadd.f32 0.0, %v11399
        %v11401 = vpop.f32.mrf.mxu0
        %v11402 = vpop.f32.mrf.mxu0
        %v11403 = vadd.f32 0.0, %v11402
        %v11404 = vpop.f32.mrf.mxu0
        %11405 = vmatprep.mubr.bf16.mxu0 0
        %11406 = vmatmul.mubr.bf16.gmra.mxu0 %v11237
        %v11407 = vpop.f32.mrf.mxu0
        %v11408 = vadd.f32 0.0, %v11407
        %v11409 = vpop.f32.mrf.mxu0
        %v11410 = vpop.f32.mrf.mxu0
        %v11411 = vadd.f32 0.0, %v11410
        %v11412 = vpop.f32.mrf.mxu0
        %11413 = vmatprep.mubr.bf16.mxu0 0
        %11414 = vmatmul.mubr.bf16.gmra.mxu0 %v11238
        %v11415 = vpop.f32.mrf.mxu0
        %v11416 = vadd.f32 0.0, %v11415
        %v11417 = vpop.f32.mrf.mxu0
        %v11418 = vpop.f32.mrf.mxu0
        %v11419 = vadd.f32 0.0, %v11418
        %v11420 = vpop.f32.mrf.mxu0
        %11421 = vmatprep.mubr.bf16.mxu0 0
        %11422 = vmatmul.mubr.bf16.gmra.mxu0 %v11239
        %v11423 = vpop.f32.mrf.mxu0
        %v11424 = vadd.f32 0.0, %v11423
        %v11425 = vpop.f32.mrf.mxu0
        %v11426 = vpop.f32.mrf.mxu0
        %v11427 = vadd.f32 0.0, %v11426
        %v11428 = vpop.f32.mrf.mxu0
        %11429 = vmatprep.mubr.bf16.mxu0 0
        %11430 = vmatmul.mubr.bf16.gmra.mxu0 %v11240
        %v11431 = vpop.f32.mrf.mxu0
        %v11432 = vadd.f32 0.0, %v11431
        %v11433 = vpop.f32.mrf.mxu0
        %v11434 = vpop.f32.mrf.mxu0
        %v11435 = vadd.f32 0.0, %v11434
        %v11436 = vpop.f32.mrf.mxu0
        %11437 = vmatprep.mubr.bf16.mxu0 0
        %11438 = vmatmul.mubr.bf16.gmra.mxu0 %v11241
        %v11439 = vpop.f32.mrf.mxu0
        %v11440 = vadd.f32 0.0, %v11439
        %v11441 = vpop.f32.mrf.mxu0
        %v11442 = vpop.f32.mrf.mxu0
        %v11443 = vadd.f32 0.0, %v11442
        %v11444 = vpop.f32.mrf.mxu0
        %11445 = vmatprep.mubr.bf16.mxu0 0
        %11446 = vmatmul.mubr.bf16.gmra.mxu0 %v11242
        %v11447 = vpop.f32.mrf.mxu0
        %v11448 = vadd.f32 0.0, %v11447
        %v11449 = vpop.f32.mrf.mxu0
        %v11450 = vpop.f32.mrf.mxu0
        %v11451 = vadd.f32 0.0, %v11450
        %v11452 = vpop.f32.mrf.mxu0
        %11453 = vmatprep.mubr.bf16.mxu0 0
        %11454 = vmatmul.mubr.bf16.gmra.mxu0 %v11243
        %v11455 = vpop.f32.mrf.mxu0
        %v11456 = vadd.f32 0.0, %v11455
        %v11457 = vpop.f32.mrf.mxu0
        %v11458 = vpop.f32.mrf.mxu0
        %v11459 = vadd.f32 0.0, %v11458
        %v11460 = vpop.f32.mrf.mxu0
        %11461 = vmatprep.mubr.bf16.mxu0 0
        %11462 = vmatmul.mubr.bf16.gmra.mxu0 %v11244
        %v11463 = vpop.f32.mrf.mxu0
        %v11464 = vadd.f32 0.0, %v11463
        %v11465 = vpop.f32.mrf.mxu0
        %v11466 = vpop.f32.mrf.mxu0
        %v11467 = vadd.f32 0.0, %v11466
        %v11468 = vpop.f32.mrf.mxu0
        %11469 = vdwg.mxu0
        %v11470 = vadd.f32 %v10972, %v11344
        %v11471 = vadd.f32 %v10973, %v11347
        %v11472 = vadd.f32 %v10974, %v11352
        %v11473 = vadd.f32 %v10975, %v11355
        %v11474 = vadd.f32 %v10976, %v11360
        %v11475 = vadd.f32 %v10977, %v11363
        %v11476 = vadd.f32 %v10978, %v11368
        %v11477 = vadd.f32 %v10979, %v11371
        %v11478 = vadd.f32 %v10980, %v11376
        %v11479 = vadd.f32 %v10981, %v11379
        %v11480 = vadd.f32 %v10982, %v11384
        %v11481 = vadd.f32 %v10983, %v11387
        %v11482 = vadd.f32 %v10984, %v11392
        %v11483 = vadd.f32 %v10985, %v11395
        %v11484 = vadd.f32 %v10986, %v11400
        %v11485 = vadd.f32 %v10987, %v11403
        %v11486 = vadd.f32 %v10988, %v11408
        %v11487 = vadd.f32 %v10989, %v11411
        %v11488 = vadd.f32 %v10990, %v11416
        %v11489 = vadd.f32 %v10991, %v11419
        %v11490 = vadd.f32 %v10992, %v11424
        %v11491 = vadd.f32 %v10993, %v11427
        %v11492 = vadd.f32 %v10994, %v11432
        %v11493 = vadd.f32 %v10995, %v11435
        %v11494 = vadd.f32 %v10996, %v11440
        %v11495 = vadd.f32 %v10997, %v11443
        %v11496 = vadd.f32 %v10998, %v11448
        %v11497 = vadd.f32 %v10999, %v11451
        %v11498 = vadd.f32 %v11000, %v11456
        %v11499 = vadd.f32 %v11001, %v11459
        %v11500 = vadd.f32 %v11002, %v11464
        %v11501 = vadd.f32 %v11003, %v11467
        %v11502 = vld [vmem:[%s6] sm:$0x1]
        %v11504 = vlaneseq
        %v11505 = vshrl.u32 %v11504, 7
        %v11506 = vsub.s32 0, %v11505
        %v11507 = vrot.slane %v11502, %v11506
        %v11509 = vadd.f32 %v11470, %v11507
        %v11510 = vadd.f32 %v11471, %v11507
        %v11511 = vadd.f32 %v11472, %v11507
        %v11512 = vadd.f32 %v11473, %v11507
        %v11513 = vadd.f32 %v11474, %v11507
        %v11514 = vadd.f32 %v11475, %v11507
        %v11515 = vadd.f32 %v11476, %v11507
        %v11516 = vadd.f32 %v11477, %v11507
        %v11517 = vadd.f32 %v11478, %v11507
        %v11518 = vadd.f32 %v11479, %v11507
        %v11519 = vadd.f32 %v11480, %v11507
        %v11520 = vadd.f32 %v11481, %v11507
        %v11521 = vadd.f32 %v11482, %v11507
        %v11522 = vadd.f32 %v11483, %v11507
        %v11523 = vadd.f32 %v11484, %v11507
        %v11524 = vadd.f32 %v11485, %v11507
        %v11525 = vadd.f32 %v11486, %v11507
        %v11526 = vadd.f32 %v11487, %v11507
        %v11527 = vadd.f32 %v11488, %v11507
        %v11528 = vadd.f32 %v11489, %v11507
        %v11529 = vadd.f32 %v11490, %v11507
        %v11530 = vadd.f32 %v11491, %v11507
        %v11531 = vadd.f32 %v11492, %v11507
        %v11532 = vadd.f32 %v11493, %v11507
        %v11533 = vadd.f32 %v11494, %v11507
        %v11534 = vadd.f32 %v11495, %v11507
        %v11535 = vadd.f32 %v11496, %v11507
        %v11536 = vadd.f32 %v11497, %v11507
        %v11537 = vadd.f32 %v11498, %v11507
        %v11538 = vadd.f32 %v11499, %v11507
        %v11539 = vadd.f32 %v11500, %v11507
        %v11540 = vadd.f32 %v11501, %v11507
        %v11541 = vadd.f32 %v11509, %v610
        %v11542 = vadd.f32 %v11510, %v613
        %v11543 = vadd.f32 %v11511, %v618
        %v11544 = vadd.f32 %v11512, %v621
        %v11545 = vadd.f32 %v11513, %v626
        %v11546 = vadd.f32 %v11514, %v629
        %v11547 = vadd.f32 %v11515, %v634
        %v11548 = vadd.f32 %v11516, %v637
        %v11549 = vadd.f32 %v11517, %v642
        %v11550 = vadd.f32 %v11518, %v645
        %v11551 = vadd.f32 %v11519, %v650
        %v11552 = vadd.f32 %v11520, %v653
        %v11553 = vadd.f32 %v11521, %v658
        %v11554 = vadd.f32 %v11522, %v661
        %v11555 = vadd.f32 %v11523, %v666
        %v11556 = vadd.f32 %v11524, %v669
        %v11557 = vadd.f32 %v11525, %v674
        %v11558 = vadd.f32 %v11526, %v677
        %v11559 = vadd.f32 %v11527, %v682
        %v11560 = vadd.f32 %v11528, %v685
        %v11561 = vadd.f32 %v11529, %v690
        %v11562 = vadd.f32 %v11530, %v693
        %v11563 = vadd.f32 %v11531, %v698
        %v11564 = vadd.f32 %v11532, %v701
        %v11565 = vadd.f32 %v11533, %v706
        %v11566 = vadd.f32 %v11534, %v709
        %v11567 = vadd.f32 %v11535, %v714
        %v11568 = vadd.f32 %v11536, %v717
        %v11569 = vadd.f32 %v11537, %v722
        %v11570 = vadd.f32 %v11538, %v725
        %v11571 = vadd.f32 %v11539, %v730
        %v11572 = vadd.f32 %v11540, %v733
        %v11573 = vpack.c.bf16 %v11542, %v11541
        %v11574 = vpack.c.bf16 %v11544, %v11543
        %v11575 = vpack.c.bf16 %v11546, %v11545
        %v11576 = vpack.c.bf16 %v11548, %v11547
        %v11577 = vpack.c.bf16 %v11550, %v11549
        %v11578 = vpack.c.bf16 %v11552, %v11551
        %v11579 = vpack.c.bf16 %v11554, %v11553
        %v11580 = vpack.c.bf16 %v11556, %v11555
        %v11581 = vpack.c.bf16 %v11558, %v11557
        %v11582 = vpack.c.bf16 %v11560, %v11559
        %v11583 = vpack.c.bf16 %v11562, %v11561
        %v11584 = vpack.c.bf16 %v11564, %v11563
        %v11585 = vpack.c.bf16 %v11566, %v11565
        %v11586 = vpack.c.bf16 %v11568, %v11567
        %v11587 = vpack.c.bf16 %v11570, %v11569
        %v11588 = vpack.c.bf16 %v11572, %v11571
        %v11589 = vld [vmem:[%s7] sm:$0xf]
        %v11590 = vld [vmem:[%s7 + $0x4] sm:$0xf]
        %v11591 = vld [vmem:[%s7 + $0x8] sm:$0xf]
        %v11592 = vld [vmem:[%s7 + $0xc] sm:$0xf]
        %v11593 = vld [vmem:[%s7 + $0x10] sm:$0xf]
        %v11594 = vld [vmem:[%s7 + $0x14] sm:$0xf]
        %v11595 = vld [vmem:[%s7 + $0x18] sm:$0xf]
        %v11596 = vld [vmem:[%s7 + $0x1c] sm:$0xf]
        %v11597 = vld [vmem:[%s7 + $0x20] sm:$0xf]
        %v11598 = vld [vmem:[%s7 + $0x24] sm:$0xf]
        %v11599 = vld [vmem:[%s7 + $0x28] sm:$0xf]
        %v11600 = vld [vmem:[%s7 + $0x2c] sm:$0xf]
        %v11601 = vld [vmem:[%s7 + $0x30] sm:$0xf]
        %v11602 = vld [vmem:[%s7 + $0x34] sm:$0xf]
        %v11603 = vld [vmem:[%s7 + $0x38] sm:$0xf]
        %v11604 = vld [vmem:[%s7 + $0x3c] sm:$0xf]
        %v11605 = vld [vmem:[%s8] sm:$0xf]
        %v11606 = vld [vmem:[%s8 + $0x4] sm:$0xf]
        %v11607 = vld [vmem:[%s8 + $0x8] sm:$0xf]
        %v11608 = vld [vmem:[%s8 + $0xc] sm:$0xf]
        %v11609 = vld [vmem:[%s8 + $0x10] sm:$0xf]
        %v11610 = vld [vmem:[%s8 + $0x14] sm:$0xf]
        %v11611 = vld [vmem:[%s8 + $0x18] sm:$0xf]
        %v11612 = vld [vmem:[%s8 + $0x1c] sm:$0xf]
        %v11613 = vld [vmem:[%s8 + $0x20] sm:$0xf]
        %v11614 = vld [vmem:[%s8 + $0x24] sm:$0xf]
        %v11615 = vld [vmem:[%s8 + $0x28] sm:$0xf]
        %v11616 = vld [vmem:[%s8 + $0x2c] sm:$0xf]
        %v11617 = vld [vmem:[%s8 + $0x30] sm:$0xf]
        %v11618 = vld [vmem:[%s8 + $0x34] sm:$0xf]
        %v11619 = vld [vmem:[%s8 + $0x38] sm:$0xf]
        %v11620 = vld [vmem:[%s8 + $0x3c] sm:$0xf]
        %v11637 = vunpack.c.l.b16 %v11605
        %v11638 = vunpack.c.l.b16 %v11606
        %v11639 = vunpack.c.l.b16 %v11607
        %v11640 = vunpack.c.l.b16 %v11608
        %v11641 = vunpack.c.l.b16 %v11609
        %v11642 = vunpack.c.l.b16 %v11610
        %v11643 = vunpack.c.l.b16 %v11611
        %v11644 = vunpack.c.l.b16 %v11612
        %v11645 = vunpack.c.l.b16 %v11613
        %v11646 = vunpack.c.l.b16 %v11614
        %v11647 = vunpack.c.l.b16 %v11615
        %v11648 = vunpack.c.l.b16 %v11616
        %v11649 = vunpack.c.l.b16 %v11617
        %v11650 = vunpack.c.l.b16 %v11618
        %v11651 = vunpack.c.l.b16 %v11619
        %v11652 = vunpack.c.l.b16 %v11620
        %v11653 = vpack.c.b16 %v11638, %v11637
        %v11654 = vpack.c.b16 %v11640, %v11639
        %v11655 = vpack.c.b16 %v11642, %v11641
        %v11656 = vpack.c.b16 %v11644, %v11643
        %v11657 = vpack.c.b16 %v11646, %v11645
        %v11658 = vpack.c.b16 %v11648, %v11647
        %v11659 = vpack.c.b16 %v11650, %v11649
        %v11660 = vpack.c.b16 %v11652, %v11651
        %11669 = vmatprep.subr.bf16.mxu0 0
        %11670 = vmatpush1.bf16.msra.mxu0 %v11660
        %11671 = vmatprep.subr.bf16.mxu0 0
        %11672 = vmatpush1.bf16.msra.mxu0 %v11659
        %11673 = vmatprep.subr.bf16.mxu0 0
        %11674 = vmatpush1.bf16.msra.mxu0 %v11658
        %11675 = vmatprep.subr.bf16.mxu0 0
        %11676 = vmatpush1.bf16.msra.mxu0 %v11657
        %11677 = vmatprep.subr.bf16.mxu0 0
        %11678 = vmatpush1.bf16.msra.mxu0 %v11656
        %11679 = vmatprep.subr.bf16.mxu0 0
        %11680 = vmatpush1.bf16.msra.mxu0 %v11655
        %11681 = vmatprep.subr.bf16.mxu0 0
        %11682 = vmatpush1.bf16.msra.mxu0 %v11654
        %11683 = vmatprep.subr.bf16.mxu0 0
        %11684 = vmatpush1.bf16.msra.mxu0 %v11653
        %11685 = vmatprep.subr.bf16.mxu0 0
        %11686 = vmatpush2.bf16.msra.mxu0 0
        %11687 = vmatprep.subr.bf16.mxu0 0
        %11688 = vmatpush2.bf16.msra.mxu0 0
        %11689 = vmatprep.subr.bf16.mxu0 0
        %11690 = vmatpush2.bf16.msra.mxu0 0
        %11691 = vmatprep.subr.bf16.mxu0 0
        %11692 = vmatpush2.bf16.msra.mxu0 0
        %11693 = vmatprep.subr.bf16.mxu0 0
        %11694 = vmatpush2.bf16.msra.mxu0 0
        %11695 = vmatprep.subr.bf16.mxu0 0
        %11696 = vmatpush2.bf16.msra.mxu0 0
        %11697 = vmatprep.subr.bf16.mxu0 0
        %11698 = vmatpush2.bf16.msra.mxu0 0
        %11699 = vmatprep.subr.bf16.mxu0 0
        %11700 = vmatpush2.bf16.msra.mxu0 0
        %11701 = vmatprep.mubr.bf16.mxu0 0
        %11702 = vmatmul.mubr.bf16.gmra.mxu0 %v11573
        %v11703 = vpop.f32.mrf.mxu0
        %v11704 = vadd.f32 0.0, %v11703
        %v11705 = vpop.f32.mrf.mxu0
        %v11706 = vpop.f32.mrf.mxu0
        %v11707 = vadd.f32 0.0, %v11706
        %v11708 = vpop.f32.mrf.mxu0
        %11709 = vmatprep.mubr.bf16.mxu0 0
        %11710 = vmatmul.mubr.bf16.gmra.mxu0 %v11574
        %v11711 = vpop.f32.mrf.mxu0
        %v11712 = vadd.f32 0.0, %v11711
        %v11713 = vpop.f32.mrf.mxu0
        %v11714 = vpop.f32.mrf.mxu0
        %v11715 = vadd.f32 0.0, %v11714
        %v11716 = vpop.f32.mrf.mxu0
        %11717 = vmatprep.mubr.bf16.mxu0 0
        %11718 = vmatmul.mubr.bf16.gmra.mxu0 %v11575
        %v11719 = vpop.f32.mrf.mxu0
        %v11720 = vadd.f32 0.0, %v11719
        %v11721 = vpop.f32.mrf.mxu0
        %v11722 = vpop.f32.mrf.mxu0
        %v11723 = vadd.f32 0.0, %v11722
        %v11724 = vpop.f32.mrf.mxu0
        %11725 = vmatprep.mubr.bf16.mxu0 0
        %11726 = vmatmul.mubr.bf16.gmra.mxu0 %v11576
        %v11727 = vpop.f32.mrf.mxu0
        %v11728 = vadd.f32 0.0, %v11727
        %v11729 = vpop.f32.mrf.mxu0
        %v11730 = vpop.f32.mrf.mxu0
        %v11731 = vadd.f32 0.0, %v11730
        %v11732 = vpop.f32.mrf.mxu0
        %11733 = vmatprep.mubr.bf16.mxu0 0
        %11734 = vmatmul.mubr.bf16.gmra.mxu0 %v11577
        %v11735 = vpop.f32.mrf.mxu0
        %v11736 = vadd.f32 0.0, %v11735
        %v11737 = vpop.f32.mrf.mxu0
        %v11738 = vpop.f32.mrf.mxu0
        %v11739 = vadd.f32 0.0, %v11738
        %v11740 = vpop.f32.mrf.mxu0
        %11741 = vmatprep.mubr.bf16.mxu0 0
        %11742 = vmatmul.mubr.bf16.gmra.mxu0 %v11578
        %v11743 = vpop.f32.mrf.mxu0
        %v11744 = vadd.f32 0.0, %v11743
        %v11745 = vpop.f32.mrf.mxu0
        %v11746 = vpop.f32.mrf.mxu0
        %v11747 = vadd.f32 0.0, %v11746
        %v11748 = vpop.f32.mrf.mxu0
        %11749 = vmatprep.mubr.bf16.mxu0 0
        %11750 = vmatmul.mubr.bf16.gmra.mxu0 %v11579
        %v11751 = vpop.f32.mrf.mxu0
        %v11752 = vadd.f32 0.0, %v11751
        %v11753 = vpop.f32.mrf.mxu0
        %v11754 = vpop.f32.mrf.mxu0
        %v11755 = vadd.f32 0.0, %v11754
        %v11756 = vpop.f32.mrf.mxu0
        %11757 = vmatprep.mubr.bf16.mxu0 0
        %11758 = vmatmul.mubr.bf16.gmra.mxu0 %v11580
        %v11759 = vpop.f32.mrf.mxu0
        %v11760 = vadd.f32 0.0, %v11759
        %v11761 = vpop.f32.mrf.mxu0
        %v11762 = vpop.f32.mrf.mxu0
        %v11763 = vadd.f32 0.0, %v11762
        %v11764 = vpop.f32.mrf.mxu0
        %11765 = vmatprep.mubr.bf16.mxu0 0
        %11766 = vmatmul.mubr.bf16.gmra.mxu0 %v11581
        %v11767 = vpop.f32.mrf.mxu0
        %v11768 = vadd.f32 0.0, %v11767
        %v11769 = vpop.f32.mrf.mxu0
        %v11770 = vpop.f32.mrf.mxu0
        %v11771 = vadd.f32 0.0, %v11770
        %v11772 = vpop.f32.mrf.mxu0
        %11773 = vmatprep.mubr.bf16.mxu0 0
        %11774 = vmatmul.mubr.bf16.gmra.mxu0 %v11582
        %v11775 = vpop.f32.mrf.mxu0
        %v11776 = vadd.f32 0.0, %v11775
        %v11777 = vpop.f32.mrf.mxu0
        %v11778 = vpop.f32.mrf.mxu0
        %v11779 = vadd.f32 0.0, %v11778
        %v11780 = vpop.f32.mrf.mxu0
        %11781 = vmatprep.mubr.bf16.mxu0 0
        %11782 = vmatmul.mubr.bf16.gmra.mxu0 %v11583
        %v11783 = vpop.f32.mrf.mxu0
        %v11784 = vadd.f32 0.0, %v11783
        %v11785 = vpop.f32.mrf.mxu0
        %v11786 = vpop.f32.mrf.mxu0
        %v11787 = vadd.f32 0.0, %v11786
        %v11788 = vpop.f32.mrf.mxu0
        %11789 = vmatprep.mubr.bf16.mxu0 0
        %11790 = vmatmul.mubr.bf16.gmra.mxu0 %v11584
        %v11791 = vpop.f32.mrf.mxu0
        %v11792 = vadd.f32 0.0, %v11791
        %v11793 = vpop.f32.mrf.mxu0
        %v11794 = vpop.f32.mrf.mxu0
        %v11795 = vadd.f32 0.0, %v11794
        %v11796 = vpop.f32.mrf.mxu0
        %11797 = vmatprep.mubr.bf16.mxu0 0
        %11798 = vmatmul.mubr.bf16.gmra.mxu0 %v11585
        %v11799 = vpop.f32.mrf.mxu0
        %v11800 = vadd.f32 0.0, %v11799
        %v11801 = vpop.f32.mrf.mxu0
        %v11802 = vpop.f32.mrf.mxu0
        %v11803 = vadd.f32 0.0, %v11802
        %v11804 = vpop.f32.mrf.mxu0
        %11805 = vmatprep.mubr.bf16.mxu0 0
        %11806 = vmatmul.mubr.bf16.gmra.mxu0 %v11586
        %v11807 = vpop.f32.mrf.mxu0
        %v11808 = vadd.f32 0.0, %v11807
        %v11809 = vpop.f32.mrf.mxu0
        %v11810 = vpop.f32.mrf.mxu0
        %v11811 = vadd.f32 0.0, %v11810
        %v11812 = vpop.f32.mrf.mxu0
        %11813 = vmatprep.mubr.bf16.mxu0 0
        %11814 = vmatmul.mubr.bf16.gmra.mxu0 %v11587
        %v11815 = vpop.f32.mrf.mxu0
        %v11816 = vadd.f32 0.0, %v11815
        %v11817 = vpop.f32.mrf.mxu0
        %v11818 = vpop.f32.mrf.mxu0
        %v11819 = vadd.f32 0.0, %v11818
        %v11820 = vpop.f32.mrf.mxu0
        %11821 = vmatprep.mubr.bf16.mxu0 0
        %11822 = vmatmul.mubr.bf16.gmra.mxu0 %v11588
        %v11823 = vpop.f32.mrf.mxu0
        %v11824 = vadd.f32 0.0, %v11823
        %v11825 = vpop.f32.mrf.mxu0
        %v11826 = vpop.f32.mrf.mxu0
        %v11827 = vadd.f32 0.0, %v11826
        %v11828 = vpop.f32.mrf.mxu0
        %11829 = vdwg.mxu0
        %v11846 = vunpack.c.l.b16 %v11589
        %v11847 = vunpack.c.l.b16 %v11590
        %v11848 = vunpack.c.l.b16 %v11591
        %v11849 = vunpack.c.l.b16 %v11592
        %v11850 = vunpack.c.l.b16 %v11593
        %v11851 = vunpack.c.l.b16 %v11594
        %v11852 = vunpack.c.l.b16 %v11595
        %v11853 = vunpack.c.l.b16 %v11596
        %v11854 = vunpack.c.l.b16 %v11597
        %v11855 = vunpack.c.l.b16 %v11598
        %v11856 = vunpack.c.l.b16 %v11599
        %v11857 = vunpack.c.l.b16 %v11600
        %v11858 = vunpack.c.l.b16 %v11601
        %v11859 = vunpack.c.l.b16 %v11602
        %v11860 = vunpack.c.l.b16 %v11603
        %v11861 = vunpack.c.l.b16 %v11604
        %v11862 = vpack.c.b16 %v11847, %v11846
        %v11863 = vpack.c.b16 %v11849, %v11848
        %v11864 = vpack.c.b16 %v11851, %v11850
        %v11865 = vpack.c.b16 %v11853, %v11852
        %v11866 = vpack.c.b16 %v11855, %v11854
        %v11867 = vpack.c.b16 %v11857, %v11856
        %v11868 = vpack.c.b16 %v11859, %v11858
        %v11869 = vpack.c.b16 %v11861, %v11860
        %11878 = vmatprep.subr.bf16.mxu0 0
        %11879 = vmatpush1.bf16.msra.mxu0 %v11869
        %11880 = vmatprep.subr.bf16.mxu0 0
        %11881 = vmatpush1.bf16.msra.mxu0 %v11868
        %11882 = vmatprep.subr.bf16.mxu0 0
        %11883 = vmatpush1.bf16.msra.mxu0 %v11867
        %11884 = vmatprep.subr.bf16.mxu0 0
        %11885 = vmatpush1.bf16.msra.mxu0 %v11866
        %11886 = vmatprep.subr.bf16.mxu0 0
        %11887 = vmatpush1.bf16.msra.mxu0 %v11865
        %11888 = vmatprep.subr.bf16.mxu0 0
        %11889 = vmatpush1.bf16.msra.mxu0 %v11864
        %11890 = vmatprep.subr.bf16.mxu0 0
        %11891 = vmatpush1.bf16.msra.mxu0 %v11863
        %11892 = vmatprep.subr.bf16.mxu0 0
        %11893 = vmatpush1.bf16.msra.mxu0 %v11862
        %11894 = vmatprep.subr.bf16.mxu0 0
        %11895 = vmatpush2.bf16.msra.mxu0 0
        %11896 = vmatprep.subr.bf16.mxu0 0
        %11897 = vmatpush2.bf16.msra.mxu0 0
        %11898 = vmatprep.subr.bf16.mxu0 0
        %11899 = vmatpush2.bf16.msra.mxu0 0
        %11900 = vmatprep.subr.bf16.mxu0 0
        %11901 = vmatpush2.bf16.msra.mxu0 0
        %11902 = vmatprep.subr.bf16.mxu0 0
        %11903 = vmatpush2.bf16.msra.mxu0 0
        %11904 = vmatprep.subr.bf16.mxu0 0
        %11905 = vmatpush2.bf16.msra.mxu0 0
        %11906 = vmatprep.subr.bf16.mxu0 0
        %11907 = vmatpush2.bf16.msra.mxu0 0
        %11908 = vmatprep.subr.bf16.mxu0 0
        %11909 = vmatpush2.bf16.msra.mxu0 0
        %11910 = vmatprep.mubr.bf16.mxu0 0
        %11911 = vmatmul.mubr.bf16.gmra.mxu0 %v736
        %v11912 = vpop.f32.mrf.mxu0
        %v11913 = vadd.f32 %v11704, %v11912
        %v11914 = vpop.f32.mrf.mxu0
        %v11915 = vpop.f32.mrf.mxu0
        %v11916 = vadd.f32 %v11707, %v11915
        %v11917 = vpop.f32.mrf.mxu0
        %11918 = vmatprep.mubr.bf16.mxu0 0
        %11919 = vmatmul.mubr.bf16.gmra.mxu0 %v737
        %v11920 = vpop.f32.mrf.mxu0
        %v11921 = vadd.f32 %v11712, %v11920
        %v11922 = vpop.f32.mrf.mxu0
        %v11923 = vpop.f32.mrf.mxu0
        %v11924 = vadd.f32 %v11715, %v11923
        %v11925 = vpop.f32.mrf.mxu0
        %11926 = vmatprep.mubr.bf16.mxu0 0
        %11927 = vmatmul.mubr.bf16.gmra.mxu0 %v738
        %v11928 = vpop.f32.mrf.mxu0
        %v11929 = vadd.f32 %v11720, %v11928
        %v11930 = vpop.f32.mrf.mxu0
        %v11931 = vpop.f32.mrf.mxu0
        %v11932 = vadd.f32 %v11723, %v11931
        %v11933 = vpop.f32.mrf.mxu0
        %11934 = vmatprep.mubr.bf16.mxu0 0
        %11935 = vmatmul.mubr.bf16.gmra.mxu0 %v739
        %v11936 = vpop.f32.mrf.mxu0
        %v11937 = vadd.f32 %v11728, %v11936
        %v11938 = vpop.f32.mrf.mxu0
        %v11939 = vpop.f32.mrf.mxu0
        %v11940 = vadd.f32 %v11731, %v11939
        %v11941 = vpop.f32.mrf.mxu0
        %11942 = vmatprep.mubr.bf16.mxu0 0
        %11943 = vmatmul.mubr.bf16.gmra.mxu0 %v740
        %v11944 = vpop.f32.mrf.mxu0
        %v11945 = vadd.f32 %v11736, %v11944
        %v11946 = vpop.f32.mrf.mxu0
        %v11947 = vpop.f32.mrf.mxu0
        %v11948 = vadd.f32 %v11739, %v11947
        %v11949 = vpop.f32.mrf.mxu0
        %11950 = vmatprep.mubr.bf16.mxu0 0
        %11951 = vmatmul.mubr.bf16.gmra.mxu0 %v741
        %v11952 = vpop.f32.mrf.mxu0
        %v11953 = vadd.f32 %v11744, %v11952
        %v11954 = vpop.f32.mrf.mxu0
        %v11955 = vpop.f32.mrf.mxu0
        %v11956 = vadd.f32 %v11747, %v11955
        %v11957 = vpop.f32.mrf.mxu0
        %11958 = vmatprep.mubr.bf16.mxu0 0
        %11959 = vmatmul.mubr.bf16.gmra.mxu0 %v742
        %v11960 = vpop.f32.mrf.mxu0
        %v11961 = vadd.f32 %v11752, %v11960
        %v11962 = vpop.f32.mrf.mxu0
        %v11963 = vpop.f32.mrf.mxu0
        %v11964 = vadd.f32 %v11755, %v11963
        %v11965 = vpop.f32.mrf.mxu0
        %11966 = vmatprep.mubr.bf16.mxu0 0
        %11967 = vmatmul.mubr.bf16.gmra.mxu0 %v743
        %v11968 = vpop.f32.mrf.mxu0
        %v11969 = vadd.f32 %v11760, %v11968
        %v11970 = vpop.f32.mrf.mxu0
        %v11971 = vpop.f32.mrf.mxu0
        %v11972 = vadd.f32 %v11763, %v11971
        %v11973 = vpop.f32.mrf.mxu0
        %11974 = vmatprep.mubr.bf16.mxu0 0
        %11975 = vmatmul.mubr.bf16.gmra.mxu0 %v744
        %v11976 = vpop.f32.mrf.mxu0
        %v11977 = vadd.f32 %v11768, %v11976
        %v11978 = vpop.f32.mrf.mxu0
        %v11979 = vpop.f32.mrf.mxu0
        %v11980 = vadd.f32 %v11771, %v11979
        %v11981 = vpop.f32.mrf.mxu0
        %11982 = vmatprep.mubr.bf16.mxu0 0
        %11983 = vmatmul.mubr.bf16.gmra.mxu0 %v745
        %v11984 = vpop.f32.mrf.mxu0
        %v11985 = vadd.f32 %v11776, %v11984
        %v11986 = vpop.f32.mrf.mxu0
        %v11987 = vpop.f32.mrf.mxu0
        %v11988 = vadd.f32 %v11779, %v11987
        %v11989 = vpop.f32.mrf.mxu0
        %11990 = vmatprep.mubr.bf16.mxu0 0
        %11991 = vmatmul.mubr.bf16.gmra.mxu0 %v746
        %v11992 = vpop.f32.mrf.mxu0
        %v11993 = vadd.f32 %v11784, %v11992
        %v11994 = vpop.f32.mrf.mxu0
        %v11995 = vpop.f32.mrf.mxu0
        %v11996 = vadd.f32 %v11787, %v11995
        %v11997 = vpop.f32.mrf.mxu0
        %11998 = vmatprep.mubr.bf16.mxu0 0
        %11999 = vmatmul.mubr.bf16.gmra.mxu0 %v747
        %v12000 = vpop.f32.mrf.mxu0
        %v12001 = vadd.f32 %v11792, %v12000
        %v12002 = vpop.f32.mrf.mxu0
        %v12003 = vpop.f32.mrf.mxu0
        %v12004 = vadd.f32 %v11795, %v12003
        %v12005 = vpop.f32.mrf.mxu0
        %12006 = vmatprep.mubr.bf16.mxu0 0
        %12007 = vmatmul.mubr.bf16.gmra.mxu0 %v748
        %v12008 = vpop.f32.mrf.mxu0
        %v12009 = vadd.f32 %v11800, %v12008
        %v12010 = vpop.f32.mrf.mxu0
        %v12011 = vpop.f32.mrf.mxu0
        %v12012 = vadd.f32 %v11803, %v12011
        %v12013 = vpop.f32.mrf.mxu0
        %12014 = vmatprep.mubr.bf16.mxu0 0
        %12015 = vmatmul.mubr.bf16.gmra.mxu0 %v749
        %v12016 = vpop.f32.mrf.mxu0
        %v12017 = vadd.f32 %v11808, %v12016
        %v12018 = vpop.f32.mrf.mxu0
        %v12019 = vpop.f32.mrf.mxu0
        %v12020 = vadd.f32 %v11811, %v12019
        %v12021 = vpop.f32.mrf.mxu0
        %12022 = vmatprep.mubr.bf16.mxu0 0
        %12023 = vmatmul.mubr.bf16.gmra.mxu0 %v750
        %v12024 = vpop.f32.mrf.mxu0
        %v12025 = vadd.f32 %v11816, %v12024
        %v12026 = vpop.f32.mrf.mxu0
        %v12027 = vpop.f32.mrf.mxu0
        %v12028 = vadd.f32 %v11819, %v12027
        %v12029 = vpop.f32.mrf.mxu0
        %12030 = vmatprep.mubr.bf16.mxu0 0
        %12031 = vmatmul.mubr.bf16.gmra.mxu0 %v751
        %v12032 = vpop.f32.mrf.mxu0
        %v12033 = vadd.f32 %v11824, %v12032
        %v12034 = vpop.f32.mrf.mxu0
        %v12035 = vpop.f32.mrf.mxu0
        %v12036 = vadd.f32 %v11827, %v12035
        %v12037 = vpop.f32.mrf.mxu0
        %12038 = vdwg.mxu0
        %v12039 = vld [vmem:[%s9] sm:$0x1]
        %v12041 = vlaneseq
        %v12042 = vshrl.u32 %v12041, 7
        %v12043 = vsub.s32 0, %v12042
        %v12044 = vrot.slane %v12039, %v12043
        %v12046 = vadd.f32 %v11913, %v12044
        %v12047 = vadd.f32 %v11916, %v12044
        %v12048 = vadd.f32 %v11921, %v12044
        %v12049 = vadd.f32 %v11924, %v12044
        %v12050 = vadd.f32 %v11929, %v12044
        %v12051 = vadd.f32 %v11932, %v12044
        %v12052 = vadd.f32 %v11937, %v12044
        %v12053 = vadd.f32 %v11940, %v12044
        %v12054 = vadd.f32 %v11945, %v12044
        %v12055 = vadd.f32 %v11948, %v12044
        %v12056 = vadd.f32 %v11953, %v12044
        %v12057 = vadd.f32 %v11956, %v12044
        %v12058 = vadd.f32 %v11961, %v12044
        %v12059 = vadd.f32 %v11964, %v12044
        %v12060 = vadd.f32 %v11969, %v12044
        %v12061 = vadd.f32 %v11972, %v12044
        %v12062 = vadd.f32 %v11977, %v12044
        %v12063 = vadd.f32 %v11980, %v12044
        %v12064 = vadd.f32 %v11985, %v12044
        %v12065 = vadd.f32 %v11988, %v12044
        %v12066 = vadd.f32 %v11993, %v12044
        %v12067 = vadd.f32 %v11996, %v12044
        %v12068 = vadd.f32 %v12001, %v12044
        %v12069 = vadd.f32 %v12004, %v12044
        %v12070 = vadd.f32 %v12009, %v12044
        %v12071 = vadd.f32 %v12012, %v12044
        %v12072 = vadd.f32 %v12017, %v12044
        %v12073 = vadd.f32 %v12020, %v12044
        %v12074 = vadd.f32 %v12025, %v12044
        %v12075 = vadd.f32 %v12028, %v12044
        %v12076 = vadd.f32 %v12033, %v12044
        %v12077 = vadd.f32 %v12036, %v12044
        %12078 = vst [vmem:[%s374] sm:$0xff] %v12046
        %12079 = vst [vmem:[%s374 + $0x8] sm:$0xff] %v12047
        %12080 = vst [vmem:[%s374 + $0x10] sm:$0xff] %v12048
        %12081 = vst [vmem:[%s374 + $0x18] sm:$0xff] %v12049
        %12082 = vst [vmem:[%s374 + $0x20] sm:$0xff] %v12050
        %12083 = vst [vmem:[%s374 + $0x28] sm:$0xff] %v12051
        %12084 = vst [vmem:[%s374 + $0x30] sm:$0xff] %v12052
        %12085 = vst [vmem:[%s374 + $0x38] sm:$0xff] %v12053
        %12086 = vst [vmem:[%s374 + $0x40] sm:$0xff] %v12054
        %12087 = vst [vmem:[%s374 + $0x48] sm:$0xff] %v12055
        %12088 = vst [vmem:[%s374 + $0x50] sm:$0xff] %v12056
        %12089 = vst [vmem:[%s374 + $0x58] sm:$0xff] %v12057
        %12090 = vst [vmem:[%s374 + $0x60] sm:$0xff] %v12058
        %12091 = vst [vmem:[%s374 + $0x68] sm:$0xff] %v12059
        %12092 = vst [vmem:[%s374 + $0x70] sm:$0xff] %v12060
        %12093 = vst [vmem:[%s374 + $0x78] sm:$0xff] %v12061
        %12094 = vst [vmem:[%s374 + $0x80] sm:$0xff] %v12062
        %12095 = vst [vmem:[%s374 + $0x88] sm:$0xff] %v12063
        %12096 = vst [vmem:[%s374 + $0x90] sm:$0xff] %v12064
        %12097 = vst [vmem:[%s374 + $0x98] sm:$0xff] %v12065
        %12098 = vst [vmem:[%s374 + $0xa0] sm:$0xff] %v12066
        %12099 = vst [vmem:[%s374 + $0xa8] sm:$0xff] %v12067
        %12100 = vst [vmem:[%s374 + $0xb0] sm:$0xff] %v12068
        %12101 = vst [vmem:[%s374 + $0xb8] sm:$0xff] %v12069
        %12102 = vst [vmem:[%s374 + $0xc0] sm:$0xff] %v12070
        %12103 = vst [vmem:[%s374 + $0xc8] sm:$0xff] %v12071
        %12104 = vst [vmem:[%s374 + $0xd0] sm:$0xff] %v12072
        %12105 = vst [vmem:[%s374 + $0xd8] sm:$0xff] %v12073
        %12106 = vst [vmem:[%s374 + $0xe0] sm:$0xff] %v12074
        %12107 = vst [vmem:[%s374 + $0xe8] sm:$0xff] %v12075
        %12108 = vst [vmem:[%s374 + $0xf0] sm:$0xff] %v12076
        %12109 = vst [vmem:[%s374 + $0xf8] sm:$0xff] %v12077
        %p12110 = scmp.lt.s32.totalorder %s22, 1
        %s12111 = scalar_select %p12110, %s22, 1
        %s12112 = smul.addr %s12111, 32
        %s12113 = smul.addr %s12112, 8
        %s12114 = scalar_lea.vmem %s10, %s12113
        // Predicated region
        $region65: #{rtmdet_csp_block.1} parent=59 // pred_check
          %p12115 = pneg %p255
        $region66: #{rtmdet_csp_block.1} parent=59 // pred_check_branch
          %12117 = sbr.rel (%p12115) target = $region68
        $region67: #{rtmdet_csp_block.1} parent=59 // pred_region
          _
        $region68: #{rtmdet_csp_block.1} parent=59 // pred_fallthru
          _
      $region60: #{rtmdet_csp_block.1} parent=5 // pred_fallthru
        _
      %p12118 = scmp.le.s32.totalorder 2, %s17
      // Predicated region
      $region69: #{rtmdet_csp_block.1} parent=5 // pred_check
        %p12119 = pneg %p12118
      $region70: #{rtmdet_csp_block.1} parent=5 // pred_check_branch
        %12121 = sbr.rel (%p12119) target = $region72
      $region71: #{rtmdet_csp_block.1} parent=5 // pred_region
        %s12122 = ssub.s32 %s17, 2
        // Predicated region
        $region73: #{rtmdet_csp_block.1} parent=71 // pred_check
          %p12123 = pneg %p261
        $region74: #{rtmdet_csp_block.1} parent=71 // pred_check_branch
          %12125 = sbr.rel (%p12123) target = $region76
        $region75: #{rtmdet_csp_block.1} parent=71 // pred_region
          %p12126 = scmp.lt.s32.totalorder %s23, 1
          %s12127 = scalar_select %p12126, %s23, 1
          %s12128 = smul.addr %s12127, 32
          %s12129 = smul.addr %s12128, 8
          %s12130 = scalar_lea.vmem %s10, %s12129
        $region76: #{rtmdet_csp_block.1} parent=71 // pred_fallthru
          _
      $region72: #{rtmdet_csp_block.1} parent=5 // pred_fallthru
        _
    $region6: #{rtmdet_csp_block.1} parent=1 // loop_footer
      %s21 = sadd.s32 1, %s17
    $region7: #{rtmdet_csp_block.1} parent=1 // loop_footer_branch
      %16 = sbr.rel target = $region3
    $region8: #{rtmdet_csp_block.1} parent=1 // loop_exit
      _
    %12131 = vsyncpa [#allocation4], 1
    %s12132 = scalar_lea.sflag [#allocation4], 1
    %12133 = vsyncpa %s12132, 1

</llo_original>
